<compile_context>
chip_gen: v5e
topology: v5e:2x2
jax: 0.10.0
libtpu: 0.0.40
codegen_flags: <defaults>
</compile_context>

<pallas_src>
import math

import jax
import jax.numpy as jnp
from jax.experimental import pallas as pl
from jax.experimental.pallas import tpu as pltpu


_EPS = 1e-8             # GVP _norm_no_nan eps
_LN_SCALAR_EPS = 1e-5   # torch.nn.LayerNorm default eps
_LN_VECTOR_EPS = 1e-4   # LayerNorm(..., eps=1e-4) used by every GVP LayerNorm here

_PARALLEL = pltpu.CompilerParams(dimension_semantics=("parallel",))


# ----------------------------------------------------------------------------
# In-kernel math (operates on values already loaded from refs)
# ----------------------------------------------------------------------------
def _dotf(a, b):
    return jnp.dot(a, b, preferred_element_type=jnp.float32)


def _gvp_core(s, v3, w, *, scalar_act, vector_act, vector_gate):
    """Geometric Vector Perceptron on flat rows.

    s: [R, Si], v3: [3, R, Vi].  The xyz planes are stacked into single
    [3R, *] MXU matmuls.  w: wh [Vi,H], ws_s [Si,So], ws_v [H,So], bs [1,So],
    wv [H,Vo], wsv [So,Vo], bsv [1,Vo].
    """
    r = s.shape[0]
    h = w["wh"].shape[1]
    vo = w["wv"].shape[1]
    vh = _dotf(v3.reshape(3 * r, v3.shape[-1]), w["wh"])          # [3R, H]
    vh3 = vh.reshape(3, r, h)
    vn = jnp.sqrt(jnp.maximum(
        vh3[0] * vh3[0] + vh3[1] * vh3[1] + vh3[2] * vh3[2], _EPS))
    s_lin = _dotf(s, w["ws_s"]) + _dotf(vn, w["ws_v"]) + w["bs"]
    v_out = _dotf(vh, w["wv"]).reshape(3, r, vo)
    if vector_gate:
        g_in = jax.nn.sigmoid(s_lin) if vector_act == "sigmoid" else s_lin
        gate = jax.nn.sigmoid(_dotf(g_in, w["wsv"]) + w["bsv"])
        v_out = v_out * gate[None]
    elif vector_act == "sigmoid":
        vno = jnp.sqrt(jnp.maximum(
            v_out[0] ** 2 + v_out[1] ** 2 + v_out[2] ** 2, _EPS))
        v_out = v_out * jax.nn.sigmoid(vno)[None]
    if scalar_act == "relu":
        s_lin = jnp.maximum(s_lin, 0.0)
    return s_lin, v_out


def _gvp_layer_norm(s, v3, gamma, beta):
    """GVP LayerNorm: nn.LayerNorm on scalars, masked RMS over channels on vectors."""
    mu = jnp.mean(s, axis=-1, keepdims=True)
    var = jnp.mean(jnp.square(s - mu), axis=-1, keepdims=True)
    s_out = (s - mu) * jax.lax.rsqrt(var + _LN_SCALAR_EPS) * gamma + beta
    vn2 = v3[0] * v3[0] + v3[1] * v3[1] + v3[2] * v3[2]           # [R, V]
    mask = (vn2 > 2.0 * _LN_VECTOR_EPS).astype(s.dtype)
    mean_vn = (jnp.sum(vn2 * mask, axis=-1, keepdims=True)
               / (_LN_VECTOR_EPS + jnp.sum(mask, axis=-1, keepdims=True)))
    inv = mask * jax.lax.rsqrt(mean_vn + _LN_VECTOR_EPS)          # [R, V]
    return s_out, v3 * inv[None]


# ----------------------------------------------------------------------------
# Pallas kernels
# ----------------------------------------------------------------------------
def _embed_kernel(s_ref, v_ref, wh, ws_s, ws_v, bs, wv, g, b, so_ref, vo_ref):
    """Fused GVP (no activations) + GVP LayerNorm on one tile of rows."""
    w = dict(wh=wh[...], ws_s=ws_s[...], ws_v=ws_v[...], bs=bs[...],
             wv=wv[...], wsv=None, bsv=None)
    s, v = _gvp_core(s_ref[...], v_ref[...], w,
                     scalar_act=None, vector_act=None, vector_gate=False)
    s, v = _gvp_layer_norm(s, v, g[...], b[...])
    so_ref[...] = s
    vo_ref[...] = v


def _make_message_kernel(k):
    """3 message GVPs + mean-over-K + residual + LayerNorm on one node tile."""

    def kernel(hs_ref, hv_ref, sj_ref, vj_ref, es_ref, ev_ref,
               # GVP #0 (gated, relu/sigmoid), concat folded into split weights
               wh0j, wh0e, wh0i, ws0j, ws0e, ws0i, ws0v, bs0, wv0, wsv0, bsv0,
               # GVP #1 (gated, relu/sigmoid)
               wh1, ws1s, ws1v, bs1, wv1, wsv1, bsv1,
               # GVP #2 (no gate, no activations)
               wh2, ws2s, ws2v, bs2, wv2,
               # LayerNorm
               g, b,
               so_ref, vo_ref):
        t = hs_ref.shape[0]
        kt = k * t
        h0 = wh0j.shape[1]
        so = ws0j.shape[1]
        vo = wv0.shape[1]

        hs = hs_ref[...]                  # [T, Sn]
        hv = hv_ref[...]                  # [3, T, Vn]
        s_j = sj_ref[...]                 # [K, T, Sn]
        v_j = vj_ref[...]                 # [3, K, T, Vn]
        e_s = es_ref[...]                 # [K, T, Se]
        e_v = ev_ref[...]                 # [3, K, T, Ve]

        # ---- GVP #0 on (cat[s_j, e_s, s_i], cat[v_j, e_v, v_i]); the concat
        # is folded into row-split weights and the centre-node (s_i, v_i)
        # contributions are computed once per node and broadcast over K.
        vh = (_dotf(v_j.reshape(3 * kt, -1), wh0j[...])
              + _dotf(e_v.reshape(3 * kt, -1), wh0e[...])).reshape(3, k, t, h0)
        vh = vh + _dotf(hv.reshape(3 * t, -1), wh0i[...]).reshape(3, 1, t, h0)
        vn = jnp.sqrt(jnp.maximum(
            vh[0] * vh[0] + vh[1] * vh[1] + vh[2] * vh[2], _EPS))      # [K,T,H0]
        s_lin = (_dotf(s_j.reshape(kt, -1), ws0j[...]).reshape(k, t, so)
                 + _dotf(e_s.reshape(kt, -1), ws0e[...]).reshape(k, t, so)
                 + _dotf(vn.reshape(kt, h0), ws0v[...]).reshape(k, t, so)
                 + _dotf(hs, ws0i[...]).reshape(1, t, so)
                 + bs0[...])
        v0 = _dotf(vh.reshape(3 * kt, h0), wv0[...]).reshape(3, k, t, vo)
        gate = jax.nn.sigmoid(
            _dotf(jax.nn.sigmoid(s_lin).reshape(kt, so), wsv0[...]) + bsv0[...])
        v0 = v0 * gate.reshape(1, k, t, vo)
        s0 = jnp.maximum(s_lin, 0.0)                                   # relu

        # ---- GVPs #1 and #2 on flat edge rows ----
        s_flat = s0.reshape(kt, so)
        v_flat = v0.reshape(3, kt, vo)
        w1 = dict(wh=wh1[...], ws_s=ws1s[...], ws_v=ws1v[...], bs=bs1[...],
                  wv=wv1[...], wsv=wsv1[...], bsv=bsv1[...])
        s_flat, v_flat = _gvp_core(s_flat, v_flat, w1, scalar_act="relu",
                                   vector_act="sigmoid", vector_gate=True)
        w2 = dict(wh=wh2[...], ws_s=ws2s[...], ws_v=ws2v[...], bs=bs2[...],
                  wv=wv2[...], wsv=None, bsv=None)
        s_flat, v_flat = _gvp_core(s_flat, v_flat, w2, scalar_act=None,
                                   vector_act=None, vector_gate=False)

        # ---- mean aggregation over the K neighbours (aggr="mean") ----
        s3 = s_flat.reshape(k, t, so)
        v4 = v_flat.reshape(3, k, t, vo)
        dh_s = s3[0]
        dh_v = v4[:, 0]
        for kk in range(1, k):
            dh_s = dh_s + s3[kk]
            dh_v = dh_v + v4[:, kk]
        inv_k = 1.0 / float(k)
        dh_s = dh_s * inv_k
        dh_v = dh_v * inv_k

        # ---- residual + LayerNorm ----
        # TODO(synk): dropout treated as identity (inference mode).
        s_out, v_out = _gvp_layer_norm(hs + dh_s, hv + dh_v, g[...], b[...])
        so_ref[...] = s_out
        vo_ref[...] = v_out

    return kernel


def _ff_kernel(hs_ref, hv_ref,
               wh0, ws0s, ws0v, bs0, wv0, wsv0, bsv0,
               wh1, ws1s, ws1v, bs1, wv1,
               g, b, so_ref, vo_ref):
    """Feed-forward: 2 GVPs + residual + LayerNorm on one node tile."""
    hs = hs_ref[...]
    hv = hv_ref[...]
    w0 = dict(wh=wh0[...], ws_s=ws0s[...], ws_v=ws0v[...], bs=bs0[...],
              wv=wv0[...], wsv=wsv0[...], bsv=bsv0[...])
    s, v = _gvp_core(hs, hv, w0, scalar_act="relu", vector_act="sigmoid",
                     vector_gate=True)
    w1 = dict(wh=wh1[...], ws_s=ws1s[...], ws_v=ws1v[...], bs=bs1[...],
              wv=wv1[...], wsv=None, bsv=None)
    s, v = _gvp_core(s, v, w1, scalar_act=None, vector_act=None,
                     vector_gate=False)
    s_out, v_out = _gvp_layer_norm(hs + s, hv + v, g[...], b[...])
    so_ref[...] = s_out
    vo_ref[...] = v_out


# ----------------------------------------------------------------------------
# BlockSpec helpers & Pallas wrappers
# ----------------------------------------------------------------------------
def _const_specs(arrays):
    return [pl.BlockSpec(a.shape, lambda *_, _nd=a.ndim: (0,) * _nd)
            for a in arrays]


def _row_spec(c, tile):
    return pl.BlockSpec((tile, c), lambda i: (i, 0))


def _vec_spec(c, tile):
    return pl.BlockSpec((3, tile, c), lambda i: (0, i, 0))


def _edge_spec(k, c, tile):
    return pl.BlockSpec((k, tile, c), lambda i: (0, i, 0))


def _edge_vec_spec(k, c, tile):
    return pl.BlockSpec((3, k, tile, c), lambda i: (0, 0, i, 0))


def gvp_embed_ln(s, v, gvp_p, ln_p, *, tile):
    """Fused GVP (no activations) + LayerNorm.  s: [R, Si], v: [3, R, Vi]."""
    r, si = s.shape
    vi = v.shape[-1]
    so = gvp_p["ws"].shape[1]
    vo = gvp_p["wv"].shape[1]
    weights = [gvp_p["wh"], gvp_p["ws"][:si], gvp_p["ws"][si:],
               gvp_p["bs"].reshape(1, so), gvp_p["wv"],
               ln_p["gamma"].reshape(1, so), ln_p["beta"].reshape(1, so)]
    return pl.pallas_call(
        _embed_kernel,
        grid=(r // tile,),
        in_specs=[_row_spec(si, tile), _vec_spec(vi, tile)] + _const_specs(weights),
        out_specs=(_row_spec(so, tile), _vec_spec(vo, tile)),
        out_shape=(jax.ShapeDtypeStruct((r, so), jnp.float32),
                   jax.ShapeDtypeStruct((3, r, vo), jnp.float32)),
        compiler_params=_PARALLEL,
    )(s, v, *weights)


def gvp_conv_message(hs, hv, sj, vj, es, ev, msg_ps, ln_p, *, tile):
    """Fused message path of one GVPConv layer.
    hs [N,Sn], hv [3,N,Vn], sj [K,N,Sn], vj [3,K,N,Vn], es [K,N,Se], ev [3,K,N,Ve]."""
    n, sn = hs.shape
    vn = hv.shape[-1]
    k, _, se = es.shape
    ve = ev.shape[-1]
    p0, p1, p2 = msg_ps
    wh0, ws0 = p0["wh"], p0["ws"]
    weights = [
        # GVP #0 — concat [v_j, e_v, v_i] / [s_j, e_s, s_i, vn] folded into splits
        wh0[:vn], wh0[vn:vn + ve], wh0[vn + ve:],
        ws0[:sn], ws0[sn:sn + se], ws0[sn + se:2 * sn + se], ws0[2 * sn + se:],
        p0["bs"].reshape(1, -1), p0["wv"], p0["wsv"], p0["bsv"].reshape(1, -1),
        # GVP #1
        p1["wh"], p1["ws"][:sn], p1["ws"][sn:], p1["bs"].reshape(1, -1),
        p1["wv"], p1["wsv"], p1["bsv"].reshape(1, -1),
        # GVP #2
        p2["wh"], p2["ws"][:sn], p2["ws"][sn:], p2["bs"].reshape(1, -1), p2["wv"],
        # LayerNorm
        ln_p["gamma"].reshape(1, -1), ln_p["beta"].reshape(1, -1),
    ]
    in_specs = [_row_spec(sn, tile), _vec_spec(vn, tile),
                _edge_spec(k, sn, tile), _edge_vec_spec(k, vn, tile),
                _edge_spec(k, se, tile), _edge_vec_spec(k, ve, tile)]
    in_specs += _const_specs(weights)
    return pl.pallas_call(
        _make_message_kernel(k),
        grid=(n // tile,),
        in_specs=in_specs,
        out_specs=(_row_spec(sn, tile), _vec_spec(vn, tile)),
        out_shape=(jax.ShapeDtypeStruct((n, sn), jnp.float32),
                   jax.ShapeDtypeStruct((3, n, vn), jnp.float32)),
        compiler_params=_PARALLEL,
    )(hs, hv, sj, vj, es, ev, *weights)


def gvp_feed_forward(hs, hv, ff_ps, ln_p, *, tile):
    """Fused feed-forward path (2 GVPs + residual + LayerNorm) of one layer."""
    n, sn = hs.shape
    vn = hv.shape[-1]
    p0, p1 = ff_ps
    s_mid = p0["ws"].shape[1]
    weights = [
        p0["wh"], p0["ws"][:sn], p0["ws"][sn:], p0["bs"].reshape(1, -1),
        p0["wv"], p0["wsv"], p0["bsv"].reshape(1, -1),
        p1["wh"], p1["ws"][:s_mid], p1["ws"][s_mid:], p1["bs"].reshape(1, -1),
        p1["wv"],
        ln_p["gamma"].reshape(1, -1), ln_p["beta"].reshape(1, -1),
    ]
    in_specs = [_row_spec(sn, tile), _vec_spec(vn, tile)] + _const_specs(weights)
    return pl.pallas_call(
        _ff_kernel,
        grid=(n // tile,),
        in_specs=in_specs,
        out_specs=(_row_spec(sn, tile), _vec_spec(vn, tile)),
        out_shape=(jax.ShapeDtypeStruct((n, sn), jnp.float32),
                   jax.ShapeDtypeStruct((3, n, vn), jnp.float32)),
        compiler_params=_PARALLEL,
    )(hs, hv, *weights)


# ----------------------------------------------------------------------------
# Tiling helpers
# ----------------------------------------------------------------------------
def _round_up(x, m):
    return ((x + m - 1) // m) * m


def _choose_tile(n_nodes, k, sn, vn, se, ve, max_tile=256,
                 vmem_budget=6 * 1024 * 1024):
    """Pick the node-tile: as large as possible (fewer grid steps, fat MXU M
    dimension) while the fused message kernel's per-step working set stays
    well under the scoped-VMEM budget (double buffering included)."""
    per_edge_row = 4 * (4 * sn + se + 12 * vn + 6 * ve + 64)    # rough f32 bytes
    per_node = k * per_edge_row + 4 * (8 * sn + 24 * vn)
    t = vmem_budget // max(per_node, 1)
    t = max(8, min(max_tile, (t // 8) * 8))
    return int(min(t, _round_up(n_nodes, 8)))


# ----------------------------------------------------------------------------
# Graph featurization (JAX glue, mirrors GVPInputFeaturizer)
# ----------------------------------------------------------------------------
def _normalize(x, axis=-1, eps=1e-8):
    return jnp.nan_to_num(
        x * jax.lax.rsqrt(jnp.sum(jnp.square(x), axis=axis, keepdims=True) + eps))


def _rbf(values, v_min, v_max, n_bins=16):
    centers = jnp.linspace(v_min, v_max, n_bins)
    std = (v_max - v_min) / n_bins
    z = (values[..., None] - centers) / std
    return jnp.exp(-z * z)


def _dihedrals(x, eps=1e-7):
    b, l = x.shape[0], x.shape[1]
    xf = x[:, :, :3].reshape(b, 3 * l, 3)
    dx = xf[:, 1:] - xf[:, :-1]
    u = _normalize(dx)
    u2, u1, u0 = u[:, :-2], u[:, 1:-1], u[:, 2:]
    n2 = _normalize(jnp.cross(u2, u1))
    n1 = _normalize(jnp.cross(u1, u0))
    cos_d = jnp.clip(jnp.sum(n2 * n1, -1), -1 + eps, 1 - eps)
    d = jnp.sign(jnp.sum(u2 * n1, -1)) * jnp.arccos(cos_d)
    d = jnp.pad(d, ((0, 0), (1, 2))).reshape(b, l, 3)
    return jnp.concatenate([jnp.cos(d), jnp.sin(d)], -1)


def _orientations(x_ca):
    fwd = _normalize(x_ca[:, 1:] - x_ca[:, :-1])
    bwd = _normalize(x_ca[:, :-1] - x_ca[:, 1:])
    fwd = jnp.pad(fwd, ((0, 0), (0, 1), (0, 0)))
    bwd = jnp.pad(bwd, ((0, 0), (1, 0), (0, 0)))
    return jnp.concatenate([fwd[:, :, None, :], bwd[:, :, None, :]], axis=-2)


def _sidechains(x):
    n, origin, c = x[:, :, 0], x[:, :, 1], x[:, :, 2]
    c, n = _normalize(c - origin), _normalize(n - origin)
    bisector = _normalize(c + n)
    perp = _normalize(jnp.cross(c, n))
    return -bisector * math.sqrt(1.0 / 3.0) - perp * math.sqrt(2.0 / 3.0)


def _positional_embeddings(d, num_embeddings=16):
    freq = jnp.exp(jnp.arange(0, num_embeddings, 2, dtype=jnp.float32)
                   * -(math.log(10000.0) / num_embeddings))
    angles = d[..., None].astype(jnp.float32) * freq
    return jnp.concatenate([jnp.cos(angles), jnp.sin(angles)], -1)


def _dist(x_ca, coord_mask, padding_mask, top_k, eps=1e-8):
    b, l = x_ca.shape[:2]
    cm2 = (coord_mask[:, :, None] & coord_mask[:, None, :]).astype(jnp.float32)
    rm = ~padding_mask
    rm2 = (rm[:, :, None] & rm[:, None, :]).astype(jnp.float32)
    dx = x_ca[:, :, None, :] - x_ca[:, None, :, :]
    d = cm2 * jnp.sqrt(jnp.sum(dx * dx, -1) + eps)
    seqpos = jnp.arange(l)
    d_seq = jnp.abs(seqpos[:, None] - seqpos[None, :]).astype(jnp.float32)[None]
    d_adjust = (jnp.nan_to_num(d) + (1.0 - cm2) * (1e8 + d_seq * 1e6)
                + (1.0 - rm2) * 1e10)
    k = min(top_k, l)
    neg_d, e_idx = jax.lax.top_k(-d_adjust, k)
    d_nb = -neg_d
    return d_nb, e_idx, d_nb < 5e7, d_nb < 5e9


# ----------------------------------------------------------------------------
# Parameter initialization (deterministic, synthetic)
# ----------------------------------------------------------------------------
def _init_linear(key, fan_in, fan_out, bias=True):
    kw, kb = jax.random.split(key)
    bound = 1.0 / math.sqrt(fan_in)
    w = jax.random.uniform(kw, (fan_in, fan_out), jnp.float32, -bound, bound)
    b = (jax.random.uniform(kb, (fan_out,), jnp.float32, -bound, bound)
         if bias else None)
    return w, b


def _init_gvp(key, si, vi, so, vo, vector_gate):
    h = max(vi, vo)
    k1, k2, k3, k4 = jax.random.split(key, 4)
    wh, _ = _init_linear(k1, vi, h, bias=False)
    ws, bs = _init_linear(k2, si + h, so)          # ws rows: [s (si) | vn (h)]
    wv, _ = _init_linear(k3, h, vo, bias=False)
    if vector_gate:
        wsv, bsv = _init_linear(k4, so, vo)
    else:
        wsv = jnp.zeros((so, vo), jnp.float32)
        bsv = jnp.zeros((vo,), jnp.float32)
    return dict(wh=wh, ws=ws, bs=bs, wv=wv, wsv=wsv, bsv=bsv)


def _init_ln(sdim):
    return dict(gamma=jnp.ones((sdim,), jnp.float32),
                beta=jnp.zeros((sdim,), jnp.float32))


def init_gvp_encoder_params(key, ns, nv, es, ev, num_layers):
    keys = jax.random.split(key, 2 + num_layers)
    params = {
        "embed_node": _init_gvp(keys[0], 7, 3, ns, nv, vector_gate=False),
        "embed_node_ln": _init_ln(ns),
        "embed_edge": _init_gvp(keys[1], 34, 1, es, ev, vector_gate=False),
        "embed_edge_ln": _init_ln(es),
        "layers": [],
    }
    for i in range(num_layers):
        lk = jax.random.split(keys[2 + i], 5)
        params["layers"].append({
            "msg": [
                _init_gvp(lk[0], 2 * ns + es, 2 * nv + ev, ns, nv, True),
                _init_gvp(lk[1], ns, nv, ns, nv, True),
                _init_gvp(lk[2], ns, nv, ns, nv, False),
            ],
            "ln0": _init_ln(ns),
            "ff": [
                _init_gvp(lk[3], ns, nv, 4 * ns, 2 * nv, True),
                _init_gvp(lk[4], 4 * ns, 2 * nv, ns, nv, False),
            ],
            "ln1": _init_ln(ns),
        })
    return params


# ----------------------------------------------------------------------------
# GVPEncoder forward
# ----------------------------------------------------------------------------
def gvp_encoder_forward(params, coords, coord_mask, padding_mask, top_k):
    f32 = jnp.float32
    coords = coords.astype(f32)
    b, l = coords.shape[:2]
    x_ca = coords[:, :, 1]

    # ---- node features ----
    dih = _dihedrals(coords)                                         # [B,L,6]
    node_s = jnp.concatenate([dih, coord_mask.astype(f32)[..., None]], -1)
    node_v_t = jnp.concatenate(
        [_orientations(x_ca), _sidechains(coords)[:, :, None, :]], axis=-2)
    node_s = jnp.nan_to_num(node_s)                                  # [B,L,7]
    node_v_t = jnp.nan_to_num(node_v_t)                              # [B,L,3ch,3xyz]

    # ---- edge features (kNN graph) ----
    d_nb, e_idx, e_cmask, _ = _dist(x_ca, coord_mask, padding_mask, top_k)
    k = e_idx.shape[-1]
    d_rbf = _rbf(d_nb, 0.0, 20.0, 16)                                # [B,L,K,16]
    d_seq = jnp.arange(l)[None, :, None] - e_idx
    pos_emb = _positional_embeddings(d_seq, 16)                      # [B,L,K,16]
    x_nbr = jax.vmap(lambda x, idx: x[idx])(x_ca, e_idx)             # [B,L,K,3]
    cmask_nbr = jax.vmap(lambda m, idx: m[idx])(coord_mask, e_idx)
    e_vec = x_ca[:, :, None, :] - x_nbr
    mask_f = e_cmask.astype(f32)[..., None]
    mean_vec = (jnp.sum(e_vec * mask_f, axis=(1, 2), keepdims=True)
                / jnp.maximum(jnp.sum(mask_f, axis=(1, 2), keepdims=True), 1.0))
    e_vec = e_vec * mask_f + mean_vec * (1.0 - mask_f)
    edge_v_xyz = jnp.nan_to_num(_normalize(e_vec))                   # [B,L,K,3]
    cmask_ctr = jnp.broadcast_to(coord_mask[:, :, None], (b, l, k))
    edge_s = jnp.nan_to_num(jnp.concatenate(
        [d_rbf, pos_emb,
         (~cmask_ctr).astype(f32)[..., None],
         (~cmask_nbr).astype(f32)[..., None]], -1))                  # [B,L,K,34]
    # TODO(synk): confidence-RBF node bias of ESM-IF GVPGraphEmbedding omitted
    # (this forward signature carries no confidence input).
    # TODO(synk): remove_edges_without_coords edge filtering omitted.

    # ---- reorganize to kernel-friendly layouts ----
    n = b * l
    sn_dim = params["embed_node"]["ws"].shape[1]
    vn_dim = params["embed_node"]["wv"].shape[1]
    se_dim = params["embed_edge"]["ws"].shape[1]
    ve_dim = params["embed_edge"]["wv"].shape[1]

    ns = node_s.reshape(n, -1)                                       # [N,7]
    nv = jnp.transpose(node_v_t, (3, 0, 1, 2)).reshape(3, n, -1)     # [3,N,3]
    es = jnp.transpose(edge_s, (2, 0, 1, 3)).reshape(k, n, -1)       # [K,N,34]
    ev = jnp.transpose(edge_v_xyz, (3, 2, 0, 1)).reshape(3, k, n, 1)  # [3,K,N,1]
    nbr = jnp.transpose(e_idx + (jnp.arange(b) * l)[:, None, None],
                        (2, 0, 1)).reshape(k, n).astype(jnp.int32)   # [K,N]

    # ---- choose tile and pad the node axis once, up front ----
    tile = _choose_tile(n, k, sn_dim, vn_dim, se_dim, ve_dim)
    n_pad = _round_up(n, tile)

    def pad_axis(x, axis):
        pad = n_pad - n
        if pad == 0:
            return x
        cfg = [(0, 0)] * x.ndim
        cfg[axis] = (0, pad)
        return jnp.pad(x, cfg)

    ns, nv = pad_axis(ns, 0), pad_axis(nv, 1)
    es, ev = pad_axis(es, 1), pad_axis(ev, 2)
    nbr = pad_axis(nbr, 1)          # padded entries gather node 0 (harmless)

    # ---- graph embedding: fused GVP + LayerNorm kernels ----
    hs, hv = gvp_embed_ln(ns, nv, params["embed_node"],
                          params["embed_node_ln"], tile=tile)
    ces_f, cev_f = gvp_embed_ln(es.reshape(k * n_pad, -1),
                                ev.reshape(3, k * n_pad, -1),
                                params["embed_edge"],
                                params["embed_edge_ln"], tile=tile)
    ces = ces_f.reshape(k, n_pad, se_dim)
    cev = cev_f.reshape(3, k, n_pad, ve_dim)

    # ---- GVPConv encoder layers ----
    # TODO(synk): the neighbour gather hs[nbr] stays in XLA; a data-dependent
    # in-kernel sublane gather is not cleanly expressible with BlockSpec
    # index_maps for multi-row tiles.
    for lp in params["layers"]:
        sj = hs[nbr]                 # [K, N_pad, Sn]
        vj = hv[:, nbr]              # [3, K, N_pad, Vn]
        hs, hv = gvp_conv_message(hs, hv, sj, vj, ces, cev,
                                  lp["msg"], lp["ln0"], tile=tile)
        hs, hv = gvp_feed_forward(hs, hv, lp["ff"], lp["ln1"], tile=tile)

    # ---- unflatten_graph (PyTorch convention: v is [B, L, Vn, 3]) ----
    out_s = hs[:n].reshape(b, l, sn_dim)
    out_v = jnp.transpose(hv[:, :n].reshape(3, b, l, vn_dim), (1, 2, 3, 0))
    return out_s, out_v


# ----------------------------------------------------------------------------
if __name__ == "__main__":
    key = jax.random.PRNGKey(0)
    k_coords, k_params = jax.random.split(key)

    B, L = 2, 8
    node_h_s, node_h_v = 32, 8
    edge_h_s, edge_h_v = 16, 4
    top_k_neighbors = 4
    num_encoder_layers = 2

    coords = 3.0 * jax.random.normal(k_coords, (B, L, 3, 3), jnp.float32)
    coord_mask = jnp.ones((B, L), dtype=bool)
    padding_mask = jnp.zeros((B, L), dtype=bool)

    params = init_gvp_encoder_params(k_params, node_h_s, node_h_v,
                                     edge_h_s, edge_h_v, num_encoder_layers)

    fwd = jax.jit(gvp_encoder_forward, static_argnums=(4,))
    out_s, out_v = fwd(params, coords, coord_mask, padding_mask,
                       top_k_neighbors)
    jax.block_until_ready((out_s, out_v))

    assert out_s.shape == (B, L, node_h_s)
    assert out_v.shape == (B, L, node_h_v, 3)
    assert bool(jnp.all(jnp.isfinite(out_s)))
    assert bool(jnp.all(jnp.isfinite(out_v)))
    print("KERNEL_OK")
</pallas_src>

<mosaic_0001>
module attributes {stable_mosaic.version = 11 : i64} {
  func.func @_embed_kernel(%arg0: i32, %arg1: memref<16x7xf32, #tpu.memory_space<vmem>>, %arg2: memref<3x16x3xf32, #tpu.memory_space<vmem>>, %arg3: memref<3x8xf32, #tpu.memory_space<vmem>>, %arg4: memref<7x32xf32, #tpu.memory_space<vmem>>, %arg5: memref<8x32xf32, #tpu.memory_space<vmem>>, %arg6: memref<1x32xf32, #tpu.memory_space<vmem>>, %arg7: memref<8x8xf32, #tpu.memory_space<vmem>>, %arg8: memref<1x32xf32, #tpu.memory_space<vmem>>, %arg9: memref<1x32xf32, #tpu.memory_space<vmem>>, %arg10: memref<16x32xf32, #tpu.memory_space<vmem>>, %arg11: memref<3x16x8xf32, #tpu.memory_space<vmem>>) attributes {dimension_semantics = [#tpu.dimension_semantics<parallel>], iteration_bounds = array<i64: 1>, scalar_prefetch = 0 : i64, scratch_operands = 0 : i64, tpu.core_type = #tpu.core_type<tc>, window_params = [{transform_indices = @transform_0, window_bounds = array<i64: 16, 7>}, {transform_indices = @transform_1, window_bounds = array<i64: 3, 16, 3>}, {pipeline_mode = #tpu.pipeline_mode<synchronous>, transform_indices = @transform_2, window_bounds = array<i64: 3, 8>}, {pipeline_mode = #tpu.pipeline_mode<synchronous>, transform_indices = @transform_3, window_bounds = array<i64: 7, 32>}, {pipeline_mode = #tpu.pipeline_mode<synchronous>, transform_indices = @transform_4, window_bounds = array<i64: 8, 32>}, {pipeline_mode = #tpu.pipeline_mode<synchronous>, transform_indices = @transform_5, window_bounds = array<i64: 1, 32>}, {pipeline_mode = #tpu.pipeline_mode<synchronous>, transform_indices = @transform_6, window_bounds = array<i64: 8, 8>}, {pipeline_mode = #tpu.pipeline_mode<synchronous>, transform_indices = @transform_7, window_bounds = array<i64: 1, 32>}, {pipeline_mode = #tpu.pipeline_mode<synchronous>, transform_indices = @transform_8, window_bounds = array<i64: 1, 32>}, {transform_indices = @transform_9, window_bounds = array<i64: 16, 32>}, {transform_indices = @transform_10, window_bounds = array<i64: 3, 16, 8>}]} {
    %c0 = arith.constant 0 : index
    %c0_0 = arith.constant 0 : index
    %0 = vector.load %arg3[%c0, %c0_0] : memref<3x8xf32, #tpu.memory_space<vmem>>, vector<3x8xf32>
    %c0_1 = arith.constant 0 : index
    %c0_2 = arith.constant 0 : index
    %1 = vector.load %arg4[%c0_1, %c0_2] : memref<7x32xf32, #tpu.memory_space<vmem>>, vector<7x32xf32>
    %c0_3 = arith.constant 0 : index
    %c0_4 = arith.constant 0 : index
    %2 = vector.load %arg5[%c0_3, %c0_4] : memref<8x32xf32, #tpu.memory_space<vmem>>, vector<8x32xf32>
    %c0_5 = arith.constant 0 : index
    %c0_6 = arith.constant 0 : index
    %3 = vector.load %arg6[%c0_5, %c0_6] : memref<1x32xf32, #tpu.memory_space<vmem>>, vector<1x32xf32>
    %c0_7 = arith.constant 0 : index
    %c0_8 = arith.constant 0 : index
    %4 = vector.load %arg7[%c0_7, %c0_8] : memref<8x8xf32, #tpu.memory_space<vmem>>, vector<8x8xf32>
    %c0_9 = arith.constant 0 : index
    %c0_10 = arith.constant 0 : index
    %5 = vector.load %arg1[%c0_9, %c0_10] : memref<16x7xf32, #tpu.memory_space<vmem>>, vector<16x7xf32>
    %c0_11 = arith.constant 0 : index
    %c0_12 = arith.constant 0 : index
    %c0_13 = arith.constant 0 : index
    %6 = vector.load %arg2[%c0_11, %c0_12, %c0_13] : memref<3x16x3xf32, #tpu.memory_space<vmem>>, vector<3x16x3xf32>
    %7 = vector.shape_cast %6 : vector<3x16x3xf32> to vector<48x3xf32>
    %cst = arith.constant dense<0.000000e+00> : vector<48x8xf32>
    %8 = tpu.matmul %7, %0, %cst {dimension_numbers = #tpu.dot_dimension_numbers<[1], [0], [0], [1], [0, 0, 1, 1], [], []>} : vector<48x3xf32>, vector<3x8xf32>, vector<48x8xf32> -> vector<48x8xf32>
    %9 = vector.shape_cast %8 : vector<48x8xf32> to vector<3x16x8xf32>
    %10 = vector.extract_strided_slice %9 {offsets = [0, 0, 0], sizes = [1, 16, 8], strides = [1, 1, 1]} : vector<3x16x8xf32> to vector<1x16x8xf32>
    %11 = vector.shape_cast %10 : vector<1x16x8xf32> to vector<16x8xf32>
    %12 = vector.extract_strided_slice %9 {offsets = [0, 0, 0], sizes = [1, 16, 8], strides = [1, 1, 1]} : vector<3x16x8xf32> to vector<1x16x8xf32>
    %13 = vector.shape_cast %12 : vector<1x16x8xf32> to vector<16x8xf32>
    %14 = arith.mulf %11, %13 : vector<16x8xf32>
    %15 = vector.extract_strided_slice %9 {offsets = [1, 0, 0], sizes = [1, 16, 8], strides = [1, 1, 1]} : vector<3x16x8xf32> to vector<1x16x8xf32>
    %16 = vector.shape_cast %15 : vector<1x16x8xf32> to vector<16x8xf32>
    %17 = vector.extract_strided_slice %9 {offsets = [1, 0, 0], sizes = [1, 16, 8], strides = [1, 1, 1]} : vector<3x16x8xf32> to vector<1x16x8xf32>
    %18 = vector.shape_cast %17 : vector<1x16x8xf32> to vector<16x8xf32>
    %19 = arith.mulf %16, %18 : vector<16x8xf32>
    %20 = arith.addf %14, %19 : vector<16x8xf32>
    %21 = vector.extract_strided_slice %9 {offsets = [2, 0, 0], sizes = [1, 16, 8], strides = [1, 1, 1]} : vector<3x16x8xf32> to vector<1x16x8xf32>
    %22 = vector.shape_cast %21 : vector<1x16x8xf32> to vector<16x8xf32>
    %23 = vector.extract_strided_slice %9 {offsets = [2, 0, 0], sizes = [1, 16, 8], strides = [1, 1, 1]} : vector<3x16x8xf32> to vector<1x16x8xf32>
    %24 = vector.shape_cast %23 : vector<1x16x8xf32> to vector<16x8xf32>
    %25 = arith.mulf %22, %24 : vector<16x8xf32>
    %26 = arith.addf %20, %25 : vector<16x8xf32>
    %cst_14 = arith.constant 9.99999993E-9 : f32
    %27 = vector.broadcast %cst_14 : f32 to vector<16x8xf32>
    %28 = arith.maximumf %26, %27 : vector<16x8xf32>
    %29 = math.sqrt %28 : vector<16x8xf32>
    %cst_15 = arith.constant dense<0.000000e+00> : vector<16x32xf32>
    %30 = tpu.matmul %5, %1, %cst_15 {dimension_numbers = #tpu.dot_dimension_numbers<[1], [0], [0], [1], [0, 0, 1, 1], [], []>} : vector<16x7xf32>, vector<7x32xf32>, vector<16x32xf32> -> vector<16x32xf32>
    %cst_16 = arith.constant dense<0.000000e+00> : vector<16x32xf32>
    %31 = tpu.matmul %29, %2, %cst_16 {dimension_numbers = #tpu.dot_dimension_numbers<[1], [0], [0], [1], [0, 0, 1, 1], [], []>} : vector<16x8xf32>, vector<8x32xf32>, vector<16x32xf32> -> vector<16x32xf32>
    %32 = arith.addf %30, %31 : vector<16x32xf32>
    %33 = vector.broadcast %3 : vector<1x32xf32> to vector<16x32xf32>
    %34 = arith.addf %32, %33 : vector<16x32xf32>
    %cst_17 = arith.constant dense<0.000000e+00> : vector<48x8xf32>
    %35 = tpu.matmul %8, %4, %cst_17 {dimension_numbers = #tpu.dot_dimension_numbers<[1], [0], [0], [1], [0, 0, 1, 1], [], []>} : vector<48x8xf32>, vector<8x8xf32>, vector<48x8xf32> -> vector<48x8xf32>
    %36 = vector.shape_cast %35 : vector<48x8xf32> to vector<3x16x8xf32>
    %c0_18 = arith.constant 0 : index
    %c0_19 = arith.constant 0 : index
    %37 = vector.load %arg8[%c0_18, %c0_19] : memref<1x32xf32, #tpu.memory_space<vmem>>, vector<1x32xf32>
    %c0_20 = arith.constant 0 : index
    %c0_21 = arith.constant 0 : index
    %38 = vector.load %arg9[%c0_20, %c0_21] : memref<1x32xf32, #tpu.memory_space<vmem>>, vector<1x32xf32>
    %cst_22 = arith.constant dense<0.000000e+00> : vector<16xf32>
    %39 = vector.multi_reduction <add>, %34, %cst_22 [1] : vector<16x32xf32> to vector<16xf32>
    %40 = vector.shape_cast %39 : vector<16xf32> to vector<16x1xf32>
    %cst_23 = arith.constant 3.200000e+01 : f32
    %41 = vector.broadcast %cst_23 : f32 to vector<16x1xf32>
    %42 = arith.divf %40, %41 : vector<16x1xf32>
    %43 = vector.broadcast %42 : vector<16x1xf32> to vector<16x32xf32>
    %44 = arith.subf %34, %43 : vector<16x32xf32>
    %45 = arith.mulf %44, %44 : vector<16x32xf32>
    %cst_24 = arith.constant dense<0.000000e+00> : vector<16xf32>
    %46 = vector.multi_reduction <add>, %45, %cst_24 [1] : vector<16x32xf32> to vector<16xf32>
    %47 = vector.shape_cast %46 : vector<16xf32> to vector<16x1xf32>
    %cst_25 = arith.constant 3.200000e+01 : f32
    %48 = vector.broadcast %cst_25 : f32 to vector<16x1xf32>
    %49 = arith.divf %47, %48 : vector<16x1xf32>
    %50 = vector.broadcast %42 : vector<16x1xf32> to vector<16x32xf32>
    %51 = arith.subf %34, %50 : vector<16x32xf32>
    %cst_26 = arith.constant 9.99999974E-6 : f32
    %52 = vector.broadcast %cst_26 : f32 to vector<16x1xf32>
    %53 = arith.addf %49, %52 : vector<16x1xf32>
    %54 = math.rsqrt %53 : vector<16x1xf32>
    %55 = vector.broadcast %54 : vector<16x1xf32> to vector<16x32xf32>
    %56 = arith.mulf %51, %55 : vector<16x32xf32>
    %57 = vector.broadcast %37 : vector<1x32xf32> to vector<16x32xf32>
    %58 = arith.mulf %56, %57 : vector<16x32xf32>
    %59 = vector.broadcast %38 : vector<1x32xf32> to vector<16x32xf32>
    %60 = arith.addf %58, %59 : vector<16x32xf32>
    %61 = vector.extract_strided_slice %36 {offsets = [0, 0, 0], sizes = [1, 16, 8], strides = [1, 1, 1]} : vector<3x16x8xf32> to vector<1x16x8xf32>
    %62 = vector.shape_cast %61 : vector<1x16x8xf32> to vector<16x8xf32>
    %63 = vector.extract_strided_slice %36 {offsets = [0, 0, 0], sizes = [1, 16, 8], strides = [1, 1, 1]} : vector<3x16x8xf32> to vector<1x16x8xf32>
    %64 = vector.shape_cast %63 : vector<1x16x8xf32> to vector<16x8xf32>
    %65 = arith.mulf %62, %64 : vector<16x8xf32>
    %66 = vector.extract_strided_slice %36 {offsets = [1, 0, 0], sizes = [1, 16, 8], strides = [1, 1, 1]} : vector<3x16x8xf32> to vector<1x16x8xf32>
    %67 = vector.shape_cast %66 : vector<1x16x8xf32> to vector<16x8xf32>
    %68 = vector.extract_strided_slice %36 {offsets = [1, 0, 0], sizes = [1, 16, 8], strides = [1, 1, 1]} : vector<3x16x8xf32> to vector<1x16x8xf32>
    %69 = vector.shape_cast %68 : vector<1x16x8xf32> to vector<16x8xf32>
    %70 = arith.mulf %67, %69 : vector<16x8xf32>
    %71 = arith.addf %65, %70 : vector<16x8xf32>
    %72 = vector.extract_strided_slice %36 {offsets = [2, 0, 0], sizes = [1, 16, 8], strides = [1, 1, 1]} : vector<3x16x8xf32> to vector<1x16x8xf32>
    %73 = vector.shape_cast %72 : vector<1x16x8xf32> to vector<16x8xf32>
    %74 = vector.extract_strided_slice %36 {offsets = [2, 0, 0], sizes = [1, 16, 8], strides = [1, 1, 1]} : vector<3x16x8xf32> to vector<1x16x8xf32>
    %75 = vector.shape_cast %74 : vector<1x16x8xf32> to vector<16x8xf32>
    %76 = arith.mulf %73, %75 : vector<16x8xf32>
    %77 = arith.addf %71, %76 : vector<16x8xf32>
    %cst_27 = arith.constant 2.000000e-04 : f32
    %78 = vector.broadcast %cst_27 : f32 to vector<16x8xf32>
    %79 = arith.cmpf ogt, %77, %78 : vector<16x8xf32>
    %80 = arith.extui %79 : vector<16x8xi1> to vector<16x8xi32>
    %81 = arith.sitofp %80 : vector<16x8xi32> to vector<16x8xf32>
    %82 = arith.mulf %77, %81 : vector<16x8xf32>
    %cst_28 = arith.constant dense<0.000000e+00> : vector<16xf32>
    %83 = vector.multi_reduction <add>, %82, %cst_28 [1] : vector<16x8xf32> to vector<16xf32>
    %84 = vector.shape_cast %83 : vector<16xf32> to vector<16x1xf32>
    %cst_29 = arith.constant dense<0.000000e+00> : vector<16xf32>
    %85 = vector.multi_reduction <add>, %81, %cst_29 [1] : vector<16x8xf32> to vector<16xf32>
    %86 = vector.shape_cast %85 : vector<16xf32> to vector<16x1xf32>
    %cst_30 = arith.constant 9.99999974E-5 : f32
    %87 = vector.broadcast %cst_30 : f32 to vector<16x1xf32>
    %88 = arith.addf %87, %86 : vector<16x1xf32>
    %89 = arith.divf %84, %88 : vector<16x1xf32>
    %cst_31 = arith.constant 9.99999974E-5 : f32
    %90 = vector.broadcast %cst_31 : f32 to vector<16x1xf32>
    %91 = arith.addf %89, %90 : vector<16x1xf32>
    %92 = math.rsqrt %91 : vector<16x1xf32>
    %93 = vector.broadcast %92 : vector<16x1xf32> to vector<16x8xf32>
    %94 = arith.mulf %81, %93 : vector<16x8xf32>
    %95 = vector.shape_cast %94 : vector<16x8xf32> to vector<1x16x8xf32>
    %96 = vector.broadcast %95 : vector<1x16x8xf32> to vector<3x16x8xf32>
    %97 = arith.mulf %36, %96 : vector<3x16x8xf32>
    %c0_32 = arith.constant 0 : index
    %c0_33 = arith.constant 0 : index
    %98 = vector.load %arg10[%c0_32, %c0_33] : memref<16x32xf32, #tpu.memory_space<vmem>>, vector<16x32xf32>
    tpu.vector_store %arg10[%c0_32, %c0_33], %60 {strides = array<i32>} : memref<16x32xf32, #tpu.memory_space<vmem>>, vector<16x32xf32>,
    %c0_34 = arith.constant 0 : index
    %c0_35 = arith.constant 0 : index
    %c0_36 = arith.constant 0 : index
    %99 = vector.load %arg11[%c0_34, %c0_35, %c0_36] : memref<3x16x8xf32, #tpu.memory_space<vmem>>, vector<3x16x8xf32>
    tpu.vector_store %arg11[%c0_34, %c0_35, %c0_36], %97 {strides = array<i32>} : memref<3x16x8xf32, #tpu.memory_space<vmem>>, vector<3x16x8xf32>,
    return
  }
  func.func @transform_0(%arg0: i32) -> (i32, i32) {
    %c0_i32 = arith.constant 0 : i32
    %c0_i32_0 = arith.constant 0 : i32
    return %arg0, %c0_i32 : i32, i32
  }
  func.func @transform_1(%arg0: i32) -> (i32, i32, i32) {
    %c0_i32 = arith.constant 0 : i32
    %c0_i32_0 = arith.constant 0 : i32
    %c0_i32_1 = arith.constant 0 : i32
    return %c0_i32, %arg0, %c0_i32_0 : i32, i32, i32
  }
  func.func @transform_2(%arg0: i32) -> (i32, i32) {
    %c0_i32 = arith.constant 0 : i32
    %c0_i32_0 = arith.constant 0 : i32
    %c0_i32_1 = arith.constant 0 : i32
    return %c0_i32, %c0_i32_0 : i32, i32
  }
  func.func @transform_3(%arg0: i32) -> (i32, i32) {
    %c0_i32 = arith.constant 0 : i32
    %c0_i32_0 = arith.constant 0 : i32
    %c0_i32_1 = arith.constant 0 : i32
    return %c0_i32, %c0_i32_0 : i32, i32
  }
  func.func @transform_4(%arg0: i32) -> (i32, i32) {
    %c0_i32 = arith.constant 0 : i32
    %c0_i32_0 = arith.constant 0 : i32
    %c0_i32_1 = arith.constant 0 : i32
    return %c0_i32, %c0_i32_0 : i32, i32
  }
  func.func @transform_5(%arg0: i32) -> (i32, i32) {
    %c0_i32 = arith.constant 0 : i32
    %c0_i32_0 = arith.constant 0 : i32
    %c0_i32_1 = arith.constant 0 : i32
    return %c0_i32, %c0_i32_0 : i32, i32
  }
  func.func @transform_6(%arg0: i32) -> (i32, i32) {
    %c0_i32 = arith.constant 0 : i32
    %c0_i32_0 = arith.constant 0 : i32
    %c0_i32_1 = arith.constant 0 : i32
    return %c0_i32, %c0_i32_0 : i32, i32
  }
  func.func @transform_7(%arg0: i32) -> (i32, i32) {
    %c0_i32 = arith.constant 0 : i32
    %c0_i32_0 = arith.constant 0 : i32
    %c0_i32_1 = arith.constant 0 : i32
    return %c0_i32, %c0_i32_0 : i32, i32
  }
  func.func @transform_8(%arg0: i32) -> (i32, i32) {
    %c0_i32 = arith.constant 0 : i32
    %c0_i32_0 = arith.constant 0 : i32
    %c0_i32_1 = arith.constant 0 : i32
    return %c0_i32, %c0_i32_0 : i32, i32
  }
  func.func @transform_9(%arg0: i32) -> (i32, i32) {
    %c0_i32 = arith.constant 0 : i32
    %c0_i32_0 = arith.constant 0 : i32
    return %arg0, %c0_i32 : i32, i32
  }
  func.func @transform_10(%arg0: i32) -> (i32, i32, i32) {
    %c0_i32 = arith.constant 0 : i32
    %c0_i32_0 = arith.constant 0 : i32
    %c0_i32_1 = arith.constant 0 : i32
    return %c0_i32, %arg0, %c0_i32_0 : i32, i32, i32
  }
}

module attributes {stable_mosaic.version = 11 : i64} {
  func.func @_embed_kernel(%arg0: i32, %arg1: memref<16x34xf32, #tpu.memory_space<vmem>>, %arg2: memref<3x16x1xf32, #tpu.memory_space<vmem>>, %arg3: memref<1x4xf32, #tpu.memory_space<vmem>>, %arg4: memref<34x16xf32, #tpu.memory_space<vmem>>, %arg5: memref<4x16xf32, #tpu.memory_space<vmem>>, %arg6: memref<1x16xf32, #tpu.memory_space<vmem>>, %arg7: memref<4x4xf32, #tpu.memory_space<vmem>>, %arg8: memref<1x16xf32, #tpu.memory_space<vmem>>, %arg9: memref<1x16xf32, #tpu.memory_space<vmem>>, %arg10: memref<16x16xf32, #tpu.memory_space<vmem>>, %arg11: memref<3x16x4xf32, #tpu.memory_space<vmem>>) attributes {dimension_semantics = [#tpu.dimension_semantics<parallel>], iteration_bounds = array<i64: 4>, scalar_prefetch = 0 : i64, scratch_operands = 0 : i64, tpu.core_type = #tpu.core_type<tc>, window_params = [{transform_indices = @transform_0, window_bounds = array<i64: 16, 34>}, {transform_indices = @transform_1, window_bounds = array<i64: 3, 16, 1>}, {pipeline_mode = #tpu.pipeline_mode<synchronous>, transform_indices = @transform_2, window_bounds = array<i64: 1, 4>}, {pipeline_mode = #tpu.pipeline_mode<synchronous>, transform_indices = @transform_3, window_bounds = array<i64: 34, 16>}, {pipeline_mode = #tpu.pipeline_mode<synchronous>, transform_indices = @transform_4, window_bounds = array<i64: 4, 16>}, {pipeline_mode = #tpu.pipeline_mode<synchronous>, transform_indices = @transform_5, window_bounds = array<i64: 1, 16>}, {pipeline_mode = #tpu.pipeline_mode<synchronous>, transform_indices = @transform_6, window_bounds = array<i64: 4, 4>}, {pipeline_mode = #tpu.pipeline_mode<synchronous>, transform_indices = @transform_7, window_bounds = array<i64: 1, 16>}, {pipeline_mode = #tpu.pipeline_mode<synchronous>, transform_indices = @transform_8, window_bounds = array<i64: 1, 16>}, {transform_indices = @transform_9, window_bounds = array<i64: 16, 16>}, {transform_indices = @transform_10, window_bounds = array<i64: 3, 16, 4>}]} {
    %c0 = arith.constant 0 : index
    %c0_0 = arith.constant 0 : index
    %0 = vector.load %arg3[%c0, %c0_0] : memref<1x4xf32, #tpu.memory_space<vmem>>, vector<1x4xf32>
    %c0_1 = arith.constant 0 : index
    %c0_2 = arith.constant 0 : index
    %1 = vector.load %arg4[%c0_1, %c0_2] : memref<34x16xf32, #tpu.memory_space<vmem>>, vector<34x16xf32>
    %c0_3 = arith.constant 0 : index
    %c0_4 = arith.constant 0 : index
    %2 = vector.load %arg5[%c0_3, %c0_4] : memref<4x16xf32, #tpu.memory_space<vmem>>, vector<4x16xf32>
    %c0_5 = arith.constant 0 : index
    %c0_6 = arith.constant 0 : index
    %3 = vector.load %arg6[%c0_5, %c0_6] : memref<1x16xf32, #tpu.memory_space<vmem>>, vector<1x16xf32>
    %c0_7 = arith.constant 0 : index
    %c0_8 = arith.constant 0 : index
    %4 = vector.load %arg7[%c0_7, %c0_8] : memref<4x4xf32, #tpu.memory_space<vmem>>, vector<4x4xf32>
    %c0_9 = arith.constant 0 : index
    %c0_10 = arith.constant 0 : index
    %5 = vector.load %arg1[%c0_9, %c0_10] : memref<16x34xf32, #tpu.memory_space<vmem>>, vector<16x34xf32>
    %c0_11 = arith.constant 0 : index
    %c0_12 = arith.constant 0 : index
    %c0_13 = arith.constant 0 : index
    %6 = vector.load %arg2[%c0_11, %c0_12, %c0_13] : memref<3x16x1xf32, #tpu.memory_space<vmem>>, vector<3x16x1xf32>
    %7 = vector.shape_cast %6 : vector<3x16x1xf32> to vector<48x1xf32>
    %cst = arith.constant dense<0.000000e+00> : vector<48x4xf32>
    %8 = tpu.matmul %7, %0, %cst {dimension_numbers = #tpu.dot_dimension_numbers<[1], [0], [0], [1], [0, 0, 1, 1], [], []>} : vector<48x1xf32>, vector<1x4xf32>, vector<48x4xf32> -> vector<48x4xf32>
    %9 = vector.shape_cast %8 : vector<48x4xf32> to vector<3x16x4xf32>
    %10 = vector.extract_strided_slice %9 {offsets = [0, 0, 0], sizes = [1, 16, 4], strides = [1, 1, 1]} : vector<3x16x4xf32> to vector<1x16x4xf32>
    %11 = vector.shape_cast %10 : vector<1x16x4xf32> to vector<16x4xf32>
    %12 = vector.extract_strided_slice %9 {offsets = [0, 0, 0], sizes = [1, 16, 4], strides = [1, 1, 1]} : vector<3x16x4xf32> to vector<1x16x4xf32>
    %13 = vector.shape_cast %12 : vector<1x16x4xf32> to vector<16x4xf32>
    %14 = arith.mulf %11, %13 : vector<16x4xf32>
    %15 = vector.extract_strided_slice %9 {offsets = [1, 0, 0], sizes = [1, 16, 4], strides = [1, 1, 1]} : vector<3x16x4xf32> to vector<1x16x4xf32>
    %16 = vector.shape_cast %15 : vector<1x16x4xf32> to vector<16x4xf32>
    %17 = vector.extract_strided_slice %9 {offsets = [1, 0, 0], sizes = [1, 16, 4], strides = [1, 1, 1]} : vector<3x16x4xf32> to vector<1x16x4xf32>
    %18 = vector.shape_cast %17 : vector<1x16x4xf32> to vector<16x4xf32>
    %19 = arith.mulf %16, %18 : vector<16x4xf32>
    %20 = arith.addf %14, %19 : vector<16x4xf32>
    %21 = vector.extract_strided_slice %9 {offsets = [2, 0, 0], sizes = [1, 16, 4], strides = [1, 1, 1]} : vector<3x16x4xf32> to vector<1x16x4xf32>
    %22 = vector.shape_cast %21 : vector<1x16x4xf32> to vector<16x4xf32>
    %23 = vector.extract_strided_slice %9 {offsets = [2, 0, 0], sizes = [1, 16, 4], strides = [1, 1, 1]} : vector<3x16x4xf32> to vector<1x16x4xf32>
    %24 = vector.shape_cast %23 : vector<1x16x4xf32> to vector<16x4xf32>
    %25 = arith.mulf %22, %24 : vector<16x4xf32>
    %26 = arith.addf %20, %25 : vector<16x4xf32>
    %cst_14 = arith.constant 9.99999993E-9 : f32
    %27 = vector.broadcast %cst_14 : f32 to vector<16x4xf32>
    %28 = arith.maximumf %26, %27 : vector<16x4xf32>
    %29 = math.sqrt %28 : vector<16x4xf32>
    %cst_15 = arith.constant dense<0.000000e+00> : vector<16x16xf32>
    %30 = tpu.matmul %5, %1, %cst_15 {dimension_numbers = #tpu.dot_dimension_numbers<[1], [0], [0], [1], [0, 0, 1, 1], [], []>} : vector<16x34xf32>, vector<34x16xf32>, vector<16x16xf32> -> vector<16x16xf32>
    %cst_16 = arith.constant dense<0.000000e+00> : vector<16x16xf32>
    %31 = tpu.matmul %29, %2, %cst_16 {dimension_numbers = #tpu.dot_dimension_numbers<[1], [0], [0], [1], [0, 0, 1, 1], [], []>} : vector<16x4xf32>, vector<4x16xf32>, vector<16x16xf32> -> vector<16x16xf32>
    %32 = arith.addf %30, %31 : vector<16x16xf32>
    %33 = vector.broadcast %3 : vector<1x16xf32> to vector<16x16xf32>
    %34 = arith.addf %32, %33 : vector<16x16xf32>
    %cst_17 = arith.constant dense<0.000000e+00> : vector<48x4xf32>
    %35 = tpu.matmul %8, %4, %cst_17 {dimension_numbers = #tpu.dot_dimension_numbers<[1], [0], [0], [1], [0, 0, 1, 1], [], []>} : vector<48x4xf32>, vector<4x4xf32>, vector<48x4xf32> -> vector<48x4xf32>
    %36 = vector.shape_cast %35 : vector<48x4xf32> to vector<3x16x4xf32>
    %c0_18 = arith.constant 0 : index
    %c0_19 = arith.constant 0 : index
    %37 = vector.load %arg8[%c0_18, %c0_19] : memref<1x16xf32, #tpu.memory_space<vmem>>, vector<1x16xf32>
    %c0_20 = arith.constant 0 : index
    %c0_21 = arith.constant 0 : index
    %38 = vector.load %arg9[%c0_20, %c0_21] : memref<1x16xf32, #tpu.memory_space<vmem>>, vector<1x16xf32>
    %cst_22 = arith.constant dense<0.000000e+00> : vector<16xf32>
    %39 = vector.multi_reduction <add>, %34, %cst_22 [1] : vector<16x16xf32> to vector<16xf32>
    %40 = vector.shape_cast %39 : vector<16xf32> to vector<16x1xf32>
    %cst_23 = arith.constant 1.600000e+01 : f32
    %41 = vector.broadcast %cst_23 : f32 to vector<16x1xf32>
    %42 = arith.divf %40, %41 : vector<16x1xf32>
    %43 = vector.broadcast %42 : vector<16x1xf32> to vector<16x16xf32>
    %44 = arith.subf %34, %43 : vector<16x16xf32>
    %45 = arith.mulf %44, %44 : vector<16x16xf32>
    %cst_24 = arith.constant dense<0.000000e+00> : vector<16xf32>
    %46 = vector.multi_reduction <add>, %45, %cst_24 [1] : vector<16x16xf32> to vector<16xf32>
    %47 = vector.shape_cast %46 : vector<16xf32> to vector<16x1xf32>
    %cst_25 = arith.constant 1.600000e+01 : f32
    %48 = vector.broadcast %cst_25 : f32 to vector<16x1xf32>
    %49 = arith.divf %47, %48 : vector<16x1xf32>
    %50 = vector.broadcast %42 : vector<16x1xf32> to vector<16x16xf32>
    %51 = arith.subf %34, %50 : vector<16x16xf32>
    %cst_26 = arith.constant 9.99999974E-6 : f32
    %52 = vector.broadcast %cst_26 : f32 to vector<16x1xf32>
    %53 = arith.addf %49, %52 : vector<16x1xf32>
    %54 = math.rsqrt %53 : vector<16x1xf32>
    %55 = vector.broadcast %54 : vector<16x1xf32> to vector<16x16xf32>
    %56 = arith.mulf %51, %55 : vector<16x16xf32>
    %57 = vector.broadcast %37 : vector<1x16xf32> to vector<16x16xf32>
    %58 = arith.mulf %56, %57 : vector<16x16xf32>
    %59 = vector.broadcast %38 : vector<1x16xf32> to vector<16x16xf32>
    %60 = arith.addf %58, %59 : vector<16x16xf32>
    %61 = vector.extract_strided_slice %36 {offsets = [0, 0, 0], sizes = [1, 16, 4], strides = [1, 1, 1]} : vector<3x16x4xf32> to vector<1x16x4xf32>
    %62 = vector.shape_cast %61 : vector<1x16x4xf32> to vector<16x4xf32>
    %63 = vector.extract_strided_slice %36 {offsets = [0, 0, 0], sizes = [1, 16, 4], strides = [1, 1, 1]} : vector<3x16x4xf32> to vector<1x16x4xf32>
    %64 = vector.shape_cast %63 : vector<1x16x4xf32> to vector<16x4xf32>
    %65 = arith.mulf %62, %64 : vector<16x4xf32>
    %66 = vector.extract_strided_slice %36 {offsets = [1, 0, 0], sizes = [1, 16, 4], strides = [1, 1, 1]} : vector<3x16x4xf32> to vector<1x16x4xf32>
    %67 = vector.shape_cast %66 : vector<1x16x4xf32> to vector<16x4xf32>
    %68 = vector.extract_strided_slice %36 {offsets = [1, 0, 0], sizes = [1, 16, 4], strides = [1, 1, 1]} : vector<3x16x4xf32> to vector<1x16x4xf32>
    %69 = vector.shape_cast %68 : vector<1x16x4xf32> to vector<16x4xf32>
    %70 = arith.mulf %67, %69 : vector<16x4xf32>
    %71 = arith.addf %65, %70 : vector<16x4xf32>
    %72 = vector.extract_strided_slice %36 {offsets = [2, 0, 0], sizes = [1, 16, 4], strides = [1, 1, 1]} : vector<3x16x4xf32> to vector<1x16x4xf32>
    %73 = vector.shape_cast %72 : vector<1x16x4xf32> to vector<16x4xf32>
    %74 = vector.extract_strided_slice %36 {offsets = [2, 0, 0], sizes = [1, 16, 4], strides = [1, 1, 1]} : vector<3x16x4xf32> to vector<1x16x4xf32>
    %75 = vector.shape_cast %74 : vector<1x16x4xf32> to vector<16x4xf32>
    %76 = arith.mulf %73, %75 : vector<16x4xf32>
    %77 = arith.addf %71, %76 : vector<16x4xf32>
    %cst_27 = arith.constant 2.000000e-04 : f32
    %78 = vector.broadcast %cst_27 : f32 to vector<16x4xf32>
    %79 = arith.cmpf ogt, %77, %78 : vector<16x4xf32>
    %80 = arith.extui %79 : vector<16x4xi1> to vector<16x4xi32>
    %81 = arith.sitofp %80 : vector<16x4xi32> to vector<16x4xf32>
    %82 = arith.mulf %77, %81 : vector<16x4xf32>
    %cst_28 = arith.constant dense<0.000000e+00> : vector<16xf32>
    %83 = vector.multi_reduction <add>, %82, %cst_28 [1] : vector<16x4xf32> to vector<16xf32>
    %84 = vector.shape_cast %83 : vector<16xf32> to vector<16x1xf32>
    %cst_29 = arith.constant dense<0.000000e+00> : vector<16xf32>
    %85 = vector.multi_reduction <add>, %81, %cst_29 [1] : vector<16x4xf32> to vector<16xf32>
    %86 = vector.shape_cast %85 : vector<16xf32> to vector<16x1xf32>
    %cst_30 = arith.constant 9.99999974E-5 : f32
    %87 = vector.broadcast %cst_30 : f32 to vector<16x1xf32>
    %88 = arith.addf %87, %86 : vector<16x1xf32>
    %89 = arith.divf %84, %88 : vector<16x1xf32>
    %cst_31 = arith.constant 9.99999974E-5 : f32
    %90 = vector.broadcast %cst_31 : f32 to vector<16x1xf32>
    %91 = arith.addf %89, %90 : vector<16x1xf32>
    %92 = math.rsqrt %91 : vector<16x1xf32>
    %93 = vector.broadcast %92 : vector<16x1xf32> to vector<16x4xf32>
    %94 = arith.mulf %81, %93 : vector<16x4xf32>
    %95 = vector.shape_cast %94 : vector<16x4xf32> to vector<1x16x4xf32>
    %96 = vector.broadcast %95 : vector<1x16x4xf32> to vector<3x16x4xf32>
    %97 = arith.mulf %36, %96 : vector<3x16x4xf32>
    %c0_32 = arith.constant 0 : index
    %c0_33 = arith.constant 0 : index
    %98 = vector.load %arg10[%c0_32, %c0_33] : memref<16x16xf32, #tpu.memory_space<vmem>>, vector<16x16xf32>
    tpu.vector_store %arg10[%c0_32, %c0_33], %60 {strides = array<i32>} : memref<16x16xf32, #tpu.memory_space<vmem>>, vector<16x16xf32>,
    %c0_34 = arith.constant 0 : index
    %c0_35 = arith.constant 0 : index
    %c0_36 = arith.constant 0 : index
    %99 = vector.load %arg11[%c0_34, %c0_35, %c0_36] : memref<3x16x4xf32, #tpu.memory_space<vmem>>, vector<3x16x4xf32>
    tpu.vector_store %arg11[%c0_34, %c0_35, %c0_36], %97 {strides = array<i32>} : memref<3x16x4xf32, #tpu.memory_space<vmem>>, vector<3x16x4xf32>,
    return
  }
  func.func @transform_0(%arg0: i32) -> (i32, i32) {
    %c0_i32 = arith.constant 0 : i32
    %c0_i32_0 = arith.constant 0 : i32
    return %arg0, %c0_i32 : i32, i32
  }
  func.func @transform_1(%arg0: i32) -> (i32, i32, i32) {
    %c0_i32 = arith.constant 0 : i32
    %c0_i32_0 = arith.constant 0 : i32
    %c0_i32_1 = arith.constant 0 : i32
    return %c0_i32, %arg0, %c0_i32_0 : i32, i32, i32
  }
  func.func @transform_2(%arg0: i32) -> (i32, i32) {
    %c0_i32 = arith.constant 0 : i32
    %c0_i32_0 = arith.constant 0 : i32
    %c0_i32_1 = arith.constant 0 : i32
    return %c0_i32, %c0_i32_0 : i32, i32
  }
  func.func @transform_3(%arg0: i32) -> (i32, i32) {
    %c0_i32 = arith.constant 0 : i32
    %c0_i32_0 = arith.constant 0 : i32
    %c0_i32_1 = arith.constant 0 : i32
    return %c0_i32, %c0_i32_0 : i32, i32
  }
  func.func @transform_4(%arg0: i32) -> (i32, i32) {
    %c0_i32 = arith.constant 0 : i32
    %c0_i32_0 = arith.constant 0 : i32
    %c0_i32_1 = arith.constant 0 : i32
    return %c0_i32, %c0_i32_0 : i32, i32
  }
  func.func @transform_5(%arg0: i32) -> (i32, i32) {
    %c0_i32 = arith.constant 0 : i32
    %c0_i32_0 = arith.constant 0 : i32
    %c0_i32_1 = arith.constant 0 : i32
    return %c0_i32, %c0_i32_0 : i32, i32
  }
  func.func @transform_6(%arg0: i32) -> (i32, i32) {
    %c0_i32 = arith.constant 0 : i32
    %c0_i32_0 = arith.constant 0 : i32
    %c0_i32_1 = arith.constant 0 : i32
    return %c0_i32, %c0_i32_0 : i32, i32
  }
  func.func @transform_7(%arg0: i32) -> (i32, i32) {
    %c0_i32 = arith.constant 0 : i32
    %c0_i32_0 = arith.constant 0 : i32
    %c0_i32_1 = arith.constant 0 : i32
    return %c0_i32, %c0_i32_0 : i32, i32
  }
  func.func @transform_8(%arg0: i32) -> (i32, i32) {
    %c0_i32 = arith.constant 0 : i32
    %c0_i32_0 = arith.constant 0 : i32
    %c0_i32_1 = arith.constant 0 : i32
    return %c0_i32, %c0_i32_0 : i32, i32
  }
  func.func @transform_9(%arg0: i32) -> (i32, i32) {
    %c0_i32 = arith.constant 0 : i32
    %c0_i32_0 = arith.constant 0 : i32
    return %arg0, %c0_i32 : i32, i32
  }
  func.func @transform_10(%arg0: i32) -> (i32, i32, i32) {
    %c0_i32 = arith.constant 0 : i32
    %c0_i32_0 = arith.constant 0 : i32
    %c0_i32_1 = arith.constant 0 : i32
    return %c0_i32, %arg0, %c0_i32_0 : i32, i32, i32
  }
}

module attributes {stable_mosaic.version = 11 : i64} {
  func.func @kernel(%arg0: i32, %arg1: memref<16x32xf32, #tpu.memory_space<vmem>>, %arg2: memref<3x16x8xf32, #tpu.memory_space<vmem>>, %arg3: memref<4x16x32xf32, #tpu.memory_space<vmem>>, %arg4: memref<3x4x16x8xf32, #tpu.memory_space<vmem>>, %arg5: memref<4x16x16xf32, #tpu.memory_space<vmem>>, %arg6: memref<3x4x16x4xf32, #tpu.memory_space<vmem>>, %arg7: memref<8x20xf32, #tpu.memory_space<vmem>>, %arg8: memref<4x20xf32, #tpu.memory_space<vmem>>, %arg9: memref<8x20xf32, #tpu.memory_space<vmem>>, %arg10: memref<32x32xf32, #tpu.memory_space<vmem>>, %arg11: memref<16x32xf32, #tpu.memory_space<vmem>>, %arg12: memref<32x32xf32, #tpu.memory_space<vmem>>, %arg13: memref<20x32xf32, #tpu.memory_space<vmem>>, %arg14: memref<1x32xf32, #tpu.memory_space<vmem>>, %arg15: memref<20x8xf32, #tpu.memory_space<vmem>>, %arg16: memref<32x8xf32, #tpu.memory_space<vmem>>, %arg17: memref<1x8xf32, #tpu.memory_space<vmem>>, %arg18: memref<8x8xf32, #tpu.memory_space<vmem>>, %arg19: memref<32x32xf32, #tpu.memory_space<vmem>>, %arg20: memref<8x32xf32, #tpu.memory_space<vmem>>, %arg21: memref<1x32xf32, #tpu.memory_space<vmem>>, %arg22: memref<8x8xf32, #tpu.memory_space<vmem>>, %arg23: memref<32x8xf32, #tpu.memory_space<vmem>>, %arg24: memref<1x8xf32, #tpu.memory_space<vmem>>, %arg25: memref<8x8xf32, #tpu.memory_space<vmem>>, %arg26: memref<32x32xf32, #tpu.memory_space<vmem>>, %arg27: memref<8x32xf32, #tpu.memory_space<vmem>>, %arg28: memref<1x32xf32, #tpu.memory_space<vmem>>, %arg29: memref<8x8xf32, #tpu.memory_space<vmem>>, %arg30: memref<1x32xf32, #tpu.memory_space<vmem>>, %arg31: memref<1x32xf32, #tpu.memory_space<vmem>>, %arg32: memref<16x32xf32, #tpu.memory_space<vmem>>, %arg33: memref<3x16x8xf32, #tpu.memory_space<vmem>>) attributes {dimension_semantics = [#tpu.dimension_semantics<parallel>], iteration_bounds = array<i64: 1>, scalar_prefetch = 0 : i64, scratch_operands = 0 : i64, tpu.core_type = #tpu.core_type<tc>, window_params = [{transform_indices = @transform_0, window_bounds = array<i64: 16, 32>}, {transform_indices = @transform_1, window_bounds = array<i64: 3, 16, 8>}, {transform_indices = @transform_2, window_bounds = array<i64: 4, 16, 32>}, {transform_indices = @transform_3, window_bounds = array<i64: 3, 4, 16, 8>}, {transform_indices = @transform_4, window_bounds = array<i64: 4, 16, 16>}, {transform_indices = @transform_5, window_bounds = array<i64: 3, 4, 16, 4>}, {pipeline_mode = #tpu.pipeline_mode<synchronous>, transform_indices = @transform_6, window_bounds = array<i64: 8, 20>}, {pipeline_mode = #tpu.pipeline_mode<synchronous>, transform_indices = @transform_7, window_bounds = array<i64: 4, 20>}, {pipeline_mode = #tpu.pipeline_mode<synchronous>, transform_indices = @transform_8, window_bounds = array<i64: 8, 20>}, {pipeline_mode = #tpu.pipeline_mode<synchronous>, transform_indices = @transform_9, window_bounds = array<i64: 32, 32>}, {pipeline_mode = #tpu.pipeline_mode<synchronous>, transform_indices = @transform_10, window_bounds = array<i64: 16, 32>}, {pipeline_mode = #tpu.pipeline_mode<synchronous>, transform_indices = @transform_11, window_bounds = array<i64: 32, 32>}, {pipeline_mode = #tpu.pipeline_mode<synchronous>, transform_indices = @transform_12, window_bounds = array<i64: 20, 32>}, {pipeline_mode = #tpu.pipeline_mode<synchronous>, transform_indices = @transform_13, window_bounds = array<i64: 1, 32>}, {pipeline_mode = #tpu.pipeline_mode<synchronous>, transform_indices = @transform_14, window_bounds = array<i64: 20, 8>}, {pipeline_mode = #tpu.pipeline_mode<synchronous>, transform_indices = @transform_15, window_bounds = array<i64: 32, 8>}, {pipeline_mode = #tpu.pipeline_mode<synchronous>, transform_indices = @transform_16, window_bounds = array<i64: 1, 8>}, {pipeline_mode = #tpu.pipeline_mode<synchronous>, transform_indices = @transform_17, window_bounds = array<i64: 8, 8>}, {pipeline_mode = #tpu.pipeline_mode<synchronous>, transform_indices = @transform_18, window_bounds = array<i64: 32, 32>}, {pipeline_mode = #tpu.pipeline_mode<synchronous>, transform_indices = @transform_19, window_bounds = array<i64: 8, 32>}, {pipeline_mode = #tpu.pipeline_mode<synchronous>, transform_indices = @transform_20, window_bounds = array<i64: 1, 32>}, {pipeline_mode = #tpu.pipeline_mode<synchronous>, transform_indices = @transform_21, window_bounds = array<i64: 8, 8>}, {pipeline_mode = #tpu.pipeline_mode<synchronous>, transform_indices = @transform_22, window_bounds = array<i64: 32, 8>}, {pipeline_mode = #tpu.pipeline_mode<synchronous>, transform_indices = @transform_23, window_bounds = array<i64: 1, 8>}, {pipeline_mode = #tpu.pipeline_mode<synchronous>, transform_indices = @transform_24, window_bounds = array<i64: 8, 8>}, {pipeline_mode = #tpu.pipeline_mode<synchronous>, transform_indices = @transform_25, window_bounds = array<i64: 32, 32>}, {pipeline_mode = #tpu.pipeline_mode<synchronous>, transform_indices = @transform_26, window_bounds = array<i64: 8, 32>}, {pipeline_mode = #tpu.pipeline_mode<synchronous>, transform_indices = @transform_27, window_bounds = array<i64: 1, 32>}, {pipeline_mode = #tpu.pipeline_mode<synchronous>, transform_indices = @transform_28, window_bounds = array<i64: 8, 8>}, {pipeline_mode = #tpu.pipeline_mode<synchronous>, transform_indices = @transform_29, window_bounds = array<i64: 1, 32>}, {pipeline_mode = #tpu.pipeline_mode<synchronous>, transform_indices = @transform_30, window_bounds = array<i64: 1, 32>}, {transform_indices = @transform_31, window_bounds = array<i64: 16, 32>}, {transform_indices = @transform_32, window_bounds = array<i64: 3, 16, 8>}]} {
    %c0 = arith.constant 0 : index
    %c0_0 = arith.constant 0 : index
    %0 = vector.load %arg1[%c0, %c0_0] : memref<16x32xf32, #tpu.memory_space<vmem>>, vector<16x32xf32>
    %c0_1 = arith.constant 0 : index
    %c0_2 = arith.constant 0 : index
    %c0_3 = arith.constant 0 : index
    %1 = vector.load %arg2[%c0_1, %c0_2, %c0_3] : memref<3x16x8xf32, #tpu.memory_space<vmem>>, vector<3x16x8xf32>
    %c0_4 = arith.constant 0 : index
    %c0_5 = arith.constant 0 : index
    %c0_6 = arith.constant 0 : index
    %2 = vector.load %arg3[%c0_4, %c0_5, %c0_6] : memref<4x16x32xf32, #tpu.memory_space<vmem>>, vector<4x16x32xf32>
    %c0_7 = arith.constant 0 : index
    %c0_8 = arith.constant 0 : index
    %c0_9 = arith.constant 0 : index
    %c0_10 = arith.constant 0 : index
    %3 = vector.load %arg4[%c0_7, %c0_8, %c0_9, %c0_10] : memref<3x4x16x8xf32, #tpu.memory_space<vmem>>, vector<3x4x16x8xf32>
    %c0_11 = arith.constant 0 : index
    %c0_12 = arith.constant 0 : index
    %c0_13 = arith.constant 0 : index
    %4 = vector.load %arg5[%c0_11, %c0_12, %c0_13] : memref<4x16x16xf32, #tpu.memory_space<vmem>>, vector<4x16x16xf32>
    %c0_14 = arith.constant 0 : index
    %c0_15 = arith.constant 0 : index
    %c0_16 = arith.constant 0 : index
    %c0_17 = arith.constant 0 : index
    %5 = vector.load %arg6[%c0_14, %c0_15, %c0_16, %c0_17] : memref<3x4x16x4xf32, #tpu.memory_space<vmem>>, vector<3x4x16x4xf32>
    %6 = vector.shape_cast %3 : vector<3x4x16x8xf32> to vector<192x8xf32>
    %c0_18 = arith.constant 0 : index
    %c0_19 = arith.constant 0 : index
    %7 = vector.load %arg7[%c0_18, %c0_19] : memref<8x20xf32, #tpu.memory_space<vmem>>, vector<8x20xf32>
    %cst = arith.constant dense<0.000000e+00> : vector<192x20xf32>
    %8 = tpu.matmul %6, %7, %cst {dimension_numbers = #tpu.dot_dimension_numbers<[1], [0], [0], [1], [0, 0, 1, 1], [], []>} : vector<192x8xf32>, vector<8x20xf32>, vector<192x20xf32> -> vector<192x20xf32>
    %9 = vector.shape_cast %5 : vector<3x4x16x4xf32> to vector<192x4xf32>
    %c0_20 = arith.constant 0 : index
    %c0_21 = arith.constant 0 : index
    %10 = vector.load %arg8[%c0_20, %c0_21] : memref<4x20xf32, #tpu.memory_space<vmem>>, vector<4x20xf32>
    %cst_22 = arith.constant dense<0.000000e+00> : vector<192x20xf32>
    %11 = tpu.matmul %9, %10, %cst_22 {dimension_numbers = #tpu.dot_dimension_numbers<[1], [0], [0], [1], [0, 0, 1, 1], [], []>} : vector<192x4xf32>, vector<4x20xf32>, vector<192x20xf32> -> vector<192x20xf32>
    %12 = arith.addf %8, %11 : vector<192x20xf32>
    %13 = vector.shape_cast %12 : vector<192x20xf32> to vector<3x4x16x20xf32>
    %14 = vector.shape_cast %1 : vector<3x16x8xf32> to vector<48x8xf32>
    %c0_23 = arith.constant 0 : index
    %c0_24 = arith.constant 0 : index
    %15 = vector.load %arg9[%c0_23, %c0_24] : memref<8x20xf32, #tpu.memory_space<vmem>>, vector<8x20xf32>
    %cst_25 = arith.constant dense<0.000000e+00> : vector<48x20xf32>
    %16 = tpu.matmul %14, %15, %cst_25 {dimension_numbers = #tpu.dot_dimension_numbers<[1], [0], [0], [1], [0, 0, 1, 1], [], []>} : vector<48x8xf32>, vector<8x20xf32>, vector<48x20xf32> -> vector<48x20xf32>
    %17 = vector.shape_cast %16 : vector<48x20xf32> to vector<3x1x16x20xf32>
    %18 = vector.broadcast %17 : vector<3x1x16x20xf32> to vector<3x4x16x20xf32>
    %19 = arith.addf %13, %18 : vector<3x4x16x20xf32>
    %20 = vector.extract_strided_slice %19 {offsets = [0, 0, 0, 0], sizes = [1, 4, 16, 20], strides = [1, 1, 1, 1]} : vector<3x4x16x20xf32> to vector<1x4x16x20xf32>
    %21 = vector.shape_cast %20 : vector<1x4x16x20xf32> to vector<4x16x20xf32>
    %22 = vector.extract_strided_slice %19 {offsets = [0, 0, 0, 0], sizes = [1, 4, 16, 20], strides = [1, 1, 1, 1]} : vector<3x4x16x20xf32> to vector<1x4x16x20xf32>
    %23 = vector.shape_cast %22 : vector<1x4x16x20xf32> to vector<4x16x20xf32>
    %24 = arith.mulf %21, %23 : vector<4x16x20xf32>
    %25 = vector.extract_strided_slice %19 {offsets = [1, 0, 0, 0], sizes = [1, 4, 16, 20], strides = [1, 1, 1, 1]} : vector<3x4x16x20xf32> to vector<1x4x16x20xf32>
    %26 = vector.shape_cast %25 : vector<1x4x16x20xf32> to vector<4x16x20xf32>
    %27 = vector.extract_strided_slice %19 {offsets = [1, 0, 0, 0], sizes = [1, 4, 16, 20], strides = [1, 1, 1, 1]} : vector<3x4x16x20xf32> to vector<1x4x16x20xf32>
    %28 = vector.shape_cast %27 : vector<1x4x16x20xf32> to vector<4x16x20xf32>
    %29 = arith.mulf %26, %28 : vector<4x16x20xf32>
    %30 = arith.addf %24, %29 : vector<4x16x20xf32>
    %31 = vector.extract_strided_slice %19 {offsets = [2, 0, 0, 0], sizes = [1, 4, 16, 20], strides = [1, 1, 1, 1]} : vector<3x4x16x20xf32> to vector<1x4x16x20xf32>
    %32 = vector.shape_cast %31 : vector<1x4x16x20xf32> to vector<4x16x20xf32>
    %33 = vector.extract_strided_slice %19 {offsets = [2, 0, 0, 0], sizes = [1, 4, 16, 20], strides = [1, 1, 1, 1]} : vector<3x4x16x20xf32> to vector<1x4x16x20xf32>
    %34 = vector.shape_cast %33 : vector<1x4x16x20xf32> to vector<4x16x20xf32>
    %35 = arith.mulf %32, %34 : vector<4x16x20xf32>
    %36 = arith.addf %30, %35 : vector<4x16x20xf32>
    %cst_26 = arith.constant 9.99999993E-9 : f32
    %37 = vector.broadcast %cst_26 : f32 to vector<4x16x20xf32>
    %38 = arith.maximumf %36, %37 : vector<4x16x20xf32>
    %39 = math.sqrt %38 : vector<4x16x20xf32>
    %40 = vector.shape_cast %2 : vector<4x16x32xf32> to vector<64x32xf32>
    %c0_27 = arith.constant 0 : index
    %c0_28 = arith.constant 0 : index
    %41 = vector.load %arg10[%c0_27, %c0_28] : memref<32x32xf32, #tpu.memory_space<vmem>>, vector<32x32xf32>
    %cst_29 = arith.constant dense<0.000000e+00> : vector<64x32xf32>
    %42 = tpu.matmul %40, %41, %cst_29 {dimension_numbers = #tpu.dot_dimension_numbers<[1], [0], [0], [1], [0, 0, 1, 1], [], []>} : vector<64x32xf32>, vector<32x32xf32>, vector<64x32xf32> -> vector<64x32xf32>
    %43 = vector.shape_cast %42 : vector<64x32xf32> to vector<4x16x32xf32>
    %44 = vector.shape_cast %4 : vector<4x16x16xf32> to vector<64x16xf32>
    %c0_30 = arith.constant 0 : index
    %c0_31 = arith.constant 0 : index
    %45 = vector.load %arg11[%c0_30, %c0_31] : memref<16x32xf32, #tpu.memory_space<vmem>>, vector<16x32xf32>
    %cst_32 = arith.constant dense<0.000000e+00> : vector<64x32xf32>
    %46 = tpu.matmul %44, %45, %cst_32 {dimension_numbers = #tpu.dot_dimension_numbers<[1], [0], [0], [1], [0, 0, 1, 1], [], []>} : vector<64x16xf32>, vector<16x32xf32>, vector<64x32xf32> -> vector<64x32xf32>
    %47 = vector.shape_cast %46 : vector<64x32xf32> to vector<4x16x32xf32>
    %48 = arith.addf %43, %47 : vector<4x16x32xf32>
    %49 = vector.shape_cast %39 : vector<4x16x20xf32> to vector<64x20xf32>
    %c0_33 = arith.constant 0 : index
    %c0_34 = arith.constant 0 : index
    %50 = vector.load %arg13[%c0_33, %c0_34] : memref<20x32xf32, #tpu.memory_space<vmem>>, vector<20x32xf32>
    %cst_35 = arith.constant dense<0.000000e+00> : vector<64x32xf32>
    %51 = tpu.matmul %49, %50, %cst_35 {dimension_numbers = #tpu.dot_dimension_numbers<[1], [0], [0], [1], [0, 0, 1, 1], [], []>} : vector<64x20xf32>, vector<20x32xf32>, vector<64x32xf32> -> vector<64x32xf32>
    %52 = vector.shape_cast %51 : vector<64x32xf32> to vector<4x16x32xf32>
    %53 = arith.addf %48, %52 : vector<4x16x32xf32>
    %c0_36 = arith.constant 0 : index
    %c0_37 = arith.constant 0 : index
    %54 = vector.load %arg12[%c0_36, %c0_37] : memref<32x32xf32, #tpu.memory_space<vmem>>, vector<32x32xf32>
    %cst_38 = arith.constant dense<0.000000e+00> : vector<16x32xf32>
    %55 = tpu.matmul %0, %54, %cst_38 {dimension_numbers = #tpu.dot_dimension_numbers<[1], [0], [0], [1], [0, 0, 1, 1], [], []>} : vector<16x32xf32>, vector<32x32xf32>, vector<16x32xf32> -> vector<16x32xf32>
    %56 = vector.shape_cast %55 : vector<16x32xf32> to vector<1x16x32xf32>
    %57 = vector.broadcast %56 : vector<1x16x32xf32> to vector<4x16x32xf32>
    %58 = arith.addf %53, %57 : vector<4x16x32xf32>
    %c0_39 = arith.constant 0 : index
    %c0_40 = arith.constant 0 : index
    %59 = vector.load %arg14[%c0_39, %c0_40] : memref<1x32xf32, #tpu.memory_space<vmem>>, vector<1x32xf32>
    %60 = vector.shape_cast %59 : vector<1x32xf32> to vector<1x1x32xf32>
    %61 = vector.broadcast %60 : vector<1x1x32xf32> to vector<4x16x32xf32>
    %62 = arith.addf %58, %61 : vector<4x16x32xf32>
    %63 = vector.shape_cast %19 : vector<3x4x16x20xf32> to vector<192x20xf32>
    %c0_41 = arith.constant 0 : index
    %c0_42 = arith.constant 0 : index
    %64 = vector.load %arg15[%c0_41, %c0_42] : memref<20x8xf32, #tpu.memory_space<vmem>>, vector<20x8xf32>
    %cst_43 = arith.constant dense<0.000000e+00> : vector<192x8xf32>
    %65 = tpu.matmul %63, %64, %cst_43 {dimension_numbers = #tpu.dot_dimension_numbers<[1], [0], [0], [1], [0, 0, 1, 1], [], []>} : vector<192x20xf32>, vector<20x8xf32>, vector<192x8xf32> -> vector<192x8xf32>
    %66 = vector.shape_cast %65 : vector<192x8xf32> to vector<3x4x16x8xf32>
    %67 = arith.negf %62 : vector<4x16x32xf32>
    %68 = math.exp %67 : vector<4x16x32xf32>
    %cst_44 = arith.constant 1.000000e+00 : f32
    %69 = vector.broadcast %cst_44 : f32 to vector<4x16x32xf32>
    %70 = arith.addf %69, %68 : vector<4x16x32xf32>
    %71 = arith.divf %69, %70 : vector<4x16x32xf32>
    %72 = vector.shape_cast %71 : vector<4x16x32xf32> to vector<64x32xf32>
    %c0_45 = arith.constant 0 : index
    %c0_46 = arith.constant 0 : index
    %73 = vector.load %arg16[%c0_45, %c0_46] : memref<32x8xf32, #tpu.memory_space<vmem>>, vector<32x8xf32>
    %cst_47 = arith.constant dense<0.000000e+00> : vector<64x8xf32>
    %74 = tpu.matmul %72, %73, %cst_47 {dimension_numbers = #tpu.dot_dimension_numbers<[1], [0], [0], [1], [0, 0, 1, 1], [], []>} : vector<64x32xf32>, vector<32x8xf32>, vector<64x8xf32> -> vector<64x8xf32>
    %c0_48 = arith.constant 0 : index
    %c0_49 = arith.constant 0 : index
    %75 = vector.load %arg17[%c0_48, %c0_49] : memref<1x8xf32, #tpu.memory_space<vmem>>, vector<1x8xf32>
    %76 = vector.broadcast %75 : vector<1x8xf32> to vector<64x8xf32>
    %77 = arith.addf %74, %76 : vector<64x8xf32>
    %78 = arith.negf %77 : vector<64x8xf32>
    %79 = math.exp %78 : vector<64x8xf32>
    %cst_50 = arith.constant 1.000000e+00 : f32
    %80 = vector.broadcast %cst_50 : f32 to vector<64x8xf32>
    %81 = arith.addf %80, %79 : vector<64x8xf32>
    %82 = arith.divf %80, %81 : vector<64x8xf32>
    %83 = vector.shape_cast %82 : vector<64x8xf32> to vector<1x4x16x8xf32>
    %84 = vector.broadcast %83 : vector<1x4x16x8xf32> to vector<3x4x16x8xf32>
    %85 = arith.mulf %66, %84 : vector<3x4x16x8xf32>
    %cst_51 = arith.constant 0.000000e+00 : f32
    %86 = vector.broadcast %cst_51 : f32 to vector<4x16x32xf32>
    %87 = arith.maximumf %62, %86 : vector<4x16x32xf32>
    %88 = vector.shape_cast %87 : vector<4x16x32xf32> to vector<64x32xf32>
    %89 = vector.shape_cast %85 : vector<3x4x16x8xf32> to vector<3x64x8xf32>
    %c0_52 = arith.constant 0 : index
    %c0_53 = arith.constant 0 : index
    %90 = vector.load %arg18[%c0_52, %c0_53] : memref<8x8xf32, #tpu.memory_space<vmem>>, vector<8x8xf32>
    %c0_54 = arith.constant 0 : index
    %c0_55 = arith.constant 0 : index
    %91 = vector.load %arg19[%c0_54, %c0_55] : memref<32x32xf32, #tpu.memory_space<vmem>>, vector<32x32xf32>
    %c0_56 = arith.constant 0 : index
    %c0_57 = arith.constant 0 : index
    %92 = vector.load %arg20[%c0_56, %c0_57] : memref<8x32xf32, #tpu.memory_space<vmem>>, vector<8x32xf32>
    %c0_58 = arith.constant 0 : index
    %c0_59 = arith.constant 0 : index
    %93 = vector.load %arg21[%c0_58, %c0_59] : memref<1x32xf32, #tpu.memory_space<vmem>>, vector<1x32xf32>
    %c0_60 = arith.constant 0 : index
    %c0_61 = arith.constant 0 : index
    %94 = vector.load %arg22[%c0_60, %c0_61] : memref<8x8xf32, #tpu.memory_space<vmem>>, vector<8x8xf32>
    %c0_62 = arith.constant 0 : index
    %c0_63 = arith.constant 0 : index
    %95 = vector.load %arg23[%c0_62, %c0_63] : memref<32x8xf32, #tpu.memory_space<vmem>>, vector<32x8xf32>
    %c0_64 = arith.constant 0 : index
    %c0_65 = arith.constant 0 : index
    %96 = vector.load %arg24[%c0_64, %c0_65] : memref<1x8xf32, #tpu.memory_space<vmem>>, vector<1x8xf32>
    %97 = vector.shape_cast %89 : vector<3x64x8xf32> to vector<192x8xf32>
    %cst_66 = arith.constant dense<0.000000e+00> : vector<192x8xf32>
    %98 = tpu.matmul %97, %90, %cst_66 {dimension_numbers = #tpu.dot_dimension_numbers<[1], [0], [0], [1], [0, 0, 1, 1], [], []>} : vector<192x8xf32>, vector<8x8xf32>, vector<192x8xf32> -> vector<192x8xf32>
    %99 = vector.shape_cast %98 : vector<192x8xf32> to vector<3x64x8xf32>
    %100 = vector.extract_strided_slice %99 {offsets = [0, 0, 0], sizes = [1, 64, 8], strides = [1, 1, 1]} : vector<3x64x8xf32> to vector<1x64x8xf32>
    %101 = vector.shape_cast %100 : vector<1x64x8xf32> to vector<64x8xf32>
    %102 = vector.extract_strided_slice %99 {offsets = [0, 0, 0], sizes = [1, 64, 8], strides = [1, 1, 1]} : vector<3x64x8xf32> to vector<1x64x8xf32>
    %103 = vector.shape_cast %102 : vector<1x64x8xf32> to vector<64x8xf32>
    %104 = arith.mulf %101, %103 : vector<64x8xf32>
    %105 = vector.extract_strided_slice %99 {offsets = [1, 0, 0], sizes = [1, 64, 8], strides = [1, 1, 1]} : vector<3x64x8xf32> to vector<1x64x8xf32>
    %106 = vector.shape_cast %105 : vector<1x64x8xf32> to vector<64x8xf32>
    %107 = vector.extract_strided_slice %99 {offsets = [1, 0, 0], sizes = [1, 64, 8], strides = [1, 1, 1]} : vector<3x64x8xf32> to vector<1x64x8xf32>
    %108 = vector.shape_cast %107 : vector<1x64x8xf32> to vector<64x8xf32>
    %109 = arith.mulf %106, %108 : vector<64x8xf32>
    %110 = arith.addf %104, %109 : vector<64x8xf32>
    %111 = vector.extract_strided_slice %99 {offsets = [2, 0, 0], sizes = [1, 64, 8], strides = [1, 1, 1]} : vector<3x64x8xf32> to vector<1x64x8xf32>
    %112 = vector.shape_cast %111 : vector<1x64x8xf32> to vector<64x8xf32>
    %113 = vector.extract_strided_slice %99 {offsets = [2, 0, 0], sizes = [1, 64, 8], strides = [1, 1, 1]} : vector<3x64x8xf32> to vector<1x64x8xf32>
    %114 = vector.shape_cast %113 : vector<1x64x8xf32> to vector<64x8xf32>
    %115 = arith.mulf %112, %114 : vector<64x8xf32>
    %116 = arith.addf %110, %115 : vector<64x8xf32>
    %cst_67 = arith.constant 9.99999993E-9 : f32
    %117 = vector.broadcast %cst_67 : f32 to vector<64x8xf32>
    %118 = arith.maximumf %116, %117 : vector<64x8xf32>
    %119 = math.sqrt %118 : vector<64x8xf32>
    %cst_68 = arith.constant dense<0.000000e+00> : vector<64x32xf32>
    %120 = tpu.matmul %88, %91, %cst_68 {dimension_numbers = #tpu.dot_dimension_numbers<[1], [0], [0], [1], [0, 0, 1, 1], [], []>} : vector<64x32xf32>, vector<32x32xf32>, vector<64x32xf32> -> vector<64x32xf32>
    %cst_69 = arith.constant dense<0.000000e+00> : vector<64x32xf32>
    %121 = tpu.matmul %119, %92, %cst_69 {dimension_numbers = #tpu.dot_dimension_numbers<[1], [0], [0], [1], [0, 0, 1, 1], [], []>} : vector<64x8xf32>, vector<8x32xf32>, vector<64x32xf32> -> vector<64x32xf32>
    %122 = arith.addf %120, %121 : vector<64x32xf32>
    %123 = vector.broadcast %93 : vector<1x32xf32> to vector<64x32xf32>
    %124 = arith.addf %122, %123 : vector<64x32xf32>
    %cst_70 = arith.constant dense<0.000000e+00> : vector<192x8xf32>
    %125 = tpu.matmul %98, %94, %cst_70 {dimension_numbers = #tpu.dot_dimension_numbers<[1], [0], [0], [1], [0, 0, 1, 1], [], []>} : vector<192x8xf32>, vector<8x8xf32>, vector<192x8xf32> -> vector<192x8xf32>
    %126 = vector.shape_cast %125 : vector<192x8xf32> to vector<3x64x8xf32>
    %127 = arith.negf %124 : vector<64x32xf32>
    %128 = math.exp %127 : vector<64x32xf32>
    %cst_71 = arith.constant 1.000000e+00 : f32
    %129 = vector.broadcast %cst_71 : f32 to vector<64x32xf32>
    %130 = arith.addf %129, %128 : vector<64x32xf32>
    %131 = arith.divf %129, %130 : vector<64x32xf32>
    %cst_72 = arith.constant dense<0.000000e+00> : vector<64x8xf32>
    %132 = tpu.matmul %131, %95, %cst_72 {dimension_numbers = #tpu.dot_dimension_numbers<[1], [0], [0], [1], [0, 0, 1, 1], [], []>} : vector<64x32xf32>, vector<32x8xf32>, vector<64x8xf32> -> vector<64x8xf32>
    %133 = vector.broadcast %96 : vector<1x8xf32> to vector<64x8xf32>
    %134 = arith.addf %132, %133 : vector<64x8xf32>
    %135 = arith.negf %134 : vector<64x8xf32>
    %136 = math.exp %135 : vector<64x8xf32>
    %cst_73 = arith.constant 1.000000e+00 : f32
    %137 = vector.broadcast %cst_73 : f32 to vector<64x8xf32>
    %138 = arith.addf %137, %136 : vector<64x8xf32>
    %139 = arith.divf %137, %138 : vector<64x8xf32>
    %140 = vector.shape_cast %139 : vector<64x8xf32> to vector<1x64x8xf32>
    %141 = vector.broadcast %140 : vector<1x64x8xf32> to vector<3x64x8xf32>
    %142 = arith.mulf %126, %141 : vector<3x64x8xf32>
    %cst_74 = arith.constant 0.000000e+00 : f32
    %143 = vector.broadcast %cst_74 : f32 to vector<64x32xf32>
    %144 = arith.maximumf %124, %143 : vector<64x32xf32>
    %c0_75 = arith.constant 0 : index
    %c0_76 = arith.constant 0 : index
    %145 = vector.load %arg25[%c0_75, %c0_76] : memref<8x8xf32, #tpu.memory_space<vmem>>, vector<8x8xf32>
    %c0_77 = arith.constant 0 : index
    %c0_78 = arith.constant 0 : index
    %146 = vector.load %arg26[%c0_77, %c0_78] : memref<32x32xf32, #tpu.memory_space<vmem>>, vector<32x32xf32>
    %c0_79 = arith.constant 0 : index
    %c0_80 = arith.constant 0 : index
    %147 = vector.load %arg27[%c0_79, %c0_80] : memref<8x32xf32, #tpu.memory_space<vmem>>, vector<8x32xf32>
    %c0_81 = arith.constant 0 : index
    %c0_82 = arith.constant 0 : index
    %148 = vector.load %arg28[%c0_81, %c0_82] : memref<1x32xf32, #tpu.memory_space<vmem>>, vector<1x32xf32>
    %c0_83 = arith.constant 0 : index
    %c0_84 = arith.constant 0 : index
    %149 = vector.load %arg29[%c0_83, %c0_84] : memref<8x8xf32, #tpu.memory_space<vmem>>, vector<8x8xf32>
    %150 = vector.shape_cast %142 : vector<3x64x8xf32> to vector<192x8xf32>
    %cst_85 = arith.constant dense<0.000000e+00> : vector<192x8xf32>
    %151 = tpu.matmul %150, %145, %cst_85 {dimension_numbers = #tpu.dot_dimension_numbers<[1], [0], [0], [1], [0, 0, 1, 1], [], []>} : vector<192x8xf32>, vector<8x8xf32>, vector<192x8xf32> -> vector<192x8xf32>
    %152 = vector.shape_cast %151 : vector<192x8xf32> to vector<3x64x8xf32>
    %153 = vector.extract_strided_slice %152 {offsets = [0, 0, 0], sizes = [1, 64, 8], strides = [1, 1, 1]} : vector<3x64x8xf32> to vector<1x64x8xf32>
    %154 = vector.shape_cast %153 : vector<1x64x8xf32> to vector<64x8xf32>
    %155 = vector.extract_strided_slice %152 {offsets = [0, 0, 0], sizes = [1, 64, 8], strides = [1, 1, 1]} : vector<3x64x8xf32> to vector<1x64x8xf32>
    %156 = vector.shape_cast %155 : vector<1x64x8xf32> to vector<64x8xf32>
    %157 = arith.mulf %154, %156 : vector<64x8xf32>
    %158 = vector.extract_strided_slice %152 {offsets = [1, 0, 0], sizes = [1, 64, 8], strides = [1, 1, 1]} : vector<3x64x8xf32> to vector<1x64x8xf32>
    %159 = vector.shape_cast %158 : vector<1x64x8xf32> to vector<64x8xf32>
    %160 = vector.extract_strided_slice %152 {offsets = [1, 0, 0], sizes = [1, 64, 8], strides = [1, 1, 1]} : vector<3x64x8xf32> to vector<1x64x8xf32>
    %161 = vector.shape_cast %160 : vector<1x64x8xf32> to vector<64x8xf32>
    %162 = arith.mulf %159, %161 : vector<64x8xf32>
    %163 = arith.addf %157, %162 : vector<64x8xf32>
    %164 = vector.extract_strided_slice %152 {offsets = [2, 0, 0], sizes = [1, 64, 8], strides = [1, 1, 1]} : vector<3x64x8xf32> to vector<1x64x8xf32>
    %165 = vector.shape_cast %164 : vector<1x64x8xf32> to vector<64x8xf32>
    %166 = vector.extract_strided_slice %152 {offsets = [2, 0, 0], sizes = [1, 64, 8], strides = [1, 1, 1]} : vector<3x64x8xf32> to vector<1x64x8xf32>
    %167 = vector.shape_cast %166 : vector<1x64x8xf32> to vector<64x8xf32>
    %168 = arith.mulf %165, %167 : vector<64x8xf32>
    %169 = arith.addf %163, %168 : vector<64x8xf32>
    %cst_86 = arith.constant 9.99999993E-9 : f32
    %170 = vector.broadcast %cst_86 : f32 to vector<64x8xf32>
    %171 = arith.maximumf %169, %170 : vector<64x8xf32>
    %172 = math.sqrt %171 : vector<64x8xf32>
    %cst_87 = arith.constant dense<0.000000e+00> : vector<64x32xf32>
    %173 = tpu.matmul %144, %146, %cst_87 {dimension_numbers = #tpu.dot_dimension_numbers<[1], [0], [0], [1], [0, 0, 1, 1], [], []>} : vector<64x32xf32>, vector<32x32xf32>, vector<64x32xf32> -> vector<64x32xf32>
    %cst_88 = arith.constant dense<0.000000e+00> : vector<64x32xf32>
    %174 = tpu.matmul %172, %147, %cst_88 {dimension_numbers = #tpu.dot_dimension_numbers<[1], [0], [0], [1], [0, 0, 1, 1], [], []>} : vector<64x8xf32>, vector<8x32xf32>, vector<64x32xf32> -> vector<64x32xf32>
    %175 = arith.addf %173, %174 : vector<64x32xf32>
    %176 = vector.broadcast %148 : vector<1x32xf32> to vector<64x32xf32>
    %177 = arith.addf %175, %176 : vector<64x32xf32>
    %cst_89 = arith.constant dense<0.000000e+00> : vector<192x8xf32>
    %178 = tpu.matmul %151, %149, %cst_89 {dimension_numbers = #tpu.dot_dimension_numbers<[1], [0], [0], [1], [0, 0, 1, 1], [], []>} : vector<192x8xf32>, vector<8x8xf32>, vector<192x8xf32> -> vector<192x8xf32>
    %179 = vector.shape_cast %178 : vector<192x8xf32> to vector<3x64x8xf32>
    %180 = vector.shape_cast %177 : vector<64x32xf32> to vector<4x16x32xf32>
    %181 = vector.shape_cast %179 : vector<3x64x8xf32> to vector<3x4x16x8xf32>
    %182 = vector.extract_strided_slice %180 {offsets = [0, 0, 0], sizes = [1, 16, 32], strides = [1, 1, 1]} : vector<4x16x32xf32> to vector<1x16x32xf32>
    %183 = vector.shape_cast %182 : vector<1x16x32xf32> to vector<16x32xf32>
    %184 = vector.extract_strided_slice %181 {offsets = [0, 0, 0, 0], sizes = [3, 1, 16, 8], strides = [1, 1, 1, 1]} : vector<3x4x16x8xf32> to vector<3x1x16x8xf32>
    %185 = vector.shape_cast %184 : vector<3x1x16x8xf32> to vector<3x16x8xf32>
    %186 = vector.extract_strided_slice %180 {offsets = [1, 0, 0], sizes = [1, 16, 32], strides = [1, 1, 1]} : vector<4x16x32xf32> to vector<1x16x32xf32>
    %187 = vector.shape_cast %186 : vector<1x16x32xf32> to vector<16x32xf32>
    %188 = arith.addf %183, %187 : vector<16x32xf32>
    %189 = vector.extract_strided_slice %181 {offsets = [0, 1, 0, 0], sizes = [3, 1, 16, 8], strides = [1, 1, 1, 1]} : vector<3x4x16x8xf32> to vector<3x1x16x8xf32>
    %190 = vector.shape_cast %189 : vector<3x1x16x8xf32> to vector<3x16x8xf32>
    %191 = arith.addf %185, %190 : vector<3x16x8xf32>
    %192 = vector.extract_strided_slice %180 {offsets = [2, 0, 0], sizes = [1, 16, 32], strides = [1, 1, 1]} : vector<4x16x32xf32> to vector<1x16x32xf32>
    %193 = vector.shape_cast %192 : vector<1x16x32xf32> to vector<16x32xf32>
    %194 = arith.addf %188, %193 : vector<16x32xf32>
    %195 = vector.extract_strided_slice %181 {offsets = [0, 2, 0, 0], sizes = [3, 1, 16, 8], strides = [1, 1, 1, 1]} : vector<3x4x16x8xf32> to vector<3x1x16x8xf32>
    %196 = vector.shape_cast %195 : vector<3x1x16x8xf32> to vector<3x16x8xf32>
    %197 = arith.addf %191, %196 : vector<3x16x8xf32>
    %198 = vector.extract_strided_slice %180 {offsets = [3, 0, 0], sizes = [1, 16, 32], strides = [1, 1, 1]} : vector<4x16x32xf32> to vector<1x16x32xf32>
    %199 = vector.shape_cast %198 : vector<1x16x32xf32> to vector<16x32xf32>
    %200 = arith.addf %194, %199 : vector<16x32xf32>
    %201 = vector.extract_strided_slice %181 {offsets = [0, 3, 0, 0], sizes = [3, 1, 16, 8], strides = [1, 1, 1, 1]} : vector<3x4x16x8xf32> to vector<3x1x16x8xf32>
    %202 = vector.shape_cast %201 : vector<3x1x16x8xf32> to vector<3x16x8xf32>
    %203 = arith.addf %197, %202 : vector<3x16x8xf32>
    %cst_90 = arith.constant 2.500000e-01 : f32
    %204 = vector.broadcast %cst_90 : f32 to vector<16x32xf32>
    %205 = arith.mulf %200, %204 : vector<16x32xf32>
    %cst_91 = arith.constant 2.500000e-01 : f32
    %206 = vector.broadcast %cst_91 : f32 to vector<3x16x8xf32>
    %207 = arith.mulf %203, %206 : vector<3x16x8xf32>
    %208 = arith.addf %0, %205 : vector<16x32xf32>
    %209 = arith.addf %1, %207 : vector<3x16x8xf32>
    %c0_92 = arith.constant 0 : index
    %c0_93 = arith.constant 0 : index
    %210 = vector.load %arg30[%c0_92, %c0_93] : memref<1x32xf32, #tpu.memory_space<vmem>>, vector<1x32xf32>
    %c0_94 = arith.constant 0 : index
    %c0_95 = arith.constant 0 : index
    %211 = vector.load %arg31[%c0_94, %c0_95] : memref<1x32xf32, #tpu.memory_space<vmem>>, vector<1x32xf32>
    %cst_96 = arith.constant dense<0.000000e+00> : vector<16xf32>
    %212 = vector.multi_reduction <add>, %208, %cst_96 [1] : vector<16x32xf32> to vector<16xf32>
    %213 = vector.shape_cast %212 : vector<16xf32> to vector<16x1xf32>
    %cst_97 = arith.constant 3.200000e+01 : f32
    %214 = vector.broadcast %cst_97 : f32 to vector<16x1xf32>
    %215 = arith.divf %213, %214 : vector<16x1xf32>
    %216 = vector.broadcast %215 : vector<16x1xf32> to vector<16x32xf32>
    %217 = arith.subf %208, %216 : vector<16x32xf32>
    %218 = arith.mulf %217, %217 : vector<16x32xf32>
    %cst_98 = arith.constant dense<0.000000e+00> : vector<16xf32>
    %219 = vector.multi_reduction <add>, %218, %cst_98 [1] : vector<16x32xf32> to vector<16xf32>
    %220 = vector.shape_cast %219 : vector<16xf32> to vector<16x1xf32>
    %cst_99 = arith.constant 3.200000e+01 : f32
    %221 = vector.broadcast %cst_99 : f32 to vector<16x1xf32>
    %222 = arith.divf %220, %221 : vector<16x1xf32>
    %223 = vector.broadcast %215 : vector<16x1xf32> to vector<16x32xf32>
    %224 = arith.subf %208, %223 : vector<16x32xf32>
    %cst_100 = arith.constant 9.99999974E-6 : f32
    %225 = vector.broadcast %cst_100 : f32 to vector<16x1xf32>
    %226 = arith.addf %222, %225 : vector<16x1xf32>
    %227 = math.rsqrt %226 : vector<16x1xf32>
    %228 = vector.broadcast %227 : vector<16x1xf32> to vector<16x32xf32>
    %229 = arith.mulf %224, %228 : vector<16x32xf32>
    %230 = vector.broadcast %210 : vector<1x32xf32> to vector<16x32xf32>
    %231 = arith.mulf %229, %230 : vector<16x32xf32>
    %232 = vector.broadcast %211 : vector<1x32xf32> to vector<16x32xf32>
    %233 = arith.addf %231, %232 : vector<16x32xf32>
    %234 = vector.extract_strided_slice %209 {offsets = [0, 0, 0], sizes = [1, 16, 8], strides = [1, 1, 1]} : vector<3x16x8xf32> to vector<1x16x8xf32>
    %235 = vector.shape_cast %234 : vector<1x16x8xf32> to vector<16x8xf32>
    %236 = vector.extract_strided_slice %209 {offsets = [0, 0, 0], sizes = [1, 16, 8], strides = [1, 1, 1]} : vector<3x16x8xf32> to vector<1x16x8xf32>
    %237 = vector.shape_cast %236 : vector<1x16x8xf32> to vector<16x8xf32>
    %238 = arith.mulf %235, %237 : vector<16x8xf32>
    %239 = vector.extract_strided_slice %209 {offsets = [1, 0, 0], sizes = [1, 16, 8], strides = [1, 1, 1]} : vector<3x16x8xf32> to vector<1x16x8xf32>
    %240 = vector.shape_cast %239 : vector<1x16x8xf32> to vector<16x8xf32>
    %241 = vector.extract_strided_slice %209 {offsets = [1, 0, 0], sizes = [1, 16, 8], strides = [1, 1, 1]} : vector<3x16x8xf32> to vector<1x16x8xf32>
    %242 = vector.shape_cast %241 : vector<1x16x8xf32> to vector<16x8xf32>
    %243 = arith.mulf %240, %242 : vector<16x8xf32>
    %244 = arith.addf %238, %243 : vector<16x8xf32>
    %245 = vector.extract_strided_slice %209 {offsets = [2, 0, 0], sizes = [1, 16, 8], strides = [1, 1, 1]} : vector<3x16x8xf32> to vector<1x16x8xf32>
    %246 = vector.shape_cast %245 : vector<1x16x8xf32> to vector<16x8xf32>
    %247 = vector.extract_strided_slice %209 {offsets = [2, 0, 0], sizes = [1, 16, 8], strides = [1, 1, 1]} : vector<3x16x8xf32> to vector<1x16x8xf32>
    %248 = vector.shape_cast %247 : vector<1x16x8xf32> to vector<16x8xf32>
    %249 = arith.mulf %246, %248 : vector<16x8xf32>
    %250 = arith.addf %244, %249 : vector<16x8xf32>
    %cst_101 = arith.constant 2.000000e-04 : f32
    %251 = vector.broadcast %cst_101 : f32 to vector<16x8xf32>
    %252 = arith.cmpf ogt, %250, %251 : vector<16x8xf32>
    %253 = arith.extui %252 : vector<16x8xi1> to vector<16x8xi32>
    %254 = arith.sitofp %253 : vector<16x8xi32> to vector<16x8xf32>
    %255 = arith.mulf %250, %254 : vector<16x8xf32>
    %cst_102 = arith.constant dense<0.000000e+00> : vector<16xf32>
    %256 = vector.multi_reduction <add>, %255, %cst_102 [1] : vector<16x8xf32> to vector<16xf32>
    %257 = vector.shape_cast %256 : vector<16xf32> to vector<16x1xf32>
    %cst_103 = arith.constant dense<0.000000e+00> : vector<16xf32>
    %258 = vector.multi_reduction <add>, %254, %cst_103 [1] : vector<16x8xf32> to vector<16xf32>
    %259 = vector.shape_cast %258 : vector<16xf32> to vector<16x1xf32>
    %cst_104 = arith.constant 9.99999974E-5 : f32
    %260 = vector.broadcast %cst_104 : f32 to vector<16x1xf32>
    %261 = arith.addf %260, %259 : vector<16x1xf32>
    %262 = arith.divf %257, %261 : vector<16x1xf32>
    %cst_105 = arith.constant 9.99999974E-5 : f32
    %263 = vector.broadcast %cst_105 : f32 to vector<16x1xf32>
    %264 = arith.addf %262, %263 : vector<16x1xf32>
    %265 = math.rsqrt %264 : vector<16x1xf32>
    %266 = vector.broadcast %265 : vector<16x1xf32> to vector<16x8xf32>
    %267 = arith.mulf %254, %266 : vector<16x8xf32>
    %268 = vector.shape_cast %267 : vector<16x8xf32> to vector<1x16x8xf32>
    %269 = vector.broadcast %268 : vector<1x16x8xf32> to vector<3x16x8xf32>
    %270 = arith.mulf %209, %269 : vector<3x16x8xf32>
    %c0_106 = arith.constant 0 : index
    %c0_107 = arith.constant 0 : index
    %271 = vector.load %arg32[%c0_106, %c0_107] : memref<16x32xf32, #tpu.memory_space<vmem>>, vector<16x32xf32>
    tpu.vector_store %arg32[%c0_106, %c0_107], %233 {strides = array<i32>} : memref<16x32xf32, #tpu.memory_space<vmem>>, vector<16x32xf32>,
    %c0_108 = arith.constant 0 : index
    %c0_109 = arith.constant 0 : index
    %c0_110 = arith.constant 0 : index
    %272 = vector.load %arg33[%c0_108, %c0_109, %c0_110] : memref<3x16x8xf32, #tpu.memory_space<vmem>>, vector<3x16x8xf32>
    tpu.vector_store %arg33[%c0_108, %c0_109, %c0_110], %270 {strides = array<i32>} : memref<3x16x8xf32, #tpu.memory_space<vmem>>, vector<3x16x8xf32>,
    return
  }
  func.func @transform_0(%arg0: i32) -> (i32, i32) {
    %c0_i32 = arith.constant 0 : i32
    %c0_i32_0 = arith.constant 0 : i32
    return %arg0, %c0_i32 : i32, i32
  }
  func.func @transform_1(%arg0: i32) -> (i32, i32, i32) {
    %c0_i32 = arith.constant 0 : i32
    %c0_i32_0 = arith.constant 0 : i32
    %c0_i32_1 = arith.constant 0 : i32
    return %c0_i32, %arg0, %c0_i32_0 : i32, i32, i32
  }
  func.func @transform_2(%arg0: i32) -> (i32, i32, i32) {
    %c0_i32 = arith.constant 0 : i32
    %c0_i32_0 = arith.constant 0 : i32
    %c0_i32_1 = arith.constant 0 : i32
    return %c0_i32, %arg0, %c0_i32_0 : i32, i32, i32
  }
  func.func @transform_3(%arg0: i32) -> (i32, i32, i32, i32) {
    %c0_i32 = arith.constant 0 : i32
    %c0_i32_0 = arith.constant 0 : i32
    %c0_i32_1 = arith.constant 0 : i32
    %c0_i32_2 = arith.constant 0 : i32
    return %c0_i32, %c0_i32_0, %arg0, %c0_i32_1 : i32, i32, i32, i32
  }
  func.func @transform_4(%arg0: i32) -> (i32, i32, i32) {
    %c0_i32 = arith.constant 0 : i32
    %c0_i32_0 = arith.constant 0 : i32
    %c0_i32_1 = arith.constant 0 : i32
    return %c0_i32, %arg0, %c0_i32_0 : i32, i32, i32
  }
  func.func @transform_5(%arg0: i32) -> (i32, i32, i32, i32) {
    %c0_i32 = arith.constant 0 : i32
    %c0_i32_0 = arith.constant 0 : i32
    %c0_i32_1 = arith.constant 0 : i32
    %c0_i32_2 = arith.constant 0 : i32
    return %c0_i32, %c0_i32_0, %arg0, %c0_i32_1 : i32, i32, i32, i32
  }
  func.func @transform_6(%arg0: i32) -> (i32, i32) {
    %c0_i32 = arith.constant 0 : i32
    %c0_i32_0 = arith.constant 0 : i32
    %c0_i32_1 = arith.constant 0 : i32
    return %c0_i32, %c0_i32_0 : i32, i32
  }
  func.func @transform_7(%arg0: i32) -> (i32, i32) {
    %c0_i32 = arith.constant 0 : i32
    %c0_i32_0 = arith.constant 0 : i32
    %c0_i32_1 = arith.constant 0 : i32
    return %c0_i32, %c0_i32_0 : i32, i32
  }
  func.func @transform_8(%arg0: i32) -> (i32, i32) {
    %c0_i32 = arith.constant 0 : i32
    %c0_i32_0 = arith.constant 0 : i32
    %c0_i32_1 = arith.constant 0 : i32
    return %c0_i32, %c0_i32_0 : i32, i32
  }
  func.func @transform_9(%arg0: i32) -> (i32, i32) {
    %c0_i32 = arith.constant 0 : i32
    %c0_i32_0 = arith.constant 0 : i32
    %c0_i32_1 = arith.constant 0 : i32
    return %c0_i32, %c0_i32_0 : i32, i32
  }
  func.func @transform_10(%arg0: i32) -> (i32, i32) {
    %c0_i32 = arith.constant 0 : i32
    %c0_i32_0 = arith.constant 0 : i32
    %c0_i32_1 = arith.constant 0 : i32
    return %c0_i32, %c0_i32_0 : i32, i32
  }
  func.func @transform_11(%arg0: i32) -> (i32, i32) {
    %c0_i32 = arith.constant 0 : i32
    %c0_i32_0 = arith.constant 0 : i32
    %c0_i32_1 = arith.constant 0 : i32
    return %c0_i32, %c0_i32_0 : i32, i32
  }
  func.func @transform_12(%arg0: i32) -> (i32, i32) {
    %c0_i32 = arith.constant 0 : i32
    %c0_i32_0 = arith.constant 0 : i32
    %c0_i32_1 = arith.constant 0 : i32
    return %c0_i32, %c0_i32_0 : i32, i32
  }
  func.func @transform_13(%arg0: i32) -> (i32, i32) {
    %c0_i32 = arith.constant 0 : i32
    %c0_i32_0 = arith.constant 0 : i32
    %c0_i32_1 = arith.constant 0 : i32
    return %c0_i32, %c0_i32_0 : i32, i32
  }
  func.func @transform_14(%arg0: i32) -> (i32, i32) {
    %c0_i32 = arith.constant 0 : i32
    %c0_i32_0 = arith.constant 0 : i32
    %c0_i32_1 = arith.constant 0 : i32
    return %c0_i32, %c0_i32_0 : i32, i32
  }
  func.func @transform_15(%arg0: i32) -> (i32, i32) {
    %c0_i32 = arith.constant 0 : i32
    %c0_i32_0 = arith.constant 0 : i32
    %c0_i32_1 = arith.constant 0 : i32
    return %c0_i32, %c0_i32_0 : i32, i32
  }
  func.func @transform_16(%arg0: i32) -> (i32, i32) {
    %c0_i32 = arith.constant 0 : i32
    %c0_i32_0 = arith.constant 0 : i32
    %c0_i32_1 = arith.constant 0 : i32
    return %c0_i32, %c0_i32_0 : i32, i32
  }
  func.func @transform_17(%arg0: i32) -> (i32, i32) {
    %c0_i32 = arith.constant 0 : i32
    %c0_i32_0 = arith.constant 0 : i32
    %c0_i32_1 = arith.constant 0 : i32
    return %c0_i32, %c0_i32_0 : i32, i32
  }
  func.func @transform_18(%arg0: i32) -> (i32, i32) {
    %c0_i32 = arith.constant 0 : i32
    %c0_i32_0 = arith.constant 0 : i32
    %c0_i32_1 = arith.constant 0 : i32
    return %c0_i32, %c0_i32_0 : i32, i32
  }
  func.func @transform_19(%arg0: i32) -> (i32, i32) {
    %c0_i32 = arith.constant 0 : i32
    %c0_i32_0 = arith.constant 0 : i32
    %c0_i32_1 = arith.constant 0 : i32
    return %c0_i32, %c0_i32_0 : i32, i32
  }
  func.func @transform_20(%arg0: i32) -> (i32, i32) {
    %c0_i32 = arith.constant 0 : i32
    %c0_i32_0 = arith.constant 0 : i32
    %c0_i32_1 = arith.constant 0 : i32
    return %c0_i32, %c0_i32_0 : i32, i32
  }
  func.func @transform_21(%arg0: i32) -> (i32, i32) {
    %c0_i32 = arith.constant 0 : i32
    %c0_i32_0 = arith.constant 0 : i32
    %c0_i32_1 = arith.constant 0 : i32
    return %c0_i32, %c0_i32_0 : i32, i32
  }
  func.func @transform_22(%arg0: i32) -> (i32, i32) {
    %c0_i32 = arith.constant 0 : i32
    %c0_i32_0 = arith.constant 0 : i32
    %c0_i32_1 = arith.constant 0 : i32
    return %c0_i32, %c0_i32_0 : i32, i32
  }
  func.func @transform_23(%arg0: i32) -> (i32, i32) {
    %c0_i32 = arith.constant 0 : i32
    %c0_i32_0 = arith.constant 0 : i32
    %c0_i32_1 = arith.constant 0 : i32
    return %c0_i32, %c0_i32_0 : i32, i32
  }
  func.func @transform_24(%arg0: i32) -> (i32, i32) {
    %c0_i32 = arith.constant 0 : i32
    %c0_i32_0 = arith.constant 0 : i32
    %c0_i32_1 = arith.constant 0 : i32
    return %c0_i32, %c0_i32_0 : i32, i32
  }
  func.func @transform_25(%arg0: i32) -> (i32, i32) {
    %c0_i32 = arith.constant 0 : i32
    %c0_i32_0 = arith.constant 0 : i32
    %c0_i32_1 = arith.constant 0 : i32
    return %c0_i32, %c0_i32_0 : i32, i32
  }
  func.func @transform_26(%arg0: i32) -> (i32, i32) {
    %c0_i32 = arith.constant 0 : i32
    %c0_i32_0 = arith.constant 0 : i32
    %c0_i32_1 = arith.constant 0 : i32
    return %c0_i32, %c0_i32_0 : i32, i32
  }
  func.func @transform_27(%arg0: i32) -> (i32, i32) {
    %c0_i32 = arith.constant 0 : i32
    %c0_i32_0 = arith.constant 0 : i32
    %c0_i32_1 = arith.constant 0 : i32
    return %c0_i32, %c0_i32_0 : i32, i32
  }
  func.func @transform_28(%arg0: i32) -> (i32, i32) {
    %c0_i32 = arith.constant 0 : i32
    %c0_i32_0 = arith.constant 0 : i32
    %c0_i32_1 = arith.constant 0 : i32
    return %c0_i32, %c0_i32_0 : i32, i32
  }
  func.func @transform_29(%arg0: i32) -> (i32, i32) {
    %c0_i32 = arith.constant 0 : i32
    %c0_i32_0 = arith.constant 0 : i32
    %c0_i32_1 = arith.constant 0 : i32
    return %c0_i32, %c0_i32_0 : i32, i32
  }
  func.func @transform_30(%arg0: i32) -> (i32, i32) {
    %c0_i32 = arith.constant 0 : i32
    %c0_i32_0 = arith.constant 0 : i32
    %c0_i32_1 = arith.constant 0 : i32
    return %c0_i32, %c0_i32_0 : i32, i32
  }
  func.func @transform_31(%arg0: i32) -> (i32, i32) {
    %c0_i32 = arith.constant 0 : i32
    %c0_i32_0 = arith.constant 0 : i32
    return %arg0, %c0_i32 : i32, i32
  }
  func.func @transform_32(%arg0: i32) -> (i32, i32, i32) {
    %c0_i32 = arith.constant 0 : i32
    %c0_i32_0 = arith.constant 0 : i32
    %c0_i32_1 = arith.constant 0 : i32
    return %c0_i32, %arg0, %c0_i32_0 : i32, i32, i32
  }
}

module attributes {stable_mosaic.version = 11 : i64} {
  func.func @_ff_kernel(%arg0: i32, %arg1: memref<16x32xf32, #tpu.memory_space<vmem>>, %arg2: memref<3x16x8xf32, #tpu.memory_space<vmem>>, %arg3: memref<8x16xf32, #tpu.memory_space<vmem>>, %arg4: memref<32x128xf32, #tpu.memory_space<vmem>>, %arg5: memref<16x128xf32, #tpu.memory_space<vmem>>, %arg6: memref<1x128xf32, #tpu.memory_space<vmem>>, %arg7: memref<16x16xf32, #tpu.memory_space<vmem>>, %arg8: memref<128x16xf32, #tpu.memory_space<vmem>>, %arg9: memref<1x16xf32, #tpu.memory_space<vmem>>, %arg10: memref<16x16xf32, #tpu.memory_space<vmem>>, %arg11: memref<128x32xf32, #tpu.memory_space<vmem>>, %arg12: memref<16x32xf32, #tpu.memory_space<vmem>>, %arg13: memref<1x32xf32, #tpu.memory_space<vmem>>, %arg14: memref<16x8xf32, #tpu.memory_space<vmem>>, %arg15: memref<1x32xf32, #tpu.memory_space<vmem>>, %arg16: memref<1x32xf32, #tpu.memory_space<vmem>>, %arg17: memref<16x32xf32, #tpu.memory_space<vmem>>, %arg18: memref<3x16x8xf32, #tpu.memory_space<vmem>>) attributes {dimension_semantics = [#tpu.dimension_semantics<parallel>], iteration_bounds = array<i64: 1>, scalar_prefetch = 0 : i64, scratch_operands = 0 : i64, tpu.core_type = #tpu.core_type<tc>, window_params = [{transform_indices = @transform_0, window_bounds = array<i64: 16, 32>}, {transform_indices = @transform_1, window_bounds = array<i64: 3, 16, 8>}, {pipeline_mode = #tpu.pipeline_mode<synchronous>, transform_indices = @transform_2, window_bounds = array<i64: 8, 16>}, {pipeline_mode = #tpu.pipeline_mode<synchronous>, transform_indices = @transform_3, window_bounds = array<i64: 32, 128>}, {pipeline_mode = #tpu.pipeline_mode<synchronous>, transform_indices = @transform_4, window_bounds = array<i64: 16, 128>}, {pipeline_mode = #tpu.pipeline_mode<synchronous>, transform_indices = @transform_5, window_bounds = array<i64: 1, 128>}, {pipeline_mode = #tpu.pipeline_mode<synchronous>, transform_indices = @transform_6, window_bounds = array<i64: 16, 16>}, {pipeline_mode = #tpu.pipeline_mode<synchronous>, transform_indices = @transform_7, window_bounds = array<i64: 128, 16>}, {pipeline_mode = #tpu.pipeline_mode<synchronous>, transform_indices = @transform_8, window_bounds = array<i64: 1, 16>}, {pipeline_mode = #tpu.pipeline_mode<synchronous>, transform_indices = @transform_9, window_bounds = array<i64: 16, 16>}, {pipeline_mode = #tpu.pipeline_mode<synchronous>, transform_indices = @transform_10, window_bounds = array<i64: 128, 32>}, {pipeline_mode = #tpu.pipeline_mode<synchronous>, transform_indices = @transform_11, window_bounds = array<i64: 16, 32>}, {pipeline_mode = #tpu.pipeline_mode<synchronous>, transform_indices = @transform_12, window_bounds = array<i64: 1, 32>}, {pipeline_mode = #tpu.pipeline_mode<synchronous>, transform_indices = @transform_13, window_bounds = array<i64: 16, 8>}, {pipeline_mode = #tpu.pipeline_mode<synchronous>, transform_indices = @transform_14, window_bounds = array<i64: 1, 32>}, {pipeline_mode = #tpu.pipeline_mode<synchronous>, transform_indices = @transform_15, window_bounds = array<i64: 1, 32>}, {transform_indices = @transform_16, window_bounds = array<i64: 16, 32>}, {transform_indices = @transform_17, window_bounds = array<i64: 3, 16, 8>}]} {
    %c0 = arith.constant 0 : index
    %c0_0 = arith.constant 0 : index
    %0 = vector.load %arg1[%c0, %c0_0] : memref<16x32xf32, #tpu.memory_space<vmem>>, vector<16x32xf32>
    %c0_1 = arith.constant 0 : index
    %c0_2 = arith.constant 0 : index
    %c0_3 = arith.constant 0 : index
    %1 = vector.load %arg2[%c0_1, %c0_2, %c0_3] : memref<3x16x8xf32, #tpu.memory_space<vmem>>, vector<3x16x8xf32>
    %c0_4 = arith.constant 0 : index
    %c0_5 = arith.constant 0 : index
    %2 = vector.load %arg3[%c0_4, %c0_5] : memref<8x16xf32, #tpu.memory_space<vmem>>, vector<8x16xf32>
    %c0_6 = arith.constant 0 : index
    %c0_7 = arith.constant 0 : index
    %3 = vector.load %arg4[%c0_6, %c0_7] : memref<32x128xf32, #tpu.memory_space<vmem>>, vector<32x128xf32>
    %c0_8 = arith.constant 0 : index
    %c0_9 = arith.constant 0 : index
    %4 = vector.load %arg5[%c0_8, %c0_9] : memref<16x128xf32, #tpu.memory_space<vmem>>, vector<16x128xf32>
    %c0_10 = arith.constant 0 : index
    %c0_11 = arith.constant 0 : index
    %5 = vector.load %arg6[%c0_10, %c0_11] : memref<1x128xf32, #tpu.memory_space<vmem>>, vector<1x128xf32>
    %c0_12 = arith.constant 0 : index
    %c0_13 = arith.constant 0 : index
    %6 = vector.load %arg7[%c0_12, %c0_13] : memref<16x16xf32, #tpu.memory_space<vmem>>, vector<16x16xf32>
    %c0_14 = arith.constant 0 : index
    %c0_15 = arith.constant 0 : index
    %7 = vector.load %arg8[%c0_14, %c0_15] : memref<128x16xf32, #tpu.memory_space<vmem>>, vector<128x16xf32>
    %c0_16 = arith.constant 0 : index
    %c0_17 = arith.constant 0 : index
    %8 = vector.load %arg9[%c0_16, %c0_17] : memref<1x16xf32, #tpu.memory_space<vmem>>, vector<1x16xf32>
    %9 = vector.shape_cast %1 : vector<3x16x8xf32> to vector<48x8xf32>
    %cst = arith.constant dense<0.000000e+00> : vector<48x16xf32>
    %10 = tpu.matmul %9, %2, %cst {dimension_numbers = #tpu.dot_dimension_numbers<[1], [0], [0], [1], [0, 0, 1, 1], [], []>} : vector<48x8xf32>, vector<8x16xf32>, vector<48x16xf32> -> vector<48x16xf32>
    %11 = vector.shape_cast %10 : vector<48x16xf32> to vector<3x16x16xf32>
    %12 = vector.extract_strided_slice %11 {offsets = [0, 0, 0], sizes = [1, 16, 16], strides = [1, 1, 1]} : vector<3x16x16xf32> to vector<1x16x16xf32>
    %13 = vector.shape_cast %12 : vector<1x16x16xf32> to vector<16x16xf32>
    %14 = vector.extract_strided_slice %11 {offsets = [0, 0, 0], sizes = [1, 16, 16], strides = [1, 1, 1]} : vector<3x16x16xf32> to vector<1x16x16xf32>
    %15 = vector.shape_cast %14 : vector<1x16x16xf32> to vector<16x16xf32>
    %16 = arith.mulf %13, %15 : vector<16x16xf32>
    %17 = vector.extract_strided_slice %11 {offsets = [1, 0, 0], sizes = [1, 16, 16], strides = [1, 1, 1]} : vector<3x16x16xf32> to vector<1x16x16xf32>
    %18 = vector.shape_cast %17 : vector<1x16x16xf32> to vector<16x16xf32>
    %19 = vector.extract_strided_slice %11 {offsets = [1, 0, 0], sizes = [1, 16, 16], strides = [1, 1, 1]} : vector<3x16x16xf32> to vector<1x16x16xf32>
    %20 = vector.shape_cast %19 : vector<1x16x16xf32> to vector<16x16xf32>
    %21 = arith.mulf %18, %20 : vector<16x16xf32>
    %22 = arith.addf %16, %21 : vector<16x16xf32>
    %23 = vector.extract_strided_slice %11 {offsets = [2, 0, 0], sizes = [1, 16, 16], strides = [1, 1, 1]} : vector<3x16x16xf32> to vector<1x16x16xf32>
    %24 = vector.shape_cast %23 : vector<1x16x16xf32> to vector<16x16xf32>
    %25 = vector.extract_strided_slice %11 {offsets = [2, 0, 0], sizes = [1, 16, 16], strides = [1, 1, 1]} : vector<3x16x16xf32> to vector<1x16x16xf32>
    %26 = vector.shape_cast %25 : vector<1x16x16xf32> to vector<16x16xf32>
    %27 = arith.mulf %24, %26 : vector<16x16xf32>
    %28 = arith.addf %22, %27 : vector<16x16xf32>
    %cst_18 = arith.constant 9.99999993E-9 : f32
    %29 = vector.broadcast %cst_18 : f32 to vector<16x16xf32>
    %30 = arith.maximumf %28, %29 : vector<16x16xf32>
    %31 = math.sqrt %30 : vector<16x16xf32>
    %cst_19 = arith.constant dense<0.000000e+00> : vector<16x128xf32>
    %32 = tpu.matmul %0, %3, %cst_19 {dimension_numbers = #tpu.dot_dimension_numbers<[1], [0], [0], [1], [0, 0, 1, 1], [], []>} : vector<16x32xf32>, vector<32x128xf32>, vector<16x128xf32> -> vector<16x128xf32>
    %cst_20 = arith.constant dense<0.000000e+00> : vector<16x128xf32>
    %33 = tpu.matmul %31, %4, %cst_20 {dimension_numbers = #tpu.dot_dimension_numbers<[1], [0], [0], [1], [0, 0, 1, 1], [], []>} : vector<16x16xf32>, vector<16x128xf32>, vector<16x128xf32> -> vector<16x128xf32>
    %34 = arith.addf %32, %33 : vector<16x128xf32>
    %35 = vector.broadcast %5 : vector<1x128xf32> to vector<16x128xf32>
    %36 = arith.addf %34, %35 : vector<16x128xf32>
    %cst_21 = arith.constant dense<0.000000e+00> : vector<48x16xf32>
    %37 = tpu.matmul %10, %6, %cst_21 {dimension_numbers = #tpu.dot_dimension_numbers<[1], [0], [0], [1], [0, 0, 1, 1], [], []>} : vector<48x16xf32>, vector<16x16xf32>, vector<48x16xf32> -> vector<48x16xf32>
    %38 = vector.shape_cast %37 : vector<48x16xf32> to vector<3x16x16xf32>
    %39 = arith.negf %36 : vector<16x128xf32>
    %40 = math.exp %39 : vector<16x128xf32>
    %cst_22 = arith.constant 1.000000e+00 : f32
    %41 = vector.broadcast %cst_22 : f32 to vector<16x128xf32>
    %42 = arith.addf %41, %40 : vector<16x128xf32>
    %43 = arith.divf %41, %42 : vector<16x128xf32>
    %cst_23 = arith.constant dense<0.000000e+00> : vector<16x16xf32>
    %44 = tpu.matmul %43, %7, %cst_23 {dimension_numbers = #tpu.dot_dimension_numbers<[1], [0], [0], [1], [0, 0, 1, 1], [], []>} : vector<16x128xf32>, vector<128x16xf32>, vector<16x16xf32> -> vector<16x16xf32>
    %45 = vector.broadcast %8 : vector<1x16xf32> to vector<16x16xf32>
    %46 = arith.addf %44, %45 : vector<16x16xf32>
    %47 = arith.negf %46 : vector<16x16xf32>
    %48 = math.exp %47 : vector<16x16xf32>
    %cst_24 = arith.constant 1.000000e+00 : f32
    %49 = vector.broadcast %cst_24 : f32 to vector<16x16xf32>
    %50 = arith.addf %49, %48 : vector<16x16xf32>
    %51 = arith.divf %49, %50 : vector<16x16xf32>
    %52 = vector.shape_cast %51 : vector<16x16xf32> to vector<1x16x16xf32>
    %53 = vector.broadcast %52 : vector<1x16x16xf32> to vector<3x16x16xf32>
    %54 = arith.mulf %38, %53 : vector<3x16x16xf32>
    %cst_25 = arith.constant 0.000000e+00 : f32
    %55 = vector.broadcast %cst_25 : f32 to vector<16x128xf32>
    %56 = arith.maximumf %36, %55 : vector<16x128xf32>
    %c0_26 = arith.constant 0 : index
    %c0_27 = arith.constant 0 : index
    %57 = vector.load %arg10[%c0_26, %c0_27] : memref<16x16xf32, #tpu.memory_space<vmem>>, vector<16x16xf32>
    %c0_28 = arith.constant 0 : index
    %c0_29 = arith.constant 0 : index
    %58 = vector.load %arg11[%c0_28, %c0_29] : memref<128x32xf32, #tpu.memory_space<vmem>>, vector<128x32xf32>
    %c0_30 = arith.constant 0 : index
    %c0_31 = arith.constant 0 : index
    %59 = vector.load %arg12[%c0_30, %c0_31] : memref<16x32xf32, #tpu.memory_space<vmem>>, vector<16x32xf32>
    %c0_32 = arith.constant 0 : index
    %c0_33 = arith.constant 0 : index
    %60 = vector.load %arg13[%c0_32, %c0_33] : memref<1x32xf32, #tpu.memory_space<vmem>>, vector<1x32xf32>
    %c0_34 = arith.constant 0 : index
    %c0_35 = arith.constant 0 : index
    %61 = vector.load %arg14[%c0_34, %c0_35] : memref<16x8xf32, #tpu.memory_space<vmem>>, vector<16x8xf32>
    %62 = vector.shape_cast %54 : vector<3x16x16xf32> to vector<48x16xf32>
    %cst_36 = arith.constant dense<0.000000e+00> : vector<48x16xf32>
    %63 = tpu.matmul %62, %57, %cst_36 {dimension_numbers = #tpu.dot_dimension_numbers<[1], [0], [0], [1], [0, 0, 1, 1], [], []>} : vector<48x16xf32>, vector<16x16xf32>, vector<48x16xf32> -> vector<48x16xf32>
    %64 = vector.shape_cast %63 : vector<48x16xf32> to vector<3x16x16xf32>
    %65 = vector.extract_strided_slice %64 {offsets = [0, 0, 0], sizes = [1, 16, 16], strides = [1, 1, 1]} : vector<3x16x16xf32> to vector<1x16x16xf32>
    %66 = vector.shape_cast %65 : vector<1x16x16xf32> to vector<16x16xf32>
    %67 = vector.extract_strided_slice %64 {offsets = [0, 0, 0], sizes = [1, 16, 16], strides = [1, 1, 1]} : vector<3x16x16xf32> to vector<1x16x16xf32>
    %68 = vector.shape_cast %67 : vector<1x16x16xf32> to vector<16x16xf32>
    %69 = arith.mulf %66, %68 : vector<16x16xf32>
    %70 = vector.extract_strided_slice %64 {offsets = [1, 0, 0], sizes = [1, 16, 16], strides = [1, 1, 1]} : vector<3x16x16xf32> to vector<1x16x16xf32>
    %71 = vector.shape_cast %70 : vector<1x16x16xf32> to vector<16x16xf32>
    %72 = vector.extract_strided_slice %64 {offsets = [1, 0, 0], sizes = [1, 16, 16], strides = [1, 1, 1]} : vector<3x16x16xf32> to vector<1x16x16xf32>
    %73 = vector.shape_cast %72 : vector<1x16x16xf32> to vector<16x16xf32>
    %74 = arith.mulf %71, %73 : vector<16x16xf32>
    %75 = arith.addf %69, %74 : vector<16x16xf32>
    %76 = vector.extract_strided_slice %64 {offsets = [2, 0, 0], sizes = [1, 16, 16], strides = [1, 1, 1]} : vector<3x16x16xf32> to vector<1x16x16xf32>
    %77 = vector.shape_cast %76 : vector<1x16x16xf32> to vector<16x16xf32>
    %78 = vector.extract_strided_slice %64 {offsets = [2, 0, 0], sizes = [1, 16, 16], strides = [1, 1, 1]} : vector<3x16x16xf32> to vector<1x16x16xf32>
    %79 = vector.shape_cast %78 : vector<1x16x16xf32> to vector<16x16xf32>
    %80 = arith.mulf %77, %79 : vector<16x16xf32>
    %81 = arith.addf %75, %80 : vector<16x16xf32>
    %cst_37 = arith.constant 9.99999993E-9 : f32
    %82 = vector.broadcast %cst_37 : f32 to vector<16x16xf32>
    %83 = arith.maximumf %81, %82 : vector<16x16xf32>
    %84 = math.sqrt %83 : vector<16x16xf32>
    %cst_38 = arith.constant dense<0.000000e+00> : vector<16x32xf32>
    %85 = tpu.matmul %56, %58, %cst_38 {dimension_numbers = #tpu.dot_dimension_numbers<[1], [0], [0], [1], [0, 0, 1, 1], [], []>} : vector<16x128xf32>, vector<128x32xf32>, vector<16x32xf32> -> vector<16x32xf32>
    %cst_39 = arith.constant dense<0.000000e+00> : vector<16x32xf32>
    %86 = tpu.matmul %84, %59, %cst_39 {dimension_numbers = #tpu.dot_dimension_numbers<[1], [0], [0], [1], [0, 0, 1, 1], [], []>} : vector<16x16xf32>, vector<16x32xf32>, vector<16x32xf32> -> vector<16x32xf32>
    %87 = arith.addf %85, %86 : vector<16x32xf32>
    %88 = vector.broadcast %60 : vector<1x32xf32> to vector<16x32xf32>
    %89 = arith.addf %87, %88 : vector<16x32xf32>
    %cst_40 = arith.constant dense<0.000000e+00> : vector<48x8xf32>
    %90 = tpu.matmul %63, %61, %cst_40 {dimension_numbers = #tpu.dot_dimension_numbers<[1], [0], [0], [1], [0, 0, 1, 1], [], []>} : vector<48x16xf32>, vector<16x8xf32>, vector<48x8xf32> -> vector<48x8xf32>
    %91 = vector.shape_cast %90 : vector<48x8xf32> to vector<3x16x8xf32>
    %92 = arith.addf %0, %89 : vector<16x32xf32>
    %93 = arith.addf %1, %91 : vector<3x16x8xf32>
    %c0_41 = arith.constant 0 : index
    %c0_42 = arith.constant 0 : index
    %94 = vector.load %arg15[%c0_41, %c0_42] : memref<1x32xf32, #tpu.memory_space<vmem>>, vector<1x32xf32>
    %c0_43 = arith.constant 0 : index
    %c0_44 = arith.constant 0 : index
    %95 = vector.load %arg16[%c0_43, %c0_44] : memref<1x32xf32, #tpu.memory_space<vmem>>, vector<1x32xf32>
    %cst_45 = arith.constant dense<0.000000e+00> : vector<16xf32>
    %96 = vector.multi_reduction <add>, %92, %cst_45 [1] : vector<16x32xf32> to vector<16xf32>
    %97 = vector.shape_cast %96 : vector<16xf32> to vector<16x1xf32>
    %cst_46 = arith.constant 3.200000e+01 : f32
    %98 = vector.broadcast %cst_46 : f32 to vector<16x1xf32>
    %99 = arith.divf %97, %98 : vector<16x1xf32>
    %100 = vector.broadcast %99 : vector<16x1xf32> to vector<16x32xf32>
    %101 = arith.subf %92, %100 : vector<16x32xf32>
    %102 = arith.mulf %101, %101 : vector<16x32xf32>
    %cst_47 = arith.constant dense<0.000000e+00> : vector<16xf32>
    %103 = vector.multi_reduction <add>, %102, %cst_47 [1] : vector<16x32xf32> to vector<16xf32>
    %104 = vector.shape_cast %103 : vector<16xf32> to vector<16x1xf32>
    %cst_48 = arith.constant 3.200000e+01 : f32
    %105 = vector.broadcast %cst_48 : f32 to vector<16x1xf32>
    %106 = arith.divf %104, %105 : vector<16x1xf32>
    %107 = vector.broadcast %99 : vector<16x1xf32> to vector<16x32xf32>
    %108 = arith.subf %92, %107 : vector<16x32xf32>
    %cst_49 = arith.constant 9.99999974E-6 : f32
    %109 = vector.broadcast %cst_49 : f32 to vector<16x1xf32>
    %110 = arith.addf %106, %109 : vector<16x1xf32>
    %111 = math.rsqrt %110 : vector<16x1xf32>
    %112 = vector.broadcast %111 : vector<16x1xf32> to vector<16x32xf32>
    %113 = arith.mulf %108, %112 : vector<16x32xf32>
    %114 = vector.broadcast %94 : vector<1x32xf32> to vector<16x32xf32>
    %115 = arith.mulf %113, %114 : vector<16x32xf32>
    %116 = vector.broadcast %95 : vector<1x32xf32> to vector<16x32xf32>
    %117 = arith.addf %115, %116 : vector<16x32xf32>
    %118 = vector.extract_strided_slice %93 {offsets = [0, 0, 0], sizes = [1, 16, 8], strides = [1, 1, 1]} : vector<3x16x8xf32> to vector<1x16x8xf32>
    %119 = vector.shape_cast %118 : vector<1x16x8xf32> to vector<16x8xf32>
    %120 = vector.extract_strided_slice %93 {offsets = [0, 0, 0], sizes = [1, 16, 8], strides = [1, 1, 1]} : vector<3x16x8xf32> to vector<1x16x8xf32>
    %121 = vector.shape_cast %120 : vector<1x16x8xf32> to vector<16x8xf32>
    %122 = arith.mulf %119, %121 : vector<16x8xf32>
    %123 = vector.extract_strided_slice %93 {offsets = [1, 0, 0], sizes = [1, 16, 8], strides = [1, 1, 1]} : vector<3x16x8xf32> to vector<1x16x8xf32>
    %124 = vector.shape_cast %123 : vector<1x16x8xf32> to vector<16x8xf32>
    %125 = vector.extract_strided_slice %93 {offsets = [1, 0, 0], sizes = [1, 16, 8], strides = [1, 1, 1]} : vector<3x16x8xf32> to vector<1x16x8xf32>
    %126 = vector.shape_cast %125 : vector<1x16x8xf32> to vector<16x8xf32>
    %127 = arith.mulf %124, %126 : vector<16x8xf32>
    %128 = arith.addf %122, %127 : vector<16x8xf32>
    %129 = vector.extract_strided_slice %93 {offsets = [2, 0, 0], sizes = [1, 16, 8], strides = [1, 1, 1]} : vector<3x16x8xf32> to vector<1x16x8xf32>
    %130 = vector.shape_cast %129 : vector<1x16x8xf32> to vector<16x8xf32>
    %131 = vector.extract_strided_slice %93 {offsets = [2, 0, 0], sizes = [1, 16, 8], strides = [1, 1, 1]} : vector<3x16x8xf32> to vector<1x16x8xf32>
    %132 = vector.shape_cast %131 : vector<1x16x8xf32> to vector<16x8xf32>
    %133 = arith.mulf %130, %132 : vector<16x8xf32>
    %134 = arith.addf %128, %133 : vector<16x8xf32>
    %cst_50 = arith.constant 2.000000e-04 : f32
    %135 = vector.broadcast %cst_50 : f32 to vector<16x8xf32>
    %136 = arith.cmpf ogt, %134, %135 : vector<16x8xf32>
    %137 = arith.extui %136 : vector<16x8xi1> to vector<16x8xi32>
    %138 = arith.sitofp %137 : vector<16x8xi32> to vector<16x8xf32>
    %139 = arith.mulf %134, %138 : vector<16x8xf32>
    %cst_51 = arith.constant dense<0.000000e+00> : vector<16xf32>
    %140 = vector.multi_reduction <add>, %139, %cst_51 [1] : vector<16x8xf32> to vector<16xf32>
    %141 = vector.shape_cast %140 : vector<16xf32> to vector<16x1xf32>
    %cst_52 = arith.constant dense<0.000000e+00> : vector<16xf32>
    %142 = vector.multi_reduction <add>, %138, %cst_52 [1] : vector<16x8xf32> to vector<16xf32>
    %143 = vector.shape_cast %142 : vector<16xf32> to vector<16x1xf32>
    %cst_53 = arith.constant 9.99999974E-5 : f32
    %144 = vector.broadcast %cst_53 : f32 to vector<16x1xf32>
    %145 = arith.addf %144, %143 : vector<16x1xf32>
    %146 = arith.divf %141, %145 : vector<16x1xf32>
    %cst_54 = arith.constant 9.99999974E-5 : f32
    %147 = vector.broadcast %cst_54 : f32 to vector<16x1xf32>
    %148 = arith.addf %146, %147 : vector<16x1xf32>
    %149 = math.rsqrt %148 : vector<16x1xf32>
    %150 = vector.broadcast %149 : vector<16x1xf32> to vector<16x8xf32>
    %151 = arith.mulf %138, %150 : vector<16x8xf32>
    %152 = vector.shape_cast %151 : vector<16x8xf32> to vector<1x16x8xf32>
    %153 = vector.broadcast %152 : vector<1x16x8xf32> to vector<3x16x8xf32>
    %154 = arith.mulf %93, %153 : vector<3x16x8xf32>
    %c0_55 = arith.constant 0 : index
    %c0_56 = arith.constant 0 : index
    %155 = vector.load %arg17[%c0_55, %c0_56] : memref<16x32xf32, #tpu.memory_space<vmem>>, vector<16x32xf32>
    tpu.vector_store %arg17[%c0_55, %c0_56], %117 {strides = array<i32>} : memref<16x32xf32, #tpu.memory_space<vmem>>, vector<16x32xf32>,
    %c0_57 = arith.constant 0 : index
    %c0_58 = arith.constant 0 : index
    %c0_59 = arith.constant 0 : index
    %156 = vector.load %arg18[%c0_57, %c0_58, %c0_59] : memref<3x16x8xf32, #tpu.memory_space<vmem>>, vector<3x16x8xf32>
    tpu.vector_store %arg18[%c0_57, %c0_58, %c0_59], %154 {strides = array<i32>} : memref<3x16x8xf32, #tpu.memory_space<vmem>>, vector<3x16x8xf32>,
    return
  }
  func.func @transform_0(%arg0: i32) -> (i32, i32) {
    %c0_i32 = arith.constant 0 : i32
    %c0_i32_0 = arith.constant 0 : i32
    return %arg0, %c0_i32 : i32, i32
  }
  func.func @transform_1(%arg0: i32) -> (i32, i32, i32) {
    %c0_i32 = arith.constant 0 : i32
    %c0_i32_0 = arith.constant 0 : i32
    %c0_i32_1 = arith.constant 0 : i32
    return %c0_i32, %arg0, %c0_i32_0 : i32, i32, i32
  }
  func.func @transform_2(%arg0: i32) -> (i32, i32) {
    %c0_i32 = arith.constant 0 : i32
    %c0_i32_0 = arith.constant 0 : i32
    %c0_i32_1 = arith.constant 0 : i32
    return %c0_i32, %c0_i32_0 : i32, i32
  }
  func.func @transform_3(%arg0: i32) -> (i32, i32) {
    %c0_i32 = arith.constant 0 : i32
    %c0_i32_0 = arith.constant 0 : i32
    %c0_i32_1 = arith.constant 0 : i32
    return %c0_i32, %c0_i32_0 : i32, i32
  }
  func.func @transform_4(%arg0: i32) -> (i32, i32) {
    %c0_i32 = arith.constant 0 : i32
    %c0_i32_0 = arith.constant 0 : i32
    %c0_i32_1 = arith.constant 0 : i32
    return %c0_i32, %c0_i32_0 : i32, i32
  }
  func.func @transform_5(%arg0: i32) -> (i32, i32) {
    %c0_i32 = arith.constant 0 : i32
    %c0_i32_0 = arith.constant 0 : i32
    %c0_i32_1 = arith.constant 0 : i32
    return %c0_i32, %c0_i32_0 : i32, i32
  }
  func.func @transform_6(%arg0: i32) -> (i32, i32) {
    %c0_i32 = arith.constant 0 : i32
    %c0_i32_0 = arith.constant 0 : i32
    %c0_i32_1 = arith.constant 0 : i32
    return %c0_i32, %c0_i32_0 : i32, i32
  }
  func.func @transform_7(%arg0: i32) -> (i32, i32) {
    %c0_i32 = arith.constant 0 : i32
    %c0_i32_0 = arith.constant 0 : i32
    %c0_i32_1 = arith.constant 0 : i32
    return %c0_i32, %c0_i32_0 : i32, i32
  }
  func.func @transform_8(%arg0: i32) -> (i32, i32) {
    %c0_i32 = arith.constant 0 : i32
    %c0_i32_0 = arith.constant 0 : i32
    %c0_i32_1 = arith.constant 0 : i32
    return %c0_i32, %c0_i32_0 : i32, i32
  }
  func.func @transform_9(%arg0: i32) -> (i32, i32) {
    %c0_i32 = arith.constant 0 : i32
    %c0_i32_0 = arith.constant 0 : i32
    %c0_i32_1 = arith.constant 0 : i32
    return %c0_i32, %c0_i32_0 : i32, i32
  }
  func.func @transform_10(%arg0: i32) -> (i32, i32) {
    %c0_i32 = arith.constant 0 : i32
    %c0_i32_0 = arith.constant 0 : i32
    %c0_i32_1 = arith.constant 0 : i32
    return %c0_i32, %c0_i32_0 : i32, i32
  }
  func.func @transform_11(%arg0: i32) -> (i32, i32) {
    %c0_i32 = arith.constant 0 : i32
    %c0_i32_0 = arith.constant 0 : i32
    %c0_i32_1 = arith.constant 0 : i32
    return %c0_i32, %c0_i32_0 : i32, i32
  }
  func.func @transform_12(%arg0: i32) -> (i32, i32) {
    %c0_i32 = arith.constant 0 : i32
    %c0_i32_0 = arith.constant 0 : i32
    %c0_i32_1 = arith.constant 0 : i32
    return %c0_i32, %c0_i32_0 : i32, i32
  }
  func.func @transform_13(%arg0: i32) -> (i32, i32) {
    %c0_i32 = arith.constant 0 : i32
    %c0_i32_0 = arith.constant 0 : i32
    %c0_i32_1 = arith.constant 0 : i32
    return %c0_i32, %c0_i32_0 : i32, i32
  }
  func.func @transform_14(%arg0: i32) -> (i32, i32) {
    %c0_i32 = arith.constant 0 : i32
    %c0_i32_0 = arith.constant 0 : i32
    %c0_i32_1 = arith.constant 0 : i32
    return %c0_i32, %c0_i32_0 : i32, i32
  }
  func.func @transform_15(%arg0: i32) -> (i32, i32) {
    %c0_i32 = arith.constant 0 : i32
    %c0_i32_0 = arith.constant 0 : i32
    %c0_i32_1 = arith.constant 0 : i32
    return %c0_i32, %c0_i32_0 : i32, i32
  }
  func.func @transform_16(%arg0: i32) -> (i32, i32) {
    %c0_i32 = arith.constant 0 : i32
    %c0_i32_0 = arith.constant 0 : i32
    return %arg0, %c0_i32 : i32, i32
  }
  func.func @transform_17(%arg0: i32) -> (i32, i32, i32) {
    %c0_i32 = arith.constant 0 : i32
    %c0_i32_0 = arith.constant 0 : i32
    %c0_i32_1 = arith.constant 0 : i32
    return %c0_i32, %arg0, %c0_i32_0 : i32, i32, i32
  }
}

module attributes {stable_mosaic.version = 11 : i64} {
  func.func @_ff_kernel(%arg0: i32, %arg1: memref<16x32xf32, #tpu.memory_space<vmem>>, %arg2: memref<3x16x8xf32, #tpu.memory_space<vmem>>, %arg3: memref<8x16xf32, #tpu.memory_space<vmem>>, %arg4: memref<32x128xf32, #tpu.memory_space<vmem>>, %arg5: memref<16x128xf32, #tpu.memory_space<vmem>>, %arg6: memref<1x128xf32, #tpu.memory_space<vmem>>, %arg7: memref<16x16xf32, #tpu.memory_space<vmem>>, %arg8: memref<128x16xf32, #tpu.memory_space<vmem>>, %arg9: memref<1x16xf32, #tpu.memory_space<vmem>>, %arg10: memref<16x16xf32, #tpu.memory_space<vmem>>, %arg11: memref<128x32xf32, #tpu.memory_space<vmem>>, %arg12: memref<16x32xf32, #tpu.memory_space<vmem>>, %arg13: memref<1x32xf32, #tpu.memory_space<vmem>>, %arg14: memref<16x8xf32, #tpu.memory_space<vmem>>, %arg15: memref<1x32xf32, #tpu.memory_space<vmem>>, %arg16: memref<1x32xf32, #tpu.memory_space<vmem>>, %arg17: memref<16x32xf32, #tpu.memory_space<vmem>>, %arg18: memref<3x16x8xf32, #tpu.memory_space<vmem>>) attributes {dimension_semantics = [#tpu.dimension_semantics<parallel>], iteration_bounds = array<i64: 1>, scalar_prefetch = 0 : i64, scratch_operands = 0 : i64, tpu.core_type = #tpu.core_type<tc>, window_params = [{transform_indices = @transform_0, window_bounds = array<i64: 16, 32>}, {transform_indices = @transform_1, window_bounds = array<i64: 3, 16, 8>}, {pipeline_mode = #tpu.pipeline_mode<synchronous>, transform_indices = @transform_2, window_bounds = array<i64: 8, 16>}, {pipeline_mode = #tpu.pipeline_mode<synchronous>, transform_indices = @transform_3, window_bounds = array<i64: 32, 128>}, {pipeline_mode = #tpu.pipeline_mode<synchronous>, transform_indices = @transform_4, window_bounds = array<i64: 16, 128>}, {pipeline_mode = #tpu.pipeline_mode<synchronous>, transform_indices = @transform_5, window_bounds = array<i64: 1, 128>}, {pipeline_mode = #tpu.pipeline_mode<synchronous>, transform_indices = @transform_6, window_bounds = array<i64: 16, 16>}, {pipeline_mode = #tpu.pipeline_mode<synchronous>, transform_indices = @transform_7, window_bounds = array<i64: 128, 16>}, {pipeline_mode = #tpu.pipeline_mode<synchronous>, transform_indices = @transform_8, window_bounds = array<i64: 1, 16>}, {pipeline_mode = #tpu.pipeline_mode<synchronous>, transform_indices = @transform_9, window_bounds = array<i64: 16, 16>}, {pipeline_mode = #tpu.pipeline_mode<synchronous>, transform_indices = @transform_10, window_bounds = array<i64: 128, 32>}, {pipeline_mode = #tpu.pipeline_mode<synchronous>, transform_indices = @transform_11, window_bounds = array<i64: 16, 32>}, {pipeline_mode = #tpu.pipeline_mode<synchronous>, transform_indices = @transform_12, window_bounds = array<i64: 1, 32>}, {pipeline_mode = #tpu.pipeline_mode<synchronous>, transform_indices = @transform_13, window_bounds = array<i64: 16, 8>}, {pipeline_mode = #tpu.pipeline_mode<synchronous>, transform_indices = @transform_14, window_bounds = array<i64: 1, 32>}, {pipeline_mode = #tpu.pipeline_mode<synchronous>, transform_indices = @transform_15, window_bounds = array<i64: 1, 32>}, {transform_indices = @transform_16, window_bounds = array<i64: 16, 32>}, {transform_indices = @transform_17, window_bounds = array<i64: 3, 16, 8>}]} {
    %c0 = arith.constant 0 : index
    %c0_0 = arith.constant 0 : index
    %0 = vector.load %arg1[%c0, %c0_0] : memref<16x32xf32, #tpu.memory_space<vmem>>, vector<16x32xf32>
    %c0_1 = arith.constant 0 : index
    %c0_2 = arith.constant 0 : index
    %c0_3 = arith.constant 0 : index
    %1 = vector.load %arg2[%c0_1, %c0_2, %c0_3] : memref<3x16x8xf32, #tpu.memory_space<vmem>>, vector<3x16x8xf32>
    %c0_4 = arith.constant 0 : index
    %c0_5 = arith.constant 0 : index
    %2 = vector.load %arg3[%c0_4, %c0_5] : memref<8x16xf32, #tpu.memory_space<vmem>>, vector<8x16xf32>
    %c0_6 = arith.constant 0 : index
    %c0_7 = arith.constant 0 : index
    %3 = vector.load %arg4[%c0_6, %c0_7] : memref<32x128xf32, #tpu.memory_space<vmem>>, vector<32x128xf32>
    %c0_8 = arith.constant 0 : index
    %c0_9 = arith.constant 0 : index
    %4 = vector.load %arg5[%c0_8, %c0_9] : memref<16x128xf32, #tpu.memory_space<vmem>>, vector<16x128xf32>
    %c0_10 = arith.constant 0 : index
    %c0_11 = arith.constant 0 : index
    %5 = vector.load %arg6[%c0_10, %c0_11] : memref<1x128xf32, #tpu.memory_space<vmem>>, vector<1x128xf32>
    %c0_12 = arith.constant 0 : index
    %c0_13 = arith.constant 0 : index
    %6 = vector.load %arg7[%c0_12, %c0_13] : memref<16x16xf32, #tpu.memory_space<vmem>>, vector<16x16xf32>
    %c0_14 = arith.constant 0 : index
    %c0_15 = arith.constant 0 : index
    %7 = vector.load %arg8[%c0_14, %c0_15] : memref<128x16xf32, #tpu.memory_space<vmem>>, vector<128x16xf32>
    %c0_16 = arith.constant 0 : index
    %c0_17 = arith.constant 0 : index
    %8 = vector.load %arg9[%c0_16, %c0_17] : memref<1x16xf32, #tpu.memory_space<vmem>>, vector<1x16xf32>
    %9 = vector.shape_cast %1 : vector<3x16x8xf32> to vector<48x8xf32>
    %cst = arith.constant dense<0.000000e+00> : vector<48x16xf32>
    %10 = tpu.matmul %9, %2, %cst {dimension_numbers = #tpu.dot_dimension_numbers<[1], [0], [0], [1], [0, 0, 1, 1], [], []>} : vector<48x8xf32>, vector<8x16xf32>, vector<48x16xf32> -> vector<48x16xf32>
    %11 = vector.shape_cast %10 : vector<48x16xf32> to vector<3x16x16xf32>
    %12 = vector.extract_strided_slice %11 {offsets = [0, 0, 0], sizes = [1, 16, 16], strides = [1, 1, 1]} : vector<3x16x16xf32> to vector<1x16x16xf32>
    %13 = vector.shape_cast %12 : vector<1x16x16xf32> to vector<16x16xf32>
    %14 = vector.extract_strided_slice %11 {offsets = [0, 0, 0], sizes = [1, 16, 16], strides = [1, 1, 1]} : vector<3x16x16xf32> to vector<1x16x16xf32>
    %15 = vector.shape_cast %14 : vector<1x16x16xf32> to vector<16x16xf32>
    %16 = arith.mulf %13, %15 : vector<16x16xf32>
    %17 = vector.extract_strided_slice %11 {offsets = [1, 0, 0], sizes = [1, 16, 16], strides = [1, 1, 1]} : vector<3x16x16xf32> to vector<1x16x16xf32>
    %18 = vector.shape_cast %17 : vector<1x16x16xf32> to vector<16x16xf32>
    %19 = vector.extract_strided_slice %11 {offsets = [1, 0, 0], sizes = [1, 16, 16], strides = [1, 1, 1]} : vector<3x16x16xf32> to vector<1x16x16xf32>
    %20 = vector.shape_cast %19 : vector<1x16x16xf32> to vector<16x16xf32>
    %21 = arith.mulf %18, %20 : vector<16x16xf32>
    %22 = arith.addf %16, %21 : vector<16x16xf32>
    %23 = vector.extract_strided_slice %11 {offsets = [2, 0, 0], sizes = [1, 16, 16], strides = [1, 1, 1]} : vector<3x16x16xf32> to vector<1x16x16xf32>
    %24 = vector.shape_cast %23 : vector<1x16x16xf32> to vector<16x16xf32>
    %25 = vector.extract_strided_slice %11 {offsets = [2, 0, 0], sizes = [1, 16, 16], strides = [1, 1, 1]} : vector<3x16x16xf32> to vector<1x16x16xf32>
    %26 = vector.shape_cast %25 : vector<1x16x16xf32> to vector<16x16xf32>
    %27 = arith.mulf %24, %26 : vector<16x16xf32>
    %28 = arith.addf %22, %27 : vector<16x16xf32>
    %cst_18 = arith.constant 9.99999993E-9 : f32
    %29 = vector.broadcast %cst_18 : f32 to vector<16x16xf32>
    %30 = arith.maximumf %28, %29 : vector<16x16xf32>
    %31 = math.sqrt %30 : vector<16x16xf32>
    %cst_19 = arith.constant dense<0.000000e+00> : vector<16x128xf32>
    %32 = tpu.matmul %0, %3, %cst_19 {dimension_numbers = #tpu.dot_dimension_numbers<[1], [0], [0], [1], [0, 0, 1, 1], [], []>} : vector<16x32xf32>, vector<32x128xf32>, vector<16x128xf32> -> vector<16x128xf32>
    %cst_20 = arith.constant dense<0.000000e+00> : vector<16x128xf32>
    %33 = tpu.matmul %31, %4, %cst_20 {dimension_numbers = #tpu.dot_dimension_numbers<[1], [0], [0], [1], [0, 0, 1, 1], [], []>} : vector<16x16xf32>, vector<16x128xf32>, vector<16x128xf32> -> vector<16x128xf32>
    %34 = arith.addf %32, %33 : vector<16x128xf32>
    %35 = vector.broadcast %5 : vector<1x128xf32> to vector<16x128xf32>
    %36 = arith.addf %34, %35 : vector<16x128xf32>
    %cst_21 = arith.constant dense<0.000000e+00> : vector<48x16xf32>
    %37 = tpu.matmul %10, %6, %cst_21 {dimension_numbers = #tpu.dot_dimension_numbers<[1], [0], [0], [1], [0, 0, 1, 1], [], []>} : vector<48x16xf32>, vector<16x16xf32>, vector<48x16xf32> -> vector<48x16xf32>
    %38 = vector.shape_cast %37 : vector<48x16xf32> to vector<3x16x16xf32>
    %39 = arith.negf %36 : vector<16x128xf32>
    %40 = math.exp %39 : vector<16x128xf32>
    %cst_22 = arith.constant 1.000000e+00 : f32
    %41 = vector.broadcast %cst_22 : f32 to vector<16x128xf32>
    %42 = arith.addf %41, %40 : vector<16x128xf32>
    %43 = arith.divf %41, %42 : vector<16x128xf32>
    %cst_23 = arith.constant dense<0.000000e+00> : vector<16x16xf32>
    %44 = tpu.matmul %43, %7, %cst_23 {dimension_numbers = #tpu.dot_dimension_numbers<[1], [0], [0], [1], [0, 0, 1, 1], [], []>} : vector<16x128xf32>, vector<128x16xf32>, vector<16x16xf32> -> vector<16x16xf32>
    %45 = vector.broadcast %8 : vector<1x16xf32> to vector<16x16xf32>
    %46 = arith.addf %44, %45 : vector<16x16xf32>
    %47 = arith.negf %46 : vector<16x16xf32>
    %48 = math.exp %47 : vector<16x16xf32>
    %cst_24 = arith.constant 1.000000e+00 : f32
    %49 = vector.broadcast %cst_24 : f32 to vector<16x16xf32>
    %50 = arith.addf %49, %48 : vector<16x16xf32>
    %51 = arith.divf %49, %50 : vector<16x16xf32>
    %52 = vector.shape_cast %51 : vector<16x16xf32> to vector<1x16x16xf32>
    %53 = vector.broadcast %52 : vector<1x16x16xf32> to vector<3x16x16xf32>
    %54 = arith.mulf %38, %53 : vector<3x16x16xf32>
    %cst_25 = arith.constant 0.000000e+00 : f32
    %55 = vector.broadcast %cst_25 : f32 to vector<16x128xf32>
    %56 = arith.maximumf %36, %55 : vector<16x128xf32>
    %c0_26 = arith.constant 0 : index
    %c0_27 = arith.constant 0 : index
    %57 = vector.load %arg10[%c0_26, %c0_27] : memref<16x16xf32, #tpu.memory_space<vmem>>, vector<16x16xf32>
    %c0_28 = arith.constant 0 : index
    %c0_29 = arith.constant 0 : index
    %58 = vector.load %arg11[%c0_28, %c0_29] : memref<128x32xf32, #tpu.memory_space<vmem>>, vector<128x32xf32>
    %c0_30 = arith.constant 0 : index
    %c0_31 = arith.constant 0 : index
    %59 = vector.load %arg12[%c0_30, %c0_31] : memref<16x32xf32, #tpu.memory_space<vmem>>, vector<16x32xf32>
    %c0_32 = arith.constant 0 : index
    %c0_33 = arith.constant 0 : index
    %60 = vector.load %arg13[%c0_32, %c0_33] : memref<1x32xf32, #tpu.memory_space<vmem>>, vector<1x32xf32>
    %c0_34 = arith.constant 0 : index
    %c0_35 = arith.constant 0 : index
    %61 = vector.load %arg14[%c0_34, %c0_35] : memref<16x8xf32, #tpu.memory_space<vmem>>, vector<16x8xf32>
    %62 = vector.shape_cast %54 : vector<3x16x16xf32> to vector<48x16xf32>
    %cst_36 = arith.constant dense<0.000000e+00> : vector<48x16xf32>
    %63 = tpu.matmul %62, %57, %cst_36 {dimension_numbers = #tpu.dot_dimension_numbers<[1], [0], [0], [1], [0, 0, 1, 1], [], []>} : vector<48x16xf32>, vector<16x16xf32>, vector<48x16xf32> -> vector<48x16xf32>
    %64 = vector.shape_cast %63 : vector<48x16xf32> to vector<3x16x16xf32>
    %65 = vector.extract_strided_slice %64 {offsets = [0, 0, 0], sizes = [1, 16, 16], strides = [1, 1, 1]} : vector<3x16x16xf32> to vector<1x16x16xf32>
    %66 = vector.shape_cast %65 : vector<1x16x16xf32> to vector<16x16xf32>
    %67 = vector.extract_strided_slice %64 {offsets = [0, 0, 0], sizes = [1, 16, 16], strides = [1, 1, 1]} : vector<3x16x16xf32> to vector<1x16x16xf32>
    %68 = vector.shape_cast %67 : vector<1x16x16xf32> to vector<16x16xf32>
    %69 = arith.mulf %66, %68 : vector<16x16xf32>
    %70 = vector.extract_strided_slice %64 {offsets = [1, 0, 0], sizes = [1, 16, 16], strides = [1, 1, 1]} : vector<3x16x16xf32> to vector<1x16x16xf32>
    %71 = vector.shape_cast %70 : vector<1x16x16xf32> to vector<16x16xf32>
    %72 = vector.extract_strided_slice %64 {offsets = [1, 0, 0], sizes = [1, 16, 16], strides = [1, 1, 1]} : vector<3x16x16xf32> to vector<1x16x16xf32>
    %73 = vector.shape_cast %72 : vector<1x16x16xf32> to vector<16x16xf32>
    %74 = arith.mulf %71, %73 : vector<16x16xf32>
    %75 = arith.addf %69, %74 : vector<16x16xf32>
    %76 = vector.extract_strided_slice %64 {offsets = [2, 0, 0], sizes = [1, 16, 16], strides = [1, 1, 1]} : vector<3x16x16xf32> to vector<1x16x16xf32>
    %77 = vector.shape_cast %76 : vector<1x16x16xf32> to vector<16x16xf32>
    %78 = vector.extract_strided_slice %64 {offsets = [2, 0, 0], sizes = [1, 16, 16], strides = [1, 1, 1]} : vector<3x16x16xf32> to vector<1x16x16xf32>
    %79 = vector.shape_cast %78 : vector<1x16x16xf32> to vector<16x16xf32>
    %80 = arith.mulf %77, %79 : vector<16x16xf32>
    %81 = arith.addf %75, %80 : vector<16x16xf32>
    %cst_37 = arith.constant 9.99999993E-9 : f32
    %82 = vector.broadcast %cst_37 : f32 to vector<16x16xf32>
    %83 = arith.maximumf %81, %82 : vector<16x16xf32>
    %84 = math.sqrt %83 : vector<16x16xf32>
    %cst_38 = arith.constant dense<0.000000e+00> : vector<16x32xf32>
    %85 = tpu.matmul %56, %58, %cst_38 {dimension_numbers = #tpu.dot_dimension_numbers<[1], [0], [0], [1], [0, 0, 1, 1], [], []>} : vector<16x128xf32>, vector<128x32xf32>, vector<16x32xf32> -> vector<16x32xf32>
    %cst_39 = arith.constant dense<0.000000e+00> : vector<16x32xf32>
    %86 = tpu.matmul %84, %59, %cst_39 {dimension_numbers = #tpu.dot_dimension_numbers<[1], [0], [0], [1], [0, 0, 1, 1], [], []>} : vector<16x16xf32>, vector<16x32xf32>, vector<16x32xf32> -> vector<16x32xf32>
    %87 = arith.addf %85, %86 : vector<16x32xf32>
    %88 = vector.broadcast %60 : vector<1x32xf32> to vector<16x32xf32>
    %89 = arith.addf %87, %88 : vector<16x32xf32>
    %cst_40 = arith.constant dense<0.000000e+00> : vector<48x8xf32>
    %90 = tpu.matmul %63, %61, %cst_40 {dimension_numbers = #tpu.dot_dimension_numbers<[1], [0], [0], [1], [0, 0, 1, 1], [], []>} : vector<48x16xf32>, vector<16x8xf32>, vector<48x8xf32> -> vector<48x8xf32>
    %91 = vector.shape_cast %90 : vector<48x8xf32> to vector<3x16x8xf32>
    %92 = arith.addf %0, %89 : vector<16x32xf32>
    %93 = arith.addf %1, %91 : vector<3x16x8xf32>
    %c0_41 = arith.constant 0 : index
    %c0_42 = arith.constant 0 : index
    %94 = vector.load %arg15[%c0_41, %c0_42] : memref<1x32xf32, #tpu.memory_space<vmem>>, vector<1x32xf32>
    %c0_43 = arith.constant 0 : index
    %c0_44 = arith.constant 0 : index
    %95 = vector.load %arg16[%c0_43, %c0_44] : memref<1x32xf32, #tpu.memory_space<vmem>>, vector<1x32xf32>
    %cst_45 = arith.constant dense<0.000000e+00> : vector<16xf32>
    %96 = vector.multi_reduction <add>, %92, %cst_45 [1] : vector<16x32xf32> to vector<16xf32>
    %97 = vector.shape_cast %96 : vector<16xf32> to vector<16x1xf32>
    %cst_46 = arith.constant 3.200000e+01 : f32
    %98 = vector.broadcast %cst_46 : f32 to vector<16x1xf32>
    %99 = arith.divf %97, %98 : vector<16x1xf32>
    %100 = vector.broadcast %99 : vector<16x1xf32> to vector<16x32xf32>
    %101 = arith.subf %92, %100 : vector<16x32xf32>
    %102 = arith.mulf %101, %101 : vector<16x32xf32>
    %cst_47 = arith.constant dense<0.000000e+00> : vector<16xf32>
    %103 = vector.multi_reduction <add>, %102, %cst_47 [1] : vector<16x32xf32> to vector<16xf32>
    %104 = vector.shape_cast %103 : vector<16xf32> to vector<16x1xf32>
    %cst_48 = arith.constant 3.200000e+01 : f32
    %105 = vector.broadcast %cst_48 : f32 to vector<16x1xf32>
    %106 = arith.divf %104, %105 : vector<16x1xf32>
    %107 = vector.broadcast %99 : vector<16x1xf32> to vector<16x32xf32>
    %108 = arith.subf %92, %107 : vector<16x32xf32>
    %cst_49 = arith.constant 9.99999974E-6 : f32
    %109 = vector.broadcast %cst_49 : f32 to vector<16x1xf32>
    %110 = arith.addf %106, %109 : vector<16x1xf32>
    %111 = math.rsqrt %110 : vector<16x1xf32>
    %112 = vector.broadcast %111 : vector<16x1xf32> to vector<16x32xf32>
    %113 = arith.mulf %108, %112 : vector<16x32xf32>
    %114 = vector.broadcast %94 : vector<1x32xf32> to vector<16x32xf32>
    %115 = arith.mulf %113, %114 : vector<16x32xf32>
    %116 = vector.broadcast %95 : vector<1x32xf32> to vector<16x32xf32>
    %117 = arith.addf %115, %116 : vector<16x32xf32>
    %118 = vector.extract_strided_slice %93 {offsets = [0, 0, 0], sizes = [1, 16, 8], strides = [1, 1, 1]} : vector<3x16x8xf32> to vector<1x16x8xf32>
    %119 = vector.shape_cast %118 : vector<1x16x8xf32> to vector<16x8xf32>
    %120 = vector.extract_strided_slice %93 {offsets = [0, 0, 0], sizes = [1, 16, 8], strides = [1, 1, 1]} : vector<3x16x8xf32> to vector<1x16x8xf32>
    %121 = vector.shape_cast %120 : vector<1x16x8xf32> to vector<16x8xf32>
    %122 = arith.mulf %119, %121 : vector<16x8xf32>
    %123 = vector.extract_strided_slice %93 {offsets = [1, 0, 0], sizes = [1, 16, 8], strides = [1, 1, 1]} : vector<3x16x8xf32> to vector<1x16x8xf32>
    %124 = vector.shape_cast %123 : vector<1x16x8xf32> to vector<16x8xf32>
    %125 = vector.extract_strided_slice %93 {offsets = [1, 0, 0], sizes = [1, 16, 8], strides = [1, 1, 1]} : vector<3x16x8xf32> to vector<1x16x8xf32>
    %126 = vector.shape_cast %125 : vector<1x16x8xf32> to vector<16x8xf32>
    %127 = arith.mulf %124, %126 : vector<16x8xf32>
    %128 = arith.addf %122, %127 : vector<16x8xf32>
    %129 = vector.extract_strided_slice %93 {offsets = [2, 0, 0], sizes = [1, 16, 8], strides = [1, 1, 1]} : vector<3x16x8xf32> to vector<1x16x8xf32>
    %130 = vector.shape_cast %129 : vector<1x16x8xf32> to vector<16x8xf32>
    %131 = vector.extract_strided_slice %93 {offsets = [2, 0, 0], sizes = [1, 16, 8], strides = [1, 1, 1]} : vector<3x16x8xf32> to vector<1x16x8xf32>
    %132 = vector.shape_cast %131 : vector<1x16x8xf32> to vector<16x8xf32>
    %133 = arith.mulf %130, %132 : vector<16x8xf32>
    %134 = arith.addf %128, %133 : vector<16x8xf32>
    %cst_50 = arith.constant 2.000000e-04 : f32
    %135 = vector.broadcast %cst_50 : f32 to vector<16x8xf32>
    %136 = arith.cmpf ogt, %134, %135 : vector<16x8xf32>
    %137 = arith.extui %136 : vector<16x8xi1> to vector<16x8xi32>
    %138 = arith.sitofp %137 : vector<16x8xi32> to vector<16x8xf32>
    %139 = arith.mulf %134, %138 : vector<16x8xf32>
    %cst_51 = arith.constant dense<0.000000e+00> : vector<16xf32>
    %140 = vector.multi_reduction <add>, %139, %cst_51 [1] : vector<16x8xf32> to vector<16xf32>
    %141 = vector.shape_cast %140 : vector<16xf32> to vector<16x1xf32>
    %cst_52 = arith.constant dense<0.000000e+00> : vector<16xf32>
    %142 = vector.multi_reduction <add>, %138, %cst_52 [1] : vector<16x8xf32> to vector<16xf32>
    %143 = vector.shape_cast %142 : vector<16xf32> to vector<16x1xf32>
    %cst_53 = arith.constant 9.99999974E-5 : f32
    %144 = vector.broadcast %cst_53 : f32 to vector<16x1xf32>
    %145 = arith.addf %144, %143 : vector<16x1xf32>
    %146 = arith.divf %141, %145 : vector<16x1xf32>
    %cst_54 = arith.constant 9.99999974E-5 : f32
    %147 = vector.broadcast %cst_54 : f32 to vector<16x1xf32>
    %148 = arith.addf %146, %147 : vector<16x1xf32>
    %149 = math.rsqrt %148 : vector<16x1xf32>
    %150 = vector.broadcast %149 : vector<16x1xf32> to vector<16x8xf32>
    %151 = arith.mulf %138, %150 : vector<16x8xf32>
    %152 = vector.shape_cast %151 : vector<16x8xf32> to vector<1x16x8xf32>
    %153 = vector.broadcast %152 : vector<1x16x8xf32> to vector<3x16x8xf32>
    %154 = arith.mulf %93, %153 : vector<3x16x8xf32>
    %c0_55 = arith.constant 0 : index
    %c0_56 = arith.constant 0 : index
    %155 = vector.load %arg17[%c0_55, %c0_56] : memref<16x32xf32, #tpu.memory_space<vmem>>, vector<16x32xf32>
    tpu.vector_store %arg17[%c0_55, %c0_56], %117 {strides = array<i32>} : memref<16x32xf32, #tpu.memory_space<vmem>>, vector<16x32xf32>,
    %c0_57 = arith.constant 0 : index
    %c0_58 = arith.constant 0 : index
    %c0_59 = arith.constant 0 : index
    %156 = vector.load %arg18[%c0_57, %c0_58, %c0_59] : memref<3x16x8xf32, #tpu.memory_space<vmem>>, vector<3x16x8xf32>
    tpu.vector_store %arg18[%c0_57, %c0_58, %c0_59], %154 {strides = array<i32>} : memref<3x16x8xf32, #tpu.memory_space<vmem>>, vector<3x16x8xf32>,
    return
  }
  func.func @transform_0(%arg0: i32) -> (i32, i32) {
    %c0_i32 = arith.constant 0 : i32
    %c0_i32_0 = arith.constant 0 : i32
    return %arg0, %c0_i32 : i32, i32
  }
  func.func @transform_1(%arg0: i32) -> (i32, i32, i32) {
    %c0_i32 = arith.constant 0 : i32
    %c0_i32_0 = arith.constant 0 : i32
    %c0_i32_1 = arith.constant 0 : i32
    return %c0_i32, %arg0, %c0_i32_0 : i32, i32, i32
  }
  func.func @transform_2(%arg0: i32) -> (i32, i32) {
    %c0_i32 = arith.constant 0 : i32
    %c0_i32_0 = arith.constant 0 : i32
    %c0_i32_1 = arith.constant 0 : i32
    return %c0_i32, %c0_i32_0 : i32, i32
  }
  func.func @transform_3(%arg0: i32) -> (i32, i32) {
    %c0_i32 = arith.constant 0 : i32
    %c0_i32_0 = arith.constant 0 : i32
    %c0_i32_1 = arith.constant 0 : i32
    return %c0_i32, %c0_i32_0 : i32, i32
  }
  func.func @transform_4(%arg0: i32) -> (i32, i32) {
    %c0_i32 = arith.constant 0 : i32
    %c0_i32_0 = arith.constant 0 : i32
    %c0_i32_1 = arith.constant 0 : i32
    return %c0_i32, %c0_i32_0 : i32, i32
  }
  func.func @transform_5(%arg0: i32) -> (i32, i32) {
    %c0_i32 = arith.constant 0 : i32
    %c0_i32_0 = arith.constant 0 : i32
    %c0_i32_1 = arith.constant 0 : i32
    return %c0_i32, %c0_i32_0 : i32, i32
  }
  func.func @transform_6(%arg0: i32) -> (i32, i32) {
    %c0_i32 = arith.constant 0 : i32
    %c0_i32_0 = arith.constant 0 : i32
    %c0_i32_1 = arith.constant 0 : i32
    return %c0_i32, %c0_i32_0 : i32, i32
  }
  func.func @transform_7(%arg0: i32) -> (i32, i32) {
    %c0_i32 = arith.constant 0 : i32
    %c0_i32_0 = arith.constant 0 : i32
    %c0_i32_1 = arith.constant 0 : i32
    return %c0_i32, %c0_i32_0 : i32, i32
  }
  func.func @transform_8(%arg0: i32) -> (i32, i32) {
    %c0_i32 = arith.constant 0 : i32
    %c0_i32_0 = arith.constant 0 : i32
    %c0_i32_1 = arith.constant 0 : i32
    return %c0_i32, %c0_i32_0 : i32, i32
  }
  func.func @transform_9(%arg0: i32) -> (i32, i32) {
    %c0_i32 = arith.constant 0 : i32
    %c0_i32_0 = arith.constant 0 : i32
    %c0_i32_1 = arith.constant 0 : i32
    return %c0_i32, %c0_i32_0 : i32, i32
  }
  func.func @transform_10(%arg0: i32) -> (i32, i32) {
    %c0_i32 = arith.constant 0 : i32
    %c0_i32_0 = arith.constant 0 : i32
    %c0_i32_1 = arith.constant 0 : i32
    return %c0_i32, %c0_i32_0 : i32, i32
  }
  func.func @transform_11(%arg0: i32) -> (i32, i32) {
    %c0_i32 = arith.constant 0 : i32
    %c0_i32_0 = arith.constant 0 : i32
    %c0_i32_1 = arith.constant 0 : i32
    return %c0_i32, %c0_i32_0 : i32, i32
  }
  func.func @transform_12(%arg0: i32) -> (i32, i32) {
    %c0_i32 = arith.constant 0 : i32
    %c0_i32_0 = arith.constant 0 : i32
    %c0_i32_1 = arith.constant 0 : i32
    return %c0_i32, %c0_i32_0 : i32, i32
  }
  func.func @transform_13(%arg0: i32) -> (i32, i32) {
    %c0_i32 = arith.constant 0 : i32
    %c0_i32_0 = arith.constant 0 : i32
    %c0_i32_1 = arith.constant 0 : i32
    return %c0_i32, %c0_i32_0 : i32, i32
  }
  func.func @transform_14(%arg0: i32) -> (i32, i32) {
    %c0_i32 = arith.constant 0 : i32
    %c0_i32_0 = arith.constant 0 : i32
    %c0_i32_1 = arith.constant 0 : i32
    return %c0_i32, %c0_i32_0 : i32, i32
  }
  func.func @transform_15(%arg0: i32) -> (i32, i32) {
    %c0_i32 = arith.constant 0 : i32
    %c0_i32_0 = arith.constant 0 : i32
    %c0_i32_1 = arith.constant 0 : i32
    return %c0_i32, %c0_i32_0 : i32, i32
  }
  func.func @transform_16(%arg0: i32) -> (i32, i32) {
    %c0_i32 = arith.constant 0 : i32
    %c0_i32_0 = arith.constant 0 : i32
    return %arg0, %c0_i32 : i32, i32
  }
  func.func @transform_17(%arg0: i32) -> (i32, i32, i32) {
    %c0_i32 = arith.constant 0 : i32
    %c0_i32_0 = arith.constant 0 : i32
    %c0_i32_1 = arith.constant 0 : i32
    return %c0_i32, %arg0, %c0_i32_0 : i32, i32, i32
  }
}

</mosaic_0001>

<llo_original>
// kernel: gvp_encoder_forward.6
$region0: #{gvp_encoder_forward.6}
  #allocation0 [shape = 'u32[]', space=smem, size = 0x4, offset = 0x4, fixed_abs, tag = 'smem constant byte address 0x4 - core index']
  #allocation1 [shape = 'u32[72,128]{1,0:T(1,128)}', space=vmem, size = 0x9000, scoped, tag = 'internal scratch']
  %s0 = inlined_call_operand.vmem [shape: f32[16,7], index: 0, kind: input, shape index: {}]
  %s1 = inlined_call_operand.vmem [shape: f32[3,16,3], index: 1, kind: input, shape index: {}]
  %s2 = inlined_call_operand.vmem [shape: f32[3,8], index: 2, kind: input, shape index: {}]
  %s3 = inlined_call_operand.vmem [shape: f32[7,32], index: 3, kind: input, shape index: {}]
  %s4 = inlined_call_operand.vmem [shape: f32[8,32], index: 4, kind: input, shape index: {}]
  %s5 = inlined_call_operand.vmem [shape: f32[1,32], index: 5, kind: input, shape index: {}]
  %s6 = inlined_call_operand.vmem [shape: f32[8,8], index: 6, kind: input, shape index: {}]
  %s7 = inlined_call_operand.vmem [shape: f32[1,32], index: 7, kind: input, shape index: {}]
  %s8 = inlined_call_operand.vmem [shape: f32[1,32], index: 8, kind: input, shape index: {}]
  %s9 = inlined_call_operand.vmem [shape: f32[16,32], index: 9, kind: output, shape index: {0}]
  %s10 = inlined_call_operand.vmem [shape: f32[3,16,8], index: 10, kind: output, shape index: {1}]
  %11 = xla_tuple %s9, %s10
  %s12 = sld [smem:[#allocation0]]
  $region54: #{gvp_encoder_forward.6} parent=0
    _
  %s14 = ssub.s32 1, %s12
  %s15 = scalar_select 0, %s14, %s12
  // Predicated region
  $region2: #{gvp_encoder_forward.6} parent=0 // pred_check
    _
  $region3: #{gvp_encoder_forward.6} parent=0 // pred_check_branch
    %17 = sbr.rel (0) target = $region5
  $region4: #{gvp_encoder_forward.6} parent=0 // pred_region
    _
  $region5: #{gvp_encoder_forward.6} parent=0 // pred_fallthru
    _
  // Predicated region
  $region6: #{gvp_encoder_forward.6} parent=0 // pred_check
    _
  $region7: #{gvp_encoder_forward.6} parent=0 // pred_check_branch
    %19 = sbr.rel (0) target = $region9
  $region8: #{gvp_encoder_forward.6} parent=0 // pred_region
    _
  $region9: #{gvp_encoder_forward.6} parent=0 // pred_fallthru
    _
  // Predicated region
  $region10: #{gvp_encoder_forward.6} parent=0 // pred_check
    _
  $region11: #{gvp_encoder_forward.6} parent=0 // pred_check_branch
    %21 = sbr.rel (0) target = $region13
  $region12: #{gvp_encoder_forward.6} parent=0 // pred_region
    _
  $region13: #{gvp_encoder_forward.6} parent=0 // pred_fallthru
    _
  // Predicated region
  $region14: #{gvp_encoder_forward.6} parent=0 // pred_check
    _
  $region15: #{gvp_encoder_forward.6} parent=0 // pred_check_branch
    %23 = sbr.rel (0) target = $region17
  $region16: #{gvp_encoder_forward.6} parent=0 // pred_region
    _
  $region17: #{gvp_encoder_forward.6} parent=0 // pred_fallthru
    _
  // Predicated region
  $region18: #{gvp_encoder_forward.6} parent=0 // pred_check
    _
  $region19: #{gvp_encoder_forward.6} parent=0 // pred_check_branch
    %25 = sbr.rel (0) target = $region21
  $region20: #{gvp_encoder_forward.6} parent=0 // pred_region
    _
  $region21: #{gvp_encoder_forward.6} parent=0 // pred_fallthru
    _
  // Predicated region
  $region22: #{gvp_encoder_forward.6} parent=0 // pred_check
    _
  $region23: #{gvp_encoder_forward.6} parent=0 // pred_check_branch
    %27 = sbr.rel (0) target = $region25
  $region24: #{gvp_encoder_forward.6} parent=0 // pred_region
    _
  $region25: #{gvp_encoder_forward.6} parent=0 // pred_fallthru
    _
  // Predicated region
  $region26: #{gvp_encoder_forward.6} parent=0 // pred_check
    _
  $region27: #{gvp_encoder_forward.6} parent=0 // pred_check_branch
    %29 = sbr.rel (0) target = $region29
  $region28: #{gvp_encoder_forward.6} parent=0 // pred_region
    _
  $region29: #{gvp_encoder_forward.6} parent=0 // pred_fallthru
    _
  // Predicated region
  $region30: #{gvp_encoder_forward.6} parent=0 // pred_check
    _
  $region31: #{gvp_encoder_forward.6} parent=0 // pred_check_branch
    %31 = sbr.rel (0) target = $region33
  $region32: #{gvp_encoder_forward.6} parent=0 // pred_region
    _
  $region33: #{gvp_encoder_forward.6} parent=0 // pred_fallthru
    _
  // Predicated region
  $region34: #{gvp_encoder_forward.6} parent=0 // pred_check
    _
  $region35: #{gvp_encoder_forward.6} parent=0 // pred_check_branch
    %33 = sbr.rel (0) target = $region37
  $region36: #{gvp_encoder_forward.6} parent=0 // pred_region
    _
  $region37: #{gvp_encoder_forward.6} parent=0 // pred_fallthru
    _
  %v34 = vld [vmem:[%s2] sm:$0x7]
  %v35 = vld [vmem:[%s3] sm:$0x7f]
  %v36 = vld [vmem:[%s4] sm:$0xff]
  %v37 = vld [vmem:[%s5] sm:$0x1]
  %v38 = vld [vmem:[%s6] sm:$0xff]
  %v39 = vld [vmem:[%s0] sm:$0xff]
  %v40 = vld [vmem:[%s0 + $0x8] sm:$0xff]
  %v41 = vld [vmem:[%s1] sm:$0xff]
  %v42 = vld [vmem:[%s1 + $0x8] sm:$0xff]
  %v43 = vld [vmem:[%s1 + $0x10] sm:$0xff]
  %v44 = vld [vmem:[%s1 + $0x18] sm:$0xff]
  %v45 = vld [vmem:[%s1 + $0x20] sm:$0xff]
  %v46 = vld [vmem:[%s1 + $0x28] sm:$0xff]
  %vm47 = vcmask 23552
  %v49 = vsel %vm47, %v41, 0
  %v52 = vsel %vm47, %v42, 0
  %v55 = vsel %vm47, %v43, 0
  %v58 = vsel %vm47, %v44, 0
  %v61 = vsel %vm47, %v45, 0
  %v64 = vsel %vm47, %v46, 0
  %vm66 = vcmask 1042432
  %v68 = vsel %vm66, %v34, 0
  %70 = vmatpush.msra.mxu0 0.0
  %71 = vmatpush.msra.mxu0 0.0
  %72 = vmatpush.msra.mxu0 0.0
  %73 = vmatpush.msra.mxu0 0.0
  %74 = vmatpush.msra.mxu0 0.0
  %75 = vmatpush.msra.mxu0 0.0
  %76 = vmatpush.msra.mxu0 0.0
  %77 = vmatpush.msra.mxu0 0.0
  %78 = vmatpush.msra.mxu0 0.0
  %79 = vmatpush.msra.mxu0 0.0
  %80 = vmatpush.msra.mxu0 0.0
  %81 = vmatpush.msra.mxu0 0.0
  %82 = vmatpush.msra.mxu0 0.0
  %83 = vmatpush.msra.mxu0 0.0
  %84 = vmatpush.msra.mxu0 0.0
  %85 = vmatpush.msra.mxu0 %v68
  %86 = vmatmul.f32.gmra.mxu0 %v49
  %v87 = vpop.f32.mrf.mxu0
  %v88 = vadd.f32 0.0, %v87
  %89 = vmatmul.f32.gmra.mxu0 %v52
  %v90 = vpop.f32.mrf.mxu0
  %v91 = vadd.f32 0.0, %v90
  %92 = vmatmul.f32.gmra.mxu0 %v55
  %v93 = vpop.f32.mrf.mxu0
  %v94 = vadd.f32 0.0, %v93
  %95 = vmatmul.f32.gmra.mxu0 %v58
  %v96 = vpop.f32.mrf.mxu0
  %v97 = vadd.f32 0.0, %v96
  %98 = vmatmul.f32.gmra.mxu0 %v61
  %v99 = vpop.f32.mrf.mxu0
  %v100 = vadd.f32 0.0, %v99
  %101 = vmatmul.f32.gmra.mxu0 %v64
  %v102 = vpop.f32.mrf.mxu0
  %v103 = vadd.f32 0.0, %v102
  %104 = vdwg.mxu0
  %v105 = vmul.f32 %v88, %v88
  %v106 = vmul.f32 %v91, %v91
  %v107 = vmul.f32 %v94, %v94
  %v108 = vmul.f32 %v97, %v97
  %v109 = vadd.f32 %v105, %v107
  %v110 = vadd.f32 %v106, %v108
  %v111 = vmul.f32 %v100, %v100
  %v112 = vmul.f32 %v103, %v103
  %v113 = vadd.f32 %v109, %v111
  %v114 = vadd.f32 %v110, %v112
  %v115 = vmax.f32 %v113, 1e-08
  %v116 = vmax.f32 %v114, 1e-08
  %v117 = vrsqrt.pop %v115
  %v118 = vmul.f32 %v117, %v115
  %v119 = vmul.f32 %v118, %v117
  %v120 = vmul.f32 0.5, %v119
  %v121 = vsub.f32 1.5, %v120
  %v122 = vmul.f32 %v117, %v121
  %v123 = vmul.f32 %v115, %v122
  %vm124 = vcmp.eq.f32.partialorder %v115, inf
  %v125 = vsel %vm124, %v115, %v123
  %vm126 = vcmp.eq.f32.partialorder %v115, 0.0
  %v127 = vand.u32 %v115, 2147483648
  %v128 = vsel %vm126, %v127, %v125
  %v129 = vrsqrt.pop %v116
  %v130 = vmul.f32 %v129, %v116
  %v131 = vmul.f32 %v130, %v129
  %v132 = vmul.f32 0.5, %v131
  %v133 = vsub.f32 1.5, %v132
  %v134 = vmul.f32 %v129, %v133
  %v135 = vmul.f32 %v116, %v134
  %vm136 = vcmp.eq.f32.partialorder %v116, inf
  %v137 = vsel %vm136, %v116, %v135
  %vm138 = vcmp.eq.f32.partialorder %v116, 0.0
  %v139 = vand.u32 %v116, 2147483648
  %v140 = vsel %vm138, %v139, %v137
  %vm141 = vcmask 64512
  %v143 = vsel %vm141, %v128, 0
  %v146 = vsel %vm141, %v140, 0
  %148 = vmatpush.msra.mxu0 0.0
  %149 = vmatpush.msra.mxu0 0.0
  %150 = vmatpush.msra.mxu0 0.0
  %151 = vmatpush.msra.mxu0 0.0
  %152 = vmatpush.msra.mxu0 0.0
  %153 = vmatpush.msra.mxu0 0.0
  %154 = vmatpush.msra.mxu0 0.0
  %155 = vmatpush.msra.mxu0 0.0
  %156 = vmatpush.msra.mxu0 0.0
  %157 = vmatpush.msra.mxu0 0.0
  %158 = vmatpush.msra.mxu0 0.0
  %159 = vmatpush.msra.mxu0 0.0
  %160 = vmatpush.msra.mxu0 0.0
  %161 = vmatpush.msra.mxu0 0.0
  %162 = vmatpush.msra.mxu0 0.0
  %163 = vmatpush.msra.mxu0 %v36
  %164 = vmatmul.f32.gmra.mxu0 %v143
  %v165 = vpop.f32.mrf.mxu0
  %v166 = vadd.f32 0.0, %v165
  %167 = vmatmul.f32.gmra.mxu0 %v146
  %v168 = vpop.f32.mrf.mxu0
  %v169 = vadd.f32 0.0, %v168
  %170 = vdwg.mxu0
  %vm171 = vcmask 56320
  %v173 = vsel %vm171, %v39, 0
  %v176 = vsel %vm171, %v40, 0
  %vm178 = vcmask 1046528
  %v180 = vsel %vm178, %v35, 0
  %182 = vmatpush.msra.mxu0 0.0
  %183 = vmatpush.msra.mxu0 0.0
  %184 = vmatpush.msra.mxu0 0.0
  %185 = vmatpush.msra.mxu0 0.0
  %186 = vmatpush.msra.mxu0 0.0
  %187 = vmatpush.msra.mxu0 0.0
  %188 = vmatpush.msra.mxu0 0.0
  %189 = vmatpush.msra.mxu0 0.0
  %190 = vmatpush.msra.mxu0 0.0
  %191 = vmatpush.msra.mxu0 0.0
  %192 = vmatpush.msra.mxu0 0.0
  %193 = vmatpush.msra.mxu0 0.0
  %194 = vmatpush.msra.mxu0 0.0
  %195 = vmatpush.msra.mxu0 0.0
  %196 = vmatpush.msra.mxu0 0.0
  %197 = vmatpush.msra.mxu0 %v180
  %198 = vmatmul.f32.gmra.mxu0 %v173
  %v199 = vpop.f32.mrf.mxu0
  %v200 = vadd.f32 %v166, %v199
  %201 = vmatmul.f32.gmra.mxu0 %v176
  %v202 = vpop.f32.mrf.mxu0
  %v203 = vadd.f32 %v169, %v202
  %204 = vdwg.mxu0
  %v206 = vperm.slane %v37, 0
  %v208 = vadd.f32 %v200, %v206
  %v209 = vadd.f32 %v203, %v206
  %v211 = vsel %vm141, %v88, 0
  %v214 = vsel %vm141, %v91, 0
  %v217 = vsel %vm141, %v94, 0
  %v220 = vsel %vm141, %v97, 0
  %v223 = vsel %vm141, %v100, 0
  %v226 = vsel %vm141, %v103, 0
  %228 = vmatpush.msra.mxu0 0.0
  %229 = vmatpush.msra.mxu0 0.0
  %230 = vmatpush.msra.mxu0 0.0
  %231 = vmatpush.msra.mxu0 0.0
  %232 = vmatpush.msra.mxu0 0.0
  %233 = vmatpush.msra.mxu0 0.0
  %234 = vmatpush.msra.mxu0 0.0
  %235 = vmatpush.msra.mxu0 0.0
  %236 = vmatpush.msra.mxu0 0.0
  %237 = vmatpush.msra.mxu0 0.0
  %238 = vmatpush.msra.mxu0 0.0
  %239 = vmatpush.msra.mxu0 0.0
  %240 = vmatpush.msra.mxu0 0.0
  %241 = vmatpush.msra.mxu0 0.0
  %242 = vmatpush.msra.mxu0 0.0
  %243 = vmatpush.msra.mxu0 %v38
  %244 = vmatmul.f32.gmra.mxu0 %v211
  %v245 = vpop.f32.mrf.mxu0
  %v246 = vadd.f32 0.0, %v245
  %247 = vmatmul.f32.gmra.mxu0 %v214
  %v248 = vpop.f32.mrf.mxu0
  %v249 = vadd.f32 0.0, %v248
  %250 = vmatmul.f32.gmra.mxu0 %v217
  %v251 = vpop.f32.mrf.mxu0
  %v252 = vadd.f32 0.0, %v251
  %253 = vmatmul.f32.gmra.mxu0 %v220
  %v254 = vpop.f32.mrf.mxu0
  %v255 = vadd.f32 0.0, %v254
  %256 = vmatmul.f32.gmra.mxu0 %v223
  %v257 = vpop.f32.mrf.mxu0
  %v258 = vadd.f32 0.0, %v257
  %259 = vmatmul.f32.gmra.mxu0 %v226
  %v260 = vpop.f32.mrf.mxu0
  %v261 = vadd.f32 0.0, %v260
  %262 = vdwg.mxu0
  %v263 = vld [vmem:[%s7] sm:$0x1]
  %v264 = vld [vmem:[%s8] sm:$0x1]
  %vm265 = vcmask 261120
  %v266 = vsel %vm265, %v208, 0.0
  %267 = vadd.xlane.f32.xlu0 %v266
  %v268 = vpop.xlane.xlu0 %267
  %v269 = vsel %vm265, %v209, 0.0
  %270 = vadd.xlane.f32.xlu0 %v269
  %v271 = vpop.xlane.xlu0 %270
  %v272 = vrcp.pop 32.0
  %v273 = vmul.f32 32.0, %v272
  %v274 = vsub.f32 1.0, %v273
  %v275 = vmul.f32 %v272, %v274
  %v276 = vadd.f32 %v272, %v275
  %vm277 = vweird.f32 %v272
  %v278 = vsel %vm277, %v272, %v276
  %v279 = vmul.f32 %v268, %v278
  %v280 = vmul.f32 %v271, %v278
  %v281 = vsub.f32 %v208, %v279
  %v282 = vsub.f32 %v209, %v280
  %v283 = vmul.f32 %v281, %v281
  %v284 = vmul.f32 %v282, %v282
  %v285 = vsel %vm265, %v283, 0.0
  %286 = vadd.xlane.f32.xlu0 %v285
  %v287 = vpop.xlane.xlu0 %286
  %v288 = vsel %vm265, %v284, 0.0
  %289 = vadd.xlane.f32.xlu0 %v288
  %v290 = vpop.xlane.xlu0 %289
  %v291 = vmul.f32 %v287, %v278
  %v292 = vmul.f32 %v290, %v278
  %v293 = vadd.f32 %v291, 1e-05
  %v294 = vadd.f32 %v292, 1e-05
  %v295 = vrsqrt.pop %v293
  %v296 = vmul.f32 %v295, %v293
  %v297 = vmul.f32 %v296, %v295
  %v298 = vmul.f32 0.5, %v297
  %v299 = vsub.f32 1.5, %v298
  %v300 = vmul.f32 %v295, %v299
  %vm301 = vweird.f32 %v293
  %vm302 = vweird.f32 %v295
  %vm303 = vmor %vm301, %vm302
  %v304 = vsel %vm303, %v295, %v300
  %v305 = vrsqrt.pop %v294
  %v306 = vmul.f32 %v305, %v294
  %v307 = vmul.f32 %v306, %v305
  %v308 = vmul.f32 0.5, %v307
  %v309 = vsub.f32 1.5, %v308
  %v310 = vmul.f32 %v305, %v309
  %vm311 = vweird.f32 %v294
  %vm312 = vweird.f32 %v305
  %vm313 = vmor %vm311, %vm312
  %v314 = vsel %vm313, %v305, %v310
  %v315 = vmul.f32 %v281, %v304
  %v316 = vmul.f32 %v282, %v314
  %v318 = vperm.slane %v263, 0
  %v320 = vmul.f32 %v315, %v318
  %v321 = vmul.f32 %v316, %v318
  %v323 = vperm.slane %v264, 0
  %v325 = vadd.f32 %v320, %v323
  %v326 = vadd.f32 %v321, %v323
  %v327 = vmul.f32 %v246, %v246
  %v328 = vmul.f32 %v249, %v249
  %v329 = vmul.f32 %v252, %v252
  %v330 = vmul.f32 %v255, %v255
  %v331 = vadd.f32 %v327, %v329
  %v332 = vadd.f32 %v328, %v330
  %v333 = vmul.f32 %v258, %v258
  %v334 = vmul.f32 %v261, %v261
  %v335 = vadd.f32 %v331, %v333
  %v336 = vadd.f32 %v332, %v334
  %vm337 = vcmp.gt.f32.partialorder %v335, 0.0002
  %vm338 = vcmp.gt.f32.partialorder %v336, 0.0002
  %v339 = vsel %vm337, 1, 0
  %v340 = vsel %vm338, 1, 0
  %v341 = vcvt.s32.f32 %v339
  %v342 = vcvt.s32.f32 %v340
  %v343 = vmul.f32 %v335, %v341
  %v344 = vmul.f32 %v336, %v342
  %v345 = vsel %vm141, %v343, 0.0
  %346 = vadd.xlane.f32.xlu0 %v345
  %v347 = vpop.xlane.xlu0 %346
  %v348 = vsel %vm141, %v344, 0.0
  %349 = vadd.xlane.f32.xlu0 %v348
  %v350 = vpop.xlane.xlu0 %349
  %v351 = vsel %vm141, %v341, 0.0
  %352 = vadd.xlane.f32.xlu0 %v351
  %v353 = vpop.xlane.xlu0 %352
  %v354 = vsel %vm141, %v342, 0.0
  %355 = vadd.xlane.f32.xlu0 %v354
  %v356 = vpop.xlane.xlu0 %355
  %v357 = vadd.f32 %v353, 0.0001
  %v358 = vadd.f32 %v356, 0.0001
  %v359 = vrcp.pop %v357
  %v360 = vmul.f32 %v357, %v359
  %v361 = vsub.f32 1.0, %v360
  %v362 = vmul.f32 %v359, %v361
  %v363 = vadd.f32 %v359, %v362
  %vm364 = vweird.f32 %v357
  %vm365 = vweird.f32 %v359
  %vm366 = vmor %vm364, %vm365
  %v367 = vsel %vm366, %v359, %v363
  %v368 = vand.u32 2147483647, %v357
  %vm369 = vcmp.eq.f32.partialorder %v368, 8.507059e+37
  %v370 = vand.u32 %v357, 2147483648
  %v371 = vor.u32 1.1754944e-38, %v370
  %v372 = vsel %vm369, %v371, %v367
  %v373 = vmul.f32 %v347, %v372
  %v374 = vrcp.pop %v358
  %v375 = vmul.f32 %v358, %v374
  %v376 = vsub.f32 1.0, %v375
  %v377 = vmul.f32 %v374, %v376
  %v378 = vadd.f32 %v374, %v377
  %vm379 = vweird.f32 %v358
  %vm380 = vweird.f32 %v374
  %vm381 = vmor %vm379, %vm380
  %v382 = vsel %vm381, %v374, %v378
  %v383 = vand.u32 2147483647, %v358
  %vm384 = vcmp.eq.f32.partialorder %v383, 8.507059e+37
  %v385 = vand.u32 %v358, 2147483648
  %v386 = vor.u32 1.1754944e-38, %v385
  %v387 = vsel %vm384, %v386, %v382
  %v388 = vmul.f32 %v350, %v387
  %v389 = vadd.f32 %v373, 0.0001
  %v390 = vadd.f32 %v388, 0.0001
  %v391 = vrsqrt.pop %v389
  %v392 = vmul.f32 %v391, %v389
  %v393 = vmul.f32 %v392, %v391
  %v394 = vmul.f32 0.5, %v393
  %v395 = vsub.f32 1.5, %v394
  %v396 = vmul.f32 %v391, %v395
  %vm397 = vweird.f32 %v389
  %vm398 = vweird.f32 %v391
  %vm399 = vmor %vm397, %vm398
  %v400 = vsel %vm399, %v391, %v396
  %v401 = vrsqrt.pop %v390
  %v402 = vmul.f32 %v401, %v390
  %v403 = vmul.f32 %v402, %v401
  %v404 = vmul.f32 0.5, %v403
  %v405 = vsub.f32 1.5, %v404
  %v406 = vmul.f32 %v401, %v405
  %vm407 = vweird.f32 %v390
  %vm408 = vweird.f32 %v401
  %vm409 = vmor %vm407, %vm408
  %v410 = vsel %vm409, %v401, %v406
  %v411 = vmul.f32 %v341, %v400
  %v412 = vmul.f32 %v342, %v410
  %v413 = vmul.f32 %v246, %v411
  %v414 = vmul.f32 %v249, %v412
  %v415 = vmul.f32 %v252, %v411
  %v416 = vmul.f32 %v255, %v412
  %v417 = vmul.f32 %v258, %v411
  %v418 = vmul.f32 %v261, %v412
  %419 = vst.msk [vmem:[%s9] sm:$0xff] %vm265, %v325
  %420 = vst.msk [vmem:[%s9 + $0x8] sm:$0xff] %vm265, %v326
  %421 = vst.msk [vmem:[%s10] sm:$0xff] %vm141, %v413
  %422 = vst.msk [vmem:[%s10 + $0x8] sm:$0xff] %vm141, %v414
  %423 = vst.msk [vmem:[%s10 + $0x10] sm:$0xff] %vm141, %v415
  %424 = vst.msk [vmem:[%s10 + $0x18] sm:$0xff] %vm141, %v416
  %425 = vst.msk [vmem:[%s10 + $0x20] sm:$0xff] %vm141, %v417
  %426 = vst.msk [vmem:[%s10 + $0x28] sm:$0xff] %vm141, %v418
  // Predicated region
  $region38: #{gvp_encoder_forward.6} parent=0 // pred_check
    _
  $region39: #{gvp_encoder_forward.6} parent=0 // pred_check_branch
    %428 = sbr.rel (0) target = $region41
  $region40: #{gvp_encoder_forward.6} parent=0 // pred_region
    _
  $region41: #{gvp_encoder_forward.6} parent=0 // pred_fallthru
    _
  // Predicated region
  $region42: #{gvp_encoder_forward.6} parent=0 // pred_check
    _
  $region43: #{gvp_encoder_forward.6} parent=0 // pred_check_branch
    %430 = sbr.rel (0) target = $region45
  $region44: #{gvp_encoder_forward.6} parent=0 // pred_region
    _
  $region45: #{gvp_encoder_forward.6} parent=0 // pred_fallthru
    _
  // Predicated region
  $region46: #{gvp_encoder_forward.6} parent=0 // pred_check
    _
  $region47: #{gvp_encoder_forward.6} parent=0 // pred_check_branch
    %432 = sbr.rel (0) target = $region49
  $region48: #{gvp_encoder_forward.6} parent=0 // pred_region
    _
  $region49: #{gvp_encoder_forward.6} parent=0 // pred_fallthru
    _
  // Predicated region
  $region50: #{gvp_encoder_forward.6} parent=0 // pred_check
    _
  $region51: #{gvp_encoder_forward.6} parent=0 // pred_check_branch
    %434 = sbr.rel (0) target = $region53
  $region52: #{gvp_encoder_forward.6} parent=0 // pred_region
    _
  $region53: #{gvp_encoder_forward.6} parent=0 // pred_fallthru
    _

// kernel: gvp_encoder_forward.7
$region0: #{gvp_encoder_forward.7}
  #allocation0 [shape = 'u32[]', space=smem, size = 0x4, offset = 0x4, fixed_abs, tag = 'smem constant byte address 0x4 - core index']
  #allocation1 [shape = 'u32[72,128]{1,0:T(1,128)}', space=vmem, size = 0x9000, scoped, tag = 'internal scratch']
  %s0 = inlined_call_operand.vmem [shape: f32[64,34], index: 0, kind: input, shape index: {}]
  %s1 = inlined_call_operand.vmem [shape: f32[3,64,1], index: 1, kind: input, shape index: {}]
  %s2 = inlined_call_operand.vmem [shape: f32[1,4], index: 2, kind: input, shape index: {}]
  %s3 = inlined_call_operand.vmem [shape: f32[34,16], index: 3, kind: input, shape index: {}]
  %s4 = inlined_call_operand.vmem [shape: f32[4,16], index: 4, kind: input, shape index: {}]
  %s5 = inlined_call_operand.vmem [shape: f32[1,16], index: 5, kind: input, shape index: {}]
  %s6 = inlined_call_operand.vmem [shape: f32[4,4], index: 6, kind: input, shape index: {}]
  %s7 = inlined_call_operand.vmem [shape: f32[1,16], index: 7, kind: input, shape index: {}]
  %s8 = inlined_call_operand.vmem [shape: f32[1,16], index: 8, kind: input, shape index: {}]
  %s9 = inlined_call_operand.vmem [shape: f32[64,16], index: 9, kind: output, shape index: {0}]
  %s10 = inlined_call_operand.vmem [shape: f32[3,64,4], index: 10, kind: output, shape index: {1}]
  %11 = xla_tuple %s9, %s10
  %s12 = sld [smem:[#allocation0]]
  $region149: #{gvp_encoder_forward.7} parent=0
    _
  %s14 = ssub.s32 1, %s12
  %s15 = scalar_select 0, %s14, %s12
  $region1: #{gvp_encoder_forward.7} parent=0
    #allocation2 [shape = 'u8[49152]{0}', space=vmem, size = 0xc000, scoped, tag = 'input window, operand 1']
    #allocation3 [shape = 'u8[49152]{0}', space=vmem, size = 0xc000, scoped, tag = 'output window, operand 1']
    loop: start=0, step=1, limit=6
    $region2: #{gvp_encoder_forward.7} parent=1 // loop_pre_header
      _
    $region3: #{gvp_encoder_forward.7} parent=1 // loop_header
      %s17 = sphi 0, %s21
      %p18 = scmp.ge.s32.totalorder %s17, 6
      %s27 = sphi 0, %s29
      %s30 = sphi 0, %s27
      %s31 = sphi 0, %s30
      %s47 = sphi 0, %s31
      %s53 = sphi 0, %s55
      %s56 = sphi 0, %s53
      %s57 = sphi 0, %s56
      %s73 = sphi 0, %s57
      %s77 = sphi 0, %s77
      %s79 = sphi 0, %s77
      %s80 = sphi 0, %s79
      %s94 = sphi 0, %s80
      %s98 = sphi 0, %s98
      %s100 = sphi 0, %s98
      %s101 = sphi 0, %s100
      %s115 = sphi 0, %s101
      %s119 = sphi 0, %s119
      %s121 = sphi 0, %s119
      %s122 = sphi 0, %s121
      %s136 = sphi 0, %s122
      %s140 = sphi 0, %s140
      %s142 = sphi 0, %s140
      %s143 = sphi 0, %s142
      %s157 = sphi 0, %s143
      %s161 = sphi 0, %s161
      %s163 = sphi 0, %s161
      %s164 = sphi 0, %s163
      %s178 = sphi 0, %s164
      %s182 = sphi 0, %s182
      %s184 = sphi 0, %s182
      %s185 = sphi 0, %s184
      %s199 = sphi 0, %s185
      %s203 = sphi 0, %s203
      %s205 = sphi 0, %s203
      %s206 = sphi 0, %s205
      %s220 = sphi 0, %s206
      %s226 = sphi 0, %s228
      %s229 = sphi 0, %s226
      %s230 = sphi 0, %s229
      %s246 = sphi 0, %s230
      %s252 = sphi 0, %s254
      %s255 = sphi 0, %s252
      %s256 = sphi 0, %s255
      %s272 = sphi 0, %s256
    $region4: #{gvp_encoder_forward.7} parent=1 // loop_header_branch
      %20 = sbr.rel (%p18) target = $region8
    $region5: #{gvp_encoder_forward.7} parent=1 // loop_body
      %s22 = ssub.s32 %s17, 1
      %s23 = ssub.s32 %s17, 2
      %s24 = sadd.s32 %s17, 1
      %s25 = ssub.s32 %s17, %s24
      %p26 = scmp.eq.s32.totalorder %s25, 0
      %s28 = sadd.s32 %s27, 1
      %s29 = scalar_select %p26, %s27, %s28
      %p32 = pneg %p26
      %p33 = scmp.eq.s32.totalorder %s17, 3
      %p34 = por %p32, %p33
      %p35 = scmp.ne.s32.totalorder %s27, %s30
      %p36 = scmp.eq.s32.totalorder %s17, 0
      %p37 = por %p35, %p36
      %p38 = scmp.ne.s32.totalorder %s27, %s30
      %p39 = scmp.eq.s32.totalorder %s22, 3
      %p40 = por %p38, %p39
      %p41 = scmp.ne.s32.totalorder %s30, %s31
      %p42 = scmp.eq.s32.totalorder %s22, 0
      %p43 = por %p41, %p42
      %p44 = scmp.ne.s32.totalorder %s30, %s31
      %p45 = scmp.eq.s32.totalorder %s23, 3
      %p46 = por %p44, %p45
      %p48 = scmp.ne.s32.totalorder %s31, %s47
      %p49 = scmp.eq.s32.totalorder %s23, 0
      %p50 = por %p48, %p49
      %s51 = ssub.s32 %s17, %s24
      %p52 = scmp.eq.s32.totalorder %s51, 0
      %s54 = sadd.s32 %s53, 1
      %s55 = scalar_select %p52, %s53, %s54
      %p58 = pneg %p52
      %p59 = scmp.eq.s32.totalorder %s17, 3
      %p60 = por %p58, %p59
      %p61 = scmp.ne.s32.totalorder %s53, %s56
      %p62 = scmp.eq.s32.totalorder %s17, 0
      %p63 = por %p61, %p62
      %p64 = scmp.ne.s32.totalorder %s53, %s56
      %p65 = scmp.eq.s32.totalorder %s22, 3
      %p66 = por %p64, %p65
      %p67 = scmp.ne.s32.totalorder %s56, %s57
      %p68 = scmp.eq.s32.totalorder %s22, 0
      %p69 = por %p67, %p68
      %p70 = scmp.ne.s32.totalorder %s56, %s57
      %p71 = scmp.eq.s32.totalorder %s23, 3
      %p72 = por %p70, %p71
      %p74 = scmp.ne.s32.totalorder %s57, %s73
      %p75 = scmp.eq.s32.totalorder %s23, 0
      %p76 = por %p74, %p75
      %s78 = sadd.s32 %s77, 1
      %p81 = scmp.eq.s32.totalorder %s17, 3
      %p82 = scmp.ne.s32.totalorder %s77, %s79
      %p83 = scmp.eq.s32.totalorder %s17, 0
      %p84 = por %p82, %p83
      %p85 = scmp.ne.s32.totalorder %s77, %s79
      %p86 = scmp.eq.s32.totalorder %s22, 3
      %p87 = por %p85, %p86
      %p88 = scmp.ne.s32.totalorder %s79, %s80
      %p89 = scmp.eq.s32.totalorder %s22, 0
      %p90 = por %p88, %p89
      %p91 = scmp.ne.s32.totalorder %s79, %s80
      %p92 = scmp.eq.s32.totalorder %s23, 3
      %p93 = por %p91, %p92
      %p95 = scmp.ne.s32.totalorder %s80, %s94
      %p96 = scmp.eq.s32.totalorder %s23, 0
      %p97 = por %p95, %p96
      %s99 = sadd.s32 %s98, 1
      %p102 = scmp.eq.s32.totalorder %s17, 3
      %p103 = scmp.ne.s32.totalorder %s98, %s100
      %p104 = scmp.eq.s32.totalorder %s17, 0
      %p105 = por %p103, %p104
      %p106 = scmp.ne.s32.totalorder %s98, %s100
      %p107 = scmp.eq.s32.totalorder %s22, 3
      %p108 = por %p106, %p107
      %p109 = scmp.ne.s32.totalorder %s100, %s101
      %p110 = scmp.eq.s32.totalorder %s22, 0
      %p111 = por %p109, %p110
      %p112 = scmp.ne.s32.totalorder %s100, %s101
      %p113 = scmp.eq.s32.totalorder %s23, 3
      %p114 = por %p112, %p113
      %p116 = scmp.ne.s32.totalorder %s101, %s115
      %p117 = scmp.eq.s32.totalorder %s23, 0
      %p118 = por %p116, %p117
      %s120 = sadd.s32 %s119, 1
      %p123 = scmp.eq.s32.totalorder %s17, 3
      %p124 = scmp.ne.s32.totalorder %s119, %s121
      %p125 = scmp.eq.s32.totalorder %s17, 0
      %p126 = por %p124, %p125
      %p127 = scmp.ne.s32.totalorder %s119, %s121
      %p128 = scmp.eq.s32.totalorder %s22, 3
      %p129 = por %p127, %p128
      %p130 = scmp.ne.s32.totalorder %s121, %s122
      %p131 = scmp.eq.s32.totalorder %s22, 0
      %p132 = por %p130, %p131
      %p133 = scmp.ne.s32.totalorder %s121, %s122
      %p134 = scmp.eq.s32.totalorder %s23, 3
      %p135 = por %p133, %p134
      %p137 = scmp.ne.s32.totalorder %s122, %s136
      %p138 = scmp.eq.s32.totalorder %s23, 0
      %p139 = por %p137, %p138
      %s141 = sadd.s32 %s140, 1
      %p144 = scmp.eq.s32.totalorder %s17, 3
      %p145 = scmp.ne.s32.totalorder %s140, %s142
      %p146 = scmp.eq.s32.totalorder %s17, 0
      %p147 = por %p145, %p146
      %p148 = scmp.ne.s32.totalorder %s140, %s142
      %p149 = scmp.eq.s32.totalorder %s22, 3
      %p150 = por %p148, %p149
      %p151 = scmp.ne.s32.totalorder %s142, %s143
      %p152 = scmp.eq.s32.totalorder %s22, 0
      %p153 = por %p151, %p152
      %p154 = scmp.ne.s32.totalorder %s142, %s143
      %p155 = scmp.eq.s32.totalorder %s23, 3
      %p156 = por %p154, %p155
      %p158 = scmp.ne.s32.totalorder %s143, %s157
      %p159 = scmp.eq.s32.totalorder %s23, 0
      %p160 = por %p158, %p159
      %s162 = sadd.s32 %s161, 1
      %p165 = scmp.eq.s32.totalorder %s17, 3
      %p166 = scmp.ne.s32.totalorder %s161, %s163
      %p167 = scmp.eq.s32.totalorder %s17, 0
      %p168 = por %p166, %p167
      %p169 = scmp.ne.s32.totalorder %s161, %s163
      %p170 = scmp.eq.s32.totalorder %s22, 3
      %p171 = por %p169, %p170
      %p172 = scmp.ne.s32.totalorder %s163, %s164
      %p173 = scmp.eq.s32.totalorder %s22, 0
      %p174 = por %p172, %p173
      %p175 = scmp.ne.s32.totalorder %s163, %s164
      %p176 = scmp.eq.s32.totalorder %s23, 3
      %p177 = por %p175, %p176
      %p179 = scmp.ne.s32.totalorder %s164, %s178
      %p180 = scmp.eq.s32.totalorder %s23, 0
      %p181 = por %p179, %p180
      %s183 = sadd.s32 %s182, 1
      %p186 = scmp.eq.s32.totalorder %s17, 3
      %p187 = scmp.ne.s32.totalorder %s182, %s184
      %p188 = scmp.eq.s32.totalorder %s17, 0
      %p189 = por %p187, %p188
      %p190 = scmp.ne.s32.totalorder %s182, %s184
      %p191 = scmp.eq.s32.totalorder %s22, 3
      %p192 = por %p190, %p191
      %p193 = scmp.ne.s32.totalorder %s184, %s185
      %p194 = scmp.eq.s32.totalorder %s22, 0
      %p195 = por %p193, %p194
      %p196 = scmp.ne.s32.totalorder %s184, %s185
      %p197 = scmp.eq.s32.totalorder %s23, 3
      %p198 = por %p196, %p197
      %p200 = scmp.ne.s32.totalorder %s185, %s199
      %p201 = scmp.eq.s32.totalorder %s23, 0
      %p202 = por %p200, %p201
      %s204 = sadd.s32 %s203, 1
      %p207 = scmp.eq.s32.totalorder %s17, 3
      %p208 = scmp.ne.s32.totalorder %s203, %s205
      %p209 = scmp.eq.s32.totalorder %s17, 0
      %p210 = por %p208, %p209
      %p211 = scmp.ne.s32.totalorder %s203, %s205
      %p212 = scmp.eq.s32.totalorder %s22, 3
      %p213 = por %p211, %p212
      %p214 = scmp.ne.s32.totalorder %s205, %s206
      %p215 = scmp.eq.s32.totalorder %s22, 0
      %p216 = por %p214, %p215
      %p217 = scmp.ne.s32.totalorder %s205, %s206
      %p218 = scmp.eq.s32.totalorder %s23, 3
      %p219 = por %p217, %p218
      %p221 = scmp.ne.s32.totalorder %s206, %s220
      %p222 = scmp.eq.s32.totalorder %s23, 0
      %p223 = por %p221, %p222
      %s224 = ssub.s32 %s17, %s24
      %p225 = scmp.eq.s32.totalorder %s224, 0
      %s227 = sadd.s32 %s226, 1
      %s228 = scalar_select %p225, %s226, %s227
      %p231 = pneg %p225
      %p232 = scmp.eq.s32.totalorder %s17, 3
      %p233 = por %p231, %p232
      %p234 = scmp.ne.s32.totalorder %s226, %s229
      %p235 = scmp.eq.s32.totalorder %s17, 0
      %p236 = por %p234, %p235
      %p237 = scmp.ne.s32.totalorder %s226, %s229
      %p238 = scmp.eq.s32.totalorder %s22, 3
      %p239 = por %p237, %p238
      %p240 = scmp.ne.s32.totalorder %s229, %s230
      %p241 = scmp.eq.s32.totalorder %s22, 0
      %p242 = por %p240, %p241
      %p243 = scmp.ne.s32.totalorder %s229, %s230
      %p244 = scmp.eq.s32.totalorder %s23, 3
      %p245 = por %p243, %p244
      %p247 = scmp.ne.s32.totalorder %s230, %s246
      %p248 = scmp.eq.s32.totalorder %s23, 0
      %p249 = por %p247, %p248
      %s250 = ssub.s32 %s17, %s24
      %p251 = scmp.eq.s32.totalorder %s250, 0
      %s253 = sadd.s32 %s252, 1
      %s254 = scalar_select %p251, %s252, %s253
      %p257 = pneg %p251
      %p258 = scmp.eq.s32.totalorder %s17, 3
      %p259 = por %p257, %p258
      %p260 = scmp.ne.s32.totalorder %s252, %s255
      %p261 = scmp.eq.s32.totalorder %s17, 0
      %p262 = por %p260, %p261
      %p263 = scmp.ne.s32.totalorder %s252, %s255
      %p264 = scmp.eq.s32.totalorder %s22, 3
      %p265 = por %p263, %p264
      %p266 = scmp.ne.s32.totalorder %s255, %s256
      %p267 = scmp.eq.s32.totalorder %s22, 0
      %p268 = por %p266, %p267
      %p269 = scmp.ne.s32.totalorder %s255, %s256
      %p270 = scmp.eq.s32.totalorder %s23, 3
      %p271 = por %p269, %p270
      %p273 = scmp.ne.s32.totalorder %s256, %s272
      %p274 = scmp.eq.s32.totalorder %s23, 0
      %p275 = por %p273, %p274
      %p276 = scmp.le.s32.totalorder 1, %s17
      %p277 = scmp.lt.s32.totalorder %s17, 5
      %p278 = pnand %p276, %p277
      %p279 = pneg %p278
      // Predicated region
      $region9: #{gvp_encoder_forward.7} parent=5 // pred_check
        _
      $region10: #{gvp_encoder_forward.7} parent=5 // pred_check_branch
        %281 = sbr.rel (%p278) target = $region12
      $region11: #{gvp_encoder_forward.7} parent=5 // pred_region
        %s282 = ssub.s32 %s17, 1
        // Predicated region
        $region13: #{gvp_encoder_forward.7} parent=11 // pred_check
          %p283 = pneg %p90
        $region14: #{gvp_encoder_forward.7} parent=11 // pred_check_branch
          %285 = sbr.rel (%p283) target = $region16
        $region15: #{gvp_encoder_forward.7} parent=11 // pred_region
          _
        $region16: #{gvp_encoder_forward.7} parent=11 // pred_fallthru
          _
        // Predicated region
        $region17: #{gvp_encoder_forward.7} parent=11 // pred_check
          %p286 = pneg %p111
        $region18: #{gvp_encoder_forward.7} parent=11 // pred_check_branch
          %288 = sbr.rel (%p286) target = $region20
        $region19: #{gvp_encoder_forward.7} parent=11 // pred_region
          _
        $region20: #{gvp_encoder_forward.7} parent=11 // pred_fallthru
          _
        // Predicated region
        $region21: #{gvp_encoder_forward.7} parent=11 // pred_check
          %p289 = pneg %p132
        $region22: #{gvp_encoder_forward.7} parent=11 // pred_check_branch
          %291 = sbr.rel (%p289) target = $region24
        $region23: #{gvp_encoder_forward.7} parent=11 // pred_region
          _
        $region24: #{gvp_encoder_forward.7} parent=11 // pred_fallthru
          _
        // Predicated region
        $region25: #{gvp_encoder_forward.7} parent=11 // pred_check
          %p292 = pneg %p153
        $region26: #{gvp_encoder_forward.7} parent=11 // pred_check_branch
          %294 = sbr.rel (%p292) target = $region28
        $region27: #{gvp_encoder_forward.7} parent=11 // pred_region
          _
        $region28: #{gvp_encoder_forward.7} parent=11 // pred_fallthru
          _
        // Predicated region
        $region29: #{gvp_encoder_forward.7} parent=11 // pred_check
          %p295 = pneg %p174
        $region30: #{gvp_encoder_forward.7} parent=11 // pred_check_branch
          %297 = sbr.rel (%p295) target = $region32
        $region31: #{gvp_encoder_forward.7} parent=11 // pred_region
          _
        $region32: #{gvp_encoder_forward.7} parent=11 // pred_fallthru
          _
        // Predicated region
        $region33: #{gvp_encoder_forward.7} parent=11 // pred_check
          %p298 = pneg %p195
        $region34: #{gvp_encoder_forward.7} parent=11 // pred_check_branch
          %300 = sbr.rel (%p298) target = $region36
        $region35: #{gvp_encoder_forward.7} parent=11 // pred_region
          _
        $region36: #{gvp_encoder_forward.7} parent=11 // pred_fallthru
          _
        // Predicated region
        $region37: #{gvp_encoder_forward.7} parent=11 // pred_check
          %p301 = pneg %p216
        $region38: #{gvp_encoder_forward.7} parent=11 // pred_check_branch
          %303 = sbr.rel (%p301) target = $region40
        $region39: #{gvp_encoder_forward.7} parent=11 // pred_region
          _
        $region40: #{gvp_encoder_forward.7} parent=11 // pred_fallthru
          _
      $region12: #{gvp_encoder_forward.7} parent=5 // pred_fallthru
        _
      %p304 = scmp.lt.s32.totalorder %s17, 4
      // Predicated region
      $region41: #{gvp_encoder_forward.7} parent=5 // pred_check
        %p305 = pneg %p304
      $region42: #{gvp_encoder_forward.7} parent=5 // pred_check_branch
        %307 = sbr.rel (%p305) target = $region44
      $region43: #{gvp_encoder_forward.7} parent=5 // pred_region
        // Predicated region
        $region45: #{gvp_encoder_forward.7} parent=43 // pred_check
          %p308 = pneg %p37
        $region46: #{gvp_encoder_forward.7} parent=43 // pred_check_branch
          %310 = sbr.rel (%p308) target = $region48
        $region47: #{gvp_encoder_forward.7} parent=43 // pred_region
          %s311 = smul.u32 2, %s17
          %p312 = scmp.lt.s32.totalorder %s311, 7
          %s313 = scalar_select %p312, %s311, 7
          %s314 = smul.addr %s313, 8
          %s315 = scalar_lea.vmem %s0, %s314
          %s316 = smul.u32 2, %s17
        $region48: #{gvp_encoder_forward.7} parent=43 // pred_fallthru
          _
        // Predicated region
        $region49: #{gvp_encoder_forward.7} parent=43 // pred_check
          %p317 = pneg %p63
        $region50: #{gvp_encoder_forward.7} parent=43 // pred_check_branch
          %319 = sbr.rel (%p317) target = $region52
        $region51: #{gvp_encoder_forward.7} parent=43 // pred_region
          %s320 = sand.u32 %s53, 1
          %s321 = sand.u32 %s53, 1
          %s322 = smul.addr %s321, 48
          %s323 = scalar_lea.vmem [#allocation2], %s322
          %s324 = smul.u32 2, %s17
          %s325 = smul.addr %s324, 8
          %s326 = scalar_lea.vmem %s1, %s325
          // Predicated region
          $region53: #{gvp_encoder_forward.7} parent=51 // pred_check
            _
          $region54: #{gvp_encoder_forward.7} parent=51 // pred_check_branch
            %328 = sbr.rel (0) target = $region56
          $region55: #{gvp_encoder_forward.7} parent=51 // pred_region
            // Predicated region
            $region57: #{gvp_encoder_forward.7} parent=55 // pred_check
              _
            $region58: #{gvp_encoder_forward.7} parent=55 // pred_check_branch
              %330 = sbr.rel (0) target = $region60
            $region59: #{gvp_encoder_forward.7} parent=55 // pred_region
              // Predicated region
              $region72: #{gvp_encoder_forward.7} parent=59 // pred_check
                _
              $region73: #{gvp_encoder_forward.7} parent=59 // pred_check_branch
                %356 = sbr.rel (0) target = $region75
              $region74: #{gvp_encoder_forward.7} parent=59 // pred_region
                loop: start=0, step=1, limit=1
                $region76: #{gvp_encoder_forward.7} parent=74 // loop_pre_header
                  _
                $region77: #{gvp_encoder_forward.7} parent=74 // loop_header
                  %s358 = sphi 0, %s362
                  %p359 = scmp.ge.s32.totalorder %s358, 1
                  %s363 = sphi %s326, %s326
                  %s364 = sphi %s323, %s323
                $region78: #{gvp_encoder_forward.7} parent=74 // loop_header_branch
                  %361 = sbr.rel (%p359) target = $region82
                $region79: #{gvp_encoder_forward.7} parent=74 // loop_body
                  %v365 = vld [vmem:[%s363] sm:$0xff]
                  %366 = vst [vmem:[%s364] sm:$0xff] %v365
                  %v367 = vld [vmem:[%s363 + $0x8] sm:$0xff]
                  %368 = vst [vmem:[%s364 + $0x8] sm:$0xff] %v367
                  %v369 = vld [vmem:[%s363 + $0x40] sm:$0xff]
                  %370 = vst [vmem:[%s364 + $0x10] sm:$0xff] %v369
                  %v371 = vld [vmem:[%s363 + $0x48] sm:$0xff]
                  %372 = vst [vmem:[%s364 + $0x18] sm:$0xff] %v371
                  %v373 = vld [vmem:[%s363 + $0x80] sm:$0xff]
                  %374 = vst [vmem:[%s364 + $0x20] sm:$0xff] %v373
                  %v375 = vld [vmem:[%s363 + $0x88] sm:$0xff]
                  %376 = vst [vmem:[%s364 + $0x28] sm:$0xff] %v375
                $region80: #{gvp_encoder_forward.7} parent=74 // loop_footer
                  %s362 = sadd.s32 1, %s358
                $region81: #{gvp_encoder_forward.7} parent=74 // loop_footer_branch
                  %357 = sbr.rel target = $region77
                $region82: #{gvp_encoder_forward.7} parent=74 // loop_exit
                  _
              $region75: #{gvp_encoder_forward.7} parent=59 // pred_fallthru
                _
              // Predicated region
              $region83: #{gvp_encoder_forward.7} parent=59 // pred_check
                _
              $region84: #{gvp_encoder_forward.7} parent=59 // pred_check_branch
                %378 = sbr.rel target = $region86
              $region85: #{gvp_encoder_forward.7} parent=59 // pred_region
                _
              $region86: #{gvp_encoder_forward.7} parent=59 // pred_fallthru
                _
            $region60: #{gvp_encoder_forward.7} parent=55 // pred_fallthru
              _
            // Predicated region
            $region61: #{gvp_encoder_forward.7} parent=55 // pred_check
              _
            $region62: #{gvp_encoder_forward.7} parent=55 // pred_check_branch
              %332 = sbr.rel target = $region64
            $region63: #{gvp_encoder_forward.7} parent=55 // pred_region
              %s334 = ssub.s32 256, 1
              loop: start=0, step=1, limit=1
              $region65: #{gvp_encoder_forward.7} parent=63 // loop_pre_header
                _
              $region66: #{gvp_encoder_forward.7} parent=63 // loop_header
                %s336 = sphi 0, %s340
                %p337 = scmp.ge.s32.totalorder %s336, 1
                %s341 = sphi %s326, %s326
                %s342 = sphi %s323, %s323
              $region67: #{gvp_encoder_forward.7} parent=63 // loop_header_branch
                %339 = sbr.rel (%p337) target = $region71
              $region68: #{gvp_encoder_forward.7} parent=63 // loop_body
                %v343 = vld [vmem:[%s341] sm:%s334]
                %344 = vst [vmem:[%s342] sm:%s334] %v343
                %v345 = vld [vmem:[%s341 + $0x8] sm:%s334]
                %346 = vst [vmem:[%s342 + $0x8] sm:%s334] %v345
                %v347 = vld [vmem:[%s341 + $0x40] sm:%s334]
                %348 = vst [vmem:[%s342 + $0x10] sm:%s334] %v347
                %v349 = vld [vmem:[%s341 + $0x48] sm:%s334]
                %350 = vst [vmem:[%s342 + $0x18] sm:%s334] %v349
                %v351 = vld [vmem:[%s341 + $0x80] sm:%s334]
                %352 = vst [vmem:[%s342 + $0x20] sm:%s334] %v351
                %v353 = vld [vmem:[%s341 + $0x88] sm:%s334]
                %354 = vst [vmem:[%s342 + $0x28] sm:%s334] %v353
              $region69: #{gvp_encoder_forward.7} parent=63 // loop_footer
                %s340 = sadd.s32 1, %s336
              $region70: #{gvp_encoder_forward.7} parent=63 // loop_footer_branch
                %335 = sbr.rel target = $region66
              $region71: #{gvp_encoder_forward.7} parent=63 // loop_exit
                _
            $region64: #{gvp_encoder_forward.7} parent=55 // pred_fallthru
              _
          $region56: #{gvp_encoder_forward.7} parent=51 // pred_fallthru
            _
          %379 = vnop
        $region52: #{gvp_encoder_forward.7} parent=43 // pred_fallthru
          _
      $region44: #{gvp_encoder_forward.7} parent=5 // pred_fallthru
        _
      %p380 = scmp.le.s32.totalorder 1, %s17
      %p381 = scmp.lt.s32.totalorder %s17, 5
      %p382 = pnand %p380, %p381
      %p383 = pneg %p382
      // Predicated region
      $region87: #{gvp_encoder_forward.7} parent=5 // pred_check
        _
      $region88: #{gvp_encoder_forward.7} parent=5 // pred_check_branch
        %385 = sbr.rel (%p382) target = $region90
      $region89: #{gvp_encoder_forward.7} parent=5 // pred_region
        %s386 = ssub.s32 %s17, 1
        %s387 = sand.u32 %s56, 1
        %s388 = sand.u32 %s56, 1
        %s389 = smul.addr %s388, 48
        %s390 = scalar_lea.vmem [#allocation2], %s389
        // Predicated region
        $region91: #{gvp_encoder_forward.7} parent=89 // pred_check
          %p391 = pneg %p69
        $region92: #{gvp_encoder_forward.7} parent=89 // pred_check_branch
          %393 = sbr.rel (%p391) target = $region94
        $region93: #{gvp_encoder_forward.7} parent=89 // pred_region
          _
        $region94: #{gvp_encoder_forward.7} parent=89 // pred_fallthru
          _
        %s394 = smul.u32 2, %s22
        %p395 = scmp.lt.s32.totalorder %s394, 7
        %s396 = scalar_select %p395, %s394, 7
        %s397 = smul.addr %s396, 8
        %s398 = scalar_lea.vmem %s0, %s397
        %p399 = pneg %p43
        %p400 = pneg %p40
        %s401 = sand.u32 %s56, 1
        %s402 = sand.u32 %s56, 1
        %s403 = smul.addr %s402, 48
        %s404 = scalar_lea.vmem [#allocation2], %s403
        %p405 = pneg %p69
        %p406 = pneg %p66
        %p407 = pneg %p90
        %p408 = pneg %p87
        %p409 = pneg %p111
        %p410 = pneg %p108
        %p411 = pneg %p132
        %p412 = pneg %p129
        %p413 = pneg %p153
        %p414 = pneg %p150
        %p415 = pneg %p174
        %p416 = pneg %p171
        %p417 = pneg %p195
        %p418 = pneg %p192
        %p419 = pneg %p216
        %p420 = pneg %p213
        %p421 = pneg %p242
        %p422 = pneg %p239
        %s423 = smul.u32 2, %s22
        %p424 = scmp.lt.s32.totalorder %s423, 7
        %s425 = scalar_select %p424, %s423, 7
        %s426 = smul.addr %s425, 8
        %s427 = scalar_lea.vmem %s9, %s426
        %p428 = pneg %p268
        %p429 = pneg %p265
        %s430 = sand.u32 %s255, 1
        %s431 = sand.u32 %s255, 1
        %s432 = smul.addr %s431, 48
        %s433 = scalar_lea.vmem [#allocation3], %s432
        %s434 = smul.u32 2, %s22
        %p435 = scmp.lt.s32.totalorder %s434, 7
        %s436 = scalar_select %p435, %s434, 7
        %s437 = smul.addr %s436, 8
        %s438 = scalar_lea.vmem %s0, %s437
        %s439 = smul.u32 2, %s22
        %s440 = smul.u32 2, %s22
        %s441 = smul.u32 2, %s22
        %p442 = scmp.lt.s32.totalorder %s441, 7
        %s443 = scalar_select %p442, %s441, 7
        %s444 = smul.addr %s443, 8
        %s445 = scalar_lea.vmem %s9, %s444
        %s446 = smul.u32 2, %s22
        %s447 = smul.u32 2, %s22
        %v448 = vld [vmem:[%s2] sm:$0x1]
        %v449 = vld [vmem:[%s3] sm:$0xff]
        %v450 = vld [vmem:[%s3 + $0x8] sm:$0xff]
        %v451 = vld [vmem:[%s3 + $0x10] sm:$0xff]
        %v452 = vld [vmem:[%s3 + $0x18] sm:$0xff]
        %v453 = vld [vmem:[%s3 + $0x20] sm:$0x3]
        %v454 = vld [vmem:[%s4] sm:$0xf]
        %v455 = vld [vmem:[%s5] sm:$0x1]
        %v456 = vld [vmem:[%s6] sm:$0xf]
        %v457 = vld [vmem:[%s438] sm:$0xff]
        %v458 = vld [vmem:[%s438 + $0x8] sm:$0xff]
        %v459 = vld [vmem:[%s390] sm:$0xff]
        %v460 = vld [vmem:[%s390 + $0x8] sm:$0xff]
        %v461 = vld [vmem:[%s390 + $0x10] sm:$0xff]
        %v462 = vld [vmem:[%s390 + $0x18] sm:$0xff]
        %v463 = vld [vmem:[%s390 + $0x20] sm:$0xff]
        %v464 = vld [vmem:[%s390 + $0x28] sm:$0xff]
        %vm465 = vcmask 7168
        %v467 = vsel %vm465, %v459, 0
        %v470 = vsel %vm465, %v460, 0
        %v473 = vsel %vm465, %v461, 0
        %v476 = vsel %vm465, %v462, 0
        %v479 = vsel %vm465, %v463, 0
        %v482 = vsel %vm465, %v464, 0
        %vm484 = vcmask 1040384
        %v486 = vsel %vm484, %v448, 0
        %488 = vmatpush.msra.mxu0 0.0
        %489 = vmatpush.msra.mxu0 0.0
        %490 = vmatpush.msra.mxu0 0.0
        %491 = vmatpush.msra.mxu0 0.0
        %492 = vmatpush.msra.mxu0 0.0
        %493 = vmatpush.msra.mxu0 0.0
        %494 = vmatpush.msra.mxu0 0.0
        %495 = vmatpush.msra.mxu0 0.0
        %496 = vmatpush.msra.mxu0 0.0
        %497 = vmatpush.msra.mxu0 0.0
        %498 = vmatpush.msra.mxu0 0.0
        %499 = vmatpush.msra.mxu0 0.0
        %500 = vmatpush.msra.mxu0 0.0
        %501 = vmatpush.msra.mxu0 0.0
        %502 = vmatpush.msra.mxu0 0.0
        %503 = vmatpush.msra.mxu0 %v486
        %504 = vmatmul.f32.gmra.mxu0 %v467
        %v505 = vpop.f32.mrf.mxu0
        %v506 = vadd.f32 0.0, %v505
        %507 = vmatmul.f32.gmra.mxu0 %v470
        %v508 = vpop.f32.mrf.mxu0
        %v509 = vadd.f32 0.0, %v508
        %510 = vmatmul.f32.gmra.mxu0 %v473
        %v511 = vpop.f32.mrf.mxu0
        %v512 = vadd.f32 0.0, %v511
        %513 = vmatmul.f32.gmra.mxu0 %v476
        %v514 = vpop.f32.mrf.mxu0
        %v515 = vadd.f32 0.0, %v514
        %516 = vmatmul.f32.gmra.mxu0 %v479
        %v517 = vpop.f32.mrf.mxu0
        %v518 = vadd.f32 0.0, %v517
        %519 = vmatmul.f32.gmra.mxu0 %v482
        %v520 = vpop.f32.mrf.mxu0
        %v521 = vadd.f32 0.0, %v520
        %522 = vdwg.mxu0
        %v523 = vmul.f32 %v506, %v506
        %v524 = vmul.f32 %v509, %v509
        %v525 = vmul.f32 %v512, %v512
        %v526 = vmul.f32 %v515, %v515
        %v527 = vadd.f32 %v523, %v525
        %v528 = vadd.f32 %v524, %v526
        %v529 = vmul.f32 %v518, %v518
        %v530 = vmul.f32 %v521, %v521
        %v531 = vadd.f32 %v527, %v529
        %v532 = vadd.f32 %v528, %v530
        %v533 = vmax.f32 %v531, 1e-08
        %v534 = vmax.f32 %v532, 1e-08
        %v535 = vrsqrt.pop %v533
        %v536 = vmul.f32 %v535, %v533
        %v537 = vmul.f32 %v536, %v535
        %v538 = vmul.f32 0.5, %v537
        %v539 = vsub.f32 1.5, %v538
        %v540 = vmul.f32 %v535, %v539
        %v541 = vmul.f32 %v533, %v540
        %vm542 = vcmp.eq.f32.partialorder %v533, inf
        %v543 = vsel %vm542, %v533, %v541
        %vm544 = vcmp.eq.f32.partialorder %v533, 0.0
        %v545 = vand.u32 %v533, 2147483648
        %v546 = vsel %vm544, %v545, %v543
        %v547 = vrsqrt.pop %v534
        %v548 = vmul.f32 %v547, %v534
        %v549 = vmul.f32 %v548, %v547
        %v550 = vmul.f32 0.5, %v549
        %v551 = vsub.f32 1.5, %v550
        %v552 = vmul.f32 %v547, %v551
        %v553 = vmul.f32 %v534, %v552
        %vm554 = vcmp.eq.f32.partialorder %v534, inf
        %v555 = vsel %vm554, %v534, %v553
        %vm556 = vcmp.eq.f32.partialorder %v534, 0.0
        %v557 = vand.u32 %v534, 2147483648
        %v558 = vsel %vm556, %v557, %v555
        %vm559 = vcmask 31744
        %v561 = vsel %vm559, %v546, 0
        %v564 = vsel %vm559, %v558, 0
        %vm566 = vcmask 1043456
        %v568 = vsel %vm566, %v454, 0
        %570 = vmatpush.msra.mxu0 0.0
        %571 = vmatpush.msra.mxu0 0.0
        %572 = vmatpush.msra.mxu0 0.0
        %573 = vmatpush.msra.mxu0 0.0
        %574 = vmatpush.msra.mxu0 0.0
        %575 = vmatpush.msra.mxu0 0.0
        %576 = vmatpush.msra.mxu0 0.0
        %577 = vmatpush.msra.mxu0 0.0
        %578 = vmatpush.msra.mxu0 0.0
        %579 = vmatpush.msra.mxu0 0.0
        %580 = vmatpush.msra.mxu0 0.0
        %581 = vmatpush.msra.mxu0 0.0
        %582 = vmatpush.msra.mxu0 0.0
        %583 = vmatpush.msra.mxu0 0.0
        %584 = vmatpush.msra.mxu0 0.0
        %585 = vmatpush.msra.mxu0 %v568
        %586 = vmatmul.f32.gmra.mxu0 %v561
        %v587 = vpop.f32.mrf.mxu0
        %v588 = vadd.f32 0.0, %v587
        %589 = vmatmul.f32.gmra.mxu0 %v564
        %v590 = vpop.f32.mrf.mxu0
        %v591 = vadd.f32 0.0, %v590
        %592 = vdwg.mxu0
        %vm593 = vcmask 277504
        %v595 = vsel %vm593, %v457, 0
        %v598 = vsel %vm593, %v458, 0
        %vm600 = vcmask 1041408
        %v602 = vsel %vm600, %v453, 0
        %604 = vmatpush.msra.mxu0 0.0
        %605 = vmatpush.msra.mxu0 0.0
        %606 = vmatpush.msra.mxu0 0.0
        %607 = vmatpush.msra.mxu0 0.0
        %608 = vmatpush.msra.mxu0 0.0
        %609 = vmatpush.msra.mxu0 0.0
        %610 = vmatpush.msra.mxu0 0.0
        %611 = vmatpush.msra.mxu0 0.0
        %612 = vmatpush.msra.mxu0 0.0
        %613 = vmatpush.msra.mxu0 0.0
        %614 = vmatpush.msra.mxu0 0.0
        %615 = vmatpush.msra.mxu0 %v602
        %616 = vmatpush.msra.mxu0 %v452
        %617 = vmatpush.msra.mxu0 %v451
        %618 = vmatpush.msra.mxu0 %v450
        %619 = vmatpush.msra.mxu0 %v449
        %620 = vmatmul.f32.gmra.mxu0 %v595
        %v621 = vpop.f32.mrf.mxu0
        %v622 = vadd.f32 %v588, %v621
        %623 = vmatmul.f32.gmra.mxu0 %v598
        %v624 = vpop.f32.mrf.mxu0
        %v625 = vadd.f32 %v591, %v624
        %626 = vdwg.mxu0
        %v628 = vperm.slane %v455, 0
        %v630 = vadd.f32 %v622, %v628
        %v631 = vadd.f32 %v625, %v628
        %v633 = vsel %vm559, %v506, 0
        %v636 = vsel %vm559, %v509, 0
        %v639 = vsel %vm559, %v512, 0
        %v642 = vsel %vm559, %v515, 0
        %v645 = vsel %vm559, %v518, 0
        %v648 = vsel %vm559, %v521, 0
        %v651 = vsel %vm566, %v456, 0
        %653 = vmatpush.msra.mxu0 0.0
        %654 = vmatpush.msra.mxu0 0.0
        %655 = vmatpush.msra.mxu0 0.0
        %656 = vmatpush.msra.mxu0 0.0
        %657 = vmatpush.msra.mxu0 0.0
        %658 = vmatpush.msra.mxu0 0.0
        %659 = vmatpush.msra.mxu0 0.0
        %660 = vmatpush.msra.mxu0 0.0
        %661 = vmatpush.msra.mxu0 0.0
        %662 = vmatpush.msra.mxu0 0.0
        %663 = vmatpush.msra.mxu0 0.0
        %664 = vmatpush.msra.mxu0 0.0
        %665 = vmatpush.msra.mxu0 0.0
        %666 = vmatpush.msra.mxu0 0.0
        %667 = vmatpush.msra.mxu0 0.0
        %668 = vmatpush.msra.mxu0 %v651
        %669 = vmatmul.f32.gmra.mxu0 %v633
        %v670 = vpop.f32.mrf.mxu0
        %v671 = vadd.f32 0.0, %v670
        %672 = vmatmul.f32.gmra.mxu0 %v636
        %v673 = vpop.f32.mrf.mxu0
        %v674 = vadd.f32 0.0, %v673
        %675 = vmatmul.f32.gmra.mxu0 %v639
        %v676 = vpop.f32.mrf.mxu0
        %v677 = vadd.f32 0.0, %v676
        %678 = vmatmul.f32.gmra.mxu0 %v642
        %v679 = vpop.f32.mrf.mxu0
        %v680 = vadd.f32 0.0, %v679
        %681 = vmatmul.f32.gmra.mxu0 %v645
        %v682 = vpop.f32.mrf.mxu0
        %v683 = vadd.f32 0.0, %v682
        %684 = vmatmul.f32.gmra.mxu0 %v648
        %v685 = vpop.f32.mrf.mxu0
        %v686 = vadd.f32 0.0, %v685
        %687 = vdwg.mxu0
        %v688 = vld [vmem:[%s7] sm:$0x1]
        %v689 = vld [vmem:[%s8] sm:$0x1]
        %vm690 = vcmask 130048
        %v691 = vsel %vm690, %v630, 0.0
        %692 = vadd.xlane.f32.xlu0 %v691
        %v693 = vpop.xlane.xlu0 %692
        %v694 = vsel %vm690, %v631, 0.0
        %695 = vadd.xlane.f32.xlu0 %v694
        %v696 = vpop.xlane.xlu0 %695
        %v697 = vrcp.pop 16.0
        %v698 = vmul.f32 16.0, %v697
        %v699 = vsub.f32 1.0, %v698
        %v700 = vmul.f32 %v697, %v699
        %v701 = vadd.f32 %v697, %v700
        %vm702 = vweird.f32 %v697
        %v703 = vsel %vm702, %v697, %v701
        %v704 = vmul.f32 %v693, %v703
        %v705 = vmul.f32 %v696, %v703
        %v706 = vsub.f32 %v630, %v704
        %v707 = vsub.f32 %v631, %v705
        %v708 = vmul.f32 %v706, %v706
        %v709 = vmul.f32 %v707, %v707
        %v710 = vsel %vm690, %v708, 0.0
        %711 = vadd.xlane.f32.xlu0 %v710
        %v712 = vpop.xlane.xlu0 %711
        %v713 = vsel %vm690, %v709, 0.0
        %714 = vadd.xlane.f32.xlu0 %v713
        %v715 = vpop.xlane.xlu0 %714
        %v716 = vmul.f32 %v712, %v703
        %v717 = vmul.f32 %v715, %v703
        %v718 = vadd.f32 %v716, 1e-05
        %v719 = vadd.f32 %v717, 1e-05
        %v720 = vrsqrt.pop %v718
        %v721 = vmul.f32 %v720, %v718
        %v722 = vmul.f32 %v721, %v720
        %v723 = vmul.f32 0.5, %v722
        %v724 = vsub.f32 1.5, %v723
        %v725 = vmul.f32 %v720, %v724
        %vm726 = vweird.f32 %v718
        %vm727 = vweird.f32 %v720
        %vm728 = vmor %vm726, %vm727
        %v729 = vsel %vm728, %v720, %v725
        %v730 = vrsqrt.pop %v719
        %v731 = vmul.f32 %v730, %v719
        %v732 = vmul.f32 %v731, %v730
        %v733 = vmul.f32 0.5, %v732
        %v734 = vsub.f32 1.5, %v733
        %v735 = vmul.f32 %v730, %v734
        %vm736 = vweird.f32 %v719
        %vm737 = vweird.f32 %v730
        %vm738 = vmor %vm736, %vm737
        %v739 = vsel %vm738, %v730, %v735
        %v740 = vmul.f32 %v706, %v729
        %v741 = vmul.f32 %v707, %v739
        %v743 = vperm.slane %v688, 0
        %v745 = vmul.f32 %v740, %v743
        %v746 = vmul.f32 %v741, %v743
        %v748 = vperm.slane %v689, 0
        %v750 = vadd.f32 %v745, %v748
        %v751 = vadd.f32 %v746, %v748
        %v752 = vmul.f32 %v671, %v671
        %v753 = vmul.f32 %v674, %v674
        %v754 = vmul.f32 %v677, %v677
        %v755 = vmul.f32 %v680, %v680
        %v756 = vadd.f32 %v752, %v754
        %v757 = vadd.f32 %v753, %v755
        %v758 = vmul.f32 %v683, %v683
        %v759 = vmul.f32 %v686, %v686
        %v760 = vadd.f32 %v756, %v758
        %v761 = vadd.f32 %v757, %v759
        %vm762 = vcmp.gt.f32.partialorder %v760, 0.0002
        %vm763 = vcmp.gt.f32.partialorder %v761, 0.0002
        %v764 = vsel %vm762, 1, 0
        %v765 = vsel %vm763, 1, 0
        %v766 = vcvt.s32.f32 %v764
        %v767 = vcvt.s32.f32 %v765
        %v768 = vmul.f32 %v760, %v766
        %v769 = vmul.f32 %v761, %v767
        %v770 = vsel %vm559, %v768, 0.0
        %771 = vadd.xlane.f32.xlu0 %v770
        %v772 = vpop.xlane.xlu0 %771
        %v773 = vsel %vm559, %v769, 0.0
        %774 = vadd.xlane.f32.xlu0 %v773
        %v775 = vpop.xlane.xlu0 %774
        %v776 = vsel %vm559, %v766, 0.0
        %777 = vadd.xlane.f32.xlu0 %v776
        %v778 = vpop.xlane.xlu0 %777
        %v779 = vsel %vm559, %v767, 0.0
        %780 = vadd.xlane.f32.xlu0 %v779
        %v781 = vpop.xlane.xlu0 %780
        %v782 = vadd.f32 %v778, 0.0001
        %v783 = vadd.f32 %v781, 0.0001
        %v784 = vrcp.pop %v782
        %v785 = vmul.f32 %v782, %v784
        %v786 = vsub.f32 1.0, %v785
        %v787 = vmul.f32 %v784, %v786
        %v788 = vadd.f32 %v784, %v787
        %vm789 = vweird.f32 %v782
        %vm790 = vweird.f32 %v784
        %vm791 = vmor %vm789, %vm790
        %v792 = vsel %vm791, %v784, %v788
        %v793 = vand.u32 2147483647, %v782
        %vm794 = vcmp.eq.f32.partialorder %v793, 8.507059e+37
        %v795 = vand.u32 %v782, 2147483648
        %v796 = vor.u32 1.1754944e-38, %v795
        %v797 = vsel %vm794, %v796, %v792
        %v798 = vmul.f32 %v772, %v797
        %v799 = vrcp.pop %v783
        %v800 = vmul.f32 %v783, %v799
        %v801 = vsub.f32 1.0, %v800
        %v802 = vmul.f32 %v799, %v801
        %v803 = vadd.f32 %v799, %v802
        %vm804 = vweird.f32 %v783
        %vm805 = vweird.f32 %v799
        %vm806 = vmor %vm804, %vm805
        %v807 = vsel %vm806, %v799, %v803
        %v808 = vand.u32 2147483647, %v783
        %vm809 = vcmp.eq.f32.partialorder %v808, 8.507059e+37
        %v810 = vand.u32 %v783, 2147483648
        %v811 = vor.u32 1.1754944e-38, %v810
        %v812 = vsel %vm809, %v811, %v807
        %v813 = vmul.f32 %v775, %v812
        %v814 = vadd.f32 %v798, 0.0001
        %v815 = vadd.f32 %v813, 0.0001
        %v816 = vrsqrt.pop %v814
        %v817 = vmul.f32 %v816, %v814
        %v818 = vmul.f32 %v817, %v816
        %v819 = vmul.f32 0.5, %v818
        %v820 = vsub.f32 1.5, %v819
        %v821 = vmul.f32 %v816, %v820
        %vm822 = vweird.f32 %v814
        %vm823 = vweird.f32 %v816
        %vm824 = vmor %vm822, %vm823
        %v825 = vsel %vm824, %v816, %v821
        %v826 = vrsqrt.pop %v815
        %v827 = vmul.f32 %v826, %v815
        %v828 = vmul.f32 %v827, %v826
        %v829 = vmul.f32 0.5, %v828
        %v830 = vsub.f32 1.5, %v829
        %v831 = vmul.f32 %v826, %v830
        %vm832 = vweird.f32 %v815
        %vm833 = vweird.f32 %v826
        %vm834 = vmor %vm832, %vm833
        %v835 = vsel %vm834, %v826, %v831
        %v836 = vmul.f32 %v766, %v825
        %v837 = vmul.f32 %v767, %v835
        %v838 = vmul.f32 %v671, %v836
        %v839 = vmul.f32 %v674, %v837
        %v840 = vmul.f32 %v677, %v836
        %v841 = vmul.f32 %v680, %v837
        %v842 = vmul.f32 %v683, %v836
        %v843 = vmul.f32 %v686, %v837
        %844 = vst.msk [vmem:[%s445] sm:$0xff] %vm690, %v750
        %845 = vst.msk [vmem:[%s445 + $0x8] sm:$0xff] %vm690, %v751
        %846 = vst.msk [vmem:[%s433] sm:$0xff] %vm559, %v838
        %847 = vst.msk [vmem:[%s433 + $0x8] sm:$0xff] %vm559, %v839
        %848 = vst.msk [vmem:[%s433 + $0x10] sm:$0xff] %vm559, %v840
        %849 = vst.msk [vmem:[%s433 + $0x18] sm:$0xff] %vm559, %v841
        %850 = vst.msk [vmem:[%s433 + $0x20] sm:$0xff] %vm559, %v842
        %851 = vst.msk [vmem:[%s433 + $0x28] sm:$0xff] %vm559, %v843
        %s852 = smul.u32 2, %s22
        %p853 = scmp.lt.s32.totalorder %s852, 7
        %s854 = scalar_select %p853, %s852, 7
        %s855 = smul.addr %s854, 8
        %s856 = scalar_lea.vmem %s9, %s855
        %s857 = sand.u32 %s255, 1
        %s858 = sand.u32 %s255, 1
        %s859 = smul.addr %s858, 48
        %s860 = scalar_lea.vmem [#allocation3], %s859
        // Predicated region
        $region95: #{gvp_encoder_forward.7} parent=89 // pred_check
          %p861 = pneg %p239
        $region96: #{gvp_encoder_forward.7} parent=89 // pred_check_branch
          %863 = sbr.rel (%p861) target = $region98
        $region97: #{gvp_encoder_forward.7} parent=89 // pred_region
          %s864 = smul.u32 2, %s22
        $region98: #{gvp_encoder_forward.7} parent=89 // pred_fallthru
          _
        // Predicated region
        $region99: #{gvp_encoder_forward.7} parent=89 // pred_check
          %p865 = pneg %p265
        $region100: #{gvp_encoder_forward.7} parent=89 // pred_check_branch
          %867 = sbr.rel (%p865) target = $region102
        $region101: #{gvp_encoder_forward.7} parent=89 // pred_region
          %s868 = smul.u32 2, %s22
          %s869 = smul.addr %s868, 8
          %s870 = scalar_lea.vmem %s10, %s869
          // Predicated region
          $region103: #{gvp_encoder_forward.7} parent=101 // pred_check
            _
          $region104: #{gvp_encoder_forward.7} parent=101 // pred_check_branch
            %872 = sbr.rel (0) target = $region106
          $region105: #{gvp_encoder_forward.7} parent=101 // pred_region
            // Predicated region
            $region107: #{gvp_encoder_forward.7} parent=105 // pred_check
              _
            $region108: #{gvp_encoder_forward.7} parent=105 // pred_check_branch
              %874 = sbr.rel (0) target = $region110
            $region109: #{gvp_encoder_forward.7} parent=105 // pred_region
              // Predicated region
              $region122: #{gvp_encoder_forward.7} parent=109 // pred_check
                _
              $region123: #{gvp_encoder_forward.7} parent=109 // pred_check_branch
                %900 = sbr.rel (0) target = $region125
              $region124: #{gvp_encoder_forward.7} parent=109 // pred_region
                loop: start=0, step=1, limit=1
                $region126: #{gvp_encoder_forward.7} parent=124 // loop_pre_header
                  _
                $region127: #{gvp_encoder_forward.7} parent=124 // loop_header
                  %s902 = sphi 0, %s906
                  %p903 = scmp.ge.s32.totalorder %s902, 1
                  %s907 = sphi %s860, %s860
                  %s908 = sphi %s870, %s870
                $region128: #{gvp_encoder_forward.7} parent=124 // loop_header_branch
                  %905 = sbr.rel (%p903) target = $region132
                $region129: #{gvp_encoder_forward.7} parent=124 // loop_body
                  %v909 = vld [vmem:[%s907] sm:$0xff]
                  %910 = vst [vmem:[%s908] sm:$0xff] %v909
                  %v911 = vld [vmem:[%s907 + $0x8] sm:$0xff]
                  %912 = vst [vmem:[%s908 + $0x8] sm:$0xff] %v911
                  %v913 = vld [vmem:[%s907 + $0x10] sm:$0xff]
                  %914 = vst [vmem:[%s908 + $0x40] sm:$0xff] %v913
                  %v915 = vld [vmem:[%s907 + $0x18] sm:$0xff]
                  %916 = vst [vmem:[%s908 + $0x48] sm:$0xff] %v915
                  %v917 = vld [vmem:[%s907 + $0x20] sm:$0xff]
                  %918 = vst [vmem:[%s908 + $0x80] sm:$0xff] %v917
                  %v919 = vld [vmem:[%s907 + $0x28] sm:$0xff]
                  %920 = vst [vmem:[%s908 + $0x88] sm:$0xff] %v919
                $region130: #{gvp_encoder_forward.7} parent=124 // loop_footer
                  %s906 = sadd.s32 1, %s902
                $region131: #{gvp_encoder_forward.7} parent=124 // loop_footer_branch
                  %901 = sbr.rel target = $region127
                $region132: #{gvp_encoder_forward.7} parent=124 // loop_exit
                  _
              $region125: #{gvp_encoder_forward.7} parent=109 // pred_fallthru
                _
              // Predicated region
              $region133: #{gvp_encoder_forward.7} parent=109 // pred_check
                _
              $region134: #{gvp_encoder_forward.7} parent=109 // pred_check_branch
                %922 = sbr.rel target = $region136
              $region135: #{gvp_encoder_forward.7} parent=109 // pred_region
                _
              $region136: #{gvp_encoder_forward.7} parent=109 // pred_fallthru
                _
            $region110: #{gvp_encoder_forward.7} parent=105 // pred_fallthru
              _
            // Predicated region
            $region111: #{gvp_encoder_forward.7} parent=105 // pred_check
              _
            $region112: #{gvp_encoder_forward.7} parent=105 // pred_check_branch
              %876 = sbr.rel target = $region114
            $region113: #{gvp_encoder_forward.7} parent=105 // pred_region
              %s878 = ssub.s32 256, 1
              loop: start=0, step=1, limit=1
              $region115: #{gvp_encoder_forward.7} parent=113 // loop_pre_header
                _
              $region116: #{gvp_encoder_forward.7} parent=113 // loop_header
                %s880 = sphi 0, %s884
                %p881 = scmp.ge.s32.totalorder %s880, 1
                %s885 = sphi %s860, %s860
                %s886 = sphi %s870, %s870
              $region117: #{gvp_encoder_forward.7} parent=113 // loop_header_branch
                %883 = sbr.rel (%p881) target = $region121
              $region118: #{gvp_encoder_forward.7} parent=113 // loop_body
                %v887 = vld [vmem:[%s885] sm:%s878]
                %888 = vst [vmem:[%s886] sm:%s878] %v887
                %v889 = vld [vmem:[%s885 + $0x8] sm:%s878]
                %890 = vst [vmem:[%s886 + $0x8] sm:%s878] %v889
                %v891 = vld [vmem:[%s885 + $0x10] sm:%s878]
                %892 = vst [vmem:[%s886 + $0x40] sm:%s878] %v891
                %v893 = vld [vmem:[%s885 + $0x18] sm:%s878]
                %894 = vst [vmem:[%s886 + $0x48] sm:%s878] %v893
                %v895 = vld [vmem:[%s885 + $0x20] sm:%s878]
                %896 = vst [vmem:[%s886 + $0x80] sm:%s878] %v895
                %v897 = vld [vmem:[%s885 + $0x28] sm:%s878]
                %898 = vst [vmem:[%s886 + $0x88] sm:%s878] %v897
              $region119: #{gvp_encoder_forward.7} parent=113 // loop_footer
                %s884 = sadd.s32 1, %s880
              $region120: #{gvp_encoder_forward.7} parent=113 // loop_footer_branch
                %879 = sbr.rel target = $region116
              $region121: #{gvp_encoder_forward.7} parent=113 // loop_exit
                _
            $region114: #{gvp_encoder_forward.7} parent=105 // pred_fallthru
              _
          $region106: #{gvp_encoder_forward.7} parent=101 // pred_fallthru
            _
          %923 = vnop
        $region102: #{gvp_encoder_forward.7} parent=89 // pred_fallthru
          _
      $region90: #{gvp_encoder_forward.7} parent=5 // pred_fallthru
        _
      %p924 = scmp.le.s32.totalorder 2, %s17
      // Predicated region
      $region137: #{gvp_encoder_forward.7} parent=5 // pred_check
        %p925 = pneg %p924
      $region138: #{gvp_encoder_forward.7} parent=5 // pred_check_branch
        %927 = sbr.rel (%p925) target = $region140
      $region139: #{gvp_encoder_forward.7} parent=5 // pred_region
        %s928 = ssub.s32 %s17, 2
        // Predicated region
        $region141: #{gvp_encoder_forward.7} parent=139 // pred_check
          %p929 = pneg %p245
        $region142: #{gvp_encoder_forward.7} parent=139 // pred_check_branch
          %931 = sbr.rel (%p929) target = $region144
        $region143: #{gvp_encoder_forward.7} parent=139 // pred_region
          %s932 = smul.u32 2, %s23
          %p933 = scmp.lt.s32.totalorder %s932, 7
          %s934 = scalar_select %p933, %s932, 7
          %s935 = smul.addr %s934, 8
          %s936 = scalar_lea.vmem %s9, %s935
        $region144: #{gvp_encoder_forward.7} parent=139 // pred_fallthru
          _
        // Predicated region
        $region145: #{gvp_encoder_forward.7} parent=139 // pred_check
          %p937 = pneg %p271
        $region146: #{gvp_encoder_forward.7} parent=139 // pred_check_branch
          %939 = sbr.rel (%p937) target = $region148
        $region147: #{gvp_encoder_forward.7} parent=139 // pred_region
          %s940 = sand.u32 %s256, 1
          %s941 = sand.u32 %s256, 1
          %s942 = smul.addr %s941, 48
          %s943 = scalar_lea.vmem [#allocation3], %s942
        $region148: #{gvp_encoder_forward.7} parent=139 // pred_fallthru
          _
      $region140: #{gvp_encoder_forward.7} parent=5 // pred_fallthru
        _
    $region6: #{gvp_encoder_forward.7} parent=1 // loop_footer
      %s21 = sadd.s32 1, %s17
    $region7: #{gvp_encoder_forward.7} parent=1 // loop_footer_branch
      %16 = sbr.rel target = $region3
    $region8: #{gvp_encoder_forward.7} parent=1 // loop_exit
      _

// kernel: gvp_encoder_forward.9
$region0: #{gvp_encoder_forward.9}
  #allocation0 [shape = 'u32[]', space=smem, size = 0x4, offset = 0x4, fixed_abs, tag = 'smem constant byte address 0x4 - core index']
  #allocation1 [shape = 'u32[72,128]{1,0:T(1,128)}', space=vmem, size = 0x9000, scoped, tag = 'internal scratch']
  %s0 = inlined_call_operand.vmem [shape: f32[16,32], index: 0, kind: input, shape index: {}]
  %s1 = inlined_call_operand.vmem [shape: f32[3,16,8], index: 1, kind: input, shape index: {}]
  %s2 = inlined_call_operand.vmem [shape: f32[8,16], index: 2, kind: input, shape index: {}]
  %s3 = inlined_call_operand.vmem [shape: f32[32,128], index: 3, kind: input, shape index: {}]
  %s4 = inlined_call_operand.vmem [shape: f32[16,128], index: 4, kind: input, shape index: {}]
  %s5 = inlined_call_operand.vmem [shape: f32[1,128], index: 5, kind: input, shape index: {}]
  %s6 = inlined_call_operand.vmem [shape: f32[16,16], index: 6, kind: input, shape index: {}]
  %s7 = inlined_call_operand.vmem [shape: f32[128,16], index: 7, kind: input, shape index: {}]
  %s8 = inlined_call_operand.vmem [shape: f32[1,16], index: 8, kind: input, shape index: {}]
  %s9 = inlined_call_operand.vmem [shape: f32[16,16], index: 9, kind: input, shape index: {}]
  %s10 = inlined_call_operand.vmem [shape: f32[128,32], index: 10, kind: input, shape index: {}]
  %s11 = inlined_call_operand.vmem [shape: f32[16,32], index: 11, kind: input, shape index: {}]
  %s12 = inlined_call_operand.vmem [shape: f32[1,32], index: 12, kind: input, shape index: {}]
  %s13 = inlined_call_operand.vmem [shape: f32[16,8], index: 13, kind: input, shape index: {}]
  %s14 = inlined_call_operand.vmem [shape: f32[1,32], index: 14, kind: input, shape index: {}]
  %s15 = inlined_call_operand.vmem [shape: f32[1,32], index: 15, kind: input, shape index: {}]
  %s16 = inlined_call_operand.vmem [shape: f32[16,32], index: 16, kind: output, shape index: {0}]
  %s17 = inlined_call_operand.vmem [shape: f32[3,16,8], index: 17, kind: output, shape index: {1}]
  %18 = xla_tuple %s16, %s17
  %s19 = sld [smem:[#allocation0]]
  $region82: #{gvp_encoder_forward.9} parent=0
    _
  %s21 = ssub.s32 1, %s19
  %s22 = scalar_select 0, %s21, %s19
  // Predicated region
  $region2: #{gvp_encoder_forward.9} parent=0 // pred_check
    _
  $region3: #{gvp_encoder_forward.9} parent=0 // pred_check_branch
    %24 = sbr.rel (0) target = $region5
  $region4: #{gvp_encoder_forward.9} parent=0 // pred_region
    _
  $region5: #{gvp_encoder_forward.9} parent=0 // pred_fallthru
    _
  // Predicated region
  $region6: #{gvp_encoder_forward.9} parent=0 // pred_check
    _
  $region7: #{gvp_encoder_forward.9} parent=0 // pred_check_branch
    %26 = sbr.rel (0) target = $region9
  $region8: #{gvp_encoder_forward.9} parent=0 // pred_region
    _
  $region9: #{gvp_encoder_forward.9} parent=0 // pred_fallthru
    _
  // Predicated region
  $region10: #{gvp_encoder_forward.9} parent=0 // pred_check
    _
  $region11: #{gvp_encoder_forward.9} parent=0 // pred_check_branch
    %28 = sbr.rel (0) target = $region13
  $region12: #{gvp_encoder_forward.9} parent=0 // pred_region
    _
  $region13: #{gvp_encoder_forward.9} parent=0 // pred_fallthru
    _
  // Predicated region
  $region14: #{gvp_encoder_forward.9} parent=0 // pred_check
    _
  $region15: #{gvp_encoder_forward.9} parent=0 // pred_check_branch
    %30 = sbr.rel (0) target = $region17
  $region16: #{gvp_encoder_forward.9} parent=0 // pred_region
    _
  $region17: #{gvp_encoder_forward.9} parent=0 // pred_fallthru
    _
  // Predicated region
  $region18: #{gvp_encoder_forward.9} parent=0 // pred_check
    _
  $region19: #{gvp_encoder_forward.9} parent=0 // pred_check_branch
    %32 = sbr.rel (0) target = $region21
  $region20: #{gvp_encoder_forward.9} parent=0 // pred_region
    _
  $region21: #{gvp_encoder_forward.9} parent=0 // pred_fallthru
    _
  // Predicated region
  $region22: #{gvp_encoder_forward.9} parent=0 // pred_check
    _
  $region23: #{gvp_encoder_forward.9} parent=0 // pred_check_branch
    %34 = sbr.rel (0) target = $region25
  $region24: #{gvp_encoder_forward.9} parent=0 // pred_region
    _
  $region25: #{gvp_encoder_forward.9} parent=0 // pred_fallthru
    _
  // Predicated region
  $region26: #{gvp_encoder_forward.9} parent=0 // pred_check
    _
  $region27: #{gvp_encoder_forward.9} parent=0 // pred_check_branch
    %36 = sbr.rel (0) target = $region29
  $region28: #{gvp_encoder_forward.9} parent=0 // pred_region
    _
  $region29: #{gvp_encoder_forward.9} parent=0 // pred_fallthru
    _
  // Predicated region
  $region30: #{gvp_encoder_forward.9} parent=0 // pred_check
    _
  $region31: #{gvp_encoder_forward.9} parent=0 // pred_check_branch
    %38 = sbr.rel (0) target = $region33
  $region32: #{gvp_encoder_forward.9} parent=0 // pred_region
    _
  $region33: #{gvp_encoder_forward.9} parent=0 // pred_fallthru
    _
  // Predicated region
  $region34: #{gvp_encoder_forward.9} parent=0 // pred_check
    _
  $region35: #{gvp_encoder_forward.9} parent=0 // pred_check_branch
    %40 = sbr.rel (0) target = $region37
  $region36: #{gvp_encoder_forward.9} parent=0 // pred_region
    _
  $region37: #{gvp_encoder_forward.9} parent=0 // pred_fallthru
    _
  // Predicated region
  $region38: #{gvp_encoder_forward.9} parent=0 // pred_check
    _
  $region39: #{gvp_encoder_forward.9} parent=0 // pred_check_branch
    %42 = sbr.rel (0) target = $region41
  $region40: #{gvp_encoder_forward.9} parent=0 // pred_region
    _
  $region41: #{gvp_encoder_forward.9} parent=0 // pred_fallthru
    _
  // Predicated region
  $region42: #{gvp_encoder_forward.9} parent=0 // pred_check
    _
  $region43: #{gvp_encoder_forward.9} parent=0 // pred_check_branch
    %44 = sbr.rel (0) target = $region45
  $region44: #{gvp_encoder_forward.9} parent=0 // pred_region
    _
  $region45: #{gvp_encoder_forward.9} parent=0 // pred_fallthru
    _
  // Predicated region
  $region46: #{gvp_encoder_forward.9} parent=0 // pred_check
    _
  $region47: #{gvp_encoder_forward.9} parent=0 // pred_check_branch
    %46 = sbr.rel (0) target = $region49
  $region48: #{gvp_encoder_forward.9} parent=0 // pred_region
    _
  $region49: #{gvp_encoder_forward.9} parent=0 // pred_fallthru
    _
  // Predicated region
  $region50: #{gvp_encoder_forward.9} parent=0 // pred_check
    _
  $region51: #{gvp_encoder_forward.9} parent=0 // pred_check_branch
    %48 = sbr.rel (0) target = $region53
  $region52: #{gvp_encoder_forward.9} parent=0 // pred_region
    _
  $region53: #{gvp_encoder_forward.9} parent=0 // pred_fallthru
    _
  // Predicated region
  $region54: #{gvp_encoder_forward.9} parent=0 // pred_check
    _
  $region55: #{gvp_encoder_forward.9} parent=0 // pred_check_branch
    %50 = sbr.rel (0) target = $region57
  $region56: #{gvp_encoder_forward.9} parent=0 // pred_region
    _
  $region57: #{gvp_encoder_forward.9} parent=0 // pred_fallthru
    _
  // Predicated region
  $region58: #{gvp_encoder_forward.9} parent=0 // pred_check
    _
  $region59: #{gvp_encoder_forward.9} parent=0 // pred_check_branch
    %52 = sbr.rel (0) target = $region61
  $region60: #{gvp_encoder_forward.9} parent=0 // pred_region
    _
  $region61: #{gvp_encoder_forward.9} parent=0 // pred_fallthru
    _
  // Predicated region
  $region62: #{gvp_encoder_forward.9} parent=0 // pred_check
    _
  $region63: #{gvp_encoder_forward.9} parent=0 // pred_check_branch
    %54 = sbr.rel (0) target = $region65
  $region64: #{gvp_encoder_forward.9} parent=0 // pred_region
    _
  $region65: #{gvp_encoder_forward.9} parent=0 // pred_fallthru
    _
  %v55 = vld [vmem:[%s0] sm:$0xff]
  %v56 = vld [vmem:[%s0 + $0x8] sm:$0xff]
  %v57 = vld [vmem:[%s1] sm:$0xff]
  %v58 = vld [vmem:[%s1 + $0x8] sm:$0xff]
  %v59 = vld [vmem:[%s1 + $0x10] sm:$0xff]
  %v60 = vld [vmem:[%s1 + $0x18] sm:$0xff]
  %v61 = vld [vmem:[%s1 + $0x20] sm:$0xff]
  %v62 = vld [vmem:[%s1 + $0x28] sm:$0xff]
  %v63 = vld [vmem:[%s2] sm:$0xff]
  %v64 = vld [vmem:[%s3] sm:$0xff]
  %v65 = vld [vmem:[%s3 + $0x8] sm:$0xff]
  %v66 = vld [vmem:[%s3 + $0x10] sm:$0xff]
  %v67 = vld [vmem:[%s3 + $0x18] sm:$0xff]
  %v68 = vld [vmem:[%s4] sm:$0xff]
  %v69 = vld [vmem:[%s4 + $0x8] sm:$0xff]
  %v70 = vld [vmem:[%s5] sm:$0x1]
  %v71 = vld [vmem:[%s6] sm:$0xff]
  %v72 = vld [vmem:[%s6 + $0x8] sm:$0xff]
  %v73 = vld [vmem:[%s7] sm:$0xff]
  %v74 = vld [vmem:[%s7 + $0x8] sm:$0xff]
  %v75 = vld [vmem:[%s7 + $0x10] sm:$0xff]
  %v76 = vld [vmem:[%s7 + $0x18] sm:$0xff]
  %v77 = vld [vmem:[%s7 + $0x20] sm:$0xff]
  %v78 = vld [vmem:[%s7 + $0x28] sm:$0xff]
  %v79 = vld [vmem:[%s7 + $0x30] sm:$0xff]
  %v80 = vld [vmem:[%s7 + $0x38] sm:$0xff]
  %v81 = vld [vmem:[%s7 + $0x40] sm:$0xff]
  %v82 = vld [vmem:[%s7 + $0x48] sm:$0xff]
  %v83 = vld [vmem:[%s7 + $0x50] sm:$0xff]
  %v84 = vld [vmem:[%s7 + $0x58] sm:$0xff]
  %v85 = vld [vmem:[%s7 + $0x60] sm:$0xff]
  %v86 = vld [vmem:[%s7 + $0x68] sm:$0xff]
  %v87 = vld [vmem:[%s7 + $0x70] sm:$0xff]
  %v88 = vld [vmem:[%s7 + $0x78] sm:$0xff]
  %v89 = vld [vmem:[%s8] sm:$0x1]
  %vm90 = vcmask 64512
  %v92 = vsel %vm90, %v57, 0
  %v95 = vsel %vm90, %v58, 0
  %v98 = vsel %vm90, %v59, 0
  %v101 = vsel %vm90, %v60, 0
  %v104 = vsel %vm90, %v61, 0
  %v107 = vsel %vm90, %v62, 0
  %109 = vmatpush.msra.mxu0 0.0
  %110 = vmatpush.msra.mxu0 0.0
  %111 = vmatpush.msra.mxu0 0.0
  %112 = vmatpush.msra.mxu0 0.0
  %113 = vmatpush.msra.mxu0 0.0
  %114 = vmatpush.msra.mxu0 0.0
  %115 = vmatpush.msra.mxu0 0.0
  %116 = vmatpush.msra.mxu0 0.0
  %117 = vmatpush.msra.mxu0 0.0
  %118 = vmatpush.msra.mxu0 0.0
  %119 = vmatpush.msra.mxu0 0.0
  %120 = vmatpush.msra.mxu0 0.0
  %121 = vmatpush.msra.mxu0 0.0
  %122 = vmatpush.msra.mxu0 0.0
  %123 = vmatpush.msra.mxu0 0.0
  %124 = vmatpush.msra.mxu0 %v63
  %125 = vmatmul.f32.gmra.mxu0 %v92
  %v126 = vpop.f32.mrf.mxu0
  %v127 = vadd.f32 0.0, %v126
  %128 = vmatmul.f32.gmra.mxu0 %v95
  %v129 = vpop.f32.mrf.mxu0
  %v130 = vadd.f32 0.0, %v129
  %131 = vmatmul.f32.gmra.mxu0 %v98
  %v132 = vpop.f32.mrf.mxu0
  %v133 = vadd.f32 0.0, %v132
  %134 = vmatmul.f32.gmra.mxu0 %v101
  %v135 = vpop.f32.mrf.mxu0
  %v136 = vadd.f32 0.0, %v135
  %137 = vmatmul.f32.gmra.mxu0 %v104
  %v138 = vpop.f32.mrf.mxu0
  %v139 = vadd.f32 0.0, %v138
  %140 = vmatmul.f32.gmra.mxu0 %v107
  %v141 = vpop.f32.mrf.mxu0
  %v142 = vadd.f32 0.0, %v141
  %143 = vdwg.mxu0
  %v144 = vmul.f32 %v127, %v127
  %v145 = vmul.f32 %v130, %v130
  %v146 = vmul.f32 %v133, %v133
  %v147 = vmul.f32 %v136, %v136
  %v148 = vadd.f32 %v144, %v146
  %v149 = vadd.f32 %v145, %v147
  %v150 = vmul.f32 %v139, %v139
  %v151 = vmul.f32 %v142, %v142
  %v152 = vadd.f32 %v148, %v150
  %v153 = vadd.f32 %v149, %v151
  %v154 = vmax.f32 %v152, 1e-08
  %v155 = vmax.f32 %v153, 1e-08
  %v156 = vrsqrt.pop %v154
  %v157 = vmul.f32 %v156, %v154
  %v158 = vmul.f32 %v157, %v156
  %v159 = vmul.f32 0.5, %v158
  %v160 = vsub.f32 1.5, %v159
  %v161 = vmul.f32 %v156, %v160
  %v162 = vmul.f32 %v154, %v161
  %vm163 = vcmp.eq.f32.partialorder %v154, inf
  %v164 = vsel %vm163, %v154, %v162
  %vm165 = vcmp.eq.f32.partialorder %v154, 0.0
  %v166 = vand.u32 %v154, 2147483648
  %v167 = vsel %vm165, %v166, %v164
  %v168 = vrsqrt.pop %v155
  %v169 = vmul.f32 %v168, %v155
  %v170 = vmul.f32 %v169, %v168
  %v171 = vmul.f32 0.5, %v170
  %v172 = vsub.f32 1.5, %v171
  %v173 = vmul.f32 %v168, %v172
  %v174 = vmul.f32 %v155, %v173
  %vm175 = vcmp.eq.f32.partialorder %v155, inf
  %v176 = vsel %vm175, %v155, %v174
  %vm177 = vcmp.eq.f32.partialorder %v155, 0.0
  %v178 = vand.u32 %v155, 2147483648
  %v179 = vsel %vm177, %v178, %v176
  %vm180 = vcmask 130048
  %v182 = vsel %vm180, %v167, 0
  %v185 = vsel %vm180, %v179, 0
  %187 = vmatpush.msra.mxu0 0.0
  %188 = vmatpush.msra.mxu0 0.0
  %189 = vmatpush.msra.mxu0 0.0
  %190 = vmatpush.msra.mxu0 0.0
  %191 = vmatpush.msra.mxu0 0.0
  %192 = vmatpush.msra.mxu0 0.0
  %193 = vmatpush.msra.mxu0 0.0
  %194 = vmatpush.msra.mxu0 0.0
  %195 = vmatpush.msra.mxu0 0.0
  %196 = vmatpush.msra.mxu0 0.0
  %197 = vmatpush.msra.mxu0 0.0
  %198 = vmatpush.msra.mxu0 0.0
  %199 = vmatpush.msra.mxu0 0.0
  %200 = vmatpush.msra.mxu0 0.0
  %201 = vmatpush.msra.mxu0 %v69
  %202 = vmatpush.msra.mxu0 %v68
  %203 = vmatmul.f32.gmra.mxu0 %v182
  %v204 = vpop.f32.mrf.mxu0
  %v205 = vadd.f32 0.0, %v204
  %206 = vmatmul.f32.gmra.mxu0 %v185
  %v207 = vpop.f32.mrf.mxu0
  %v208 = vadd.f32 0.0, %v207
  %209 = vdwg.mxu0
  %vm210 = vcmask 261120
  %v212 = vsel %vm210, %v55, 0
  %v215 = vsel %vm210, %v56, 0
  %217 = vmatpush.msra.mxu0 0.0
  %218 = vmatpush.msra.mxu0 0.0
  %219 = vmatpush.msra.mxu0 0.0
  %220 = vmatpush.msra.mxu0 0.0
  %221 = vmatpush.msra.mxu0 0.0
  %222 = vmatpush.msra.mxu0 0.0
  %223 = vmatpush.msra.mxu0 0.0
  %224 = vmatpush.msra.mxu0 0.0
  %225 = vmatpush.msra.mxu0 0.0
  %226 = vmatpush.msra.mxu0 0.0
  %227 = vmatpush.msra.mxu0 0.0
  %228 = vmatpush.msra.mxu0 0.0
  %229 = vmatpush.msra.mxu0 %v67
  %230 = vmatpush.msra.mxu0 %v66
  %231 = vmatpush.msra.mxu0 %v65
  %232 = vmatpush.msra.mxu0 %v64
  %233 = vmatmul.f32.gmra.mxu0 %v212
  %v234 = vpop.f32.mrf.mxu0
  %v235 = vadd.f32 %v205, %v234
  %236 = vmatmul.f32.gmra.mxu0 %v215
  %v237 = vpop.f32.mrf.mxu0
  %v238 = vadd.f32 %v208, %v237
  %239 = vdwg.mxu0
  %v241 = vperm.slane %v70, 0
  %v243 = vadd.f32 %v235, %v241
  %v244 = vadd.f32 %v238, %v241
  %v246 = vsel %vm180, %v127, 0
  %v249 = vsel %vm180, %v130, 0
  %v252 = vsel %vm180, %v133, 0
  %v255 = vsel %vm180, %v136, 0
  %v258 = vsel %vm180, %v139, 0
  %v261 = vsel %vm180, %v142, 0
  %263 = vmatpush.msra.mxu0 0.0
  %264 = vmatpush.msra.mxu0 0.0
  %265 = vmatpush.msra.mxu0 0.0
  %266 = vmatpush.msra.mxu0 0.0
  %267 = vmatpush.msra.mxu0 0.0
  %268 = vmatpush.msra.mxu0 0.0
  %269 = vmatpush.msra.mxu0 0.0
  %270 = vmatpush.msra.mxu0 0.0
  %271 = vmatpush.msra.mxu0 0.0
  %272 = vmatpush.msra.mxu0 0.0
  %273 = vmatpush.msra.mxu0 0.0
  %274 = vmatpush.msra.mxu0 0.0
  %275 = vmatpush.msra.mxu0 0.0
  %276 = vmatpush.msra.mxu0 0.0
  %277 = vmatpush.msra.mxu0 %v72
  %278 = vmatpush.msra.mxu0 %v71
  %279 = vmatmul.f32.gmra.mxu0 %v246
  %v280 = vpop.f32.mrf.mxu0
  %v281 = vadd.f32 0.0, %v280
  %282 = vmatmul.f32.gmra.mxu0 %v249
  %v283 = vpop.f32.mrf.mxu0
  %v284 = vadd.f32 0.0, %v283
  %285 = vmatmul.f32.gmra.mxu0 %v252
  %v286 = vpop.f32.mrf.mxu0
  %v287 = vadd.f32 0.0, %v286
  %288 = vmatmul.f32.gmra.mxu0 %v255
  %v289 = vpop.f32.mrf.mxu0
  %v290 = vadd.f32 0.0, %v289
  %291 = vmatmul.f32.gmra.mxu0 %v258
  %v292 = vpop.f32.mrf.mxu0
  %v293 = vadd.f32 0.0, %v292
  %294 = vmatmul.f32.gmra.mxu0 %v261
  %v295 = vpop.f32.mrf.mxu0
  %v296 = vadd.f32 0.0, %v295
  %297 = vdwg.mxu0
  %v298 = vxor.u32 %v243, 2147483648
  %v299 = vxor.u32 %v244, 2147483648
  %v300 = vmul.f32 %v298, 1.442695
  %v301 = vpow.pop %v300
  %v302 = vmul.f32 %v299, 1.442695
  %v303 = vpow.pop %v302
  %v304 = vadd.f32 %v301, 1.0
  %v305 = vadd.f32 %v303, 1.0
  %v306 = vrcp.pop %v304
  %v307 = vmul.f32 %v304, %v306
  %v308 = vsub.f32 1.0, %v307
  %v309 = vmul.f32 %v306, %v308
  %v310 = vadd.f32 %v306, %v309
  %vm311 = vweird.f32 %v304
  %vm312 = vweird.f32 %v306
  %vm313 = vmor %vm311, %vm312
  %v314 = vsel %vm313, %v306, %v310
  %v315 = vand.u32 2147483647, %v304
  %vm316 = vcmp.eq.f32.partialorder %v315, 8.507059e+37
  %v317 = vand.u32 %v304, 2147483648
  %v318 = vor.u32 1.1754944e-38, %v317
  %v319 = vsel %vm316, %v318, %v314
  %v320 = vmul.f32 1.0, %v319
  %v321 = vrcp.pop %v305
  %v322 = vmul.f32 %v305, %v321
  %v323 = vsub.f32 1.0, %v322
  %v324 = vmul.f32 %v321, %v323
  %v325 = vadd.f32 %v321, %v324
  %vm326 = vweird.f32 %v305
  %vm327 = vweird.f32 %v321
  %vm328 = vmor %vm326, %vm327
  %v329 = vsel %vm328, %v321, %v325
  %v330 = vand.u32 2147483647, %v305
  %vm331 = vcmp.eq.f32.partialorder %v330, 8.507059e+37
  %v332 = vand.u32 %v305, 2147483648
  %v333 = vor.u32 1.1754944e-38, %v332
  %v334 = vsel %vm331, %v333, %v329
  %v335 = vmul.f32 1.0, %v334
  %v337 = vperm.slane %v89, 0
  %339 = vmatpush.msra.mxu0 %v88
  %340 = vmatpush.msra.mxu0 %v87
  %341 = vmatpush.msra.mxu0 %v86
  %342 = vmatpush.msra.mxu0 %v85
  %343 = vmatpush.msra.mxu0 %v84
  %344 = vmatpush.msra.mxu0 %v83
  %345 = vmatpush.msra.mxu0 %v82
  %346 = vmatpush.msra.mxu0 %v81
  %347 = vmatpush.msra.mxu0 %v80
  %348 = vmatpush.msra.mxu0 %v79
  %349 = vmatpush.msra.mxu0 %v78
  %350 = vmatpush.msra.mxu0 %v77
  %351 = vmatpush.msra.mxu0 %v76
  %352 = vmatpush.msra.mxu0 %v75
  %353 = vmatpush.msra.mxu0 %v74
  %354 = vmatpush.msra.mxu0 %v73
  %355 = vmatmul.f32.gmra.mxu0 %v320
  %v356 = vpop.f32.mrf.mxu0
  %v357 = vadd.f32 %v337, %v356
  %358 = vmatmul.f32.gmra.mxu0 %v335
  %v359 = vpop.f32.mrf.mxu0
  %v360 = vadd.f32 %v337, %v359
  %361 = vdwg.mxu0
  %v362 = vxor.u32 %v357, 2147483648
  %v363 = vxor.u32 %v360, 2147483648
  %v364 = vmul.f32 %v362, 1.442695
  %v365 = vpow.pop %v364
  %v366 = vmul.f32 %v363, 1.442695
  %v367 = vpow.pop %v366
  %v368 = vadd.f32 %v365, 1.0
  %v369 = vadd.f32 %v367, 1.0
  %v370 = vrcp.pop %v368
  %v371 = vmul.f32 %v368, %v370
  %v372 = vsub.f32 1.0, %v371
  %v373 = vmul.f32 %v370, %v372
  %v374 = vadd.f32 %v370, %v373
  %vm375 = vweird.f32 %v368
  %vm376 = vweird.f32 %v370
  %vm377 = vmor %vm375, %vm376
  %v378 = vsel %vm377, %v370, %v374
  %v379 = vand.u32 2147483647, %v368
  %vm380 = vcmp.eq.f32.partialorder %v379, 8.507059e+37
  %v381 = vand.u32 %v368, 2147483648
  %v382 = vor.u32 1.1754944e-38, %v381
  %v383 = vsel %vm380, %v382, %v378
  %v384 = vmul.f32 1.0, %v383
  %v385 = vrcp.pop %v369
  %v386 = vmul.f32 %v369, %v385
  %v387 = vsub.f32 1.0, %v386
  %v388 = vmul.f32 %v385, %v387
  %v389 = vadd.f32 %v385, %v388
  %vm390 = vweird.f32 %v369
  %vm391 = vweird.f32 %v385
  %vm392 = vmor %vm390, %vm391
  %v393 = vsel %vm392, %v385, %v389
  %v394 = vand.u32 2147483647, %v369
  %vm395 = vcmp.eq.f32.partialorder %v394, 8.507059e+37
  %v396 = vand.u32 %v369, 2147483648
  %v397 = vor.u32 1.1754944e-38, %v396
  %v398 = vsel %vm395, %v397, %v393
  %v399 = vmul.f32 1.0, %v398
  %v400 = vmul.f32 %v281, %v384
  %v401 = vmul.f32 %v284, %v399
  %v402 = vmul.f32 %v287, %v384
  %v403 = vmul.f32 %v290, %v399
  %v404 = vmul.f32 %v293, %v384
  %v405 = vmul.f32 %v296, %v399
  %v406 = vmax.f32 %v243, 0.0
  %v407 = vmax.f32 %v244, 0.0
  %v408 = vld [vmem:[%s9] sm:$0xff]
  %v409 = vld [vmem:[%s9 + $0x8] sm:$0xff]
  %v410 = vld [vmem:[%s10] sm:$0xff]
  %v411 = vld [vmem:[%s10 + $0x8] sm:$0xff]
  %v412 = vld [vmem:[%s10 + $0x10] sm:$0xff]
  %v413 = vld [vmem:[%s10 + $0x18] sm:$0xff]
  %v414 = vld [vmem:[%s10 + $0x20] sm:$0xff]
  %v415 = vld [vmem:[%s10 + $0x28] sm:$0xff]
  %v416 = vld [vmem:[%s10 + $0x30] sm:$0xff]
  %v417 = vld [vmem:[%s10 + $0x38] sm:$0xff]
  %v418 = vld [vmem:[%s10 + $0x40] sm:$0xff]
  %v419 = vld [vmem:[%s10 + $0x48] sm:$0xff]
  %v420 = vld [vmem:[%s10 + $0x50] sm:$0xff]
  %v421 = vld [vmem:[%s10 + $0x58] sm:$0xff]
  %v422 = vld [vmem:[%s10 + $0x60] sm:$0xff]
  %v423 = vld [vmem:[%s10 + $0x68] sm:$0xff]
  %v424 = vld [vmem:[%s10 + $0x70] sm:$0xff]
  %v425 = vld [vmem:[%s10 + $0x78] sm:$0xff]
  %v426 = vld [vmem:[%s11] sm:$0xff]
  %v427 = vld [vmem:[%s11 + $0x8] sm:$0xff]
  %v428 = vld [vmem:[%s12] sm:$0x1]
  %v429 = vld [vmem:[%s13] sm:$0xff]
  %v430 = vld [vmem:[%s13 + $0x8] sm:$0xff]
  %v432 = vsel %vm180, %v400, 0
  %v435 = vsel %vm180, %v401, 0
  %v438 = vsel %vm180, %v402, 0
  %v441 = vsel %vm180, %v403, 0
  %v444 = vsel %vm180, %v404, 0
  %v447 = vsel %vm180, %v405, 0
  %449 = vmatpush.msra.mxu0 0.0
  %450 = vmatpush.msra.mxu0 0.0
  %451 = vmatpush.msra.mxu0 0.0
  %452 = vmatpush.msra.mxu0 0.0
  %453 = vmatpush.msra.mxu0 0.0
  %454 = vmatpush.msra.mxu0 0.0
  %455 = vmatpush.msra.mxu0 0.0
  %456 = vmatpush.msra.mxu0 0.0
  %457 = vmatpush.msra.mxu0 0.0
  %458 = vmatpush.msra.mxu0 0.0
  %459 = vmatpush.msra.mxu0 0.0
  %460 = vmatpush.msra.mxu0 0.0
  %461 = vmatpush.msra.mxu0 0.0
  %462 = vmatpush.msra.mxu0 0.0
  %463 = vmatpush.msra.mxu0 %v409
  %464 = vmatpush.msra.mxu0 %v408
  %465 = vmatmul.f32.gmra.mxu0 %v432
  %v466 = vpop.f32.mrf.mxu0
  %v467 = vadd.f32 0.0, %v466
  %468 = vmatmul.f32.gmra.mxu0 %v435
  %v469 = vpop.f32.mrf.mxu0
  %v470 = vadd.f32 0.0, %v469
  %471 = vmatmul.f32.gmra.mxu0 %v438
  %v472 = vpop.f32.mrf.mxu0
  %v473 = vadd.f32 0.0, %v472
  %474 = vmatmul.f32.gmra.mxu0 %v441
  %v475 = vpop.f32.mrf.mxu0
  %v476 = vadd.f32 0.0, %v475
  %477 = vmatmul.f32.gmra.mxu0 %v444
  %v478 = vpop.f32.mrf.mxu0
  %v479 = vadd.f32 0.0, %v478
  %480 = vmatmul.f32.gmra.mxu0 %v447
  %v481 = vpop.f32.mrf.mxu0
  %v482 = vadd.f32 0.0, %v481
  %483 = vdwg.mxu0
  %v484 = vmul.f32 %v467, %v467
  %v485 = vmul.f32 %v470, %v470
  %v486 = vmul.f32 %v473, %v473
  %v487 = vmul.f32 %v476, %v476
  %v488 = vadd.f32 %v484, %v486
  %v489 = vadd.f32 %v485, %v487
  %v490 = vmul.f32 %v479, %v479
  %v491 = vmul.f32 %v482, %v482
  %v492 = vadd.f32 %v488, %v490
  %v493 = vadd.f32 %v489, %v491
  %v494 = vmax.f32 %v492, 1e-08
  %v495 = vmax.f32 %v493, 1e-08
  %v496 = vrsqrt.pop %v494
  %v497 = vmul.f32 %v496, %v494
  %v498 = vmul.f32 %v497, %v496
  %v499 = vmul.f32 0.5, %v498
  %v500 = vsub.f32 1.5, %v499
  %v501 = vmul.f32 %v496, %v500
  %v502 = vmul.f32 %v494, %v501
  %vm503 = vcmp.eq.f32.partialorder %v494, inf
  %v504 = vsel %vm503, %v494, %v502
  %vm505 = vcmp.eq.f32.partialorder %v494, 0.0
  %v506 = vand.u32 %v494, 2147483648
  %v507 = vsel %vm505, %v506, %v504
  %v508 = vrsqrt.pop %v495
  %v509 = vmul.f32 %v508, %v495
  %v510 = vmul.f32 %v509, %v508
  %v511 = vmul.f32 0.5, %v510
  %v512 = vsub.f32 1.5, %v511
  %v513 = vmul.f32 %v508, %v512
  %v514 = vmul.f32 %v495, %v513
  %vm515 = vcmp.eq.f32.partialorder %v495, inf
  %v516 = vsel %vm515, %v495, %v514
  %vm517 = vcmp.eq.f32.partialorder %v495, 0.0
  %v518 = vand.u32 %v495, 2147483648
  %v519 = vsel %vm517, %v518, %v516
  %v521 = vsel %vm180, %v507, 0
  %v524 = vsel %vm180, %v519, 0
  %526 = vmatpush.msra.mxu0 0.0
  %527 = vmatpush.msra.mxu0 0.0
  %528 = vmatpush.msra.mxu0 0.0
  %529 = vmatpush.msra.mxu0 0.0
  %530 = vmatpush.msra.mxu0 0.0
  %531 = vmatpush.msra.mxu0 0.0
  %532 = vmatpush.msra.mxu0 0.0
  %533 = vmatpush.msra.mxu0 0.0
  %534 = vmatpush.msra.mxu0 0.0
  %535 = vmatpush.msra.mxu0 0.0
  %536 = vmatpush.msra.mxu0 0.0
  %537 = vmatpush.msra.mxu0 0.0
  %538 = vmatpush.msra.mxu0 0.0
  %539 = vmatpush.msra.mxu0 0.0
  %540 = vmatpush.msra.mxu0 %v427
  %541 = vmatpush.msra.mxu0 %v426
  %542 = vmatmul.f32.gmra.mxu0 %v521
  %v543 = vpop.f32.mrf.mxu0
  %v544 = vadd.f32 0.0, %v543
  %545 = vmatmul.f32.gmra.mxu0 %v524
  %v546 = vpop.f32.mrf.mxu0
  %v547 = vadd.f32 0.0, %v546
  %548 = vdwg.mxu0
  %549 = vmatpush.msra.mxu0 %v425
  %550 = vmatpush.msra.mxu0 %v424
  %551 = vmatpush.msra.mxu0 %v423
  %552 = vmatpush.msra.mxu0 %v422
  %553 = vmatpush.msra.mxu0 %v421
  %554 = vmatpush.msra.mxu0 %v420
  %555 = vmatpush.msra.mxu0 %v419
  %556 = vmatpush.msra.mxu0 %v418
  %557 = vmatpush.msra.mxu0 %v417
  %558 = vmatpush.msra.mxu0 %v416
  %559 = vmatpush.msra.mxu0 %v415
  %560 = vmatpush.msra.mxu0 %v414
  %561 = vmatpush.msra.mxu0 %v413
  %562 = vmatpush.msra.mxu0 %v412
  %563 = vmatpush.msra.mxu0 %v411
  %564 = vmatpush.msra.mxu0 %v410
  %565 = vmatmul.f32.gmra.mxu0 %v406
  %v566 = vpop.f32.mrf.mxu0
  %v567 = vadd.f32 %v544, %v566
  %568 = vmatmul.f32.gmra.mxu0 %v407
  %v569 = vpop.f32.mrf.mxu0
  %v570 = vadd.f32 %v547, %v569
  %571 = vdwg.mxu0
  %v573 = vperm.slane %v428, 0
  %v575 = vadd.f32 %v567, %v573
  %v576 = vadd.f32 %v570, %v573
  %v578 = vsel %vm180, %v467, 0
  %v581 = vsel %vm180, %v470, 0
  %v584 = vsel %vm180, %v473, 0
  %v587 = vsel %vm180, %v476, 0
  %v590 = vsel %vm180, %v479, 0
  %v593 = vsel %vm180, %v482, 0
  %595 = vmatpush.msra.mxu0 0.0
  %596 = vmatpush.msra.mxu0 0.0
  %597 = vmatpush.msra.mxu0 0.0
  %598 = vmatpush.msra.mxu0 0.0
  %599 = vmatpush.msra.mxu0 0.0
  %600 = vmatpush.msra.mxu0 0.0
  %601 = vmatpush.msra.mxu0 0.0
  %602 = vmatpush.msra.mxu0 0.0
  %603 = vmatpush.msra.mxu0 0.0
  %604 = vmatpush.msra.mxu0 0.0
  %605 = vmatpush.msra.mxu0 0.0
  %606 = vmatpush.msra.mxu0 0.0
  %607 = vmatpush.msra.mxu0 0.0
  %608 = vmatpush.msra.mxu0 0.0
  %609 = vmatpush.msra.mxu0 %v430
  %610 = vmatpush.msra.mxu0 %v429
  %611 = vmatmul.f32.gmra.mxu0 %v578
  %v612 = vpop.f32.mrf.mxu0
  %v613 = vadd.f32 0.0, %v612
  %614 = vmatmul.f32.gmra.mxu0 %v581
  %v615 = vpop.f32.mrf.mxu0
  %v616 = vadd.f32 0.0, %v615
  %617 = vmatmul.f32.gmra.mxu0 %v584
  %v618 = vpop.f32.mrf.mxu0
  %v619 = vadd.f32 0.0, %v618
  %620 = vmatmul.f32.gmra.mxu0 %v587
  %v621 = vpop.f32.mrf.mxu0
  %v622 = vadd.f32 0.0, %v621
  %623 = vmatmul.f32.gmra.mxu0 %v590
  %v624 = vpop.f32.mrf.mxu0
  %v625 = vadd.f32 0.0, %v624
  %626 = vmatmul.f32.gmra.mxu0 %v593
  %v627 = vpop.f32.mrf.mxu0
  %v628 = vadd.f32 0.0, %v627
  %629 = vdwg.mxu0
  %v630 = vadd.f32 %v55, %v575
  %v631 = vadd.f32 %v56, %v576
  %v632 = vadd.f32 %v57, %v613
  %v633 = vadd.f32 %v58, %v616
  %v634 = vadd.f32 %v59, %v619
  %v635 = vadd.f32 %v60, %v622
  %v636 = vadd.f32 %v61, %v625
  %v637 = vadd.f32 %v62, %v628
  %v638 = vld [vmem:[%s14] sm:$0x1]
  %v639 = vld [vmem:[%s15] sm:$0x1]
  %v640 = vsel %vm210, %v630, 0.0
  %641 = vadd.xlane.f32.xlu0 %v640
  %v642 = vpop.xlane.xlu0 %641
  %v643 = vsel %vm210, %v631, 0.0
  %644 = vadd.xlane.f32.xlu0 %v643
  %v645 = vpop.xlane.xlu0 %644
  %v646 = vrcp.pop 32.0
  %v647 = vmul.f32 32.0, %v646
  %v648 = vsub.f32 1.0, %v647
  %v649 = vmul.f32 %v646, %v648
  %v650 = vadd.f32 %v646, %v649
  %vm651 = vweird.f32 %v646
  %v652 = vsel %vm651, %v646, %v650
  %v653 = vmul.f32 %v642, %v652
  %v654 = vmul.f32 %v645, %v652
  %v655 = vsub.f32 %v630, %v653
  %v656 = vsub.f32 %v631, %v654
  %v657 = vmul.f32 %v655, %v655
  %v658 = vmul.f32 %v656, %v656
  %v659 = vsel %vm210, %v657, 0.0
  %660 = vadd.xlane.f32.xlu0 %v659
  %v661 = vpop.xlane.xlu0 %660
  %v662 = vsel %vm210, %v658, 0.0
  %663 = vadd.xlane.f32.xlu0 %v662
  %v664 = vpop.xlane.xlu0 %663
  %v665 = vmul.f32 %v661, %v652
  %v666 = vmul.f32 %v664, %v652
  %v667 = vadd.f32 %v665, 1e-05
  %v668 = vadd.f32 %v666, 1e-05
  %v669 = vrsqrt.pop %v667
  %v670 = vmul.f32 %v669, %v667
  %v671 = vmul.f32 %v670, %v669
  %v672 = vmul.f32 0.5, %v671
  %v673 = vsub.f32 1.5, %v672
  %v674 = vmul.f32 %v669, %v673
  %vm675 = vweird.f32 %v667
  %vm676 = vweird.f32 %v669
  %vm677 = vmor %vm675, %vm676
  %v678 = vsel %vm677, %v669, %v674
  %v679 = vrsqrt.pop %v668
  %v680 = vmul.f32 %v679, %v668
  %v681 = vmul.f32 %v680, %v679
  %v682 = vmul.f32 0.5, %v681
  %v683 = vsub.f32 1.5, %v682
  %v684 = vmul.f32 %v679, %v683
  %vm685 = vweird.f32 %v668
  %vm686 = vweird.f32 %v679
  %vm687 = vmor %vm685, %vm686
  %v688 = vsel %vm687, %v679, %v684
  %v689 = vmul.f32 %v655, %v678
  %v690 = vmul.f32 %v656, %v688
  %v692 = vperm.slane %v638, 0
  %v694 = vmul.f32 %v689, %v692
  %v695 = vmul.f32 %v690, %v692
  %v697 = vperm.slane %v639, 0
  %v699 = vadd.f32 %v694, %v697
  %v700 = vadd.f32 %v695, %v697
  %v701 = vmul.f32 %v632, %v632
  %v702 = vmul.f32 %v633, %v633
  %v703 = vmul.f32 %v634, %v634
  %v704 = vmul.f32 %v635, %v635
  %v705 = vadd.f32 %v701, %v703
  %v706 = vadd.f32 %v702, %v704
  %v707 = vmul.f32 %v636, %v636
  %v708 = vmul.f32 %v637, %v637
  %v709 = vadd.f32 %v705, %v707
  %v710 = vadd.f32 %v706, %v708
  %vm711 = vcmp.gt.f32.partialorder %v709, 0.0002
  %vm712 = vcmp.gt.f32.partialorder %v710, 0.0002
  %v713 = vsel %vm711, 1, 0
  %v714 = vsel %vm712, 1, 0
  %v715 = vcvt.s32.f32 %v713
  %v716 = vcvt.s32.f32 %v714
  %v717 = vmul.f32 %v709, %v715
  %v718 = vmul.f32 %v710, %v716
  %v719 = vsel %vm90, %v717, 0.0
  %720 = vadd.xlane.f32.xlu0 %v719
  %v721 = vpop.xlane.xlu0 %720
  %v722 = vsel %vm90, %v718, 0.0
  %723 = vadd.xlane.f32.xlu0 %v722
  %v724 = vpop.xlane.xlu0 %723
  %v725 = vsel %vm90, %v715, 0.0
  %726 = vadd.xlane.f32.xlu0 %v725
  %v727 = vpop.xlane.xlu0 %726
  %v728 = vsel %vm90, %v716, 0.0
  %729 = vadd.xlane.f32.xlu0 %v728
  %v730 = vpop.xlane.xlu0 %729
  %v731 = vadd.f32 %v727, 0.0001
  %v732 = vadd.f32 %v730, 0.0001
  %v733 = vrcp.pop %v731
  %v734 = vmul.f32 %v731, %v733
  %v735 = vsub.f32 1.0, %v734
  %v736 = vmul.f32 %v733, %v735
  %v737 = vadd.f32 %v733, %v736
  %vm738 = vweird.f32 %v731
  %vm739 = vweird.f32 %v733
  %vm740 = vmor %vm738, %vm739
  %v741 = vsel %vm740, %v733, %v737
  %v742 = vand.u32 2147483647, %v731
  %vm743 = vcmp.eq.f32.partialorder %v742, 8.507059e+37
  %v744 = vand.u32 %v731, 2147483648
  %v745 = vor.u32 1.1754944e-38, %v744
  %v746 = vsel %vm743, %v745, %v741
  %v747 = vmul.f32 %v721, %v746
  %v748 = vrcp.pop %v732
  %v749 = vmul.f32 %v732, %v748
  %v750 = vsub.f32 1.0, %v749
  %v751 = vmul.f32 %v748, %v750
  %v752 = vadd.f32 %v748, %v751
  %vm753 = vweird.f32 %v732
  %vm754 = vweird.f32 %v748
  %vm755 = vmor %vm753, %vm754
  %v756 = vsel %vm755, %v748, %v752
  %v757 = vand.u32 2147483647, %v732
  %vm758 = vcmp.eq.f32.partialorder %v757, 8.507059e+37
  %v759 = vand.u32 %v732, 2147483648
  %v760 = vor.u32 1.1754944e-38, %v759
  %v761 = vsel %vm758, %v760, %v756
  %v762 = vmul.f32 %v724, %v761
  %v763 = vadd.f32 %v747, 0.0001
  %v764 = vadd.f32 %v762, 0.0001
  %v765 = vrsqrt.pop %v763
  %v766 = vmul.f32 %v765, %v763
  %v767 = vmul.f32 %v766, %v765
  %v768 = vmul.f32 0.5, %v767
  %v769 = vsub.f32 1.5, %v768
  %v770 = vmul.f32 %v765, %v769
  %vm771 = vweird.f32 %v763
  %vm772 = vweird.f32 %v765
  %vm773 = vmor %vm771, %vm772
  %v774 = vsel %vm773, %v765, %v770
  %v775 = vrsqrt.pop %v764
  %v776 = vmul.f32 %v775, %v764
  %v777 = vmul.f32 %v776, %v775
  %v778 = vmul.f32 0.5, %v777
  %v779 = vsub.f32 1.5, %v778
  %v780 = vmul.f32 %v775, %v779
  %vm781 = vweird.f32 %v764
  %vm782 = vweird.f32 %v775
  %vm783 = vmor %vm781, %vm782
  %v784 = vsel %vm783, %v775, %v780
  %v785 = vmul.f32 %v715, %v774
  %v786 = vmul.f32 %v716, %v784
  %v787 = vmul.f32 %v632, %v785
  %v788 = vmul.f32 %v633, %v786
  %v789 = vmul.f32 %v634, %v785
  %v790 = vmul.f32 %v635, %v786
  %v791 = vmul.f32 %v636, %v785
  %v792 = vmul.f32 %v637, %v786
  %793 = vst.msk [vmem:[%s16] sm:$0xff] %vm210, %v699
  %794 = vst.msk [vmem:[%s16 + $0x8] sm:$0xff] %vm210, %v700
  %795 = vst.msk [vmem:[%s17] sm:$0xff] %vm90, %v787
  %796 = vst.msk [vmem:[%s17 + $0x8] sm:$0xff] %vm90, %v788
  %797 = vst.msk [vmem:[%s17 + $0x10] sm:$0xff] %vm90, %v789
  %798 = vst.msk [vmem:[%s17 + $0x18] sm:$0xff] %vm90, %v790
  %799 = vst.msk [vmem:[%s17 + $0x20] sm:$0xff] %vm90, %v791
  %800 = vst.msk [vmem:[%s17 + $0x28] sm:$0xff] %vm90, %v792
  // Predicated region
  $region66: #{gvp_encoder_forward.9} parent=0 // pred_check
    _
  $region67: #{gvp_encoder_forward.9} parent=0 // pred_check_branch
    %802 = sbr.rel (0) target = $region69
  $region68: #{gvp_encoder_forward.9} parent=0 // pred_region
    _
  $region69: #{gvp_encoder_forward.9} parent=0 // pred_fallthru
    _
  // Predicated region
  $region70: #{gvp_encoder_forward.9} parent=0 // pred_check
    _
  $region71: #{gvp_encoder_forward.9} parent=0 // pred_check_branch
    %804 = sbr.rel (0) target = $region73
  $region72: #{gvp_encoder_forward.9} parent=0 // pred_region
    _
  $region73: #{gvp_encoder_forward.9} parent=0 // pred_fallthru
    _
  // Predicated region
  $region74: #{gvp_encoder_forward.9} parent=0 // pred_check
    _
  $region75: #{gvp_encoder_forward.9} parent=0 // pred_check_branch
    %806 = sbr.rel (0) target = $region77
  $region76: #{gvp_encoder_forward.9} parent=0 // pred_region
    _
  $region77: #{gvp_encoder_forward.9} parent=0 // pred_fallthru
    _
  // Predicated region
  $region78: #{gvp_encoder_forward.9} parent=0 // pred_check
    _
  $region79: #{gvp_encoder_forward.9} parent=0 // pred_check_branch
    %808 = sbr.rel (0) target = $region81
  $region80: #{gvp_encoder_forward.9} parent=0 // pred_region
    _
  $region81: #{gvp_encoder_forward.9} parent=0 // pred_fallthru
    _

// kernel: gvp_encoder_forward.11
$region0: #{gvp_encoder_forward.11}
  #allocation0 [shape = 'u32[]', space=smem, size = 0x4, offset = 0x4, fixed_abs, tag = 'smem constant byte address 0x4 - core index']
  #allocation1 [shape = 'u32[72,128]{1,0:T(1,128)}', space=vmem, size = 0x9000, scoped, tag = 'internal scratch']
  %s0 = inlined_call_operand.vmem [shape: f32[16,32], index: 0, kind: input, shape index: {}]
  %s1 = inlined_call_operand.vmem [shape: f32[3,16,8], index: 1, kind: input, shape index: {}]
  %s2 = inlined_call_operand.vmem [shape: f32[8,16], index: 2, kind: input, shape index: {}]
  %s3 = inlined_call_operand.vmem [shape: f32[32,128], index: 3, kind: input, shape index: {}]
  %s4 = inlined_call_operand.vmem [shape: f32[16,128], index: 4, kind: input, shape index: {}]
  %s5 = inlined_call_operand.vmem [shape: f32[1,128], index: 5, kind: input, shape index: {}]
  %s6 = inlined_call_operand.vmem [shape: f32[16,16], index: 6, kind: input, shape index: {}]
  %s7 = inlined_call_operand.vmem [shape: f32[128,16], index: 7, kind: input, shape index: {}]
  %s8 = inlined_call_operand.vmem [shape: f32[1,16], index: 8, kind: input, shape index: {}]
  %s9 = inlined_call_operand.vmem [shape: f32[16,16], index: 9, kind: input, shape index: {}]
  %s10 = inlined_call_operand.vmem [shape: f32[128,32], index: 10, kind: input, shape index: {}]
  %s11 = inlined_call_operand.vmem [shape: f32[16,32], index: 11, kind: input, shape index: {}]
  %s12 = inlined_call_operand.vmem [shape: f32[1,32], index: 12, kind: input, shape index: {}]
  %s13 = inlined_call_operand.vmem [shape: f32[16,8], index: 13, kind: input, shape index: {}]
  %s14 = inlined_call_operand.vmem [shape: f32[1,32], index: 14, kind: input, shape index: {}]
  %s15 = inlined_call_operand.vmem [shape: f32[1,32], index: 15, kind: input, shape index: {}]
  %s16 = inlined_call_operand.hbm [shape: f32[16,32], index: 16, kind: output, shape index: {0}]
  %s17 = inlined_call_operand.vmem [shape: f32[3,16,8], index: 17, kind: output, shape index: {1}]
  %18 = xla_tuple %s16, %s17
  %s19 = sld [smem:[#allocation0]]
  $region82: #{gvp_encoder_forward.11} parent=0
    _
  %s21 = ssub.s32 1, %s19
  %s22 = scalar_select 0, %s21, %s19
  $region1: #{gvp_encoder_forward.11} parent=0
    #allocation2 [shape = 'u8[8192]{0}', space=vmem, size = 0x2000, scoped, tag = 'output window, operand 0, single buffered']
    #allocation3 [shape = 's32[1]{0}', space=sflag, size = 0x4, scoped, tag = 'scoped memory for gvp_encoder_forward.11']
    %23 = vsyncpa [#allocation3], 0
    // Predicated region
    $region2: #{gvp_encoder_forward.11} parent=1 // pred_check
      _
    $region3: #{gvp_encoder_forward.11} parent=1 // pred_check_branch
      %25 = sbr.rel (0) target = $region5
    $region4: #{gvp_encoder_forward.11} parent=1 // pred_region
      _
    $region5: #{gvp_encoder_forward.11} parent=1 // pred_fallthru
      _
    // Predicated region
    $region6: #{gvp_encoder_forward.11} parent=1 // pred_check
      _
    $region7: #{gvp_encoder_forward.11} parent=1 // pred_check_branch
      %27 = sbr.rel (0) target = $region9
    $region8: #{gvp_encoder_forward.11} parent=1 // pred_region
      _
    $region9: #{gvp_encoder_forward.11} parent=1 // pred_fallthru
      _
    // Predicated region
    $region10: #{gvp_encoder_forward.11} parent=1 // pred_check
      _
    $region11: #{gvp_encoder_forward.11} parent=1 // pred_check_branch
      %29 = sbr.rel (0) target = $region13
    $region12: #{gvp_encoder_forward.11} parent=1 // pred_region
      _
    $region13: #{gvp_encoder_forward.11} parent=1 // pred_fallthru
      _
    // Predicated region
    $region14: #{gvp_encoder_forward.11} parent=1 // pred_check
      _
    $region15: #{gvp_encoder_forward.11} parent=1 // pred_check_branch
      %31 = sbr.rel (0) target = $region17
    $region16: #{gvp_encoder_forward.11} parent=1 // pred_region
      _
    $region17: #{gvp_encoder_forward.11} parent=1 // pred_fallthru
      _
    // Predicated region
    $region18: #{gvp_encoder_forward.11} parent=1 // pred_check
      _
    $region19: #{gvp_encoder_forward.11} parent=1 // pred_check_branch
      %33 = sbr.rel (0) target = $region21
    $region20: #{gvp_encoder_forward.11} parent=1 // pred_region
      _
    $region21: #{gvp_encoder_forward.11} parent=1 // pred_fallthru
      _
    // Predicated region
    $region22: #{gvp_encoder_forward.11} parent=1 // pred_check
      _
    $region23: #{gvp_encoder_forward.11} parent=1 // pred_check_branch
      %35 = sbr.rel (0) target = $region25
    $region24: #{gvp_encoder_forward.11} parent=1 // pred_region
      _
    $region25: #{gvp_encoder_forward.11} parent=1 // pred_fallthru
      _
    // Predicated region
    $region26: #{gvp_encoder_forward.11} parent=1 // pred_check
      _
    $region27: #{gvp_encoder_forward.11} parent=1 // pred_check_branch
      %37 = sbr.rel (0) target = $region29
    $region28: #{gvp_encoder_forward.11} parent=1 // pred_region
      _
    $region29: #{gvp_encoder_forward.11} parent=1 // pred_fallthru
      _
    // Predicated region
    $region30: #{gvp_encoder_forward.11} parent=1 // pred_check
      _
    $region31: #{gvp_encoder_forward.11} parent=1 // pred_check_branch
      %39 = sbr.rel (0) target = $region33
    $region32: #{gvp_encoder_forward.11} parent=1 // pred_region
      _
    $region33: #{gvp_encoder_forward.11} parent=1 // pred_fallthru
      _
    // Predicated region
    $region34: #{gvp_encoder_forward.11} parent=1 // pred_check
      _
    $region35: #{gvp_encoder_forward.11} parent=1 // pred_check_branch
      %41 = sbr.rel (0) target = $region37
    $region36: #{gvp_encoder_forward.11} parent=1 // pred_region
      _
    $region37: #{gvp_encoder_forward.11} parent=1 // pred_fallthru
      _
    // Predicated region
    $region38: #{gvp_encoder_forward.11} parent=1 // pred_check
      _
    $region39: #{gvp_encoder_forward.11} parent=1 // pred_check_branch
      %43 = sbr.rel (0) target = $region41
    $region40: #{gvp_encoder_forward.11} parent=1 // pred_region
      _
    $region41: #{gvp_encoder_forward.11} parent=1 // pred_fallthru
      _
    // Predicated region
    $region42: #{gvp_encoder_forward.11} parent=1 // pred_check
      _
    $region43: #{gvp_encoder_forward.11} parent=1 // pred_check_branch
      %45 = sbr.rel (0) target = $region45
    $region44: #{gvp_encoder_forward.11} parent=1 // pred_region
      _
    $region45: #{gvp_encoder_forward.11} parent=1 // pred_fallthru
      _
    // Predicated region
    $region46: #{gvp_encoder_forward.11} parent=1 // pred_check
      _
    $region47: #{gvp_encoder_forward.11} parent=1 // pred_check_branch
      %47 = sbr.rel (0) target = $region49
    $region48: #{gvp_encoder_forward.11} parent=1 // pred_region
      _
    $region49: #{gvp_encoder_forward.11} parent=1 // pred_fallthru
      _
    // Predicated region
    $region50: #{gvp_encoder_forward.11} parent=1 // pred_check
      _
    $region51: #{gvp_encoder_forward.11} parent=1 // pred_check_branch
      %49 = sbr.rel (0) target = $region53
    $region52: #{gvp_encoder_forward.11} parent=1 // pred_region
      _
    $region53: #{gvp_encoder_forward.11} parent=1 // pred_fallthru
      _
    // Predicated region
    $region54: #{gvp_encoder_forward.11} parent=1 // pred_check
      _
    $region55: #{gvp_encoder_forward.11} parent=1 // pred_check_branch
      %51 = sbr.rel (0) target = $region57
    $region56: #{gvp_encoder_forward.11} parent=1 // pred_region
      _
    $region57: #{gvp_encoder_forward.11} parent=1 // pred_fallthru
      _
    // Predicated region
    $region58: #{gvp_encoder_forward.11} parent=1 // pred_check
      _
    $region59: #{gvp_encoder_forward.11} parent=1 // pred_check_branch
      %53 = sbr.rel (0) target = $region61
    $region60: #{gvp_encoder_forward.11} parent=1 // pred_region
      _
    $region61: #{gvp_encoder_forward.11} parent=1 // pred_fallthru
      _
    // Predicated region
    $region62: #{gvp_encoder_forward.11} parent=1 // pred_check
      _
    $region63: #{gvp_encoder_forward.11} parent=1 // pred_check_branch
      %55 = sbr.rel (0) target = $region65
    $region64: #{gvp_encoder_forward.11} parent=1 // pred_region
      _
    $region65: #{gvp_encoder_forward.11} parent=1 // pred_fallthru
      _
    %v56 = vld [vmem:[%s0] sm:$0xff]
    %v57 = vld [vmem:[%s0 + $0x8] sm:$0xff]
    %v58 = vld [vmem:[%s1] sm:$0xff]
    %v59 = vld [vmem:[%s1 + $0x8] sm:$0xff]
    %v60 = vld [vmem:[%s1 + $0x10] sm:$0xff]
    %v61 = vld [vmem:[%s1 + $0x18] sm:$0xff]
    %v62 = vld [vmem:[%s1 + $0x20] sm:$0xff]
    %v63 = vld [vmem:[%s1 + $0x28] sm:$0xff]
    %v64 = vld [vmem:[%s2] sm:$0xff]
    %v65 = vld [vmem:[%s3] sm:$0xff]
    %v66 = vld [vmem:[%s3 + $0x8] sm:$0xff]
    %v67 = vld [vmem:[%s3 + $0x10] sm:$0xff]
    %v68 = vld [vmem:[%s3 + $0x18] sm:$0xff]
    %v69 = vld [vmem:[%s4] sm:$0xff]
    %v70 = vld [vmem:[%s4 + $0x8] sm:$0xff]
    %v71 = vld [vmem:[%s5] sm:$0x1]
    %v72 = vld [vmem:[%s6] sm:$0xff]
    %v73 = vld [vmem:[%s6 + $0x8] sm:$0xff]
    %v74 = vld [vmem:[%s7] sm:$0xff]
    %v75 = vld [vmem:[%s7 + $0x8] sm:$0xff]
    %v76 = vld [vmem:[%s7 + $0x10] sm:$0xff]
    %v77 = vld [vmem:[%s7 + $0x18] sm:$0xff]
    %v78 = vld [vmem:[%s7 + $0x20] sm:$0xff]
    %v79 = vld [vmem:[%s7 + $0x28] sm:$0xff]
    %v80 = vld [vmem:[%s7 + $0x30] sm:$0xff]
    %v81 = vld [vmem:[%s7 + $0x38] sm:$0xff]
    %v82 = vld [vmem:[%s7 + $0x40] sm:$0xff]
    %v83 = vld [vmem:[%s7 + $0x48] sm:$0xff]
    %v84 = vld [vmem:[%s7 + $0x50] sm:$0xff]
    %v85 = vld [vmem:[%s7 + $0x58] sm:$0xff]
    %v86 = vld [vmem:[%s7 + $0x60] sm:$0xff]
    %v87 = vld [vmem:[%s7 + $0x68] sm:$0xff]
    %v88 = vld [vmem:[%s7 + $0x70] sm:$0xff]
    %v89 = vld [vmem:[%s7 + $0x78] sm:$0xff]
    %v90 = vld [vmem:[%s8] sm:$0x1]
    %vm91 = vcmask 64512
    %v93 = vsel %vm91, %v58, 0
    %v96 = vsel %vm91, %v59, 0
    %v99 = vsel %vm91, %v60, 0
    %v102 = vsel %vm91, %v61, 0
    %v105 = vsel %vm91, %v62, 0
    %v108 = vsel %vm91, %v63, 0
    %110 = vmatpush.msra.mxu0 0.0
    %111 = vmatpush.msra.mxu0 0.0
    %112 = vmatpush.msra.mxu0 0.0
    %113 = vmatpush.msra.mxu0 0.0
    %114 = vmatpush.msra.mxu0 0.0
    %115 = vmatpush.msra.mxu0 0.0
    %116 = vmatpush.msra.mxu0 0.0
    %117 = vmatpush.msra.mxu0 0.0
    %118 = vmatpush.msra.mxu0 0.0
    %119 = vmatpush.msra.mxu0 0.0
    %120 = vmatpush.msra.mxu0 0.0
    %121 = vmatpush.msra.mxu0 0.0
    %122 = vmatpush.msra.mxu0 0.0
    %123 = vmatpush.msra.mxu0 0.0
    %124 = vmatpush.msra.mxu0 0.0
    %125 = vmatpush.msra.mxu0 %v64
    %126 = vmatmul.f32.gmra.mxu0 %v93
    %v127 = vpop.f32.mrf.mxu0
    %v128 = vadd.f32 0.0, %v127
    %129 = vmatmul.f32.gmra.mxu0 %v96
    %v130 = vpop.f32.mrf.mxu0
    %v131 = vadd.f32 0.0, %v130
    %132 = vmatmul.f32.gmra.mxu0 %v99
    %v133 = vpop.f32.mrf.mxu0
    %v134 = vadd.f32 0.0, %v133
    %135 = vmatmul.f32.gmra.mxu0 %v102
    %v136 = vpop.f32.mrf.mxu0
    %v137 = vadd.f32 0.0, %v136
    %138 = vmatmul.f32.gmra.mxu0 %v105
    %v139 = vpop.f32.mrf.mxu0
    %v140 = vadd.f32 0.0, %v139
    %141 = vmatmul.f32.gmra.mxu0 %v108
    %v142 = vpop.f32.mrf.mxu0
    %v143 = vadd.f32 0.0, %v142
    %144 = vdwg.mxu0
    %v145 = vmul.f32 %v128, %v128
    %v146 = vmul.f32 %v131, %v131
    %v147 = vmul.f32 %v134, %v134
    %v148 = vmul.f32 %v137, %v137
    %v149 = vadd.f32 %v145, %v147
    %v150 = vadd.f32 %v146, %v148
    %v151 = vmul.f32 %v140, %v140
    %v152 = vmul.f32 %v143, %v143
    %v153 = vadd.f32 %v149, %v151
    %v154 = vadd.f32 %v150, %v152
    %v155 = vmax.f32 %v153, 1e-08
    %v156 = vmax.f32 %v154, 1e-08
    %v157 = vrsqrt.pop %v155
    %v158 = vmul.f32 %v157, %v155
    %v159 = vmul.f32 %v158, %v157
    %v160 = vmul.f32 0.5, %v159
    %v161 = vsub.f32 1.5, %v160
    %v162 = vmul.f32 %v157, %v161
    %v163 = vmul.f32 %v155, %v162
    %vm164 = vcmp.eq.f32.partialorder %v155, inf
    %v165 = vsel %vm164, %v155, %v163
    %vm166 = vcmp.eq.f32.partialorder %v155, 0.0
    %v167 = vand.u32 %v155, 2147483648
    %v168 = vsel %vm166, %v167, %v165
    %v169 = vrsqrt.pop %v156
    %v170 = vmul.f32 %v169, %v156
    %v171 = vmul.f32 %v170, %v169
    %v172 = vmul.f32 0.5, %v171
    %v173 = vsub.f32 1.5, %v172
    %v174 = vmul.f32 %v169, %v173
    %v175 = vmul.f32 %v156, %v174
    %vm176 = vcmp.eq.f32.partialorder %v156, inf
    %v177 = vsel %vm176, %v156, %v175
    %vm178 = vcmp.eq.f32.partialorder %v156, 0.0
    %v179 = vand.u32 %v156, 2147483648
    %v180 = vsel %vm178, %v179, %v177
    %vm181 = vcmask 130048
    %v183 = vsel %vm181, %v168, 0
    %v186 = vsel %vm181, %v180, 0
    %188 = vmatpush.msra.mxu0 0.0
    %189 = vmatpush.msra.mxu0 0.0
    %190 = vmatpush.msra.mxu0 0.0
    %191 = vmatpush.msra.mxu0 0.0
    %192 = vmatpush.msra.mxu0 0.0
    %193 = vmatpush.msra.mxu0 0.0
    %194 = vmatpush.msra.mxu0 0.0
    %195 = vmatpush.msra.mxu0 0.0
    %196 = vmatpush.msra.mxu0 0.0
    %197 = vmatpush.msra.mxu0 0.0
    %198 = vmatpush.msra.mxu0 0.0
    %199 = vmatpush.msra.mxu0 0.0
    %200 = vmatpush.msra.mxu0 0.0
    %201 = vmatpush.msra.mxu0 0.0
    %202 = vmatpush.msra.mxu0 %v70
    %203 = vmatpush.msra.mxu0 %v69
    %204 = vmatmul.f32.gmra.mxu0 %v183
    %v205 = vpop.f32.mrf.mxu0
    %v206 = vadd.f32 0.0, %v205
    %207 = vmatmul.f32.gmra.mxu0 %v186
    %v208 = vpop.f32.mrf.mxu0
    %v209 = vadd.f32 0.0, %v208
    %210 = vdwg.mxu0
    %vm211 = vcmask 261120
    %v213 = vsel %vm211, %v56, 0
    %v216 = vsel %vm211, %v57, 0
    %218 = vmatpush.msra.mxu0 0.0
    %219 = vmatpush.msra.mxu0 0.0
    %220 = vmatpush.msra.mxu0 0.0
    %221 = vmatpush.msra.mxu0 0.0
    %222 = vmatpush.msra.mxu0 0.0
    %223 = vmatpush.msra.mxu0 0.0
    %224 = vmatpush.msra.mxu0 0.0
    %225 = vmatpush.msra.mxu0 0.0
    %226 = vmatpush.msra.mxu0 0.0
    %227 = vmatpush.msra.mxu0 0.0
    %228 = vmatpush.msra.mxu0 0.0
    %229 = vmatpush.msra.mxu0 0.0
    %230 = vmatpush.msra.mxu0 %v68
    %231 = vmatpush.msra.mxu0 %v67
    %232 = vmatpush.msra.mxu0 %v66
    %233 = vmatpush.msra.mxu0 %v65
    %234 = vmatmul.f32.gmra.mxu0 %v213
    %v235 = vpop.f32.mrf.mxu0
    %v236 = vadd.f32 %v206, %v235
    %237 = vmatmul.f32.gmra.mxu0 %v216
    %v238 = vpop.f32.mrf.mxu0
    %v239 = vadd.f32 %v209, %v238
    %240 = vdwg.mxu0
    %v242 = vperm.slane %v71, 0
    %v244 = vadd.f32 %v236, %v242
    %v245 = vadd.f32 %v239, %v242
    %v247 = vsel %vm181, %v128, 0
    %v250 = vsel %vm181, %v131, 0
    %v253 = vsel %vm181, %v134, 0
    %v256 = vsel %vm181, %v137, 0
    %v259 = vsel %vm181, %v140, 0
    %v262 = vsel %vm181, %v143, 0
    %264 = vmatpush.msra.mxu0 0.0
    %265 = vmatpush.msra.mxu0 0.0
    %266 = vmatpush.msra.mxu0 0.0
    %267 = vmatpush.msra.mxu0 0.0
    %268 = vmatpush.msra.mxu0 0.0
    %269 = vmatpush.msra.mxu0 0.0
    %270 = vmatpush.msra.mxu0 0.0
    %271 = vmatpush.msra.mxu0 0.0
    %272 = vmatpush.msra.mxu0 0.0
    %273 = vmatpush.msra.mxu0 0.0
    %274 = vmatpush.msra.mxu0 0.0
    %275 = vmatpush.msra.mxu0 0.0
    %276 = vmatpush.msra.mxu0 0.0
    %277 = vmatpush.msra.mxu0 0.0
    %278 = vmatpush.msra.mxu0 %v73
    %279 = vmatpush.msra.mxu0 %v72
    %280 = vmatmul.f32.gmra.mxu0 %v247
    %v281 = vpop.f32.mrf.mxu0
    %v282 = vadd.f32 0.0, %v281
    %283 = vmatmul.f32.gmra.mxu0 %v250
    %v284 = vpop.f32.mrf.mxu0
    %v285 = vadd.f32 0.0, %v284
    %286 = vmatmul.f32.gmra.mxu0 %v253
    %v287 = vpop.f32.mrf.mxu0
    %v288 = vadd.f32 0.0, %v287
    %289 = vmatmul.f32.gmra.mxu0 %v256
    %v290 = vpop.f32.mrf.mxu0
    %v291 = vadd.f32 0.0, %v290
    %292 = vmatmul.f32.gmra.mxu0 %v259
    %v293 = vpop.f32.mrf.mxu0
    %v294 = vadd.f32 0.0, %v293
    %295 = vmatmul.f32.gmra.mxu0 %v262
    %v296 = vpop.f32.mrf.mxu0
    %v297 = vadd.f32 0.0, %v296
    %298 = vdwg.mxu0
    %v299 = vxor.u32 %v244, 2147483648
    %v300 = vxor.u32 %v245, 2147483648
    %v301 = vmul.f32 %v299, 1.442695
    %v302 = vpow.pop %v301
    %v303 = vmul.f32 %v300, 1.442695
    %v304 = vpow.pop %v303
    %v305 = vadd.f32 %v302, 1.0
    %v306 = vadd.f32 %v304, 1.0
    %v307 = vrcp.pop %v305
    %v308 = vmul.f32 %v305, %v307
    %v309 = vsub.f32 1.0, %v308
    %v310 = vmul.f32 %v307, %v309
    %v311 = vadd.f32 %v307, %v310
    %vm312 = vweird.f32 %v305
    %vm313 = vweird.f32 %v307
    %vm314 = vmor %vm312, %vm313
    %v315 = vsel %vm314, %v307, %v311
    %v316 = vand.u32 2147483647, %v305
    %vm317 = vcmp.eq.f32.partialorder %v316, 8.507059e+37
    %v318 = vand.u32 %v305, 2147483648
    %v319 = vor.u32 1.1754944e-38, %v318
    %v320 = vsel %vm317, %v319, %v315
    %v321 = vmul.f32 1.0, %v320
    %v322 = vrcp.pop %v306
    %v323 = vmul.f32 %v306, %v322
    %v324 = vsub.f32 1.0, %v323
    %v325 = vmul.f32 %v322, %v324
    %v326 = vadd.f32 %v322, %v325
    %vm327 = vweird.f32 %v306
    %vm328 = vweird.f32 %v322
    %vm329 = vmor %vm327, %vm328
    %v330 = vsel %vm329, %v322, %v326
    %v331 = vand.u32 2147483647, %v306
    %vm332 = vcmp.eq.f32.partialorder %v331, 8.507059e+37
    %v333 = vand.u32 %v306, 2147483648
    %v334 = vor.u32 1.1754944e-38, %v333
    %v335 = vsel %vm332, %v334, %v330
    %v336 = vmul.f32 1.0, %v335
    %v338 = vperm.slane %v90, 0
    %340 = vmatpush.msra.mxu0 %v89
    %341 = vmatpush.msra.mxu0 %v88
    %342 = vmatpush.msra.mxu0 %v87
    %343 = vmatpush.msra.mxu0 %v86
    %344 = vmatpush.msra.mxu0 %v85
    %345 = vmatpush.msra.mxu0 %v84
    %346 = vmatpush.msra.mxu0 %v83
    %347 = vmatpush.msra.mxu0 %v82
    %348 = vmatpush.msra.mxu0 %v81
    %349 = vmatpush.msra.mxu0 %v80
    %350 = vmatpush.msra.mxu0 %v79
    %351 = vmatpush.msra.mxu0 %v78
    %352 = vmatpush.msra.mxu0 %v77
    %353 = vmatpush.msra.mxu0 %v76
    %354 = vmatpush.msra.mxu0 %v75
    %355 = vmatpush.msra.mxu0 %v74
    %356 = vmatmul.f32.gmra.mxu0 %v321
    %v357 = vpop.f32.mrf.mxu0
    %v358 = vadd.f32 %v338, %v357
    %359 = vmatmul.f32.gmra.mxu0 %v336
    %v360 = vpop.f32.mrf.mxu0
    %v361 = vadd.f32 %v338, %v360
    %362 = vdwg.mxu0
    %v363 = vxor.u32 %v358, 2147483648
    %v364 = vxor.u32 %v361, 2147483648
    %v365 = vmul.f32 %v363, 1.442695
    %v366 = vpow.pop %v365
    %v367 = vmul.f32 %v364, 1.442695
    %v368 = vpow.pop %v367
    %v369 = vadd.f32 %v366, 1.0
    %v370 = vadd.f32 %v368, 1.0
    %v371 = vrcp.pop %v369
    %v372 = vmul.f32 %v369, %v371
    %v373 = vsub.f32 1.0, %v372
    %v374 = vmul.f32 %v371, %v373
    %v375 = vadd.f32 %v371, %v374
    %vm376 = vweird.f32 %v369
    %vm377 = vweird.f32 %v371
    %vm378 = vmor %vm376, %vm377
    %v379 = vsel %vm378, %v371, %v375
    %v380 = vand.u32 2147483647, %v369
    %vm381 = vcmp.eq.f32.partialorder %v380, 8.507059e+37
    %v382 = vand.u32 %v369, 2147483648
    %v383 = vor.u32 1.1754944e-38, %v382
    %v384 = vsel %vm381, %v383, %v379
    %v385 = vmul.f32 1.0, %v384
    %v386 = vrcp.pop %v370
    %v387 = vmul.f32 %v370, %v386
    %v388 = vsub.f32 1.0, %v387
    %v389 = vmul.f32 %v386, %v388
    %v390 = vadd.f32 %v386, %v389
    %vm391 = vweird.f32 %v370
    %vm392 = vweird.f32 %v386
    %vm393 = vmor %vm391, %vm392
    %v394 = vsel %vm393, %v386, %v390
    %v395 = vand.u32 2147483647, %v370
    %vm396 = vcmp.eq.f32.partialorder %v395, 8.507059e+37
    %v397 = vand.u32 %v370, 2147483648
    %v398 = vor.u32 1.1754944e-38, %v397
    %v399 = vsel %vm396, %v398, %v394
    %v400 = vmul.f32 1.0, %v399
    %v401 = vmul.f32 %v282, %v385
    %v402 = vmul.f32 %v285, %v400
    %v403 = vmul.f32 %v288, %v385
    %v404 = vmul.f32 %v291, %v400
    %v405 = vmul.f32 %v294, %v385
    %v406 = vmul.f32 %v297, %v400
    %v407 = vmax.f32 %v244, 0.0
    %v408 = vmax.f32 %v245, 0.0
    %v409 = vld [vmem:[%s9] sm:$0xff]
    %v410 = vld [vmem:[%s9 + $0x8] sm:$0xff]
    %v411 = vld [vmem:[%s10] sm:$0xff]
    %v412 = vld [vmem:[%s10 + $0x8] sm:$0xff]
    %v413 = vld [vmem:[%s10 + $0x10] sm:$0xff]
    %v414 = vld [vmem:[%s10 + $0x18] sm:$0xff]
    %v415 = vld [vmem:[%s10 + $0x20] sm:$0xff]
    %v416 = vld [vmem:[%s10 + $0x28] sm:$0xff]
    %v417 = vld [vmem:[%s10 + $0x30] sm:$0xff]
    %v418 = vld [vmem:[%s10 + $0x38] sm:$0xff]
    %v419 = vld [vmem:[%s10 + $0x40] sm:$0xff]
    %v420 = vld [vmem:[%s10 + $0x48] sm:$0xff]
    %v421 = vld [vmem:[%s10 + $0x50] sm:$0xff]
    %v422 = vld [vmem:[%s10 + $0x58] sm:$0xff]
    %v423 = vld [vmem:[%s10 + $0x60] sm:$0xff]
    %v424 = vld [vmem:[%s10 + $0x68] sm:$0xff]
    %v425 = vld [vmem:[%s10 + $0x70] sm:$0xff]
    %v426 = vld [vmem:[%s10 + $0x78] sm:$0xff]
    %v427 = vld [vmem:[%s11] sm:$0xff]
    %v428 = vld [vmem:[%s11 + $0x8] sm:$0xff]
    %v429 = vld [vmem:[%s12] sm:$0x1]
    %v430 = vld [vmem:[%s13] sm:$0xff]
    %v431 = vld [vmem:[%s13 + $0x8] sm:$0xff]
    %v433 = vsel %vm181, %v401, 0
    %v436 = vsel %vm181, %v402, 0
    %v439 = vsel %vm181, %v403, 0
    %v442 = vsel %vm181, %v404, 0
    %v445 = vsel %vm181, %v405, 0
    %v448 = vsel %vm181, %v406, 0
    %450 = vmatpush.msra.mxu0 0.0
    %451 = vmatpush.msra.mxu0 0.0
    %452 = vmatpush.msra.mxu0 0.0
    %453 = vmatpush.msra.mxu0 0.0
    %454 = vmatpush.msra.mxu0 0.0
    %455 = vmatpush.msra.mxu0 0.0
    %456 = vmatpush.msra.mxu0 0.0
    %457 = vmatpush.msra.mxu0 0.0
    %458 = vmatpush.msra.mxu0 0.0
    %459 = vmatpush.msra.mxu0 0.0
    %460 = vmatpush.msra.mxu0 0.0
    %461 = vmatpush.msra.mxu0 0.0
    %462 = vmatpush.msra.mxu0 0.0
    %463 = vmatpush.msra.mxu0 0.0
    %464 = vmatpush.msra.mxu0 %v410
    %465 = vmatpush.msra.mxu0 %v409
    %466 = vmatmul.f32.gmra.mxu0 %v433
    %v467 = vpop.f32.mrf.mxu0
    %v468 = vadd.f32 0.0, %v467
    %469 = vmatmul.f32.gmra.mxu0 %v436
    %v470 = vpop.f32.mrf.mxu0
    %v471 = vadd.f32 0.0, %v470
    %472 = vmatmul.f32.gmra.mxu0 %v439
    %v473 = vpop.f32.mrf.mxu0
    %v474 = vadd.f32 0.0, %v473
    %475 = vmatmul.f32.gmra.mxu0 %v442
    %v476 = vpop.f32.mrf.mxu0
    %v477 = vadd.f32 0.0, %v476
    %478 = vmatmul.f32.gmra.mxu0 %v445
    %v479 = vpop.f32.mrf.mxu0
    %v480 = vadd.f32 0.0, %v479
    %481 = vmatmul.f32.gmra.mxu0 %v448
    %v482 = vpop.f32.mrf.mxu0
    %v483 = vadd.f32 0.0, %v482
    %484 = vdwg.mxu0
    %v485 = vmul.f32 %v468, %v468
    %v486 = vmul.f32 %v471, %v471
    %v487 = vmul.f32 %v474, %v474
    %v488 = vmul.f32 %v477, %v477
    %v489 = vadd.f32 %v485, %v487
    %v490 = vadd.f32 %v486, %v488
    %v491 = vmul.f32 %v480, %v480
    %v492 = vmul.f32 %v483, %v483
    %v493 = vadd.f32 %v489, %v491
    %v494 = vadd.f32 %v490, %v492
    %v495 = vmax.f32 %v493, 1e-08
    %v496 = vmax.f32 %v494, 1e-08
    %v497 = vrsqrt.pop %v495
    %v498 = vmul.f32 %v497, %v495
    %v499 = vmul.f32 %v498, %v497
    %v500 = vmul.f32 0.5, %v499
    %v501 = vsub.f32 1.5, %v500
    %v502 = vmul.f32 %v497, %v501
    %v503 = vmul.f32 %v495, %v502
    %vm504 = vcmp.eq.f32.partialorder %v495, inf
    %v505 = vsel %vm504, %v495, %v503
    %vm506 = vcmp.eq.f32.partialorder %v495, 0.0
    %v507 = vand.u32 %v495, 2147483648
    %v508 = vsel %vm506, %v507, %v505
    %v509 = vrsqrt.pop %v496
    %v510 = vmul.f32 %v509, %v496
    %v511 = vmul.f32 %v510, %v509
    %v512 = vmul.f32 0.5, %v511
    %v513 = vsub.f32 1.5, %v512
    %v514 = vmul.f32 %v509, %v513
    %v515 = vmul.f32 %v496, %v514
    %vm516 = vcmp.eq.f32.partialorder %v496, inf
    %v517 = vsel %vm516, %v496, %v515
    %vm518 = vcmp.eq.f32.partialorder %v496, 0.0
    %v519 = vand.u32 %v496, 2147483648
    %v520 = vsel %vm518, %v519, %v517
    %v522 = vsel %vm181, %v508, 0
    %v525 = vsel %vm181, %v520, 0
    %527 = vmatpush.msra.mxu0 0.0
    %528 = vmatpush.msra.mxu0 0.0
    %529 = vmatpush.msra.mxu0 0.0
    %530 = vmatpush.msra.mxu0 0.0
    %531 = vmatpush.msra.mxu0 0.0
    %532 = vmatpush.msra.mxu0 0.0
    %533 = vmatpush.msra.mxu0 0.0
    %534 = vmatpush.msra.mxu0 0.0
    %535 = vmatpush.msra.mxu0 0.0
    %536 = vmatpush.msra.mxu0 0.0
    %537 = vmatpush.msra.mxu0 0.0
    %538 = vmatpush.msra.mxu0 0.0
    %539 = vmatpush.msra.mxu0 0.0
    %540 = vmatpush.msra.mxu0 0.0
    %541 = vmatpush.msra.mxu0 %v428
    %542 = vmatpush.msra.mxu0 %v427
    %543 = vmatmul.f32.gmra.mxu0 %v522
    %v544 = vpop.f32.mrf.mxu0
    %v545 = vadd.f32 0.0, %v544
    %546 = vmatmul.f32.gmra.mxu0 %v525
    %v547 = vpop.f32.mrf.mxu0
    %v548 = vadd.f32 0.0, %v547
    %549 = vdwg.mxu0
    %550 = vmatpush.msra.mxu0 %v426
    %551 = vmatpush.msra.mxu0 %v425
    %552 = vmatpush.msra.mxu0 %v424
    %553 = vmatpush.msra.mxu0 %v423
    %554 = vmatpush.msra.mxu0 %v422
    %555 = vmatpush.msra.mxu0 %v421
    %556 = vmatpush.msra.mxu0 %v420
    %557 = vmatpush.msra.mxu0 %v419
    %558 = vmatpush.msra.mxu0 %v418
    %559 = vmatpush.msra.mxu0 %v417
    %560 = vmatpush.msra.mxu0 %v416
    %561 = vmatpush.msra.mxu0 %v415
    %562 = vmatpush.msra.mxu0 %v414
    %563 = vmatpush.msra.mxu0 %v413
    %564 = vmatpush.msra.mxu0 %v412
    %565 = vmatpush.msra.mxu0 %v411
    %566 = vmatmul.f32.gmra.mxu0 %v407
    %v567 = vpop.f32.mrf.mxu0
    %v568 = vadd.f32 %v545, %v567
    %569 = vmatmul.f32.gmra.mxu0 %v408
    %v570 = vpop.f32.mrf.mxu0
    %v571 = vadd.f32 %v548, %v570
    %572 = vdwg.mxu0
    %v574 = vperm.slane %v429, 0
    %v576 = vadd.f32 %v568, %v574
    %v577 = vadd.f32 %v571, %v574
    %v579 = vsel %vm181, %v468, 0
    %v582 = vsel %vm181, %v471, 0
    %v585 = vsel %vm181, %v474, 0
    %v588 = vsel %vm181, %v477, 0
    %v591 = vsel %vm181, %v480, 0
    %v594 = vsel %vm181, %v483, 0
    %596 = vmatpush.msra.mxu0 0.0
    %597 = vmatpush.msra.mxu0 0.0
    %598 = vmatpush.msra.mxu0 0.0
    %599 = vmatpush.msra.mxu0 0.0
    %600 = vmatpush.msra.mxu0 0.0
    %601 = vmatpush.msra.mxu0 0.0
    %602 = vmatpush.msra.mxu0 0.0
    %603 = vmatpush.msra.mxu0 0.0
    %604 = vmatpush.msra.mxu0 0.0
    %605 = vmatpush.msra.mxu0 0.0
    %606 = vmatpush.msra.mxu0 0.0
    %607 = vmatpush.msra.mxu0 0.0
    %608 = vmatpush.msra.mxu0 0.0
    %609 = vmatpush.msra.mxu0 0.0
    %610 = vmatpush.msra.mxu0 %v431
    %611 = vmatpush.msra.mxu0 %v430
    %612 = vmatmul.f32.gmra.mxu0 %v579
    %v613 = vpop.f32.mrf.mxu0
    %v614 = vadd.f32 0.0, %v613
    %615 = vmatmul.f32.gmra.mxu0 %v582
    %v616 = vpop.f32.mrf.mxu0
    %v617 = vadd.f32 0.0, %v616
    %618 = vmatmul.f32.gmra.mxu0 %v585
    %v619 = vpop.f32.mrf.mxu0
    %v620 = vadd.f32 0.0, %v619
    %621 = vmatmul.f32.gmra.mxu0 %v588
    %v622 = vpop.f32.mrf.mxu0
    %v623 = vadd.f32 0.0, %v622
    %624 = vmatmul.f32.gmra.mxu0 %v591
    %v625 = vpop.f32.mrf.mxu0
    %v626 = vadd.f32 0.0, %v625
    %627 = vmatmul.f32.gmra.mxu0 %v594
    %v628 = vpop.f32.mrf.mxu0
    %v629 = vadd.f32 0.0, %v628
    %630 = vdwg.mxu0
    %v631 = vadd.f32 %v56, %v576
    %v632 = vadd.f32 %v57, %v577
    %v633 = vadd.f32 %v58, %v614
    %v634 = vadd.f32 %v59, %v617
    %v635 = vadd.f32 %v60, %v620
    %v636 = vadd.f32 %v61, %v623
    %v637 = vadd.f32 %v62, %v626
    %v638 = vadd.f32 %v63, %v629
    %v639 = vld [vmem:[%s14] sm:$0x1]
    %v640 = vld [vmem:[%s15] sm:$0x1]
    %v641 = vsel %vm211, %v631, 0.0
    %642 = vadd.xlane.f32.xlu0 %v641
    %v643 = vpop.xlane.xlu0 %642
    %v644 = vsel %vm211, %v632, 0.0
    %645 = vadd.xlane.f32.xlu0 %v644
    %v646 = vpop.xlane.xlu0 %645
    %v647 = vrcp.pop 32.0
    %v648 = vmul.f32 32.0, %v647
    %v649 = vsub.f32 1.0, %v648
    %v650 = vmul.f32 %v647, %v649
    %v651 = vadd.f32 %v647, %v650
    %vm652 = vweird.f32 %v647
    %v653 = vsel %vm652, %v647, %v651
    %v654 = vmul.f32 %v643, %v653
    %v655 = vmul.f32 %v646, %v653
    %v656 = vsub.f32 %v631, %v654
    %v657 = vsub.f32 %v632, %v655
    %v658 = vmul.f32 %v656, %v656
    %v659 = vmul.f32 %v657, %v657
    %v660 = vsel %vm211, %v658, 0.0
    %661 = vadd.xlane.f32.xlu0 %v660
    %v662 = vpop.xlane.xlu0 %661
    %v663 = vsel %vm211, %v659, 0.0
    %664 = vadd.xlane.f32.xlu0 %v663
    %v665 = vpop.xlane.xlu0 %664
    %v666 = vmul.f32 %v662, %v653
    %v667 = vmul.f32 %v665, %v653
    %v668 = vadd.f32 %v666, 1e-05
    %v669 = vadd.f32 %v667, 1e-05
    %v670 = vrsqrt.pop %v668
    %v671 = vmul.f32 %v670, %v668
    %v672 = vmul.f32 %v671, %v670
    %v673 = vmul.f32 0.5, %v672
    %v674 = vsub.f32 1.5, %v673
    %v675 = vmul.f32 %v670, %v674
    %vm676 = vweird.f32 %v668
    %vm677 = vweird.f32 %v670
    %vm678 = vmor %vm676, %vm677
    %v679 = vsel %vm678, %v670, %v675
    %v680 = vrsqrt.pop %v669
    %v681 = vmul.f32 %v680, %v669
    %v682 = vmul.f32 %v681, %v680
    %v683 = vmul.f32 0.5, %v682
    %v684 = vsub.f32 1.5, %v683
    %v685 = vmul.f32 %v680, %v684
    %vm686 = vweird.f32 %v669
    %vm687 = vweird.f32 %v680
    %vm688 = vmor %vm686, %vm687
    %v689 = vsel %vm688, %v680, %v685
    %v690 = vmul.f32 %v656, %v679
    %v691 = vmul.f32 %v657, %v689
    %v693 = vperm.slane %v639, 0
    %v695 = vmul.f32 %v690, %v693
    %v696 = vmul.f32 %v691, %v693
    %v698 = vperm.slane %v640, 0
    %v700 = vadd.f32 %v695, %v698
    %v701 = vadd.f32 %v696, %v698
    %v702 = vmul.f32 %v633, %v633
    %v703 = vmul.f32 %v634, %v634
    %v704 = vmul.f32 %v635, %v635
    %v705 = vmul.f32 %v636, %v636
    %v706 = vadd.f32 %v702, %v704
    %v707 = vadd.f32 %v703, %v705
    %v708 = vmul.f32 %v637, %v637
    %v709 = vmul.f32 %v638, %v638
    %v710 = vadd.f32 %v706, %v708
    %v711 = vadd.f32 %v707, %v709
    %vm712 = vcmp.gt.f32.partialorder %v710, 0.0002
    %vm713 = vcmp.gt.f32.partialorder %v711, 0.0002
    %v714 = vsel %vm712, 1, 0
    %v715 = vsel %vm713, 1, 0
    %v716 = vcvt.s32.f32 %v714
    %v717 = vcvt.s32.f32 %v715
    %v718 = vmul.f32 %v710, %v716
    %v719 = vmul.f32 %v711, %v717
    %v720 = vsel %vm91, %v718, 0.0
    %721 = vadd.xlane.f32.xlu0 %v720
    %v722 = vpop.xlane.xlu0 %721
    %v723 = vsel %vm91, %v719, 0.0
    %724 = vadd.xlane.f32.xlu0 %v723
    %v725 = vpop.xlane.xlu0 %724
    %v726 = vsel %vm91, %v716, 0.0
    %727 = vadd.xlane.f32.xlu0 %v726
    %v728 = vpop.xlane.xlu0 %727
    %v729 = vsel %vm91, %v717, 0.0
    %730 = vadd.xlane.f32.xlu0 %v729
    %v731 = vpop.xlane.xlu0 %730
    %v732 = vadd.f32 %v728, 0.0001
    %v733 = vadd.f32 %v731, 0.0001
    %v734 = vrcp.pop %v732
    %v735 = vmul.f32 %v732, %v734
    %v736 = vsub.f32 1.0, %v735
    %v737 = vmul.f32 %v734, %v736
    %v738 = vadd.f32 %v734, %v737
    %vm739 = vweird.f32 %v732
    %vm740 = vweird.f32 %v734
    %vm741 = vmor %vm739, %vm740
    %v742 = vsel %vm741, %v734, %v738
    %v743 = vand.u32 2147483647, %v732
    %vm744 = vcmp.eq.f32.partialorder %v743, 8.507059e+37
    %v745 = vand.u32 %v732, 2147483648
    %v746 = vor.u32 1.1754944e-38, %v745
    %v747 = vsel %vm744, %v746, %v742
    %v748 = vmul.f32 %v722, %v747
    %v749 = vrcp.pop %v733
    %v750 = vmul.f32 %v733, %v749
    %v751 = vsub.f32 1.0, %v750
    %v752 = vmul.f32 %v749, %v751
    %v753 = vadd.f32 %v749, %v752
    %vm754 = vweird.f32 %v733
    %vm755 = vweird.f32 %v749
    %vm756 = vmor %vm754, %vm755
    %v757 = vsel %vm756, %v749, %v753
    %v758 = vand.u32 2147483647, %v733
    %vm759 = vcmp.eq.f32.partialorder %v758, 8.507059e+37
    %v760 = vand.u32 %v733, 2147483648
    %v761 = vor.u32 1.1754944e-38, %v760
    %v762 = vsel %vm759, %v761, %v757
    %v763 = vmul.f32 %v725, %v762
    %v764 = vadd.f32 %v748, 0.0001
    %v765 = vadd.f32 %v763, 0.0001
    %v766 = vrsqrt.pop %v764
    %v767 = vmul.f32 %v766, %v764
    %v768 = vmul.f32 %v767, %v766
    %v769 = vmul.f32 0.5, %v768
    %v770 = vsub.f32 1.5, %v769
    %v771 = vmul.f32 %v766, %v770
    %vm772 = vweird.f32 %v764
    %vm773 = vweird.f32 %v766
    %vm774 = vmor %vm772, %vm773
    %v775 = vsel %vm774, %v766, %v771
    %v776 = vrsqrt.pop %v765
    %v777 = vmul.f32 %v776, %v765
    %v778 = vmul.f32 %v777, %v776
    %v779 = vmul.f32 0.5, %v778
    %v780 = vsub.f32 1.5, %v779
    %v781 = vmul.f32 %v776, %v780
    %vm782 = vweird.f32 %v765
    %vm783 = vweird.f32 %v776
    %vm784 = vmor %vm782, %vm783
    %v785 = vsel %vm784, %v776, %v781
    %v786 = vmul.f32 %v716, %v775
    %v787 = vmul.f32 %v717, %v785
    %v788 = vmul.f32 %v633, %v786
    %v789 = vmul.f32 %v634, %v787
    %v790 = vmul.f32 %v635, %v786
    %v791 = vmul.f32 %v636, %v787
    %v792 = vmul.f32 %v637, %v786
    %v793 = vmul.f32 %v638, %v787
    %794 = vst.msk [vmem:[#allocation2] sm:$0xff] %vm211, %v700
    %795 = vst.msk [vmem:[#allocation2 + $0x8] sm:$0xff] %vm211, %v701
    %796 = vst.msk [vmem:[%s17] sm:$0xff] %vm91, %v788
    %797 = vst.msk [vmem:[%s17 + $0x8] sm:$0xff] %vm91, %v789
    %798 = vst.msk [vmem:[%s17 + $0x10] sm:$0xff] %vm91, %v790
    %799 = vst.msk [vmem:[%s17 + $0x18] sm:$0xff] %vm91, %v791
    %800 = vst.msk [vmem:[%s17 + $0x20] sm:$0xff] %vm91, %v792
    %801 = vst.msk [vmem:[%s17 + $0x28] sm:$0xff] %vm91, %v793
    // Predicated region
    $region66: #{gvp_encoder_forward.11} parent=1 // pred_check
      _
    $region67: #{gvp_encoder_forward.11} parent=1 // pred_check_branch
      %803 = sbr.rel (0) target = $region69
    $region68: #{gvp_encoder_forward.11} parent=1 // pred_region
      %805 = vsyncadd [#allocation3], 0
      %s806 = sshll.u32 [#allocation2], 4
      %s807 = int_to_ptr.vmem [resolvable:$true] %s806
      %s808 = sshll.u32 %s16, 4
      %s809 = int_to_ptr.hbm [resolvable:$true] %s808
      %814 = dma.vmem_to_hbm [thread:$0]  %s807, 256, %s809, [#allocation3], 128, 128, 8
    $region69: #{gvp_encoder_forward.11} parent=1 // pred_fallthru
      _
    // Predicated region
    $region70: #{gvp_encoder_forward.11} parent=1 // pred_check
      _
    $region71: #{gvp_encoder_forward.11} parent=1 // pred_check_branch
      %816 = sbr.rel (0) target = $region73
    $region72: #{gvp_encoder_forward.11} parent=1 // pred_region
      _
    $region73: #{gvp_encoder_forward.11} parent=1 // pred_fallthru
      _
    // Predicated region
    $region74: #{gvp_encoder_forward.11} parent=1 // pred_check
      _
    $region75: #{gvp_encoder_forward.11} parent=1 // pred_check_branch
      %818 = sbr.rel (0) target = $region77
    $region76: #{gvp_encoder_forward.11} parent=1 // pred_region
      %820 = dma.done [#allocation3], 256
    $region77: #{gvp_encoder_forward.11} parent=1 // pred_fallthru
      _
    // Predicated region
    $region78: #{gvp_encoder_forward.11} parent=1 // pred_check
      _
    $region79: #{gvp_encoder_forward.11} parent=1 // pred_check_branch
      %822 = sbr.rel (0) target = $region81
    $region80: #{gvp_encoder_forward.11} parent=1 // pred_region
      _
    $region81: #{gvp_encoder_forward.11} parent=1 // pred_fallthru
      _
    %823 = vsyncpa [#allocation3], 1

// kernel: gvp_encoder_forward.8
$region0: #{gvp_encoder_forward.8}
  #allocation0 [shape = 'u32[]', space=smem, size = 0x4, offset = 0x4, fixed_abs, tag = 'smem constant byte address 0x4 - core index']
  #allocation1 [shape = 'u32[72,128]{1,0:T(1,128)}', space=vmem, size = 0x9000, scoped, tag = 'internal scratch']
  %s0 = inlined_call_operand.smem [shape: u32[33], index: -1, kind: input, shape index: {}]
  %s1 = sld [smem:[%s0]]
  %s2 = scalar_lea.smem %s0, 1
  %s3 = sld [smem:[%s2]]
  %s4 = scalar_lea.smem %s0, 2
  %s5 = sld [smem:[%s4]]
  %s6 = scalar_lea.smem %s0, 3
  %s7 = sld [smem:[%s6]]
  %s8 = scalar_lea.smem %s0, 4
  %s9 = sld [smem:[%s8]]
  %s10 = scalar_lea.smem %s0, 5
  %s11 = sld [smem:[%s10]]
  %s12 = scalar_lea.smem %s0, 6
  %s13 = sld [smem:[%s12]]
  %s14 = scalar_lea.smem %s0, 7
  %s15 = sld [smem:[%s14]]
  %s16 = scalar_lea.smem %s0, 8
  %s17 = sld [smem:[%s16]]
  %s18 = scalar_lea.smem %s0, 9
  %s19 = sld [smem:[%s18]]
  %s20 = scalar_lea.smem %s0, 10
  %s21 = sld [smem:[%s20]]
  %s22 = scalar_lea.smem %s0, 11
  %s23 = sld [smem:[%s22]]
  %s24 = scalar_lea.smem %s0, 12
  %s25 = sld [smem:[%s24]]
  %s26 = scalar_lea.smem %s0, 13
  %s27 = sld [smem:[%s26]]
  %s28 = scalar_lea.smem %s0, 14
  %s29 = sld [smem:[%s28]]
  %s30 = scalar_lea.smem %s0, 15
  %s31 = sld [smem:[%s30]]
  %s32 = scalar_lea.smem %s0, 16
  %s33 = sld [smem:[%s32]]
  %s34 = scalar_lea.smem %s0, 17
  %s35 = sld [smem:[%s34]]
  %s36 = scalar_lea.smem %s0, 18
  %s37 = sld [smem:[%s36]]
  %s38 = scalar_lea.smem %s0, 19
  %s39 = sld [smem:[%s38]]
  %s40 = scalar_lea.smem %s0, 20
  %s41 = sld [smem:[%s40]]
  %s42 = scalar_lea.smem %s0, 21
  %s43 = sld [smem:[%s42]]
  %s44 = scalar_lea.smem %s0, 22
  %s45 = sld [smem:[%s44]]
  %s46 = scalar_lea.smem %s0, 23
  %s47 = sld [smem:[%s46]]
  %s48 = scalar_lea.smem %s0, 24
  %s49 = sld [smem:[%s48]]
  %s50 = scalar_lea.smem %s0, 25
  %s51 = sld [smem:[%s50]]
  %s52 = scalar_lea.smem %s0, 26
  %s53 = sld [smem:[%s52]]
  %s54 = scalar_lea.smem %s0, 27
  %s55 = sld [smem:[%s54]]
  %s56 = scalar_lea.smem %s0, 28
  %s57 = sld [smem:[%s56]]
  %s58 = scalar_lea.smem %s0, 29
  %s59 = sld [smem:[%s58]]
  %s60 = scalar_lea.smem %s0, 30
  %s61 = sld [smem:[%s60]]
  %s62 = scalar_lea.smem %s0, 31
  %s63 = sld [smem:[%s62]]
  %s64 = scalar_lea.smem %s0, 32
  %s65 = sld [smem:[%s64]]
  %66 = xla_tuple %s63, %s65
  %s67 = sld [smem:[#allocation0]]
  $region142: #{gvp_encoder_forward.8} parent=0
    _
  %s69 = ssub.s32 1, %s67
  %s70 = scalar_select 0, %s69, %s67
  // Predicated region
  $region2: #{gvp_encoder_forward.8} parent=0 // pred_check
    _
  $region3: #{gvp_encoder_forward.8} parent=0 // pred_check_branch
    %72 = sbr.rel (0) target = $region5
  $region4: #{gvp_encoder_forward.8} parent=0 // pred_region
    _
  $region5: #{gvp_encoder_forward.8} parent=0 // pred_fallthru
    _
  // Predicated region
  $region6: #{gvp_encoder_forward.8} parent=0 // pred_check
    _
  $region7: #{gvp_encoder_forward.8} parent=0 // pred_check_branch
    %74 = sbr.rel (0) target = $region9
  $region8: #{gvp_encoder_forward.8} parent=0 // pred_region
    _
  $region9: #{gvp_encoder_forward.8} parent=0 // pred_fallthru
    _
  // Predicated region
  $region10: #{gvp_encoder_forward.8} parent=0 // pred_check
    _
  $region11: #{gvp_encoder_forward.8} parent=0 // pred_check_branch
    %76 = sbr.rel (0) target = $region13
  $region12: #{gvp_encoder_forward.8} parent=0 // pred_region
    _
  $region13: #{gvp_encoder_forward.8} parent=0 // pred_fallthru
    _
  // Predicated region
  $region14: #{gvp_encoder_forward.8} parent=0 // pred_check
    _
  $region15: #{gvp_encoder_forward.8} parent=0 // pred_check_branch
    %78 = sbr.rel (0) target = $region17
  $region16: #{gvp_encoder_forward.8} parent=0 // pred_region
    _
  $region17: #{gvp_encoder_forward.8} parent=0 // pred_fallthru
    _
  // Predicated region
  $region18: #{gvp_encoder_forward.8} parent=0 // pred_check
    _
  $region19: #{gvp_encoder_forward.8} parent=0 // pred_check_branch
    %80 = sbr.rel (0) target = $region21
  $region20: #{gvp_encoder_forward.8} parent=0 // pred_region
    _
  $region21: #{gvp_encoder_forward.8} parent=0 // pred_fallthru
    _
  // Predicated region
  $region22: #{gvp_encoder_forward.8} parent=0 // pred_check
    _
  $region23: #{gvp_encoder_forward.8} parent=0 // pred_check_branch
    %82 = sbr.rel (0) target = $region25
  $region24: #{gvp_encoder_forward.8} parent=0 // pred_region
    _
  $region25: #{gvp_encoder_forward.8} parent=0 // pred_fallthru
    _
  // Predicated region
  $region26: #{gvp_encoder_forward.8} parent=0 // pred_check
    _
  $region27: #{gvp_encoder_forward.8} parent=0 // pred_check_branch
    %84 = sbr.rel (0) target = $region29
  $region28: #{gvp_encoder_forward.8} parent=0 // pred_region
    _
  $region29: #{gvp_encoder_forward.8} parent=0 // pred_fallthru
    _
  // Predicated region
  $region30: #{gvp_encoder_forward.8} parent=0 // pred_check
    _
  $region31: #{gvp_encoder_forward.8} parent=0 // pred_check_branch
    %86 = sbr.rel (0) target = $region33
  $region32: #{gvp_encoder_forward.8} parent=0 // pred_region
    _
  $region33: #{gvp_encoder_forward.8} parent=0 // pred_fallthru
    _
  // Predicated region
  $region34: #{gvp_encoder_forward.8} parent=0 // pred_check
    _
  $region35: #{gvp_encoder_forward.8} parent=0 // pred_check_branch
    %88 = sbr.rel (0) target = $region37
  $region36: #{gvp_encoder_forward.8} parent=0 // pred_region
    _
  $region37: #{gvp_encoder_forward.8} parent=0 // pred_fallthru
    _
  // Predicated region
  $region38: #{gvp_encoder_forward.8} parent=0 // pred_check
    _
  $region39: #{gvp_encoder_forward.8} parent=0 // pred_check_branch
    %90 = sbr.rel (0) target = $region41
  $region40: #{gvp_encoder_forward.8} parent=0 // pred_region
    _
  $region41: #{gvp_encoder_forward.8} parent=0 // pred_fallthru
    _
  // Predicated region
  $region42: #{gvp_encoder_forward.8} parent=0 // pred_check
    _
  $region43: #{gvp_encoder_forward.8} parent=0 // pred_check_branch
    %92 = sbr.rel (0) target = $region45
  $region44: #{gvp_encoder_forward.8} parent=0 // pred_region
    _
  $region45: #{gvp_encoder_forward.8} parent=0 // pred_fallthru
    _
  // Predicated region
  $region46: #{gvp_encoder_forward.8} parent=0 // pred_check
    _
  $region47: #{gvp_encoder_forward.8} parent=0 // pred_check_branch
    %94 = sbr.rel (0) target = $region49
  $region48: #{gvp_encoder_forward.8} parent=0 // pred_region
    _
  $region49: #{gvp_encoder_forward.8} parent=0 // pred_fallthru
    _
  // Predicated region
  $region50: #{gvp_encoder_forward.8} parent=0 // pred_check
    _
  $region51: #{gvp_encoder_forward.8} parent=0 // pred_check_branch
    %96 = sbr.rel (0) target = $region53
  $region52: #{gvp_encoder_forward.8} parent=0 // pred_region
    _
  $region53: #{gvp_encoder_forward.8} parent=0 // pred_fallthru
    _
  // Predicated region
  $region54: #{gvp_encoder_forward.8} parent=0 // pred_check
    _
  $region55: #{gvp_encoder_forward.8} parent=0 // pred_check_branch
    %98 = sbr.rel (0) target = $region57
  $region56: #{gvp_encoder_forward.8} parent=0 // pred_region
    _
  $region57: #{gvp_encoder_forward.8} parent=0 // pred_fallthru
    _
  // Predicated region
  $region58: #{gvp_encoder_forward.8} parent=0 // pred_check
    _
  $region59: #{gvp_encoder_forward.8} parent=0 // pred_check_branch
    %100 = sbr.rel (0) target = $region61
  $region60: #{gvp_encoder_forward.8} parent=0 // pred_region
    _
  $region61: #{gvp_encoder_forward.8} parent=0 // pred_fallthru
    _
  // Predicated region
  $region62: #{gvp_encoder_forward.8} parent=0 // pred_check
    _
  $region63: #{gvp_encoder_forward.8} parent=0 // pred_check_branch
    %102 = sbr.rel (0) target = $region65
  $region64: #{gvp_encoder_forward.8} parent=0 // pred_region
    _
  $region65: #{gvp_encoder_forward.8} parent=0 // pred_fallthru
    _
  // Predicated region
  $region66: #{gvp_encoder_forward.8} parent=0 // pred_check
    _
  $region67: #{gvp_encoder_forward.8} parent=0 // pred_check_branch
    %104 = sbr.rel (0) target = $region69
  $region68: #{gvp_encoder_forward.8} parent=0 // pred_region
    _
  $region69: #{gvp_encoder_forward.8} parent=0 // pred_fallthru
    _
  // Predicated region
  $region70: #{gvp_encoder_forward.8} parent=0 // pred_check
    _
  $region71: #{gvp_encoder_forward.8} parent=0 // pred_check_branch
    %106 = sbr.rel (0) target = $region73
  $region72: #{gvp_encoder_forward.8} parent=0 // pred_region
    _
  $region73: #{gvp_encoder_forward.8} parent=0 // pred_fallthru
    _
  // Predicated region
  $region74: #{gvp_encoder_forward.8} parent=0 // pred_check
    _
  $region75: #{gvp_encoder_forward.8} parent=0 // pred_check_branch
    %108 = sbr.rel (0) target = $region77
  $region76: #{gvp_encoder_forward.8} parent=0 // pred_region
    _
  $region77: #{gvp_encoder_forward.8} parent=0 // pred_fallthru
    _
  // Predicated region
  $region78: #{gvp_encoder_forward.8} parent=0 // pred_check
    _
  $region79: #{gvp_encoder_forward.8} parent=0 // pred_check_branch
    %110 = sbr.rel (0) target = $region81
  $region80: #{gvp_encoder_forward.8} parent=0 // pred_region
    _
  $region81: #{gvp_encoder_forward.8} parent=0 // pred_fallthru
    _
  // Predicated region
  $region82: #{gvp_encoder_forward.8} parent=0 // pred_check
    _
  $region83: #{gvp_encoder_forward.8} parent=0 // pred_check_branch
    %112 = sbr.rel (0) target = $region85
  $region84: #{gvp_encoder_forward.8} parent=0 // pred_region
    _
  $region85: #{gvp_encoder_forward.8} parent=0 // pred_fallthru
    _
  // Predicated region
  $region86: #{gvp_encoder_forward.8} parent=0 // pred_check
    _
  $region87: #{gvp_encoder_forward.8} parent=0 // pred_check_branch
    %114 = sbr.rel (0) target = $region89
  $region88: #{gvp_encoder_forward.8} parent=0 // pred_region
    _
  $region89: #{gvp_encoder_forward.8} parent=0 // pred_fallthru
    _
  // Predicated region
  $region90: #{gvp_encoder_forward.8} parent=0 // pred_check
    _
  $region91: #{gvp_encoder_forward.8} parent=0 // pred_check_branch
    %116 = sbr.rel (0) target = $region93
  $region92: #{gvp_encoder_forward.8} parent=0 // pred_region
    _
  $region93: #{gvp_encoder_forward.8} parent=0 // pred_fallthru
    _
  // Predicated region
  $region94: #{gvp_encoder_forward.8} parent=0 // pred_check
    _
  $region95: #{gvp_encoder_forward.8} parent=0 // pred_check_branch
    %118 = sbr.rel (0) target = $region97
  $region96: #{gvp_encoder_forward.8} parent=0 // pred_region
    _
  $region97: #{gvp_encoder_forward.8} parent=0 // pred_fallthru
    _
  // Predicated region
  $region98: #{gvp_encoder_forward.8} parent=0 // pred_check
    _
  $region99: #{gvp_encoder_forward.8} parent=0 // pred_check_branch
    %120 = sbr.rel (0) target = $region101
  $region100: #{gvp_encoder_forward.8} parent=0 // pred_region
    _
  $region101: #{gvp_encoder_forward.8} parent=0 // pred_fallthru
    _
  // Predicated region
  $region102: #{gvp_encoder_forward.8} parent=0 // pred_check
    _
  $region103: #{gvp_encoder_forward.8} parent=0 // pred_check_branch
    %122 = sbr.rel (0) target = $region105
  $region104: #{gvp_encoder_forward.8} parent=0 // pred_region
    _
  $region105: #{gvp_encoder_forward.8} parent=0 // pred_fallthru
    _
  // Predicated region
  $region106: #{gvp_encoder_forward.8} parent=0 // pred_check
    _
  $region107: #{gvp_encoder_forward.8} parent=0 // pred_check_branch
    %124 = sbr.rel (0) target = $region109
  $region108: #{gvp_encoder_forward.8} parent=0 // pred_region
    _
  $region109: #{gvp_encoder_forward.8} parent=0 // pred_fallthru
    _
  // Predicated region
  $region110: #{gvp_encoder_forward.8} parent=0 // pred_check
    _
  $region111: #{gvp_encoder_forward.8} parent=0 // pred_check_branch
    %126 = sbr.rel (0) target = $region113
  $region112: #{gvp_encoder_forward.8} parent=0 // pred_region
    _
  $region113: #{gvp_encoder_forward.8} parent=0 // pred_fallthru
    _
  // Predicated region
  $region114: #{gvp_encoder_forward.8} parent=0 // pred_check
    _
  $region115: #{gvp_encoder_forward.8} parent=0 // pred_check_branch
    %128 = sbr.rel (0) target = $region117
  $region116: #{gvp_encoder_forward.8} parent=0 // pred_region
    _
  $region117: #{gvp_encoder_forward.8} parent=0 // pred_fallthru
    _
  // Predicated region
  $region118: #{gvp_encoder_forward.8} parent=0 // pred_check
    _
  $region119: #{gvp_encoder_forward.8} parent=0 // pred_check_branch
    %130 = sbr.rel (0) target = $region121
  $region120: #{gvp_encoder_forward.8} parent=0 // pred_region
    _
  $region121: #{gvp_encoder_forward.8} parent=0 // pred_fallthru
    _
  // Predicated region
  $region122: #{gvp_encoder_forward.8} parent=0 // pred_check
    _
  $region123: #{gvp_encoder_forward.8} parent=0 // pred_check_branch
    %132 = sbr.rel (0) target = $region125
  $region124: #{gvp_encoder_forward.8} parent=0 // pred_region
    _
  $region125: #{gvp_encoder_forward.8} parent=0 // pred_fallthru
    _
  %v133 = vld [vmem:[%s1] sm:$0xff]
  %v134 = vld [vmem:[%s1 + $0x8] sm:$0xff]
  %v135 = vld [vmem:[%s3] sm:$0xff]
  %v136 = vld [vmem:[%s3 + $0x8] sm:$0xff]
  %v137 = vld [vmem:[%s3 + $0x10] sm:$0xff]
  %v138 = vld [vmem:[%s3 + $0x18] sm:$0xff]
  %v139 = vld [vmem:[%s3 + $0x20] sm:$0xff]
  %v140 = vld [vmem:[%s3 + $0x28] sm:$0xff]
  %v141 = vld [vmem:[%s5] sm:$0xff]
  %v142 = vld [vmem:[%s5 + $0x8] sm:$0xff]
  %v143 = vld [vmem:[%s5 + $0x10] sm:$0xff]
  %v144 = vld [vmem:[%s5 + $0x18] sm:$0xff]
  %v145 = vld [vmem:[%s5 + $0x20] sm:$0xff]
  %v146 = vld [vmem:[%s5 + $0x28] sm:$0xff]
  %v147 = vld [vmem:[%s5 + $0x30] sm:$0xff]
  %v148 = vld [vmem:[%s5 + $0x38] sm:$0xff]
  %v149 = vld [vmem:[%s7] sm:$0xff]
  %v150 = vld [vmem:[%s7 + $0x8] sm:$0xff]
  %v151 = vld [vmem:[%s7 + $0x10] sm:$0xff]
  %v152 = vld [vmem:[%s7 + $0x18] sm:$0xff]
  %v153 = vld [vmem:[%s7 + $0x20] sm:$0xff]
  %v154 = vld [vmem:[%s7 + $0x28] sm:$0xff]
  %v155 = vld [vmem:[%s7 + $0x30] sm:$0xff]
  %v156 = vld [vmem:[%s7 + $0x38] sm:$0xff]
  %v157 = vld [vmem:[%s7 + $0x40] sm:$0xff]
  %v158 = vld [vmem:[%s7 + $0x48] sm:$0xff]
  %v159 = vld [vmem:[%s7 + $0x50] sm:$0xff]
  %v160 = vld [vmem:[%s7 + $0x58] sm:$0xff]
  %v161 = vld [vmem:[%s7 + $0x60] sm:$0xff]
  %v162 = vld [vmem:[%s7 + $0x68] sm:$0xff]
  %v163 = vld [vmem:[%s7 + $0x70] sm:$0xff]
  %v164 = vld [vmem:[%s7 + $0x78] sm:$0xff]
  %v165 = vld [vmem:[%s7 + $0x80] sm:$0xff]
  %v166 = vld [vmem:[%s7 + $0x88] sm:$0xff]
  %v167 = vld [vmem:[%s7 + $0x90] sm:$0xff]
  %v168 = vld [vmem:[%s7 + $0x98] sm:$0xff]
  %v169 = vld [vmem:[%s7 + $0xa0] sm:$0xff]
  %v170 = vld [vmem:[%s7 + $0xa8] sm:$0xff]
  %v171 = vld [vmem:[%s7 + $0xb0] sm:$0xff]
  %v172 = vld [vmem:[%s7 + $0xb8] sm:$0xff]
  %v173 = vld [vmem:[%s9] sm:$0xff]
  %v174 = vld [vmem:[%s9 + $0x8] sm:$0xff]
  %v175 = vld [vmem:[%s9 + $0x10] sm:$0xff]
  %v176 = vld [vmem:[%s9 + $0x18] sm:$0xff]
  %v177 = vld [vmem:[%s9 + $0x20] sm:$0xff]
  %v178 = vld [vmem:[%s9 + $0x28] sm:$0xff]
  %v179 = vld [vmem:[%s9 + $0x30] sm:$0xff]
  %v180 = vld [vmem:[%s9 + $0x38] sm:$0xff]
  %v181 = vld [vmem:[%s11] sm:$0xff]
  %v182 = vld [vmem:[%s11 + $0x8] sm:$0xff]
  %v183 = vld [vmem:[%s11 + $0x10] sm:$0xff]
  %v184 = vld [vmem:[%s11 + $0x18] sm:$0xff]
  %v185 = vld [vmem:[%s11 + $0x20] sm:$0xff]
  %v186 = vld [vmem:[%s11 + $0x28] sm:$0xff]
  %v187 = vld [vmem:[%s11 + $0x30] sm:$0xff]
  %v188 = vld [vmem:[%s11 + $0x38] sm:$0xff]
  %v189 = vld [vmem:[%s11 + $0x40] sm:$0xff]
  %v190 = vld [vmem:[%s11 + $0x48] sm:$0xff]
  %v191 = vld [vmem:[%s11 + $0x50] sm:$0xff]
  %v192 = vld [vmem:[%s11 + $0x58] sm:$0xff]
  %v193 = vld [vmem:[%s11 + $0x60] sm:$0xff]
  %v194 = vld [vmem:[%s11 + $0x68] sm:$0xff]
  %v195 = vld [vmem:[%s11 + $0x70] sm:$0xff]
  %v196 = vld [vmem:[%s11 + $0x78] sm:$0xff]
  %v197 = vld [vmem:[%s11 + $0x80] sm:$0xff]
  %v198 = vld [vmem:[%s11 + $0x88] sm:$0xff]
  %v199 = vld [vmem:[%s11 + $0x90] sm:$0xff]
  %v200 = vld [vmem:[%s11 + $0x98] sm:$0xff]
  %v201 = vld [vmem:[%s11 + $0xa0] sm:$0xff]
  %v202 = vld [vmem:[%s11 + $0xa8] sm:$0xff]
  %v203 = vld [vmem:[%s11 + $0xb0] sm:$0xff]
  %v204 = vld [vmem:[%s11 + $0xb8] sm:$0xff]
  %v205 = vld [vmem:[%s13] sm:$0xff]
  %v206 = vld [vmem:[%s15] sm:$0xf]
  %vm207 = vcmask 31744
  %v209 = vsel %vm207, %v181, 0
  %v212 = vsel %vm207, %v182, 0
  %v215 = vsel %vm207, %v183, 0
  %v218 = vsel %vm207, %v184, 0
  %v221 = vsel %vm207, %v185, 0
  %v224 = vsel %vm207, %v186, 0
  %v227 = vsel %vm207, %v187, 0
  %v230 = vsel %vm207, %v188, 0
  %v233 = vsel %vm207, %v189, 0
  %v236 = vsel %vm207, %v190, 0
  %v239 = vsel %vm207, %v191, 0
  %v242 = vsel %vm207, %v192, 0
  %v245 = vsel %vm207, %v193, 0
  %v248 = vsel %vm207, %v194, 0
  %v251 = vsel %vm207, %v195, 0
  %v254 = vsel %vm207, %v196, 0
  %v257 = vsel %vm207, %v197, 0
  %v260 = vsel %vm207, %v198, 0
  %v263 = vsel %vm207, %v199, 0
  %v266 = vsel %vm207, %v200, 0
  %v269 = vsel %vm207, %v201, 0
  %v272 = vsel %vm207, %v202, 0
  %v275 = vsel %vm207, %v203, 0
  %v278 = vsel %vm207, %v204, 0
  %vm280 = vcmask 1043456
  %v282 = vsel %vm280, %v206, 0
  %284 = vmatpush.msra.mxu0 0.0
  %285 = vmatpush.msra.mxu0 0.0
  %286 = vmatpush.msra.mxu0 0.0
  %287 = vmatpush.msra.mxu0 0.0
  %288 = vmatpush.msra.mxu0 0.0
  %289 = vmatpush.msra.mxu0 0.0
  %290 = vmatpush.msra.mxu0 0.0
  %291 = vmatpush.msra.mxu0 0.0
  %292 = vmatpush.msra.mxu0 0.0
  %293 = vmatpush.msra.mxu0 0.0
  %294 = vmatpush.msra.mxu0 0.0
  %295 = vmatpush.msra.mxu0 0.0
  %296 = vmatpush.msra.mxu0 0.0
  %297 = vmatpush.msra.mxu0 0.0
  %298 = vmatpush.msra.mxu0 0.0
  %299 = vmatpush.msra.mxu0 %v282
  %300 = vmatmul.f32.gmra.mxu0 %v209
  %v301 = vpop.f32.mrf.mxu0
  %v302 = vadd.f32 0.0, %v301
  %303 = vmatmul.f32.gmra.mxu0 %v212
  %v304 = vpop.f32.mrf.mxu0
  %v305 = vadd.f32 0.0, %v304
  %306 = vmatmul.f32.gmra.mxu0 %v215
  %v307 = vpop.f32.mrf.mxu0
  %v308 = vadd.f32 0.0, %v307
  %309 = vmatmul.f32.gmra.mxu0 %v218
  %v310 = vpop.f32.mrf.mxu0
  %v311 = vadd.f32 0.0, %v310
  %312 = vmatmul.f32.gmra.mxu0 %v221
  %v313 = vpop.f32.mrf.mxu0
  %v314 = vadd.f32 0.0, %v313
  %315 = vmatmul.f32.gmra.mxu0 %v224
  %v316 = vpop.f32.mrf.mxu0
  %v317 = vadd.f32 0.0, %v316
  %318 = vmatmul.f32.gmra.mxu0 %v227
  %v319 = vpop.f32.mrf.mxu0
  %v320 = vadd.f32 0.0, %v319
  %321 = vmatmul.f32.gmra.mxu0 %v230
  %v322 = vpop.f32.mrf.mxu0
  %v323 = vadd.f32 0.0, %v322
  %324 = vmatmul.f32.gmra.mxu0 %v233
  %v325 = vpop.f32.mrf.mxu0
  %v326 = vadd.f32 0.0, %v325
  %327 = vmatmul.f32.gmra.mxu0 %v236
  %v328 = vpop.f32.mrf.mxu0
  %v329 = vadd.f32 0.0, %v328
  %330 = vmatmul.f32.gmra.mxu0 %v239
  %v331 = vpop.f32.mrf.mxu0
  %v332 = vadd.f32 0.0, %v331
  %333 = vmatmul.f32.gmra.mxu0 %v242
  %v334 = vpop.f32.mrf.mxu0
  %v335 = vadd.f32 0.0, %v334
  %336 = vmatmul.f32.gmra.mxu0 %v245
  %v337 = vpop.f32.mrf.mxu0
  %v338 = vadd.f32 0.0, %v337
  %339 = vmatmul.f32.gmra.mxu0 %v248
  %v340 = vpop.f32.mrf.mxu0
  %v341 = vadd.f32 0.0, %v340
  %342 = vmatmul.f32.gmra.mxu0 %v251
  %v343 = vpop.f32.mrf.mxu0
  %v344 = vadd.f32 0.0, %v343
  %345 = vmatmul.f32.gmra.mxu0 %v254
  %v346 = vpop.f32.mrf.mxu0
  %v347 = vadd.f32 0.0, %v346
  %348 = vmatmul.f32.gmra.mxu0 %v257
  %v349 = vpop.f32.mrf.mxu0
  %v350 = vadd.f32 0.0, %v349
  %351 = vmatmul.f32.gmra.mxu0 %v260
  %v352 = vpop.f32.mrf.mxu0
  %v353 = vadd.f32 0.0, %v352
  %354 = vmatmul.f32.gmra.mxu0 %v263
  %v355 = vpop.f32.mrf.mxu0
  %v356 = vadd.f32 0.0, %v355
  %357 = vmatmul.f32.gmra.mxu0 %v266
  %v358 = vpop.f32.mrf.mxu0
  %v359 = vadd.f32 0.0, %v358
  %360 = vmatmul.f32.gmra.mxu0 %v269
  %v361 = vpop.f32.mrf.mxu0
  %v362 = vadd.f32 0.0, %v361
  %363 = vmatmul.f32.gmra.mxu0 %v272
  %v364 = vpop.f32.mrf.mxu0
  %v365 = vadd.f32 0.0, %v364
  %366 = vmatmul.f32.gmra.mxu0 %v275
  %v367 = vpop.f32.mrf.mxu0
  %v368 = vadd.f32 0.0, %v367
  %369 = vmatmul.f32.gmra.mxu0 %v278
  %v370 = vpop.f32.mrf.mxu0
  %v371 = vadd.f32 0.0, %v370
  %372 = vdwg.mxu0
  %vm373 = vcmask 64512
  %v375 = vsel %vm373, %v149, 0
  %v378 = vsel %vm373, %v150, 0
  %v381 = vsel %vm373, %v151, 0
  %v384 = vsel %vm373, %v152, 0
  %v387 = vsel %vm373, %v153, 0
  %v390 = vsel %vm373, %v154, 0
  %v393 = vsel %vm373, %v155, 0
  %v396 = vsel %vm373, %v156, 0
  %v399 = vsel %vm373, %v157, 0
  %v402 = vsel %vm373, %v158, 0
  %v405 = vsel %vm373, %v159, 0
  %v408 = vsel %vm373, %v160, 0
  %v411 = vsel %vm373, %v161, 0
  %v414 = vsel %vm373, %v162, 0
  %v417 = vsel %vm373, %v163, 0
  %v420 = vsel %vm373, %v164, 0
  %v423 = vsel %vm373, %v165, 0
  %v426 = vsel %vm373, %v166, 0
  %v429 = vsel %vm373, %v167, 0
  %v432 = vsel %vm373, %v168, 0
  %v435 = vsel %vm373, %v169, 0
  %v438 = vsel %vm373, %v170, 0
  %v441 = vsel %vm373, %v171, 0
  %v444 = vsel %vm373, %v172, 0
  %446 = vmatpush.msra.mxu0 0.0
  %447 = vmatpush.msra.mxu0 0.0
  %448 = vmatpush.msra.mxu0 0.0
  %449 = vmatpush.msra.mxu0 0.0
  %450 = vmatpush.msra.mxu0 0.0
  %451 = vmatpush.msra.mxu0 0.0
  %452 = vmatpush.msra.mxu0 0.0
  %453 = vmatpush.msra.mxu0 0.0
  %454 = vmatpush.msra.mxu0 0.0
  %455 = vmatpush.msra.mxu0 0.0
  %456 = vmatpush.msra.mxu0 0.0
  %457 = vmatpush.msra.mxu0 0.0
  %458 = vmatpush.msra.mxu0 0.0
  %459 = vmatpush.msra.mxu0 0.0
  %460 = vmatpush.msra.mxu0 0.0
  %461 = vmatpush.msra.mxu0 %v205
  %462 = vmatmul.f32.gmra.mxu0 %v375
  %v463 = vpop.f32.mrf.mxu0
  %v464 = vadd.f32 %v302, %v463
  %465 = vmatmul.f32.gmra.mxu0 %v378
  %v466 = vpop.f32.mrf.mxu0
  %v467 = vadd.f32 %v305, %v466
  %468 = vmatmul.f32.gmra.mxu0 %v381
  %v469 = vpop.f32.mrf.mxu0
  %v470 = vadd.f32 %v308, %v469
  %471 = vmatmul.f32.gmra.mxu0 %v384
  %v472 = vpop.f32.mrf.mxu0
  %v473 = vadd.f32 %v311, %v472
  %474 = vmatmul.f32.gmra.mxu0 %v387
  %v475 = vpop.f32.mrf.mxu0
  %v476 = vadd.f32 %v314, %v475
  %477 = vmatmul.f32.gmra.mxu0 %v390
  %v478 = vpop.f32.mrf.mxu0
  %v479 = vadd.f32 %v317, %v478
  %480 = vmatmul.f32.gmra.mxu0 %v393
  %v481 = vpop.f32.mrf.mxu0
  %v482 = vadd.f32 %v320, %v481
  %483 = vmatmul.f32.gmra.mxu0 %v396
  %v484 = vpop.f32.mrf.mxu0
  %v485 = vadd.f32 %v323, %v484
  %486 = vmatmul.f32.gmra.mxu0 %v399
  %v487 = vpop.f32.mrf.mxu0
  %v488 = vadd.f32 %v326, %v487
  %489 = vmatmul.f32.gmra.mxu0 %v402
  %v490 = vpop.f32.mrf.mxu0
  %v491 = vadd.f32 %v329, %v490
  %492 = vmatmul.f32.gmra.mxu0 %v405
  %v493 = vpop.f32.mrf.mxu0
  %v494 = vadd.f32 %v332, %v493
  %495 = vmatmul.f32.gmra.mxu0 %v408
  %v496 = vpop.f32.mrf.mxu0
  %v497 = vadd.f32 %v335, %v496
  %498 = vmatmul.f32.gmra.mxu0 %v411
  %v499 = vpop.f32.mrf.mxu0
  %v500 = vadd.f32 %v338, %v499
  %501 = vmatmul.f32.gmra.mxu0 %v414
  %v502 = vpop.f32.mrf.mxu0
  %v503 = vadd.f32 %v341, %v502
  %504 = vmatmul.f32.gmra.mxu0 %v417
  %v505 = vpop.f32.mrf.mxu0
  %v506 = vadd.f32 %v344, %v505
  %507 = vmatmul.f32.gmra.mxu0 %v420
  %v508 = vpop.f32.mrf.mxu0
  %v509 = vadd.f32 %v347, %v508
  %510 = vmatmul.f32.gmra.mxu0 %v423
  %v511 = vpop.f32.mrf.mxu0
  %v512 = vadd.f32 %v350, %v511
  %513 = vmatmul.f32.gmra.mxu0 %v426
  %v514 = vpop.f32.mrf.mxu0
  %v515 = vadd.f32 %v353, %v514
  %516 = vmatmul.f32.gmra.mxu0 %v429
  %v517 = vpop.f32.mrf.mxu0
  %v518 = vadd.f32 %v356, %v517
  %519 = vmatmul.f32.gmra.mxu0 %v432
  %v520 = vpop.f32.mrf.mxu0
  %v521 = vadd.f32 %v359, %v520
  %522 = vmatmul.f32.gmra.mxu0 %v435
  %v523 = vpop.f32.mrf.mxu0
  %v524 = vadd.f32 %v362, %v523
  %525 = vmatmul.f32.gmra.mxu0 %v438
  %v526 = vpop.f32.mrf.mxu0
  %v527 = vadd.f32 %v365, %v526
  %528 = vmatmul.f32.gmra.mxu0 %v441
  %v529 = vpop.f32.mrf.mxu0
  %v530 = vadd.f32 %v368, %v529
  %531 = vmatmul.f32.gmra.mxu0 %v444
  %v532 = vpop.f32.mrf.mxu0
  %v533 = vadd.f32 %v371, %v532
  %534 = vdwg.mxu0
  %v535 = vld [vmem:[%s17] sm:$0xff]
  %v537 = vsel %vm373, %v135, 0
  %v540 = vsel %vm373, %v136, 0
  %v543 = vsel %vm373, %v137, 0
  %v546 = vsel %vm373, %v138, 0
  %v549 = vsel %vm373, %v139, 0
  %v552 = vsel %vm373, %v140, 0
  %554 = vmatpush.msra.mxu0 0.0
  %555 = vmatpush.msra.mxu0 0.0
  %556 = vmatpush.msra.mxu0 0.0
  %557 = vmatpush.msra.mxu0 0.0
  %558 = vmatpush.msra.mxu0 0.0
  %559 = vmatpush.msra.mxu0 0.0
  %560 = vmatpush.msra.mxu0 0.0
  %561 = vmatpush.msra.mxu0 0.0
  %562 = vmatpush.msra.mxu0 0.0
  %563 = vmatpush.msra.mxu0 0.0
  %564 = vmatpush.msra.mxu0 0.0
  %565 = vmatpush.msra.mxu0 0.0
  %566 = vmatpush.msra.mxu0 0.0
  %567 = vmatpush.msra.mxu0 0.0
  %568 = vmatpush.msra.mxu0 0.0
  %569 = vmatpush.msra.mxu0 %v535
  %570 = vmatmul.f32.gmra.mxu0 %v537
  %v571 = vpop.f32.mrf.mxu0
  %v572 = vadd.f32 0.0, %v571
  %573 = vmatmul.f32.gmra.mxu0 %v540
  %v574 = vpop.f32.mrf.mxu0
  %v575 = vadd.f32 0.0, %v574
  %576 = vmatmul.f32.gmra.mxu0 %v543
  %v577 = vpop.f32.mrf.mxu0
  %v578 = vadd.f32 0.0, %v577
  %579 = vmatmul.f32.gmra.mxu0 %v546
  %v580 = vpop.f32.mrf.mxu0
  %v581 = vadd.f32 0.0, %v580
  %582 = vmatmul.f32.gmra.mxu0 %v549
  %v583 = vpop.f32.mrf.mxu0
  %v584 = vadd.f32 0.0, %v583
  %585 = vmatmul.f32.gmra.mxu0 %v552
  %v586 = vpop.f32.mrf.mxu0
  %v587 = vadd.f32 0.0, %v586
  %588 = vdwg.mxu0
  %v589 = vadd.f32 %v464, %v572
  %v590 = vadd.f32 %v467, %v575
  %v591 = vadd.f32 %v470, %v572
  %v592 = vadd.f32 %v473, %v575
  %v593 = vadd.f32 %v476, %v572
  %v594 = vadd.f32 %v479, %v575
  %v595 = vadd.f32 %v482, %v572
  %v596 = vadd.f32 %v485, %v575
  %v597 = vadd.f32 %v488, %v578
  %v598 = vadd.f32 %v491, %v581
  %v599 = vadd.f32 %v494, %v578
  %v600 = vadd.f32 %v497, %v581
  %v601 = vadd.f32 %v500, %v578
  %v602 = vadd.f32 %v503, %v581
  %v603 = vadd.f32 %v506, %v578
  %v604 = vadd.f32 %v509, %v581
  %v605 = vadd.f32 %v512, %v584
  %v606 = vadd.f32 %v515, %v587
  %v607 = vadd.f32 %v518, %v584
  %v608 = vadd.f32 %v521, %v587
  %v609 = vadd.f32 %v524, %v584
  %v610 = vadd.f32 %v527, %v587
  %v611 = vadd.f32 %v530, %v584
  %v612 = vadd.f32 %v533, %v587
  %v613 = vmul.f32 %v589, %v589
  %v614 = vmul.f32 %v590, %v590
  %v615 = vmul.f32 %v591, %v591
  %v616 = vmul.f32 %v592, %v592
  %v617 = vmul.f32 %v593, %v593
  %v618 = vmul.f32 %v594, %v594
  %v619 = vmul.f32 %v595, %v595
  %v620 = vmul.f32 %v596, %v596
  %v621 = vmul.f32 %v597, %v597
  %v622 = vmul.f32 %v598, %v598
  %v623 = vmul.f32 %v599, %v599
  %v624 = vmul.f32 %v600, %v600
  %v625 = vmul.f32 %v601, %v601
  %v626 = vmul.f32 %v602, %v602
  %v627 = vmul.f32 %v603, %v603
  %v628 = vmul.f32 %v604, %v604
  %v629 = vadd.f32 %v613, %v621
  %v630 = vadd.f32 %v614, %v622
  %v631 = vadd.f32 %v615, %v623
  %v632 = vadd.f32 %v616, %v624
  %v633 = vadd.f32 %v617, %v625
  %v634 = vadd.f32 %v618, %v626
  %v635 = vadd.f32 %v619, %v627
  %v636 = vadd.f32 %v620, %v628
  %v637 = vmul.f32 %v605, %v605
  %v638 = vmul.f32 %v606, %v606
  %v639 = vmul.f32 %v607, %v607
  %v640 = vmul.f32 %v608, %v608
  %v641 = vmul.f32 %v609, %v609
  %v642 = vmul.f32 %v610, %v610
  %v643 = vmul.f32 %v611, %v611
  %v644 = vmul.f32 %v612, %v612
  %v645 = vadd.f32 %v629, %v637
  %v646 = vadd.f32 %v630, %v638
  %v647 = vadd.f32 %v631, %v639
  %v648 = vadd.f32 %v632, %v640
  %v649 = vadd.f32 %v633, %v641
  %v650 = vadd.f32 %v634, %v642
  %v651 = vadd.f32 %v635, %v643
  %v652 = vadd.f32 %v636, %v644
  %v653 = vmax.f32 %v645, 1e-08
  %v654 = vmax.f32 %v646, 1e-08
  %v655 = vmax.f32 %v647, 1e-08
  %v656 = vmax.f32 %v648, 1e-08
  %v657 = vmax.f32 %v649, 1e-08
  %v658 = vmax.f32 %v650, 1e-08
  %v659 = vmax.f32 %v651, 1e-08
  %v660 = vmax.f32 %v652, 1e-08
  %v661 = vrsqrt.pop %v653
  %v662 = vmul.f32 %v661, %v653
  %v663 = vmul.f32 %v662, %v661
  %v664 = vmul.f32 0.5, %v663
  %v665 = vsub.f32 1.5, %v664
  %v666 = vmul.f32 %v661, %v665
  %v667 = vmul.f32 %v653, %v666
  %vm668 = vcmp.eq.f32.partialorder %v653, inf
  %v669 = vsel %vm668, %v653, %v667
  %vm670 = vcmp.eq.f32.partialorder %v653, 0.0
  %v671 = vand.u32 %v653, 2147483648
  %v672 = vsel %vm670, %v671, %v669
  %v673 = vrsqrt.pop %v654
  %v674 = vmul.f32 %v673, %v654
  %v675 = vmul.f32 %v674, %v673
  %v676 = vmul.f32 0.5, %v675
  %v677 = vsub.f32 1.5, %v676
  %v678 = vmul.f32 %v673, %v677
  %v679 = vmul.f32 %v654, %v678
  %vm680 = vcmp.eq.f32.partialorder %v654, inf
  %v681 = vsel %vm680, %v654, %v679
  %vm682 = vcmp.eq.f32.partialorder %v654, 0.0
  %v683 = vand.u32 %v654, 2147483648
  %v684 = vsel %vm682, %v683, %v681
  %v685 = vrsqrt.pop %v655
  %v686 = vmul.f32 %v685, %v655
  %v687 = vmul.f32 %v686, %v685
  %v688 = vmul.f32 0.5, %v687
  %v689 = vsub.f32 1.5, %v688
  %v690 = vmul.f32 %v685, %v689
  %v691 = vmul.f32 %v655, %v690
  %vm692 = vcmp.eq.f32.partialorder %v655, inf
  %v693 = vsel %vm692, %v655, %v691
  %vm694 = vcmp.eq.f32.partialorder %v655, 0.0
  %v695 = vand.u32 %v655, 2147483648
  %v696 = vsel %vm694, %v695, %v693
  %v697 = vrsqrt.pop %v656
  %v698 = vmul.f32 %v697, %v656
  %v699 = vmul.f32 %v698, %v697
  %v700 = vmul.f32 0.5, %v699
  %v701 = vsub.f32 1.5, %v700
  %v702 = vmul.f32 %v697, %v701
  %v703 = vmul.f32 %v656, %v702
  %vm704 = vcmp.eq.f32.partialorder %v656, inf
  %v705 = vsel %vm704, %v656, %v703
  %vm706 = vcmp.eq.f32.partialorder %v656, 0.0
  %v707 = vand.u32 %v656, 2147483648
  %v708 = vsel %vm706, %v707, %v705
  %v709 = vrsqrt.pop %v657
  %v710 = vmul.f32 %v709, %v657
  %v711 = vmul.f32 %v710, %v709
  %v712 = vmul.f32 0.5, %v711
  %v713 = vsub.f32 1.5, %v712
  %v714 = vmul.f32 %v709, %v713
  %v715 = vmul.f32 %v657, %v714
  %vm716 = vcmp.eq.f32.partialorder %v657, inf
  %v717 = vsel %vm716, %v657, %v715
  %vm718 = vcmp.eq.f32.partialorder %v657, 0.0
  %v719 = vand.u32 %v657, 2147483648
  %v720 = vsel %vm718, %v719, %v717
  %v721 = vrsqrt.pop %v658
  %v722 = vmul.f32 %v721, %v658
  %v723 = vmul.f32 %v722, %v721
  %v724 = vmul.f32 0.5, %v723
  %v725 = vsub.f32 1.5, %v724
  %v726 = vmul.f32 %v721, %v725
  %v727 = vmul.f32 %v658, %v726
  %vm728 = vcmp.eq.f32.partialorder %v658, inf
  %v729 = vsel %vm728, %v658, %v727
  %vm730 = vcmp.eq.f32.partialorder %v658, 0.0
  %v731 = vand.u32 %v658, 2147483648
  %v732 = vsel %vm730, %v731, %v729
  %v733 = vrsqrt.pop %v659
  %v734 = vmul.f32 %v733, %v659
  %v735 = vmul.f32 %v734, %v733
  %v736 = vmul.f32 0.5, %v735
  %v737 = vsub.f32 1.5, %v736
  %v738 = vmul.f32 %v733, %v737
  %v739 = vmul.f32 %v659, %v738
  %vm740 = vcmp.eq.f32.partialorder %v659, inf
  %v741 = vsel %vm740, %v659, %v739
  %vm742 = vcmp.eq.f32.partialorder %v659, 0.0
  %v743 = vand.u32 %v659, 2147483648
  %v744 = vsel %vm742, %v743, %v741
  %v745 = vrsqrt.pop %v660
  %v746 = vmul.f32 %v745, %v660
  %v747 = vmul.f32 %v746, %v745
  %v748 = vmul.f32 0.5, %v747
  %v749 = vsub.f32 1.5, %v748
  %v750 = vmul.f32 %v745, %v749
  %v751 = vmul.f32 %v660, %v750
  %vm752 = vcmp.eq.f32.partialorder %v660, inf
  %v753 = vsel %vm752, %v660, %v751
  %vm754 = vcmp.eq.f32.partialorder %v660, 0.0
  %v755 = vand.u32 %v660, 2147483648
  %v756 = vsel %vm754, %v755, %v753
  %v757 = vld [vmem:[%s19] sm:$0xff]
  %v758 = vld [vmem:[%s19 + $0x8] sm:$0xff]
  %v759 = vld [vmem:[%s19 + $0x10] sm:$0xff]
  %v760 = vld [vmem:[%s19 + $0x18] sm:$0xff]
  %vm761 = vcmask 261120
  %v763 = vsel %vm761, %v141, 0
  %v766 = vsel %vm761, %v142, 0
  %v769 = vsel %vm761, %v143, 0
  %v772 = vsel %vm761, %v144, 0
  %v775 = vsel %vm761, %v145, 0
  %v778 = vsel %vm761, %v146, 0
  %v781 = vsel %vm761, %v147, 0
  %v784 = vsel %vm761, %v148, 0
  %786 = vmatpush.msra.mxu0 0.0
  %787 = vmatpush.msra.mxu0 0.0
  %788 = vmatpush.msra.mxu0 0.0
  %789 = vmatpush.msra.mxu0 0.0
  %790 = vmatpush.msra.mxu0 0.0
  %791 = vmatpush.msra.mxu0 0.0
  %792 = vmatpush.msra.mxu0 0.0
  %793 = vmatpush.msra.mxu0 0.0
  %794 = vmatpush.msra.mxu0 0.0
  %795 = vmatpush.msra.mxu0 0.0
  %796 = vmatpush.msra.mxu0 0.0
  %797 = vmatpush.msra.mxu0 0.0
  %798 = vmatpush.msra.mxu0 %v760
  %799 = vmatpush.msra.mxu0 %v759
  %800 = vmatpush.msra.mxu0 %v758
  %801 = vmatpush.msra.mxu0 %v757
  %802 = vmatmul.f32.gmra.mxu0 %v763
  %v803 = vpop.f32.mrf.mxu0
  %v804 = vadd.f32 0.0, %v803
  %805 = vmatmul.f32.gmra.mxu0 %v766
  %v806 = vpop.f32.mrf.mxu0
  %v807 = vadd.f32 0.0, %v806
  %808 = vmatmul.f32.gmra.mxu0 %v769
  %v809 = vpop.f32.mrf.mxu0
  %v810 = vadd.f32 0.0, %v809
  %811 = vmatmul.f32.gmra.mxu0 %v772
  %v812 = vpop.f32.mrf.mxu0
  %v813 = vadd.f32 0.0, %v812
  %814 = vmatmul.f32.gmra.mxu0 %v775
  %v815 = vpop.f32.mrf.mxu0
  %v816 = vadd.f32 0.0, %v815
  %817 = vmatmul.f32.gmra.mxu0 %v778
  %v818 = vpop.f32.mrf.mxu0
  %v819 = vadd.f32 0.0, %v818
  %820 = vmatmul.f32.gmra.mxu0 %v781
  %v821 = vpop.f32.mrf.mxu0
  %v822 = vadd.f32 0.0, %v821
  %823 = vmatmul.f32.gmra.mxu0 %v784
  %v824 = vpop.f32.mrf.mxu0
  %v825 = vadd.f32 0.0, %v824
  %826 = vdwg.mxu0
  %v827 = vld [vmem:[%s21] sm:$0xff]
  %v828 = vld [vmem:[%s21 + $0x8] sm:$0xff]
  %vm829 = vcmask 130048
  %v831 = vsel %vm829, %v173, 0
  %v834 = vsel %vm829, %v174, 0
  %v837 = vsel %vm829, %v175, 0
  %v840 = vsel %vm829, %v176, 0
  %v843 = vsel %vm829, %v177, 0
  %v846 = vsel %vm829, %v178, 0
  %v849 = vsel %vm829, %v179, 0
  %v852 = vsel %vm829, %v180, 0
  %854 = vmatpush.msra.mxu0 0.0
  %855 = vmatpush.msra.mxu0 0.0
  %856 = vmatpush.msra.mxu0 0.0
  %857 = vmatpush.msra.mxu0 0.0
  %858 = vmatpush.msra.mxu0 0.0
  %859 = vmatpush.msra.mxu0 0.0
  %860 = vmatpush.msra.mxu0 0.0
  %861 = vmatpush.msra.mxu0 0.0
  %862 = vmatpush.msra.mxu0 0.0
  %863 = vmatpush.msra.mxu0 0.0
  %864 = vmatpush.msra.mxu0 0.0
  %865 = vmatpush.msra.mxu0 0.0
  %866 = vmatpush.msra.mxu0 0.0
  %867 = vmatpush.msra.mxu0 0.0
  %868 = vmatpush.msra.mxu0 %v828
  %869 = vmatpush.msra.mxu0 %v827
  %870 = vmatmul.f32.gmra.mxu0 %v831
  %v871 = vpop.f32.mrf.mxu0
  %v872 = vadd.f32 0.0, %v871
  %873 = vmatmul.f32.gmra.mxu0 %v834
  %v874 = vpop.f32.mrf.mxu0
  %v875 = vadd.f32 0.0, %v874
  %876 = vmatmul.f32.gmra.mxu0 %v837
  %v877 = vpop.f32.mrf.mxu0
  %v878 = vadd.f32 0.0, %v877
  %879 = vmatmul.f32.gmra.mxu0 %v840
  %v880 = vpop.f32.mrf.mxu0
  %v881 = vadd.f32 0.0, %v880
  %882 = vmatmul.f32.gmra.mxu0 %v843
  %v883 = vpop.f32.mrf.mxu0
  %v884 = vadd.f32 0.0, %v883
  %885 = vmatmul.f32.gmra.mxu0 %v846
  %v886 = vpop.f32.mrf.mxu0
  %v887 = vadd.f32 0.0, %v886
  %888 = vmatmul.f32.gmra.mxu0 %v849
  %v889 = vpop.f32.mrf.mxu0
  %v890 = vadd.f32 0.0, %v889
  %891 = vmatmul.f32.gmra.mxu0 %v852
  %v892 = vpop.f32.mrf.mxu0
  %v893 = vadd.f32 0.0, %v892
  %894 = vdwg.mxu0
  %v895 = vadd.f32 %v804, %v872
  %v896 = vadd.f32 %v807, %v875
  %v897 = vadd.f32 %v810, %v878
  %v898 = vadd.f32 %v813, %v881
  %v899 = vadd.f32 %v816, %v884
  %v900 = vadd.f32 %v819, %v887
  %v901 = vadd.f32 %v822, %v890
  %v902 = vadd.f32 %v825, %v893
  %v903 = vld [vmem:[%s25] sm:$0xff]
  %v904 = vld [vmem:[%s25 + $0x8] sm:$0xff]
  %v905 = vld [vmem:[%s25 + $0x10] sm:$0xf]
  %vm906 = vcmask 162816
  %v908 = vsel %vm906, %v672, 0
  %v911 = vsel %vm906, %v684, 0
  %v914 = vsel %vm906, %v696, 0
  %v917 = vsel %vm906, %v708, 0
  %v920 = vsel %vm906, %v720, 0
  %v923 = vsel %vm906, %v732, 0
  %v926 = vsel %vm906, %v744, 0
  %v929 = vsel %vm906, %v756, 0
  %v932 = vsel %vm280, %v905, 0
  %934 = vmatpush.msra.mxu0 0.0
  %935 = vmatpush.msra.mxu0 0.0
  %936 = vmatpush.msra.mxu0 0.0
  %937 = vmatpush.msra.mxu0 0.0
  %938 = vmatpush.msra.mxu0 0.0
  %939 = vmatpush.msra.mxu0 0.0
  %940 = vmatpush.msra.mxu0 0.0
  %941 = vmatpush.msra.mxu0 0.0
  %942 = vmatpush.msra.mxu0 0.0
  %943 = vmatpush.msra.mxu0 0.0
  %944 = vmatpush.msra.mxu0 0.0
  %945 = vmatpush.msra.mxu0 0.0
  %946 = vmatpush.msra.mxu0 0.0
  %947 = vmatpush.msra.mxu0 %v932
  %948 = vmatpush.msra.mxu0 %v904
  %949 = vmatpush.msra.mxu0 %v903
  %950 = vmatmul.f32.gmra.mxu0 %v908
  %v951 = vpop.f32.mrf.mxu0
  %v952 = vadd.f32 0.0, %v951
  %953 = vmatmul.f32.gmra.mxu0 %v911
  %v954 = vpop.f32.mrf.mxu0
  %v955 = vadd.f32 0.0, %v954
  %956 = vmatmul.f32.gmra.mxu0 %v914
  %v957 = vpop.f32.mrf.mxu0
  %v958 = vadd.f32 0.0, %v957
  %959 = vmatmul.f32.gmra.mxu0 %v917
  %v960 = vpop.f32.mrf.mxu0
  %v961 = vadd.f32 0.0, %v960
  %962 = vmatmul.f32.gmra.mxu0 %v920
  %v963 = vpop.f32.mrf.mxu0
  %v964 = vadd.f32 0.0, %v963
  %965 = vmatmul.f32.gmra.mxu0 %v923
  %v966 = vpop.f32.mrf.mxu0
  %v967 = vadd.f32 0.0, %v966
  %968 = vmatmul.f32.gmra.mxu0 %v926
  %v969 = vpop.f32.mrf.mxu0
  %v970 = vadd.f32 0.0, %v969
  %971 = vmatmul.f32.gmra.mxu0 %v929
  %v972 = vpop.f32.mrf.mxu0
  %v973 = vadd.f32 0.0, %v972
  %974 = vdwg.mxu0
  %v975 = vadd.f32 %v895, %v952
  %v976 = vadd.f32 %v896, %v955
  %v977 = vadd.f32 %v897, %v958
  %v978 = vadd.f32 %v898, %v961
  %v979 = vadd.f32 %v899, %v964
  %v980 = vadd.f32 %v900, %v967
  %v981 = vadd.f32 %v901, %v970
  %v982 = vadd.f32 %v902, %v973
  %v983 = vld [vmem:[%s23] sm:$0xff]
  %v984 = vld [vmem:[%s23 + $0x8] sm:$0xff]
  %v985 = vld [vmem:[%s23 + $0x10] sm:$0xff]
  %v986 = vld [vmem:[%s23 + $0x18] sm:$0xff]
  %v988 = vsel %vm761, %v133, 0
  %v991 = vsel %vm761, %v134, 0
  %993 = vmatpush.msra.mxu0 0.0
  %994 = vmatpush.msra.mxu0 0.0
  %995 = vmatpush.msra.mxu0 0.0
  %996 = vmatpush.msra.mxu0 0.0
  %997 = vmatpush.msra.mxu0 0.0
  %998 = vmatpush.msra.mxu0 0.0
  %999 = vmatpush.msra.mxu0 0.0
  %1000 = vmatpush.msra.mxu0 0.0
  %1001 = vmatpush.msra.mxu0 0.0
  %1002 = vmatpush.msra.mxu0 0.0
  %1003 = vmatpush.msra.mxu0 0.0
  %1004 = vmatpush.msra.mxu0 0.0
  %1005 = vmatpush.msra.mxu0 %v986
  %1006 = vmatpush.msra.mxu0 %v985
  %1007 = vmatpush.msra.mxu0 %v984
  %1008 = vmatpush.msra.mxu0 %v983
  %1009 = vmatmul.f32.gmra.mxu0 %v988
  %v1010 = vpop.f32.mrf.mxu0
  %v1011 = vadd.f32 0.0, %v1010
  %1012 = vmatmul.f32.gmra.mxu0 %v991
  %v1013 = vpop.f32.mrf.mxu0
  %v1014 = vadd.f32 0.0, %v1013
  %1015 = vdwg.mxu0
  %v1016 = vadd.f32 %v975, %v1011
  %v1017 = vadd.f32 %v976, %v1014
  %v1018 = vadd.f32 %v977, %v1011
  %v1019 = vadd.f32 %v978, %v1014
  %v1020 = vadd.f32 %v979, %v1011
  %v1021 = vadd.f32 %v980, %v1014
  %v1022 = vadd.f32 %v981, %v1011
  %v1023 = vadd.f32 %v982, %v1014
  %v1024 = vld [vmem:[%s27] sm:$0x1]
  %v1026 = vperm.slane %v1024, 0
  %v1028 = vadd.f32 %v1016, %v1026
  %v1029 = vadd.f32 %v1017, %v1026
  %v1030 = vadd.f32 %v1018, %v1026
  %v1031 = vadd.f32 %v1019, %v1026
  %v1032 = vadd.f32 %v1020, %v1026
  %v1033 = vadd.f32 %v1021, %v1026
  %v1034 = vadd.f32 %v1022, %v1026
  %v1035 = vadd.f32 %v1023, %v1026
  %v1036 = vld [vmem:[%s29] sm:$0xff]
  %v1037 = vld [vmem:[%s29 + $0x8] sm:$0xff]
  %v1038 = vld [vmem:[%s29 + $0x10] sm:$0xf]
  %v1040 = vsel %vm906, %v589, 0
  %v1043 = vsel %vm906, %v590, 0
  %v1046 = vsel %vm906, %v591, 0
  %v1049 = vsel %vm906, %v592, 0
  %v1052 = vsel %vm906, %v593, 0
  %v1055 = vsel %vm906, %v594, 0
  %v1058 = vsel %vm906, %v595, 0
  %v1061 = vsel %vm906, %v596, 0
  %v1064 = vsel %vm906, %v597, 0
  %v1067 = vsel %vm906, %v598, 0
  %v1070 = vsel %vm906, %v599, 0
  %v1073 = vsel %vm906, %v600, 0
  %v1076 = vsel %vm906, %v601, 0
  %v1079 = vsel %vm906, %v602, 0
  %v1082 = vsel %vm906, %v603, 0
  %v1085 = vsel %vm906, %v604, 0
  %v1088 = vsel %vm906, %v605, 0
  %v1091 = vsel %vm906, %v606, 0
  %v1094 = vsel %vm906, %v607, 0
  %v1097 = vsel %vm906, %v608, 0
  %v1100 = vsel %vm906, %v609, 0
  %v1103 = vsel %vm906, %v610, 0
  %v1106 = vsel %vm906, %v611, 0
  %v1109 = vsel %vm906, %v612, 0
  %v1112 = vsel %vm280, %v1038, 0
  %1114 = vmatpush.msra.mxu0 0.0
  %1115 = vmatpush.msra.mxu0 0.0
  %1116 = vmatpush.msra.mxu0 0.0
  %1117 = vmatpush.msra.mxu0 0.0
  %1118 = vmatpush.msra.mxu0 0.0
  %1119 = vmatpush.msra.mxu0 0.0
  %1120 = vmatpush.msra.mxu0 0.0
  %1121 = vmatpush.msra.mxu0 0.0
  %1122 = vmatpush.msra.mxu0 0.0
  %1123 = vmatpush.msra.mxu0 0.0
  %1124 = vmatpush.msra.mxu0 0.0
  %1125 = vmatpush.msra.mxu0 0.0
  %1126 = vmatpush.msra.mxu0 0.0
  %1127 = vmatpush.msra.mxu0 %v1112
  %1128 = vmatpush.msra.mxu0 %v1037
  %1129 = vmatpush.msra.mxu0 %v1036
  %1130 = vmatmul.f32.gmra.mxu0 %v1040
  %v1131 = vpop.f32.mrf.mxu0
  %v1132 = vadd.f32 0.0, %v1131
  %1133 = vmatmul.f32.gmra.mxu0 %v1043
  %v1134 = vpop.f32.mrf.mxu0
  %v1135 = vadd.f32 0.0, %v1134
  %1136 = vmatmul.f32.gmra.mxu0 %v1046
  %v1137 = vpop.f32.mrf.mxu0
  %v1138 = vadd.f32 0.0, %v1137
  %1139 = vmatmul.f32.gmra.mxu0 %v1049
  %v1140 = vpop.f32.mrf.mxu0
  %v1141 = vadd.f32 0.0, %v1140
  %1142 = vmatmul.f32.gmra.mxu0 %v1052
  %v1143 = vpop.f32.mrf.mxu0
  %v1144 = vadd.f32 0.0, %v1143
  %1145 = vmatmul.f32.gmra.mxu0 %v1055
  %v1146 = vpop.f32.mrf.mxu0
  %v1147 = vadd.f32 0.0, %v1146
  %1148 = vmatmul.f32.gmra.mxu0 %v1058
  %v1149 = vpop.f32.mrf.mxu0
  %v1150 = vadd.f32 0.0, %v1149
  %1151 = vmatmul.f32.gmra.mxu0 %v1061
  %v1152 = vpop.f32.mrf.mxu0
  %v1153 = vadd.f32 0.0, %v1152
  %1154 = vmatmul.f32.gmra.mxu0 %v1064
  %v1155 = vpop.f32.mrf.mxu0
  %v1156 = vadd.f32 0.0, %v1155
  %1157 = vmatmul.f32.gmra.mxu0 %v1067
  %v1158 = vpop.f32.mrf.mxu0
  %v1159 = vadd.f32 0.0, %v1158
  %1160 = vmatmul.f32.gmra.mxu0 %v1070
  %v1161 = vpop.f32.mrf.mxu0
  %v1162 = vadd.f32 0.0, %v1161
  %1163 = vmatmul.f32.gmra.mxu0 %v1073
  %v1164 = vpop.f32.mrf.mxu0
  %v1165 = vadd.f32 0.0, %v1164
  %1166 = vmatmul.f32.gmra.mxu0 %v1076
  %v1167 = vpop.f32.mrf.mxu0
  %v1168 = vadd.f32 0.0, %v1167
  %1169 = vmatmul.f32.gmra.mxu0 %v1079
  %v1170 = vpop.f32.mrf.mxu0
  %v1171 = vadd.f32 0.0, %v1170
  %1172 = vmatmul.f32.gmra.mxu0 %v1082
  %v1173 = vpop.f32.mrf.mxu0
  %v1174 = vadd.f32 0.0, %v1173
  %1175 = vmatmul.f32.gmra.mxu0 %v1085
  %v1176 = vpop.f32.mrf.mxu0
  %v1177 = vadd.f32 0.0, %v1176
  %1178 = vmatmul.f32.gmra.mxu0 %v1088
  %v1179 = vpop.f32.mrf.mxu0
  %v1180 = vadd.f32 0.0, %v1179
  %1181 = vmatmul.f32.gmra.mxu0 %v1091
  %v1182 = vpop.f32.mrf.mxu0
  %v1183 = vadd.f32 0.0, %v1182
  %1184 = vmatmul.f32.gmra.mxu0 %v1094
  %v1185 = vpop.f32.mrf.mxu0
  %v1186 = vadd.f32 0.0, %v1185
  %1187 = vmatmul.f32.gmra.mxu0 %v1097
  %v1188 = vpop.f32.mrf.mxu0
  %v1189 = vadd.f32 0.0, %v1188
  %1190 = vmatmul.f32.gmra.mxu0 %v1100
  %v1191 = vpop.f32.mrf.mxu0
  %v1192 = vadd.f32 0.0, %v1191
  %1193 = vmatmul.f32.gmra.mxu0 %v1103
  %v1194 = vpop.f32.mrf.mxu0
  %v1195 = vadd.f32 0.0, %v1194
  %1196 = vmatmul.f32.gmra.mxu0 %v1106
  %v1197 = vpop.f32.mrf.mxu0
  %v1198 = vadd.f32 0.0, %v1197
  %1199 = vmatmul.f32.gmra.mxu0 %v1109
  %v1200 = vpop.f32.mrf.mxu0
  %v1201 = vadd.f32 0.0, %v1200
  %1202 = vdwg.mxu0
  %v1203 = vxor.u32 %v1028, 2147483648
  %v1204 = vxor.u32 %v1029, 2147483648
  %v1205 = vxor.u32 %v1030, 2147483648
  %v1206 = vxor.u32 %v1031, 2147483648
  %v1207 = vxor.u32 %v1032, 2147483648
  %v1208 = vxor.u32 %v1033, 2147483648
  %v1209 = vxor.u32 %v1034, 2147483648
  %v1210 = vxor.u32 %v1035, 2147483648
  %v1211 = vmul.f32 %v1203, 1.442695
  %v1212 = vpow.pop %v1211
  %v1213 = vmul.f32 %v1204, 1.442695
  %v1214 = vpow.pop %v1213
  %v1215 = vmul.f32 %v1205, 1.442695
  %v1216 = vpow.pop %v1215
  %v1217 = vmul.f32 %v1206, 1.442695
  %v1218 = vpow.pop %v1217
  %v1219 = vmul.f32 %v1207, 1.442695
  %v1220 = vpow.pop %v1219
  %v1221 = vmul.f32 %v1208, 1.442695
  %v1222 = vpow.pop %v1221
  %v1223 = vmul.f32 %v1209, 1.442695
  %v1224 = vpow.pop %v1223
  %v1225 = vmul.f32 %v1210, 1.442695
  %v1226 = vpow.pop %v1225
  %v1227 = vadd.f32 %v1212, 1.0
  %v1228 = vadd.f32 %v1214, 1.0
  %v1229 = vadd.f32 %v1216, 1.0
  %v1230 = vadd.f32 %v1218, 1.0
  %v1231 = vadd.f32 %v1220, 1.0
  %v1232 = vadd.f32 %v1222, 1.0
  %v1233 = vadd.f32 %v1224, 1.0
  %v1234 = vadd.f32 %v1226, 1.0
  %v1235 = vrcp.pop %v1227
  %v1236 = vmul.f32 %v1227, %v1235
  %v1237 = vsub.f32 1.0, %v1236
  %v1238 = vmul.f32 %v1235, %v1237
  %v1239 = vadd.f32 %v1235, %v1238
  %vm1240 = vweird.f32 %v1227
  %vm1241 = vweird.f32 %v1235
  %vm1242 = vmor %vm1240, %vm1241
  %v1243 = vsel %vm1242, %v1235, %v1239
  %v1244 = vand.u32 2147483647, %v1227
  %vm1245 = vcmp.eq.f32.partialorder %v1244, 8.507059e+37
  %v1246 = vand.u32 %v1227, 2147483648
  %v1247 = vor.u32 1.1754944e-38, %v1246
  %v1248 = vsel %vm1245, %v1247, %v1243
  %v1249 = vmul.f32 1.0, %v1248
  %v1250 = vrcp.pop %v1228
  %v1251 = vmul.f32 %v1228, %v1250
  %v1252 = vsub.f32 1.0, %v1251
  %v1253 = vmul.f32 %v1250, %v1252
  %v1254 = vadd.f32 %v1250, %v1253
  %vm1255 = vweird.f32 %v1228
  %vm1256 = vweird.f32 %v1250
  %vm1257 = vmor %vm1255, %vm1256
  %v1258 = vsel %vm1257, %v1250, %v1254
  %v1259 = vand.u32 2147483647, %v1228
  %vm1260 = vcmp.eq.f32.partialorder %v1259, 8.507059e+37
  %v1261 = vand.u32 %v1228, 2147483648
  %v1262 = vor.u32 1.1754944e-38, %v1261
  %v1263 = vsel %vm1260, %v1262, %v1258
  %v1264 = vmul.f32 1.0, %v1263
  %v1265 = vrcp.pop %v1229
  %v1266 = vmul.f32 %v1229, %v1265
  %v1267 = vsub.f32 1.0, %v1266
  %v1268 = vmul.f32 %v1265, %v1267
  %v1269 = vadd.f32 %v1265, %v1268
  %vm1270 = vweird.f32 %v1229
  %vm1271 = vweird.f32 %v1265
  %vm1272 = vmor %vm1270, %vm1271
  %v1273 = vsel %vm1272, %v1265, %v1269
  %v1274 = vand.u32 2147483647, %v1229
  %vm1275 = vcmp.eq.f32.partialorder %v1274, 8.507059e+37
  %v1276 = vand.u32 %v1229, 2147483648
  %v1277 = vor.u32 1.1754944e-38, %v1276
  %v1278 = vsel %vm1275, %v1277, %v1273
  %v1279 = vmul.f32 1.0, %v1278
  %v1280 = vrcp.pop %v1230
  %v1281 = vmul.f32 %v1230, %v1280
  %v1282 = vsub.f32 1.0, %v1281
  %v1283 = vmul.f32 %v1280, %v1282
  %v1284 = vadd.f32 %v1280, %v1283
  %vm1285 = vweird.f32 %v1230
  %vm1286 = vweird.f32 %v1280
  %vm1287 = vmor %vm1285, %vm1286
  %v1288 = vsel %vm1287, %v1280, %v1284
  %v1289 = vand.u32 2147483647, %v1230
  %vm1290 = vcmp.eq.f32.partialorder %v1289, 8.507059e+37
  %v1291 = vand.u32 %v1230, 2147483648
  %v1292 = vor.u32 1.1754944e-38, %v1291
  %v1293 = vsel %vm1290, %v1292, %v1288
  %v1294 = vmul.f32 1.0, %v1293
  %v1295 = vrcp.pop %v1231
  %v1296 = vmul.f32 %v1231, %v1295
  %v1297 = vsub.f32 1.0, %v1296
  %v1298 = vmul.f32 %v1295, %v1297
  %v1299 = vadd.f32 %v1295, %v1298
  %vm1300 = vweird.f32 %v1231
  %vm1301 = vweird.f32 %v1295
  %vm1302 = vmor %vm1300, %vm1301
  %v1303 = vsel %vm1302, %v1295, %v1299
  %v1304 = vand.u32 2147483647, %v1231
  %vm1305 = vcmp.eq.f32.partialorder %v1304, 8.507059e+37
  %v1306 = vand.u32 %v1231, 2147483648
  %v1307 = vor.u32 1.1754944e-38, %v1306
  %v1308 = vsel %vm1305, %v1307, %v1303
  %v1309 = vmul.f32 1.0, %v1308
  %v1310 = vrcp.pop %v1232
  %v1311 = vmul.f32 %v1232, %v1310
  %v1312 = vsub.f32 1.0, %v1311
  %v1313 = vmul.f32 %v1310, %v1312
  %v1314 = vadd.f32 %v1310, %v1313
  %vm1315 = vweird.f32 %v1232
  %vm1316 = vweird.f32 %v1310
  %vm1317 = vmor %vm1315, %vm1316
  %v1318 = vsel %vm1317, %v1310, %v1314
  %v1319 = vand.u32 2147483647, %v1232
  %vm1320 = vcmp.eq.f32.partialorder %v1319, 8.507059e+37
  %v1321 = vand.u32 %v1232, 2147483648
  %v1322 = vor.u32 1.1754944e-38, %v1321
  %v1323 = vsel %vm1320, %v1322, %v1318
  %v1324 = vmul.f32 1.0, %v1323
  %v1325 = vrcp.pop %v1233
  %v1326 = vmul.f32 %v1233, %v1325
  %v1327 = vsub.f32 1.0, %v1326
  %v1328 = vmul.f32 %v1325, %v1327
  %v1329 = vadd.f32 %v1325, %v1328
  %vm1330 = vweird.f32 %v1233
  %vm1331 = vweird.f32 %v1325
  %vm1332 = vmor %vm1330, %vm1331
  %v1333 = vsel %vm1332, %v1325, %v1329
  %v1334 = vand.u32 2147483647, %v1233
  %vm1335 = vcmp.eq.f32.partialorder %v1334, 8.507059e+37
  %v1336 = vand.u32 %v1233, 2147483648
  %v1337 = vor.u32 1.1754944e-38, %v1336
  %v1338 = vsel %vm1335, %v1337, %v1333
  %v1339 = vmul.f32 1.0, %v1338
  %v1340 = vrcp.pop %v1234
  %v1341 = vmul.f32 %v1234, %v1340
  %v1342 = vsub.f32 1.0, %v1341
  %v1343 = vmul.f32 %v1340, %v1342
  %v1344 = vadd.f32 %v1340, %v1343
  %vm1345 = vweird.f32 %v1234
  %vm1346 = vweird.f32 %v1340
  %vm1347 = vmor %vm1345, %vm1346
  %v1348 = vsel %vm1347, %v1340, %v1344
  %v1349 = vand.u32 2147483647, %v1234
  %vm1350 = vcmp.eq.f32.partialorder %v1349, 8.507059e+37
  %v1351 = vand.u32 %v1234, 2147483648
  %v1352 = vor.u32 1.1754944e-38, %v1351
  %v1353 = vsel %vm1350, %v1352, %v1348
  %v1354 = vmul.f32 1.0, %v1353
  %v1355 = vld [vmem:[%s31] sm:$0xff]
  %v1356 = vld [vmem:[%s31 + $0x8] sm:$0xff]
  %v1357 = vld [vmem:[%s31 + $0x10] sm:$0xff]
  %v1358 = vld [vmem:[%s31 + $0x18] sm:$0xff]
  %v1359 = vld [vmem:[%s33] sm:$0x1]
  %v1361 = vperm.slane %v1359, 0
  %v1364 = vsel %vm761, %v1249, 0
  %v1367 = vsel %vm761, %v1264, 0
  %v1370 = vsel %vm761, %v1279, 0
  %v1373 = vsel %vm761, %v1294, 0
  %v1376 = vsel %vm761, %v1309, 0
  %v1379 = vsel %vm761, %v1324, 0
  %v1382 = vsel %vm761, %v1339, 0
  %v1385 = vsel %vm761, %v1354, 0
  %1387 = vmatpush.msra.mxu0 0.0
  %1388 = vmatpush.msra.mxu0 0.0
  %1389 = vmatpush.msra.mxu0 0.0
  %1390 = vmatpush.msra.mxu0 0.0
  %1391 = vmatpush.msra.mxu0 0.0
  %1392 = vmatpush.msra.mxu0 0.0
  %1393 = vmatpush.msra.mxu0 0.0
  %1394 = vmatpush.msra.mxu0 0.0
  %1395 = vmatpush.msra.mxu0 0.0
  %1396 = vmatpush.msra.mxu0 0.0
  %1397 = vmatpush.msra.mxu0 0.0
  %1398 = vmatpush.msra.mxu0 0.0
  %1399 = vmatpush.msra.mxu0 %v1358
  %1400 = vmatpush.msra.mxu0 %v1357
  %1401 = vmatpush.msra.mxu0 %v1356
  %1402 = vmatpush.msra.mxu0 %v1355
  %1403 = vmatmul.f32.gmra.mxu0 %v1364
  %v1404 = vpop.f32.mrf.mxu0
  %v1405 = vadd.f32 %v1361, %v1404
  %1406 = vmatmul.f32.gmra.mxu0 %v1367
  %v1407 = vpop.f32.mrf.mxu0
  %v1408 = vadd.f32 %v1361, %v1407
  %1409 = vmatmul.f32.gmra.mxu0 %v1370
  %v1410 = vpop.f32.mrf.mxu0
  %v1411 = vadd.f32 %v1361, %v1410
  %1412 = vmatmul.f32.gmra.mxu0 %v1373
  %v1413 = vpop.f32.mrf.mxu0
  %v1414 = vadd.f32 %v1361, %v1413
  %1415 = vmatmul.f32.gmra.mxu0 %v1376
  %v1416 = vpop.f32.mrf.mxu0
  %v1417 = vadd.f32 %v1361, %v1416
  %1418 = vmatmul.f32.gmra.mxu0 %v1379
  %v1419 = vpop.f32.mrf.mxu0
  %v1420 = vadd.f32 %v1361, %v1419
  %1421 = vmatmul.f32.gmra.mxu0 %v1382
  %v1422 = vpop.f32.mrf.mxu0
  %v1423 = vadd.f32 %v1361, %v1422
  %1424 = vmatmul.f32.gmra.mxu0 %v1385
  %v1425 = vpop.f32.mrf.mxu0
  %v1426 = vadd.f32 %v1361, %v1425
  %1427 = vdwg.mxu0
  %v1428 = vxor.u32 %v1405, 2147483648
  %v1429 = vxor.u32 %v1408, 2147483648
  %v1430 = vxor.u32 %v1411, 2147483648
  %v1431 = vxor.u32 %v1414, 2147483648
  %v1432 = vxor.u32 %v1417, 2147483648
  %v1433 = vxor.u32 %v1420, 2147483648
  %v1434 = vxor.u32 %v1423, 2147483648
  %v1435 = vxor.u32 %v1426, 2147483648
  %v1436 = vmul.f32 %v1428, 1.442695
  %v1437 = vpow.pop %v1436
  %v1438 = vmul.f32 %v1429, 1.442695
  %v1439 = vpow.pop %v1438
  %v1440 = vmul.f32 %v1430, 1.442695
  %v1441 = vpow.pop %v1440
  %v1442 = vmul.f32 %v1431, 1.442695
  %v1443 = vpow.pop %v1442
  %v1444 = vmul.f32 %v1432, 1.442695
  %v1445 = vpow.pop %v1444
  %v1446 = vmul.f32 %v1433, 1.442695
  %v1447 = vpow.pop %v1446
  %v1448 = vmul.f32 %v1434, 1.442695
  %v1449 = vpow.pop %v1448
  %v1450 = vmul.f32 %v1435, 1.442695
  %v1451 = vpow.pop %v1450
  %v1452 = vadd.f32 %v1437, 1.0
  %v1453 = vadd.f32 %v1439, 1.0
  %v1454 = vadd.f32 %v1441, 1.0
  %v1455 = vadd.f32 %v1443, 1.0
  %v1456 = vadd.f32 %v1445, 1.0
  %v1457 = vadd.f32 %v1447, 1.0
  %v1458 = vadd.f32 %v1449, 1.0
  %v1459 = vadd.f32 %v1451, 1.0
  %v1460 = vrcp.pop %v1452
  %v1461 = vmul.f32 %v1452, %v1460
  %v1462 = vsub.f32 1.0, %v1461
  %v1463 = vmul.f32 %v1460, %v1462
  %v1464 = vadd.f32 %v1460, %v1463
  %vm1465 = vweird.f32 %v1452
  %vm1466 = vweird.f32 %v1460
  %vm1467 = vmor %vm1465, %vm1466
  %v1468 = vsel %vm1467, %v1460, %v1464
  %v1469 = vand.u32 2147483647, %v1452
  %vm1470 = vcmp.eq.f32.partialorder %v1469, 8.507059e+37
  %v1471 = vand.u32 %v1452, 2147483648
  %v1472 = vor.u32 1.1754944e-38, %v1471
  %v1473 = vsel %vm1470, %v1472, %v1468
  %v1474 = vmul.f32 1.0, %v1473
  %v1475 = vrcp.pop %v1453
  %v1476 = vmul.f32 %v1453, %v1475
  %v1477 = vsub.f32 1.0, %v1476
  %v1478 = vmul.f32 %v1475, %v1477
  %v1479 = vadd.f32 %v1475, %v1478
  %vm1480 = vweird.f32 %v1453
  %vm1481 = vweird.f32 %v1475
  %vm1482 = vmor %vm1480, %vm1481
  %v1483 = vsel %vm1482, %v1475, %v1479
  %v1484 = vand.u32 2147483647, %v1453
  %vm1485 = vcmp.eq.f32.partialorder %v1484, 8.507059e+37
  %v1486 = vand.u32 %v1453, 2147483648
  %v1487 = vor.u32 1.1754944e-38, %v1486
  %v1488 = vsel %vm1485, %v1487, %v1483
  %v1489 = vmul.f32 1.0, %v1488
  %v1490 = vrcp.pop %v1454
  %v1491 = vmul.f32 %v1454, %v1490
  %v1492 = vsub.f32 1.0, %v1491
  %v1493 = vmul.f32 %v1490, %v1492
  %v1494 = vadd.f32 %v1490, %v1493
  %vm1495 = vweird.f32 %v1454
  %vm1496 = vweird.f32 %v1490
  %vm1497 = vmor %vm1495, %vm1496
  %v1498 = vsel %vm1497, %v1490, %v1494
  %v1499 = vand.u32 2147483647, %v1454
  %vm1500 = vcmp.eq.f32.partialorder %v1499, 8.507059e+37
  %v1501 = vand.u32 %v1454, 2147483648
  %v1502 = vor.u32 1.1754944e-38, %v1501
  %v1503 = vsel %vm1500, %v1502, %v1498
  %v1504 = vmul.f32 1.0, %v1503
  %v1505 = vrcp.pop %v1455
  %v1506 = vmul.f32 %v1455, %v1505
  %v1507 = vsub.f32 1.0, %v1506
  %v1508 = vmul.f32 %v1505, %v1507
  %v1509 = vadd.f32 %v1505, %v1508
  %vm1510 = vweird.f32 %v1455
  %vm1511 = vweird.f32 %v1505
  %vm1512 = vmor %vm1510, %vm1511
  %v1513 = vsel %vm1512, %v1505, %v1509
  %v1514 = vand.u32 2147483647, %v1455
  %vm1515 = vcmp.eq.f32.partialorder %v1514, 8.507059e+37
  %v1516 = vand.u32 %v1455, 2147483648
  %v1517 = vor.u32 1.1754944e-38, %v1516
  %v1518 = vsel %vm1515, %v1517, %v1513
  %v1519 = vmul.f32 1.0, %v1518
  %v1520 = vrcp.pop %v1456
  %v1521 = vmul.f32 %v1456, %v1520
  %v1522 = vsub.f32 1.0, %v1521
  %v1523 = vmul.f32 %v1520, %v1522
  %v1524 = vadd.f32 %v1520, %v1523
  %vm1525 = vweird.f32 %v1456
  %vm1526 = vweird.f32 %v1520
  %vm1527 = vmor %vm1525, %vm1526
  %v1528 = vsel %vm1527, %v1520, %v1524
  %v1529 = vand.u32 2147483647, %v1456
  %vm1530 = vcmp.eq.f32.partialorder %v1529, 8.507059e+37
  %v1531 = vand.u32 %v1456, 2147483648
  %v1532 = vor.u32 1.1754944e-38, %v1531
  %v1533 = vsel %vm1530, %v1532, %v1528
  %v1534 = vmul.f32 1.0, %v1533
  %v1535 = vrcp.pop %v1457
  %v1536 = vmul.f32 %v1457, %v1535
  %v1537 = vsub.f32 1.0, %v1536
  %v1538 = vmul.f32 %v1535, %v1537
  %v1539 = vadd.f32 %v1535, %v1538
  %vm1540 = vweird.f32 %v1457
  %vm1541 = vweird.f32 %v1535
  %vm1542 = vmor %vm1540, %vm1541
  %v1543 = vsel %vm1542, %v1535, %v1539
  %v1544 = vand.u32 2147483647, %v1457
  %vm1545 = vcmp.eq.f32.partialorder %v1544, 8.507059e+37
  %v1546 = vand.u32 %v1457, 2147483648
  %v1547 = vor.u32 1.1754944e-38, %v1546
  %v1548 = vsel %vm1545, %v1547, %v1543
  %v1549 = vmul.f32 1.0, %v1548
  %v1550 = vrcp.pop %v1458
  %v1551 = vmul.f32 %v1458, %v1550
  %v1552 = vsub.f32 1.0, %v1551
  %v1553 = vmul.f32 %v1550, %v1552
  %v1554 = vadd.f32 %v1550, %v1553
  %vm1555 = vweird.f32 %v1458
  %vm1556 = vweird.f32 %v1550
  %vm1557 = vmor %vm1555, %vm1556
  %v1558 = vsel %vm1557, %v1550, %v1554
  %v1559 = vand.u32 2147483647, %v1458
  %vm1560 = vcmp.eq.f32.partialorder %v1559, 8.507059e+37
  %v1561 = vand.u32 %v1458, 2147483648
  %v1562 = vor.u32 1.1754944e-38, %v1561
  %v1563 = vsel %vm1560, %v1562, %v1558
  %v1564 = vmul.f32 1.0, %v1563
  %v1565 = vrcp.pop %v1459
  %v1566 = vmul.f32 %v1459, %v1565
  %v1567 = vsub.f32 1.0, %v1566
  %v1568 = vmul.f32 %v1565, %v1567
  %v1569 = vadd.f32 %v1565, %v1568
  %vm1570 = vweird.f32 %v1459
  %vm1571 = vweird.f32 %v1565
  %vm1572 = vmor %vm1570, %vm1571
  %v1573 = vsel %vm1572, %v1565, %v1569
  %v1574 = vand.u32 2147483647, %v1459
  %vm1575 = vcmp.eq.f32.partialorder %v1574, 8.507059e+37
  %v1576 = vand.u32 %v1459, 2147483648
  %v1577 = vor.u32 1.1754944e-38, %v1576
  %v1578 = vsel %vm1575, %v1577, %v1573
  %v1579 = vmul.f32 1.0, %v1578
  %v1580 = vmul.f32 %v1132, %v1474
  %v1581 = vmul.f32 %v1135, %v1489
  %v1582 = vmul.f32 %v1138, %v1504
  %v1583 = vmul.f32 %v1141, %v1519
  %v1584 = vmul.f32 %v1144, %v1534
  %v1585 = vmul.f32 %v1147, %v1549
  %v1586 = vmul.f32 %v1150, %v1564
  %v1587 = vmul.f32 %v1153, %v1579
  %v1588 = vmul.f32 %v1156, %v1474
  %v1589 = vmul.f32 %v1159, %v1489
  %v1590 = vmul.f32 %v1162, %v1504
  %v1591 = vmul.f32 %v1165, %v1519
  %v1592 = vmul.f32 %v1168, %v1534
  %v1593 = vmul.f32 %v1171, %v1549
  %v1594 = vmul.f32 %v1174, %v1564
  %v1595 = vmul.f32 %v1177, %v1579
  %v1596 = vmul.f32 %v1180, %v1474
  %v1597 = vmul.f32 %v1183, %v1489
  %v1598 = vmul.f32 %v1186, %v1504
  %v1599 = vmul.f32 %v1189, %v1519
  %v1600 = vmul.f32 %v1192, %v1534
  %v1601 = vmul.f32 %v1195, %v1549
  %v1602 = vmul.f32 %v1198, %v1564
  %v1603 = vmul.f32 %v1201, %v1579
  %v1604 = vmax.f32 %v1028, 0.0
  %v1605 = vmax.f32 %v1029, 0.0
  %v1606 = vmax.f32 %v1030, 0.0
  %v1607 = vmax.f32 %v1031, 0.0
  %v1608 = vmax.f32 %v1032, 0.0
  %v1609 = vmax.f32 %v1033, 0.0
  %v1610 = vmax.f32 %v1034, 0.0
  %v1611 = vmax.f32 %v1035, 0.0
  %v1612 = vld [vmem:[%s35] sm:$0xff]
  %v1613 = vld [vmem:[%s37] sm:$0xff]
  %v1614 = vld [vmem:[%s37 + $0x8] sm:$0xff]
  %v1615 = vld [vmem:[%s37 + $0x10] sm:$0xff]
  %v1616 = vld [vmem:[%s37 + $0x18] sm:$0xff]
  %v1617 = vld [vmem:[%s39] sm:$0xff]
  %v1618 = vld [vmem:[%s41] sm:$0x1]
  %v1619 = vld [vmem:[%s43] sm:$0xff]
  %v1620 = vld [vmem:[%s45] sm:$0xff]
  %v1621 = vld [vmem:[%s45 + $0x8] sm:$0xff]
  %v1622 = vld [vmem:[%s45 + $0x10] sm:$0xff]
  %v1623 = vld [vmem:[%s45 + $0x18] sm:$0xff]
  %v1624 = vld [vmem:[%s47] sm:$0x1]
  %v1626 = vsel %vm373, %v1580, 0
  %v1629 = vsel %vm373, %v1581, 0
  %v1632 = vsel %vm373, %v1582, 0
  %v1635 = vsel %vm373, %v1583, 0
  %v1638 = vsel %vm373, %v1584, 0
  %v1641 = vsel %vm373, %v1585, 0
  %v1644 = vsel %vm373, %v1586, 0
  %v1647 = vsel %vm373, %v1587, 0
  %v1650 = vsel %vm373, %v1588, 0
  %v1653 = vsel %vm373, %v1589, 0
  %v1656 = vsel %vm373, %v1590, 0
  %v1659 = vsel %vm373, %v1591, 0
  %v1662 = vsel %vm373, %v1592, 0
  %v1665 = vsel %vm373, %v1593, 0
  %v1668 = vsel %vm373, %v1594, 0
  %v1671 = vsel %vm373, %v1595, 0
  %v1674 = vsel %vm373, %v1596, 0
  %v1677 = vsel %vm373, %v1597, 0
  %v1680 = vsel %vm373, %v1598, 0
  %v1683 = vsel %vm373, %v1599, 0
  %v1686 = vsel %vm373, %v1600, 0
  %v1689 = vsel %vm373, %v1601, 0
  %v1692 = vsel %vm373, %v1602, 0
  %v1695 = vsel %vm373, %v1603, 0
  %1697 = vmatpush.msra.mxu0 0.0
  %1698 = vmatpush.msra.mxu0 0.0
  %1699 = vmatpush.msra.mxu0 0.0
  %1700 = vmatpush.msra.mxu0 0.0
  %1701 = vmatpush.msra.mxu0 0.0
  %1702 = vmatpush.msra.mxu0 0.0
  %1703 = vmatpush.msra.mxu0 0.0
  %1704 = vmatpush.msra.mxu0 0.0
  %1705 = vmatpush.msra.mxu0 0.0
  %1706 = vmatpush.msra.mxu0 0.0
  %1707 = vmatpush.msra.mxu0 0.0
  %1708 = vmatpush.msra.mxu0 0.0
  %1709 = vmatpush.msra.mxu0 0.0
  %1710 = vmatpush.msra.mxu0 0.0
  %1711 = vmatpush.msra.mxu0 0.0
  %1712 = vmatpush.msra.mxu0 %v1612
  %1713 = vmatmul.f32.gmra.mxu0 %v1626
  %v1714 = vpop.f32.mrf.mxu0
  %v1715 = vadd.f32 0.0, %v1714
  %1716 = vmatmul.f32.gmra.mxu0 %v1629
  %v1717 = vpop.f32.mrf.mxu0
  %v1718 = vadd.f32 0.0, %v1717
  %1719 = vmatmul.f32.gmra.mxu0 %v1632
  %v1720 = vpop.f32.mrf.mxu0
  %v1721 = vadd.f32 0.0, %v1720
  %1722 = vmatmul.f32.gmra.mxu0 %v1635
  %v1723 = vpop.f32.mrf.mxu0
  %v1724 = vadd.f32 0.0, %v1723
  %1725 = vmatmul.f32.gmra.mxu0 %v1638
  %v1726 = vpop.f32.mrf.mxu0
  %v1727 = vadd.f32 0.0, %v1726
  %1728 = vmatmul.f32.gmra.mxu0 %v1641
  %v1729 = vpop.f32.mrf.mxu0
  %v1730 = vadd.f32 0.0, %v1729
  %1731 = vmatmul.f32.gmra.mxu0 %v1644
  %v1732 = vpop.f32.mrf.mxu0
  %v1733 = vadd.f32 0.0, %v1732
  %1734 = vmatmul.f32.gmra.mxu0 %v1647
  %v1735 = vpop.f32.mrf.mxu0
  %v1736 = vadd.f32 0.0, %v1735
  %1737 = vmatmul.f32.gmra.mxu0 %v1650
  %v1738 = vpop.f32.mrf.mxu0
  %v1739 = vadd.f32 0.0, %v1738
  %1740 = vmatmul.f32.gmra.mxu0 %v1653
  %v1741 = vpop.f32.mrf.mxu0
  %v1742 = vadd.f32 0.0, %v1741
  %1743 = vmatmul.f32.gmra.mxu0 %v1656
  %v1744 = vpop.f32.mrf.mxu0
  %v1745 = vadd.f32 0.0, %v1744
  %1746 = vmatmul.f32.gmra.mxu0 %v1659
  %v1747 = vpop.f32.mrf.mxu0
  %v1748 = vadd.f32 0.0, %v1747
  %1749 = vmatmul.f32.gmra.mxu0 %v1662
  %v1750 = vpop.f32.mrf.mxu0
  %v1751 = vadd.f32 0.0, %v1750
  %1752 = vmatmul.f32.gmra.mxu0 %v1665
  %v1753 = vpop.f32.mrf.mxu0
  %v1754 = vadd.f32 0.0, %v1753
  %1755 = vmatmul.f32.gmra.mxu0 %v1668
  %v1756 = vpop.f32.mrf.mxu0
  %v1757 = vadd.f32 0.0, %v1756
  %1758 = vmatmul.f32.gmra.mxu0 %v1671
  %v1759 = vpop.f32.mrf.mxu0
  %v1760 = vadd.f32 0.0, %v1759
  %1761 = vmatmul.f32.gmra.mxu0 %v1674
  %v1762 = vpop.f32.mrf.mxu0
  %v1763 = vadd.f32 0.0, %v1762
  %1764 = vmatmul.f32.gmra.mxu0 %v1677
  %v1765 = vpop.f32.mrf.mxu0
  %v1766 = vadd.f32 0.0, %v1765
  %1767 = vmatmul.f32.gmra.mxu0 %v1680
  %v1768 = vpop.f32.mrf.mxu0
  %v1769 = vadd.f32 0.0, %v1768
  %1770 = vmatmul.f32.gmra.mxu0 %v1683
  %v1771 = vpop.f32.mrf.mxu0
  %v1772 = vadd.f32 0.0, %v1771
  %1773 = vmatmul.f32.gmra.mxu0 %v1686
  %v1774 = vpop.f32.mrf.mxu0
  %v1775 = vadd.f32 0.0, %v1774
  %1776 = vmatmul.f32.gmra.mxu0 %v1689
  %v1777 = vpop.f32.mrf.mxu0
  %v1778 = vadd.f32 0.0, %v1777
  %1779 = vmatmul.f32.gmra.mxu0 %v1692
  %v1780 = vpop.f32.mrf.mxu0
  %v1781 = vadd.f32 0.0, %v1780
  %1782 = vmatmul.f32.gmra.mxu0 %v1695
  %v1783 = vpop.f32.mrf.mxu0
  %v1784 = vadd.f32 0.0, %v1783
  %1785 = vdwg.mxu0
  %v1786 = vmul.f32 %v1715, %v1715
  %v1787 = vmul.f32 %v1718, %v1718
  %v1788 = vmul.f32 %v1721, %v1721
  %v1789 = vmul.f32 %v1724, %v1724
  %v1790 = vmul.f32 %v1727, %v1727
  %v1791 = vmul.f32 %v1730, %v1730
  %v1792 = vmul.f32 %v1733, %v1733
  %v1793 = vmul.f32 %v1736, %v1736
  %v1794 = vmul.f32 %v1739, %v1739
  %v1795 = vmul.f32 %v1742, %v1742
  %v1796 = vmul.f32 %v1745, %v1745
  %v1797 = vmul.f32 %v1748, %v1748
  %v1798 = vmul.f32 %v1751, %v1751
  %v1799 = vmul.f32 %v1754, %v1754
  %v1800 = vmul.f32 %v1757, %v1757
  %v1801 = vmul.f32 %v1760, %v1760
  %v1802 = vadd.f32 %v1786, %v1794
  %v1803 = vadd.f32 %v1787, %v1795
  %v1804 = vadd.f32 %v1788, %v1796
  %v1805 = vadd.f32 %v1789, %v1797
  %v1806 = vadd.f32 %v1790, %v1798
  %v1807 = vadd.f32 %v1791, %v1799
  %v1808 = vadd.f32 %v1792, %v1800
  %v1809 = vadd.f32 %v1793, %v1801
  %v1810 = vmul.f32 %v1763, %v1763
  %v1811 = vmul.f32 %v1766, %v1766
  %v1812 = vmul.f32 %v1769, %v1769
  %v1813 = vmul.f32 %v1772, %v1772
  %v1814 = vmul.f32 %v1775, %v1775
  %v1815 = vmul.f32 %v1778, %v1778
  %v1816 = vmul.f32 %v1781, %v1781
  %v1817 = vmul.f32 %v1784, %v1784
  %v1818 = vadd.f32 %v1802, %v1810
  %v1819 = vadd.f32 %v1803, %v1811
  %v1820 = vadd.f32 %v1804, %v1812
  %v1821 = vadd.f32 %v1805, %v1813
  %v1822 = vadd.f32 %v1806, %v1814
  %v1823 = vadd.f32 %v1807, %v1815
  %v1824 = vadd.f32 %v1808, %v1816
  %v1825 = vadd.f32 %v1809, %v1817
  %v1826 = vmax.f32 %v1818, 1e-08
  %v1827 = vmax.f32 %v1819, 1e-08
  %v1828 = vmax.f32 %v1820, 1e-08
  %v1829 = vmax.f32 %v1821, 1e-08
  %v1830 = vmax.f32 %v1822, 1e-08
  %v1831 = vmax.f32 %v1823, 1e-08
  %v1832 = vmax.f32 %v1824, 1e-08
  %v1833 = vmax.f32 %v1825, 1e-08
  %v1834 = vrsqrt.pop %v1826
  %v1835 = vmul.f32 %v1834, %v1826
  %v1836 = vmul.f32 %v1835, %v1834
  %v1837 = vmul.f32 0.5, %v1836
  %v1838 = vsub.f32 1.5, %v1837
  %v1839 = vmul.f32 %v1834, %v1838
  %v1840 = vmul.f32 %v1826, %v1839
  %vm1841 = vcmp.eq.f32.partialorder %v1826, inf
  %v1842 = vsel %vm1841, %v1826, %v1840
  %vm1843 = vcmp.eq.f32.partialorder %v1826, 0.0
  %v1844 = vand.u32 %v1826, 2147483648
  %v1845 = vsel %vm1843, %v1844, %v1842
  %v1846 = vrsqrt.pop %v1827
  %v1847 = vmul.f32 %v1846, %v1827
  %v1848 = vmul.f32 %v1847, %v1846
  %v1849 = vmul.f32 0.5, %v1848
  %v1850 = vsub.f32 1.5, %v1849
  %v1851 = vmul.f32 %v1846, %v1850
  %v1852 = vmul.f32 %v1827, %v1851
  %vm1853 = vcmp.eq.f32.partialorder %v1827, inf
  %v1854 = vsel %vm1853, %v1827, %v1852
  %vm1855 = vcmp.eq.f32.partialorder %v1827, 0.0
  %v1856 = vand.u32 %v1827, 2147483648
  %v1857 = vsel %vm1855, %v1856, %v1854
  %v1858 = vrsqrt.pop %v1828
  %v1859 = vmul.f32 %v1858, %v1828
  %v1860 = vmul.f32 %v1859, %v1858
  %v1861 = vmul.f32 0.5, %v1860
  %v1862 = vsub.f32 1.5, %v1861
  %v1863 = vmul.f32 %v1858, %v1862
  %v1864 = vmul.f32 %v1828, %v1863
  %vm1865 = vcmp.eq.f32.partialorder %v1828, inf
  %v1866 = vsel %vm1865, %v1828, %v1864
  %vm1867 = vcmp.eq.f32.partialorder %v1828, 0.0
  %v1868 = vand.u32 %v1828, 2147483648
  %v1869 = vsel %vm1867, %v1868, %v1866
  %v1870 = vrsqrt.pop %v1829
  %v1871 = vmul.f32 %v1870, %v1829
  %v1872 = vmul.f32 %v1871, %v1870
  %v1873 = vmul.f32 0.5, %v1872
  %v1874 = vsub.f32 1.5, %v1873
  %v1875 = vmul.f32 %v1870, %v1874
  %v1876 = vmul.f32 %v1829, %v1875
  %vm1877 = vcmp.eq.f32.partialorder %v1829, inf
  %v1878 = vsel %vm1877, %v1829, %v1876
  %vm1879 = vcmp.eq.f32.partialorder %v1829, 0.0
  %v1880 = vand.u32 %v1829, 2147483648
  %v1881 = vsel %vm1879, %v1880, %v1878
  %v1882 = vrsqrt.pop %v1830
  %v1883 = vmul.f32 %v1882, %v1830
  %v1884 = vmul.f32 %v1883, %v1882
  %v1885 = vmul.f32 0.5, %v1884
  %v1886 = vsub.f32 1.5, %v1885
  %v1887 = vmul.f32 %v1882, %v1886
  %v1888 = vmul.f32 %v1830, %v1887
  %vm1889 = vcmp.eq.f32.partialorder %v1830, inf
  %v1890 = vsel %vm1889, %v1830, %v1888
  %vm1891 = vcmp.eq.f32.partialorder %v1830, 0.0
  %v1892 = vand.u32 %v1830, 2147483648
  %v1893 = vsel %vm1891, %v1892, %v1890
  %v1894 = vrsqrt.pop %v1831
  %v1895 = vmul.f32 %v1894, %v1831
  %v1896 = vmul.f32 %v1895, %v1894
  %v1897 = vmul.f32 0.5, %v1896
  %v1898 = vsub.f32 1.5, %v1897
  %v1899 = vmul.f32 %v1894, %v1898
  %v1900 = vmul.f32 %v1831, %v1899
  %vm1901 = vcmp.eq.f32.partialorder %v1831, inf
  %v1902 = vsel %vm1901, %v1831, %v1900
  %vm1903 = vcmp.eq.f32.partialorder %v1831, 0.0
  %v1904 = vand.u32 %v1831, 2147483648
  %v1905 = vsel %vm1903, %v1904, %v1902
  %v1906 = vrsqrt.pop %v1832
  %v1907 = vmul.f32 %v1906, %v1832
  %v1908 = vmul.f32 %v1907, %v1906
  %v1909 = vmul.f32 0.5, %v1908
  %v1910 = vsub.f32 1.5, %v1909
  %v1911 = vmul.f32 %v1906, %v1910
  %v1912 = vmul.f32 %v1832, %v1911
  %vm1913 = vcmp.eq.f32.partialorder %v1832, inf
  %v1914 = vsel %vm1913, %v1832, %v1912
  %vm1915 = vcmp.eq.f32.partialorder %v1832, 0.0
  %v1916 = vand.u32 %v1832, 2147483648
  %v1917 = vsel %vm1915, %v1916, %v1914
  %v1918 = vrsqrt.pop %v1833
  %v1919 = vmul.f32 %v1918, %v1833
  %v1920 = vmul.f32 %v1919, %v1918
  %v1921 = vmul.f32 0.5, %v1920
  %v1922 = vsub.f32 1.5, %v1921
  %v1923 = vmul.f32 %v1918, %v1922
  %v1924 = vmul.f32 %v1833, %v1923
  %vm1925 = vcmp.eq.f32.partialorder %v1833, inf
  %v1926 = vsel %vm1925, %v1833, %v1924
  %vm1927 = vcmp.eq.f32.partialorder %v1833, 0.0
  %v1928 = vand.u32 %v1833, 2147483648
  %v1929 = vsel %vm1927, %v1928, %v1926
  %v1931 = vsel %vm373, %v1845, 0
  %v1934 = vsel %vm373, %v1857, 0
  %v1937 = vsel %vm373, %v1869, 0
  %v1940 = vsel %vm373, %v1881, 0
  %v1943 = vsel %vm373, %v1893, 0
  %v1946 = vsel %vm373, %v1905, 0
  %v1949 = vsel %vm373, %v1917, 0
  %v1952 = vsel %vm373, %v1929, 0
  %1954 = vmatpush.msra.mxu0 0.0
  %1955 = vmatpush.msra.mxu0 0.0
  %1956 = vmatpush.msra.mxu0 0.0
  %1957 = vmatpush.msra.mxu0 0.0
  %1958 = vmatpush.msra.mxu0 0.0
  %1959 = vmatpush.msra.mxu0 0.0
  %1960 = vmatpush.msra.mxu0 0.0
  %1961 = vmatpush.msra.mxu0 0.0
  %1962 = vmatpush.msra.mxu0 0.0
  %1963 = vmatpush.msra.mxu0 0.0
  %1964 = vmatpush.msra.mxu0 0.0
  %1965 = vmatpush.msra.mxu0 0.0
  %1966 = vmatpush.msra.mxu0 0.0
  %1967 = vmatpush.msra.mxu0 0.0
  %1968 = vmatpush.msra.mxu0 0.0
  %1969 = vmatpush.msra.mxu0 %v1617
  %1970 = vmatmul.f32.gmra.mxu0 %v1931
  %v1971 = vpop.f32.mrf.mxu0
  %v1972 = vadd.f32 0.0, %v1971
  %1973 = vmatmul.f32.gmra.mxu0 %v1934
  %v1974 = vpop.f32.mrf.mxu0
  %v1975 = vadd.f32 0.0, %v1974
  %1976 = vmatmul.f32.gmra.mxu0 %v1937
  %v1977 = vpop.f32.mrf.mxu0
  %v1978 = vadd.f32 0.0, %v1977
  %1979 = vmatmul.f32.gmra.mxu0 %v1940
  %v1980 = vpop.f32.mrf.mxu0
  %v1981 = vadd.f32 0.0, %v1980
  %1982 = vmatmul.f32.gmra.mxu0 %v1943
  %v1983 = vpop.f32.mrf.mxu0
  %v1984 = vadd.f32 0.0, %v1983
  %1985 = vmatmul.f32.gmra.mxu0 %v1946
  %v1986 = vpop.f32.mrf.mxu0
  %v1987 = vadd.f32 0.0, %v1986
  %1988 = vmatmul.f32.gmra.mxu0 %v1949
  %v1989 = vpop.f32.mrf.mxu0
  %v1990 = vadd.f32 0.0, %v1989
  %1991 = vmatmul.f32.gmra.mxu0 %v1952
  %v1992 = vpop.f32.mrf.mxu0
  %v1993 = vadd.f32 0.0, %v1992
  %1994 = vdwg.mxu0
  %v1996 = vsel %vm761, %v1604, 0
  %v1999 = vsel %vm761, %v1605, 0
  %v2002 = vsel %vm761, %v1606, 0
  %v2005 = vsel %vm761, %v1607, 0
  %v2008 = vsel %vm761, %v1608, 0
  %v2011 = vsel %vm761, %v1609, 0
  %v2014 = vsel %vm761, %v1610, 0
  %v2017 = vsel %vm761, %v1611, 0
  %2019 = vmatpush.msra.mxu0 0.0
  %2020 = vmatpush.msra.mxu0 0.0
  %2021 = vmatpush.msra.mxu0 0.0
  %2022 = vmatpush.msra.mxu0 0.0
  %2023 = vmatpush.msra.mxu0 0.0
  %2024 = vmatpush.msra.mxu0 0.0
  %2025 = vmatpush.msra.mxu0 0.0
  %2026 = vmatpush.msra.mxu0 0.0
  %2027 = vmatpush.msra.mxu0 0.0
  %2028 = vmatpush.msra.mxu0 0.0
  %2029 = vmatpush.msra.mxu0 0.0
  %2030 = vmatpush.msra.mxu0 0.0
  %2031 = vmatpush.msra.mxu0 %v1616
  %2032 = vmatpush.msra.mxu0 %v1615
  %2033 = vmatpush.msra.mxu0 %v1614
  %2034 = vmatpush.msra.mxu0 %v1613
  %2035 = vmatmul.f32.gmra.mxu0 %v1996
  %v2036 = vpop.f32.mrf.mxu0
  %v2037 = vadd.f32 %v1972, %v2036
  %2038 = vmatmul.f32.gmra.mxu0 %v1999
  %v2039 = vpop.f32.mrf.mxu0
  %v2040 = vadd.f32 %v1975, %v2039
  %2041 = vmatmul.f32.gmra.mxu0 %v2002
  %v2042 = vpop.f32.mrf.mxu0
  %v2043 = vadd.f32 %v1978, %v2042
  %2044 = vmatmul.f32.gmra.mxu0 %v2005
  %v2045 = vpop.f32.mrf.mxu0
  %v2046 = vadd.f32 %v1981, %v2045
  %2047 = vmatmul.f32.gmra.mxu0 %v2008
  %v2048 = vpop.f32.mrf.mxu0
  %v2049 = vadd.f32 %v1984, %v2048
  %2050 = vmatmul.f32.gmra.mxu0 %v2011
  %v2051 = vpop.f32.mrf.mxu0
  %v2052 = vadd.f32 %v1987, %v2051
  %2053 = vmatmul.f32.gmra.mxu0 %v2014
  %v2054 = vpop.f32.mrf.mxu0
  %v2055 = vadd.f32 %v1990, %v2054
  %2056 = vmatmul.f32.gmra.mxu0 %v2017
  %v2057 = vpop.f32.mrf.mxu0
  %v2058 = vadd.f32 %v1993, %v2057
  %2059 = vdwg.mxu0
  %v2061 = vperm.slane %v1618, 0
  %v2063 = vadd.f32 %v2037, %v2061
  %v2064 = vadd.f32 %v2040, %v2061
  %v2065 = vadd.f32 %v2043, %v2061
  %v2066 = vadd.f32 %v2046, %v2061
  %v2067 = vadd.f32 %v2049, %v2061
  %v2068 = vadd.f32 %v2052, %v2061
  %v2069 = vadd.f32 %v2055, %v2061
  %v2070 = vadd.f32 %v2058, %v2061
  %v2072 = vsel %vm373, %v1715, 0
  %v2075 = vsel %vm373, %v1718, 0
  %v2078 = vsel %vm373, %v1721, 0
  %v2081 = vsel %vm373, %v1724, 0
  %v2084 = vsel %vm373, %v1727, 0
  %v2087 = vsel %vm373, %v1730, 0
  %v2090 = vsel %vm373, %v1733, 0
  %v2093 = vsel %vm373, %v1736, 0
  %v2096 = vsel %vm373, %v1739, 0
  %v2099 = vsel %vm373, %v1742, 0
  %v2102 = vsel %vm373, %v1745, 0
  %v2105 = vsel %vm373, %v1748, 0
  %v2108 = vsel %vm373, %v1751, 0
  %v2111 = vsel %vm373, %v1754, 0
  %v2114 = vsel %vm373, %v1757, 0
  %v2117 = vsel %vm373, %v1760, 0
  %v2120 = vsel %vm373, %v1763, 0
  %v2123 = vsel %vm373, %v1766, 0
  %v2126 = vsel %vm373, %v1769, 0
  %v2129 = vsel %vm373, %v1772, 0
  %v2132 = vsel %vm373, %v1775, 0
  %v2135 = vsel %vm373, %v1778, 0
  %v2138 = vsel %vm373, %v1781, 0
  %v2141 = vsel %vm373, %v1784, 0
  %2143 = vmatpush.msra.mxu0 0.0
  %2144 = vmatpush.msra.mxu0 0.0
  %2145 = vmatpush.msra.mxu0 0.0
  %2146 = vmatpush.msra.mxu0 0.0
  %2147 = vmatpush.msra.mxu0 0.0
  %2148 = vmatpush.msra.mxu0 0.0
  %2149 = vmatpush.msra.mxu0 0.0
  %2150 = vmatpush.msra.mxu0 0.0
  %2151 = vmatpush.msra.mxu0 0.0
  %2152 = vmatpush.msra.mxu0 0.0
  %2153 = vmatpush.msra.mxu0 0.0
  %2154 = vmatpush.msra.mxu0 0.0
  %2155 = vmatpush.msra.mxu0 0.0
  %2156 = vmatpush.msra.mxu0 0.0
  %2157 = vmatpush.msra.mxu0 0.0
  %2158 = vmatpush.msra.mxu0 %v1619
  %2159 = vmatmul.f32.gmra.mxu0 %v2072
  %v2160 = vpop.f32.mrf.mxu0
  %v2161 = vadd.f32 0.0, %v2160
  %2162 = vmatmul.f32.gmra.mxu0 %v2075
  %v2163 = vpop.f32.mrf.mxu0
  %v2164 = vadd.f32 0.0, %v2163
  %2165 = vmatmul.f32.gmra.mxu0 %v2078
  %v2166 = vpop.f32.mrf.mxu0
  %v2167 = vadd.f32 0.0, %v2166
  %2168 = vmatmul.f32.gmra.mxu0 %v2081
  %v2169 = vpop.f32.mrf.mxu0
  %v2170 = vadd.f32 0.0, %v2169
  %2171 = vmatmul.f32.gmra.mxu0 %v2084
  %v2172 = vpop.f32.mrf.mxu0
  %v2173 = vadd.f32 0.0, %v2172
  %2174 = vmatmul.f32.gmra.mxu0 %v2087
  %v2175 = vpop.f32.mrf.mxu0
  %v2176 = vadd.f32 0.0, %v2175
  %2177 = vmatmul.f32.gmra.mxu0 %v2090
  %v2178 = vpop.f32.mrf.mxu0
  %v2179 = vadd.f32 0.0, %v2178
  %2180 = vmatmul.f32.gmra.mxu0 %v2093
  %v2181 = vpop.f32.mrf.mxu0
  %v2182 = vadd.f32 0.0, %v2181
  %2183 = vmatmul.f32.gmra.mxu0 %v2096
  %v2184 = vpop.f32.mrf.mxu0
  %v2185 = vadd.f32 0.0, %v2184
  %2186 = vmatmul.f32.gmra.mxu0 %v2099
  %v2187 = vpop.f32.mrf.mxu0
  %v2188 = vadd.f32 0.0, %v2187
  %2189 = vmatmul.f32.gmra.mxu0 %v2102
  %v2190 = vpop.f32.mrf.mxu0
  %v2191 = vadd.f32 0.0, %v2190
  %2192 = vmatmul.f32.gmra.mxu0 %v2105
  %v2193 = vpop.f32.mrf.mxu0
  %v2194 = vadd.f32 0.0, %v2193
  %2195 = vmatmul.f32.gmra.mxu0 %v2108
  %v2196 = vpop.f32.mrf.mxu0
  %v2197 = vadd.f32 0.0, %v2196
  %2198 = vmatmul.f32.gmra.mxu0 %v2111
  %v2199 = vpop.f32.mrf.mxu0
  %v2200 = vadd.f32 0.0, %v2199
  %2201 = vmatmul.f32.gmra.mxu0 %v2114
  %v2202 = vpop.f32.mrf.mxu0
  %v2203 = vadd.f32 0.0, %v2202
  %2204 = vmatmul.f32.gmra.mxu0 %v2117
  %v2205 = vpop.f32.mrf.mxu0
  %v2206 = vadd.f32 0.0, %v2205
  %2207 = vmatmul.f32.gmra.mxu0 %v2120
  %v2208 = vpop.f32.mrf.mxu0
  %v2209 = vadd.f32 0.0, %v2208
  %2210 = vmatmul.f32.gmra.mxu0 %v2123
  %v2211 = vpop.f32.mrf.mxu0
  %v2212 = vadd.f32 0.0, %v2211
  %2213 = vmatmul.f32.gmra.mxu0 %v2126
  %v2214 = vpop.f32.mrf.mxu0
  %v2215 = vadd.f32 0.0, %v2214
  %2216 = vmatmul.f32.gmra.mxu0 %v2129
  %v2217 = vpop.f32.mrf.mxu0
  %v2218 = vadd.f32 0.0, %v2217
  %2219 = vmatmul.f32.gmra.mxu0 %v2132
  %v2220 = vpop.f32.mrf.mxu0
  %v2221 = vadd.f32 0.0, %v2220
  %2222 = vmatmul.f32.gmra.mxu0 %v2135
  %v2223 = vpop.f32.mrf.mxu0
  %v2224 = vadd.f32 0.0, %v2223
  %2225 = vmatmul.f32.gmra.mxu0 %v2138
  %v2226 = vpop.f32.mrf.mxu0
  %v2227 = vadd.f32 0.0, %v2226
  %2228 = vmatmul.f32.gmra.mxu0 %v2141
  %v2229 = vpop.f32.mrf.mxu0
  %v2230 = vadd.f32 0.0, %v2229
  %2231 = vdwg.mxu0
  %v2232 = vxor.u32 %v2063, 2147483648
  %v2233 = vxor.u32 %v2064, 2147483648
  %v2234 = vxor.u32 %v2065, 2147483648
  %v2235 = vxor.u32 %v2066, 2147483648
  %v2236 = vxor.u32 %v2067, 2147483648
  %v2237 = vxor.u32 %v2068, 2147483648
  %v2238 = vxor.u32 %v2069, 2147483648
  %v2239 = vxor.u32 %v2070, 2147483648
  %v2240 = vmul.f32 %v2232, 1.442695
  %v2241 = vpow.pop %v2240
  %v2242 = vmul.f32 %v2233, 1.442695
  %v2243 = vpow.pop %v2242
  %v2244 = vmul.f32 %v2234, 1.442695
  %v2245 = vpow.pop %v2244
  %v2246 = vmul.f32 %v2235, 1.442695
  %v2247 = vpow.pop %v2246
  %v2248 = vmul.f32 %v2236, 1.442695
  %v2249 = vpow.pop %v2248
  %v2250 = vmul.f32 %v2237, 1.442695
  %v2251 = vpow.pop %v2250
  %v2252 = vmul.f32 %v2238, 1.442695
  %v2253 = vpow.pop %v2252
  %v2254 = vmul.f32 %v2239, 1.442695
  %v2255 = vpow.pop %v2254
  %v2256 = vadd.f32 %v2241, 1.0
  %v2257 = vadd.f32 %v2243, 1.0
  %v2258 = vadd.f32 %v2245, 1.0
  %v2259 = vadd.f32 %v2247, 1.0
  %v2260 = vadd.f32 %v2249, 1.0
  %v2261 = vadd.f32 %v2251, 1.0
  %v2262 = vadd.f32 %v2253, 1.0
  %v2263 = vadd.f32 %v2255, 1.0
  %v2264 = vrcp.pop %v2256
  %v2265 = vmul.f32 %v2256, %v2264
  %v2266 = vsub.f32 1.0, %v2265
  %v2267 = vmul.f32 %v2264, %v2266
  %v2268 = vadd.f32 %v2264, %v2267
  %vm2269 = vweird.f32 %v2256
  %vm2270 = vweird.f32 %v2264
  %vm2271 = vmor %vm2269, %vm2270
  %v2272 = vsel %vm2271, %v2264, %v2268
  %v2273 = vand.u32 2147483647, %v2256
  %vm2274 = vcmp.eq.f32.partialorder %v2273, 8.507059e+37
  %v2275 = vand.u32 %v2256, 2147483648
  %v2276 = vor.u32 1.1754944e-38, %v2275
  %v2277 = vsel %vm2274, %v2276, %v2272
  %v2278 = vmul.f32 1.0, %v2277
  %v2279 = vrcp.pop %v2257
  %v2280 = vmul.f32 %v2257, %v2279
  %v2281 = vsub.f32 1.0, %v2280
  %v2282 = vmul.f32 %v2279, %v2281
  %v2283 = vadd.f32 %v2279, %v2282
  %vm2284 = vweird.f32 %v2257
  %vm2285 = vweird.f32 %v2279
  %vm2286 = vmor %vm2284, %vm2285
  %v2287 = vsel %vm2286, %v2279, %v2283
  %v2288 = vand.u32 2147483647, %v2257
  %vm2289 = vcmp.eq.f32.partialorder %v2288, 8.507059e+37
  %v2290 = vand.u32 %v2257, 2147483648
  %v2291 = vor.u32 1.1754944e-38, %v2290
  %v2292 = vsel %vm2289, %v2291, %v2287
  %v2293 = vmul.f32 1.0, %v2292
  %v2294 = vrcp.pop %v2258
  %v2295 = vmul.f32 %v2258, %v2294
  %v2296 = vsub.f32 1.0, %v2295
  %v2297 = vmul.f32 %v2294, %v2296
  %v2298 = vadd.f32 %v2294, %v2297
  %vm2299 = vweird.f32 %v2258
  %vm2300 = vweird.f32 %v2294
  %vm2301 = vmor %vm2299, %vm2300
  %v2302 = vsel %vm2301, %v2294, %v2298
  %v2303 = vand.u32 2147483647, %v2258
  %vm2304 = vcmp.eq.f32.partialorder %v2303, 8.507059e+37
  %v2305 = vand.u32 %v2258, 2147483648
  %v2306 = vor.u32 1.1754944e-38, %v2305
  %v2307 = vsel %vm2304, %v2306, %v2302
  %v2308 = vmul.f32 1.0, %v2307
  %v2309 = vrcp.pop %v2259
  %v2310 = vmul.f32 %v2259, %v2309
  %v2311 = vsub.f32 1.0, %v2310
  %v2312 = vmul.f32 %v2309, %v2311
  %v2313 = vadd.f32 %v2309, %v2312
  %vm2314 = vweird.f32 %v2259
  %vm2315 = vweird.f32 %v2309
  %vm2316 = vmor %vm2314, %vm2315
  %v2317 = vsel %vm2316, %v2309, %v2313
  %v2318 = vand.u32 2147483647, %v2259
  %vm2319 = vcmp.eq.f32.partialorder %v2318, 8.507059e+37
  %v2320 = vand.u32 %v2259, 2147483648
  %v2321 = vor.u32 1.1754944e-38, %v2320
  %v2322 = vsel %vm2319, %v2321, %v2317
  %v2323 = vmul.f32 1.0, %v2322
  %v2324 = vrcp.pop %v2260
  %v2325 = vmul.f32 %v2260, %v2324
  %v2326 = vsub.f32 1.0, %v2325
  %v2327 = vmul.f32 %v2324, %v2326
  %v2328 = vadd.f32 %v2324, %v2327
  %vm2329 = vweird.f32 %v2260
  %vm2330 = vweird.f32 %v2324
  %vm2331 = vmor %vm2329, %vm2330
  %v2332 = vsel %vm2331, %v2324, %v2328
  %v2333 = vand.u32 2147483647, %v2260
  %vm2334 = vcmp.eq.f32.partialorder %v2333, 8.507059e+37
  %v2335 = vand.u32 %v2260, 2147483648
  %v2336 = vor.u32 1.1754944e-38, %v2335
  %v2337 = vsel %vm2334, %v2336, %v2332
  %v2338 = vmul.f32 1.0, %v2337
  %v2339 = vrcp.pop %v2261
  %v2340 = vmul.f32 %v2261, %v2339
  %v2341 = vsub.f32 1.0, %v2340
  %v2342 = vmul.f32 %v2339, %v2341
  %v2343 = vadd.f32 %v2339, %v2342
  %vm2344 = vweird.f32 %v2261
  %vm2345 = vweird.f32 %v2339
  %vm2346 = vmor %vm2344, %vm2345
  %v2347 = vsel %vm2346, %v2339, %v2343
  %v2348 = vand.u32 2147483647, %v2261
  %vm2349 = vcmp.eq.f32.partialorder %v2348, 8.507059e+37
  %v2350 = vand.u32 %v2261, 2147483648
  %v2351 = vor.u32 1.1754944e-38, %v2350
  %v2352 = vsel %vm2349, %v2351, %v2347
  %v2353 = vmul.f32 1.0, %v2352
  %v2354 = vrcp.pop %v2262
  %v2355 = vmul.f32 %v2262, %v2354
  %v2356 = vsub.f32 1.0, %v2355
  %v2357 = vmul.f32 %v2354, %v2356
  %v2358 = vadd.f32 %v2354, %v2357
  %vm2359 = vweird.f32 %v2262
  %vm2360 = vweird.f32 %v2354
  %vm2361 = vmor %vm2359, %vm2360
  %v2362 = vsel %vm2361, %v2354, %v2358
  %v2363 = vand.u32 2147483647, %v2262
  %vm2364 = vcmp.eq.f32.partialorder %v2363, 8.507059e+37
  %v2365 = vand.u32 %v2262, 2147483648
  %v2366 = vor.u32 1.1754944e-38, %v2365
  %v2367 = vsel %vm2364, %v2366, %v2362
  %v2368 = vmul.f32 1.0, %v2367
  %v2369 = vrcp.pop %v2263
  %v2370 = vmul.f32 %v2263, %v2369
  %v2371 = vsub.f32 1.0, %v2370
  %v2372 = vmul.f32 %v2369, %v2371
  %v2373 = vadd.f32 %v2369, %v2372
  %vm2374 = vweird.f32 %v2263
  %vm2375 = vweird.f32 %v2369
  %vm2376 = vmor %vm2374, %vm2375
  %v2377 = vsel %vm2376, %v2369, %v2373
  %v2378 = vand.u32 2147483647, %v2263
  %vm2379 = vcmp.eq.f32.partialorder %v2378, 8.507059e+37
  %v2380 = vand.u32 %v2263, 2147483648
  %v2381 = vor.u32 1.1754944e-38, %v2380
  %v2382 = vsel %vm2379, %v2381, %v2377
  %v2383 = vmul.f32 1.0, %v2382
  %v2385 = vperm.slane %v1624, 0
  %v2388 = vsel %vm761, %v2278, 0
  %v2391 = vsel %vm761, %v2293, 0
  %v2394 = vsel %vm761, %v2308, 0
  %v2397 = vsel %vm761, %v2323, 0
  %v2400 = vsel %vm761, %v2338, 0
  %v2403 = vsel %vm761, %v2353, 0
  %v2406 = vsel %vm761, %v2368, 0
  %v2409 = vsel %vm761, %v2383, 0
  %2411 = vmatpush.msra.mxu0 0.0
  %2412 = vmatpush.msra.mxu0 0.0
  %2413 = vmatpush.msra.mxu0 0.0
  %2414 = vmatpush.msra.mxu0 0.0
  %2415 = vmatpush.msra.mxu0 0.0
  %2416 = vmatpush.msra.mxu0 0.0
  %2417 = vmatpush.msra.mxu0 0.0
  %2418 = vmatpush.msra.mxu0 0.0
  %2419 = vmatpush.msra.mxu0 0.0
  %2420 = vmatpush.msra.mxu0 0.0
  %2421 = vmatpush.msra.mxu0 0.0
  %2422 = vmatpush.msra.mxu0 0.0
  %2423 = vmatpush.msra.mxu0 %v1623
  %2424 = vmatpush.msra.mxu0 %v1622
  %2425 = vmatpush.msra.mxu0 %v1621
  %2426 = vmatpush.msra.mxu0 %v1620
  %2427 = vmatmul.f32.gmra.mxu0 %v2388
  %v2428 = vpop.f32.mrf.mxu0
  %v2429 = vadd.f32 %v2385, %v2428
  %2430 = vmatmul.f32.gmra.mxu0 %v2391
  %v2431 = vpop.f32.mrf.mxu0
  %v2432 = vadd.f32 %v2385, %v2431
  %2433 = vmatmul.f32.gmra.mxu0 %v2394
  %v2434 = vpop.f32.mrf.mxu0
  %v2435 = vadd.f32 %v2385, %v2434
  %2436 = vmatmul.f32.gmra.mxu0 %v2397
  %v2437 = vpop.f32.mrf.mxu0
  %v2438 = vadd.f32 %v2385, %v2437
  %2439 = vmatmul.f32.gmra.mxu0 %v2400
  %v2440 = vpop.f32.mrf.mxu0
  %v2441 = vadd.f32 %v2385, %v2440
  %2442 = vmatmul.f32.gmra.mxu0 %v2403
  %v2443 = vpop.f32.mrf.mxu0
  %v2444 = vadd.f32 %v2385, %v2443
  %2445 = vmatmul.f32.gmra.mxu0 %v2406
  %v2446 = vpop.f32.mrf.mxu0
  %v2447 = vadd.f32 %v2385, %v2446
  %2448 = vmatmul.f32.gmra.mxu0 %v2409
  %v2449 = vpop.f32.mrf.mxu0
  %v2450 = vadd.f32 %v2385, %v2449
  %2451 = vdwg.mxu0
  %v2452 = vxor.u32 %v2429, 2147483648
  %v2453 = vxor.u32 %v2432, 2147483648
  %v2454 = vxor.u32 %v2435, 2147483648
  %v2455 = vxor.u32 %v2438, 2147483648
  %v2456 = vxor.u32 %v2441, 2147483648
  %v2457 = vxor.u32 %v2444, 2147483648
  %v2458 = vxor.u32 %v2447, 2147483648
  %v2459 = vxor.u32 %v2450, 2147483648
  %v2460 = vmul.f32 %v2452, 1.442695
  %v2461 = vpow.pop %v2460
  %v2462 = vmul.f32 %v2453, 1.442695
  %v2463 = vpow.pop %v2462
  %v2464 = vmul.f32 %v2454, 1.442695
  %v2465 = vpow.pop %v2464
  %v2466 = vmul.f32 %v2455, 1.442695
  %v2467 = vpow.pop %v2466
  %v2468 = vmul.f32 %v2456, 1.442695
  %v2469 = vpow.pop %v2468
  %v2470 = vmul.f32 %v2457, 1.442695
  %v2471 = vpow.pop %v2470
  %v2472 = vmul.f32 %v2458, 1.442695
  %v2473 = vpow.pop %v2472
  %v2474 = vmul.f32 %v2459, 1.442695
  %v2475 = vpow.pop %v2474
  %v2476 = vadd.f32 %v2461, 1.0
  %v2477 = vadd.f32 %v2463, 1.0
  %v2478 = vadd.f32 %v2465, 1.0
  %v2479 = vadd.f32 %v2467, 1.0
  %v2480 = vadd.f32 %v2469, 1.0
  %v2481 = vadd.f32 %v2471, 1.0
  %v2482 = vadd.f32 %v2473, 1.0
  %v2483 = vadd.f32 %v2475, 1.0
  %v2484 = vrcp.pop %v2476
  %v2485 = vmul.f32 %v2476, %v2484
  %v2486 = vsub.f32 1.0, %v2485
  %v2487 = vmul.f32 %v2484, %v2486
  %v2488 = vadd.f32 %v2484, %v2487
  %vm2489 = vweird.f32 %v2476
  %vm2490 = vweird.f32 %v2484
  %vm2491 = vmor %vm2489, %vm2490
  %v2492 = vsel %vm2491, %v2484, %v2488
  %v2493 = vand.u32 2147483647, %v2476
  %vm2494 = vcmp.eq.f32.partialorder %v2493, 8.507059e+37
  %v2495 = vand.u32 %v2476, 2147483648
  %v2496 = vor.u32 1.1754944e-38, %v2495
  %v2497 = vsel %vm2494, %v2496, %v2492
  %v2498 = vmul.f32 1.0, %v2497
  %v2499 = vrcp.pop %v2477
  %v2500 = vmul.f32 %v2477, %v2499
  %v2501 = vsub.f32 1.0, %v2500
  %v2502 = vmul.f32 %v2499, %v2501
  %v2503 = vadd.f32 %v2499, %v2502
  %vm2504 = vweird.f32 %v2477
  %vm2505 = vweird.f32 %v2499
  %vm2506 = vmor %vm2504, %vm2505
  %v2507 = vsel %vm2506, %v2499, %v2503
  %v2508 = vand.u32 2147483647, %v2477
  %vm2509 = vcmp.eq.f32.partialorder %v2508, 8.507059e+37
  %v2510 = vand.u32 %v2477, 2147483648
  %v2511 = vor.u32 1.1754944e-38, %v2510
  %v2512 = vsel %vm2509, %v2511, %v2507
  %v2513 = vmul.f32 1.0, %v2512
  %v2514 = vrcp.pop %v2478
  %v2515 = vmul.f32 %v2478, %v2514
  %v2516 = vsub.f32 1.0, %v2515
  %v2517 = vmul.f32 %v2514, %v2516
  %v2518 = vadd.f32 %v2514, %v2517
  %vm2519 = vweird.f32 %v2478
  %vm2520 = vweird.f32 %v2514
  %vm2521 = vmor %vm2519, %vm2520
  %v2522 = vsel %vm2521, %v2514, %v2518
  %v2523 = vand.u32 2147483647, %v2478
  %vm2524 = vcmp.eq.f32.partialorder %v2523, 8.507059e+37
  %v2525 = vand.u32 %v2478, 2147483648
  %v2526 = vor.u32 1.1754944e-38, %v2525
  %v2527 = vsel %vm2524, %v2526, %v2522
  %v2528 = vmul.f32 1.0, %v2527
  %v2529 = vrcp.pop %v2479
  %v2530 = vmul.f32 %v2479, %v2529
  %v2531 = vsub.f32 1.0, %v2530
  %v2532 = vmul.f32 %v2529, %v2531
  %v2533 = vadd.f32 %v2529, %v2532
  %vm2534 = vweird.f32 %v2479
  %vm2535 = vweird.f32 %v2529
  %vm2536 = vmor %vm2534, %vm2535
  %v2537 = vsel %vm2536, %v2529, %v2533
  %v2538 = vand.u32 2147483647, %v2479
  %vm2539 = vcmp.eq.f32.partialorder %v2538, 8.507059e+37
  %v2540 = vand.u32 %v2479, 2147483648
  %v2541 = vor.u32 1.1754944e-38, %v2540
  %v2542 = vsel %vm2539, %v2541, %v2537
  %v2543 = vmul.f32 1.0, %v2542
  %v2544 = vrcp.pop %v2480
  %v2545 = vmul.f32 %v2480, %v2544
  %v2546 = vsub.f32 1.0, %v2545
  %v2547 = vmul.f32 %v2544, %v2546
  %v2548 = vadd.f32 %v2544, %v2547
  %vm2549 = vweird.f32 %v2480
  %vm2550 = vweird.f32 %v2544
  %vm2551 = vmor %vm2549, %vm2550
  %v2552 = vsel %vm2551, %v2544, %v2548
  %v2553 = vand.u32 2147483647, %v2480
  %vm2554 = vcmp.eq.f32.partialorder %v2553, 8.507059e+37
  %v2555 = vand.u32 %v2480, 2147483648
  %v2556 = vor.u32 1.1754944e-38, %v2555
  %v2557 = vsel %vm2554, %v2556, %v2552
  %v2558 = vmul.f32 1.0, %v2557
  %v2559 = vrcp.pop %v2481
  %v2560 = vmul.f32 %v2481, %v2559
  %v2561 = vsub.f32 1.0, %v2560
  %v2562 = vmul.f32 %v2559, %v2561
  %v2563 = vadd.f32 %v2559, %v2562
  %vm2564 = vweird.f32 %v2481
  %vm2565 = vweird.f32 %v2559
  %vm2566 = vmor %vm2564, %vm2565
  %v2567 = vsel %vm2566, %v2559, %v2563
  %v2568 = vand.u32 2147483647, %v2481
  %vm2569 = vcmp.eq.f32.partialorder %v2568, 8.507059e+37
  %v2570 = vand.u32 %v2481, 2147483648
  %v2571 = vor.u32 1.1754944e-38, %v2570
  %v2572 = vsel %vm2569, %v2571, %v2567
  %v2573 = vmul.f32 1.0, %v2572
  %v2574 = vrcp.pop %v2482
  %v2575 = vmul.f32 %v2482, %v2574
  %v2576 = vsub.f32 1.0, %v2575
  %v2577 = vmul.f32 %v2574, %v2576
  %v2578 = vadd.f32 %v2574, %v2577
  %vm2579 = vweird.f32 %v2482
  %vm2580 = vweird.f32 %v2574
  %vm2581 = vmor %vm2579, %vm2580
  %v2582 = vsel %vm2581, %v2574, %v2578
  %v2583 = vand.u32 2147483647, %v2482
  %vm2584 = vcmp.eq.f32.partialorder %v2583, 8.507059e+37
  %v2585 = vand.u32 %v2482, 2147483648
  %v2586 = vor.u32 1.1754944e-38, %v2585
  %v2587 = vsel %vm2584, %v2586, %v2582
  %v2588 = vmul.f32 1.0, %v2587
  %v2589 = vrcp.pop %v2483
  %v2590 = vmul.f32 %v2483, %v2589
  %v2591 = vsub.f32 1.0, %v2590
  %v2592 = vmul.f32 %v2589, %v2591
  %v2593 = vadd.f32 %v2589, %v2592
  %vm2594 = vweird.f32 %v2483
  %vm2595 = vweird.f32 %v2589
  %vm2596 = vmor %vm2594, %vm2595
  %v2597 = vsel %vm2596, %v2589, %v2593
  %v2598 = vand.u32 2147483647, %v2483
  %vm2599 = vcmp.eq.f32.partialorder %v2598, 8.507059e+37
  %v2600 = vand.u32 %v2483, 2147483648
  %v2601 = vor.u32 1.1754944e-38, %v2600
  %v2602 = vsel %vm2599, %v2601, %v2597
  %v2603 = vmul.f32 1.0, %v2602
  %v2604 = vmul.f32 %v2161, %v2498
  %v2605 = vmul.f32 %v2164, %v2513
  %v2606 = vmul.f32 %v2167, %v2528
  %v2607 = vmul.f32 %v2170, %v2543
  %v2608 = vmul.f32 %v2173, %v2558
  %v2609 = vmul.f32 %v2176, %v2573
  %v2610 = vmul.f32 %v2179, %v2588
  %v2611 = vmul.f32 %v2182, %v2603
  %v2612 = vmul.f32 %v2185, %v2498
  %v2613 = vmul.f32 %v2188, %v2513
  %v2614 = vmul.f32 %v2191, %v2528
  %v2615 = vmul.f32 %v2194, %v2543
  %v2616 = vmul.f32 %v2197, %v2558
  %v2617 = vmul.f32 %v2200, %v2573
  %v2618 = vmul.f32 %v2203, %v2588
  %v2619 = vmul.f32 %v2206, %v2603
  %v2620 = vmul.f32 %v2209, %v2498
  %v2621 = vmul.f32 %v2212, %v2513
  %v2622 = vmul.f32 %v2215, %v2528
  %v2623 = vmul.f32 %v2218, %v2543
  %v2624 = vmul.f32 %v2221, %v2558
  %v2625 = vmul.f32 %v2224, %v2573
  %v2626 = vmul.f32 %v2227, %v2588
  %v2627 = vmul.f32 %v2230, %v2603
  %v2628 = vmax.f32 %v2063, 0.0
  %v2629 = vmax.f32 %v2064, 0.0
  %v2630 = vmax.f32 %v2065, 0.0
  %v2631 = vmax.f32 %v2066, 0.0
  %v2632 = vmax.f32 %v2067, 0.0
  %v2633 = vmax.f32 %v2068, 0.0
  %v2634 = vmax.f32 %v2069, 0.0
  %v2635 = vmax.f32 %v2070, 0.0
  %v2636 = vld [vmem:[%s49] sm:$0xff]
  %v2637 = vld [vmem:[%s51] sm:$0xff]
  %v2638 = vld [vmem:[%s51 + $0x8] sm:$0xff]
  %v2639 = vld [vmem:[%s51 + $0x10] sm:$0xff]
  %v2640 = vld [vmem:[%s51 + $0x18] sm:$0xff]
  %v2641 = vld [vmem:[%s53] sm:$0xff]
  %v2642 = vld [vmem:[%s55] sm:$0x1]
  %v2643 = vld [vmem:[%s57] sm:$0xff]
  %v2645 = vsel %vm373, %v2604, 0
  %v2648 = vsel %vm373, %v2605, 0
  %v2651 = vsel %vm373, %v2606, 0
  %v2654 = vsel %vm373, %v2607, 0
  %v2657 = vsel %vm373, %v2608, 0
  %v2660 = vsel %vm373, %v2609, 0
  %v2663 = vsel %vm373, %v2610, 0
  %v2666 = vsel %vm373, %v2611, 0
  %v2669 = vsel %vm373, %v2612, 0
  %v2672 = vsel %vm373, %v2613, 0
  %v2675 = vsel %vm373, %v2614, 0
  %v2678 = vsel %vm373, %v2615, 0
  %v2681 = vsel %vm373, %v2616, 0
  %v2684 = vsel %vm373, %v2617, 0
  %v2687 = vsel %vm373, %v2618, 0
  %v2690 = vsel %vm373, %v2619, 0
  %v2693 = vsel %vm373, %v2620, 0
  %v2696 = vsel %vm373, %v2621, 0
  %v2699 = vsel %vm373, %v2622, 0
  %v2702 = vsel %vm373, %v2623, 0
  %v2705 = vsel %vm373, %v2624, 0
  %v2708 = vsel %vm373, %v2625, 0
  %v2711 = vsel %vm373, %v2626, 0
  %v2714 = vsel %vm373, %v2627, 0
  %2716 = vmatpush.msra.mxu0 0.0
  %2717 = vmatpush.msra.mxu0 0.0
  %2718 = vmatpush.msra.mxu0 0.0
  %2719 = vmatpush.msra.mxu0 0.0
  %2720 = vmatpush.msra.mxu0 0.0
  %2721 = vmatpush.msra.mxu0 0.0
  %2722 = vmatpush.msra.mxu0 0.0
  %2723 = vmatpush.msra.mxu0 0.0
  %2724 = vmatpush.msra.mxu0 0.0
  %2725 = vmatpush.msra.mxu0 0.0
  %2726 = vmatpush.msra.mxu0 0.0
  %2727 = vmatpush.msra.mxu0 0.0
  %2728 = vmatpush.msra.mxu0 0.0
  %2729 = vmatpush.msra.mxu0 0.0
  %2730 = vmatpush.msra.mxu0 0.0
  %2731 = vmatpush.msra.mxu0 %v2636
  %2732 = vmatmul.f32.gmra.mxu0 %v2645
  %v2733 = vpop.f32.mrf.mxu0
  %v2734 = vadd.f32 0.0, %v2733
  %2735 = vmatmul.f32.gmra.mxu0 %v2648
  %v2736 = vpop.f32.mrf.mxu0
  %v2737 = vadd.f32 0.0, %v2736
  %2738 = vmatmul.f32.gmra.mxu0 %v2651
  %v2739 = vpop.f32.mrf.mxu0
  %v2740 = vadd.f32 0.0, %v2739
  %2741 = vmatmul.f32.gmra.mxu0 %v2654
  %v2742 = vpop.f32.mrf.mxu0
  %v2743 = vadd.f32 0.0, %v2742
  %2744 = vmatmul.f32.gmra.mxu0 %v2657
  %v2745 = vpop.f32.mrf.mxu0
  %v2746 = vadd.f32 0.0, %v2745
  %2747 = vmatmul.f32.gmra.mxu0 %v2660
  %v2748 = vpop.f32.mrf.mxu0
  %v2749 = vadd.f32 0.0, %v2748
  %2750 = vmatmul.f32.gmra.mxu0 %v2663
  %v2751 = vpop.f32.mrf.mxu0
  %v2752 = vadd.f32 0.0, %v2751
  %2753 = vmatmul.f32.gmra.mxu0 %v2666
  %v2754 = vpop.f32.mrf.mxu0
  %v2755 = vadd.f32 0.0, %v2754
  %2756 = vmatmul.f32.gmra.mxu0 %v2669
  %v2757 = vpop.f32.mrf.mxu0
  %v2758 = vadd.f32 0.0, %v2757
  %2759 = vmatmul.f32.gmra.mxu0 %v2672
  %v2760 = vpop.f32.mrf.mxu0
  %v2761 = vadd.f32 0.0, %v2760
  %2762 = vmatmul.f32.gmra.mxu0 %v2675
  %v2763 = vpop.f32.mrf.mxu0
  %v2764 = vadd.f32 0.0, %v2763
  %2765 = vmatmul.f32.gmra.mxu0 %v2678
  %v2766 = vpop.f32.mrf.mxu0
  %v2767 = vadd.f32 0.0, %v2766
  %2768 = vmatmul.f32.gmra.mxu0 %v2681
  %v2769 = vpop.f32.mrf.mxu0
  %v2770 = vadd.f32 0.0, %v2769
  %2771 = vmatmul.f32.gmra.mxu0 %v2684
  %v2772 = vpop.f32.mrf.mxu0
  %v2773 = vadd.f32 0.0, %v2772
  %2774 = vmatmul.f32.gmra.mxu0 %v2687
  %v2775 = vpop.f32.mrf.mxu0
  %v2776 = vadd.f32 0.0, %v2775
  %2777 = vmatmul.f32.gmra.mxu0 %v2690
  %v2778 = vpop.f32.mrf.mxu0
  %v2779 = vadd.f32 0.0, %v2778
  %2780 = vmatmul.f32.gmra.mxu0 %v2693
  %v2781 = vpop.f32.mrf.mxu0
  %v2782 = vadd.f32 0.0, %v2781
  %2783 = vmatmul.f32.gmra.mxu0 %v2696
  %v2784 = vpop.f32.mrf.mxu0
  %v2785 = vadd.f32 0.0, %v2784
  %2786 = vmatmul.f32.gmra.mxu0 %v2699
  %v2787 = vpop.f32.mrf.mxu0
  %v2788 = vadd.f32 0.0, %v2787
  %2789 = vmatmul.f32.gmra.mxu0 %v2702
  %v2790 = vpop.f32.mrf.mxu0
  %v2791 = vadd.f32 0.0, %v2790
  %2792 = vmatmul.f32.gmra.mxu0 %v2705
  %v2793 = vpop.f32.mrf.mxu0
  %v2794 = vadd.f32 0.0, %v2793
  %2795 = vmatmul.f32.gmra.mxu0 %v2708
  %v2796 = vpop.f32.mrf.mxu0
  %v2797 = vadd.f32 0.0, %v2796
  %2798 = vmatmul.f32.gmra.mxu0 %v2711
  %v2799 = vpop.f32.mrf.mxu0
  %v2800 = vadd.f32 0.0, %v2799
  %2801 = vmatmul.f32.gmra.mxu0 %v2714
  %v2802 = vpop.f32.mrf.mxu0
  %v2803 = vadd.f32 0.0, %v2802
  %2804 = vdwg.mxu0
  %v2805 = vmul.f32 %v2734, %v2734
  %v2806 = vmul.f32 %v2737, %v2737
  %v2807 = vmul.f32 %v2740, %v2740
  %v2808 = vmul.f32 %v2743, %v2743
  %v2809 = vmul.f32 %v2746, %v2746
  %v2810 = vmul.f32 %v2749, %v2749
  %v2811 = vmul.f32 %v2752, %v2752
  %v2812 = vmul.f32 %v2755, %v2755
  %v2813 = vmul.f32 %v2758, %v2758
  %v2814 = vmul.f32 %v2761, %v2761
  %v2815 = vmul.f32 %v2764, %v2764
  %v2816 = vmul.f32 %v2767, %v2767
  %v2817 = vmul.f32 %v2770, %v2770
  %v2818 = vmul.f32 %v2773, %v2773
  %v2819 = vmul.f32 %v2776, %v2776
  %v2820 = vmul.f32 %v2779, %v2779
  %v2821 = vadd.f32 %v2805, %v2813
  %v2822 = vadd.f32 %v2806, %v2814
  %v2823 = vadd.f32 %v2807, %v2815
  %v2824 = vadd.f32 %v2808, %v2816
  %v2825 = vadd.f32 %v2809, %v2817
  %v2826 = vadd.f32 %v2810, %v2818
  %v2827 = vadd.f32 %v2811, %v2819
  %v2828 = vadd.f32 %v2812, %v2820
  %v2829 = vmul.f32 %v2782, %v2782
  %v2830 = vmul.f32 %v2785, %v2785
  %v2831 = vmul.f32 %v2788, %v2788
  %v2832 = vmul.f32 %v2791, %v2791
  %v2833 = vmul.f32 %v2794, %v2794
  %v2834 = vmul.f32 %v2797, %v2797
  %v2835 = vmul.f32 %v2800, %v2800
  %v2836 = vmul.f32 %v2803, %v2803
  %v2837 = vadd.f32 %v2821, %v2829
  %v2838 = vadd.f32 %v2822, %v2830
  %v2839 = vadd.f32 %v2823, %v2831
  %v2840 = vadd.f32 %v2824, %v2832
  %v2841 = vadd.f32 %v2825, %v2833
  %v2842 = vadd.f32 %v2826, %v2834
  %v2843 = vadd.f32 %v2827, %v2835
  %v2844 = vadd.f32 %v2828, %v2836
  %v2845 = vmax.f32 %v2837, 1e-08
  %v2846 = vmax.f32 %v2838, 1e-08
  %v2847 = vmax.f32 %v2839, 1e-08
  %v2848 = vmax.f32 %v2840, 1e-08
  %v2849 = vmax.f32 %v2841, 1e-08
  %v2850 = vmax.f32 %v2842, 1e-08
  %v2851 = vmax.f32 %v2843, 1e-08
  %v2852 = vmax.f32 %v2844, 1e-08
  %v2853 = vrsqrt.pop %v2845
  %v2854 = vmul.f32 %v2853, %v2845
  %v2855 = vmul.f32 %v2854, %v2853
  %v2856 = vmul.f32 0.5, %v2855
  %v2857 = vsub.f32 1.5, %v2856
  %v2858 = vmul.f32 %v2853, %v2857
  %v2859 = vmul.f32 %v2845, %v2858
  %vm2860 = vcmp.eq.f32.partialorder %v2845, inf
  %v2861 = vsel %vm2860, %v2845, %v2859
  %vm2862 = vcmp.eq.f32.partialorder %v2845, 0.0
  %v2863 = vand.u32 %v2845, 2147483648
  %v2864 = vsel %vm2862, %v2863, %v2861
  %v2865 = vrsqrt.pop %v2846
  %v2866 = vmul.f32 %v2865, %v2846
  %v2867 = vmul.f32 %v2866, %v2865
  %v2868 = vmul.f32 0.5, %v2867
  %v2869 = vsub.f32 1.5, %v2868
  %v2870 = vmul.f32 %v2865, %v2869
  %v2871 = vmul.f32 %v2846, %v2870
  %vm2872 = vcmp.eq.f32.partialorder %v2846, inf
  %v2873 = vsel %vm2872, %v2846, %v2871
  %vm2874 = vcmp.eq.f32.partialorder %v2846, 0.0
  %v2875 = vand.u32 %v2846, 2147483648
  %v2876 = vsel %vm2874, %v2875, %v2873
  %v2877 = vrsqrt.pop %v2847
  %v2878 = vmul.f32 %v2877, %v2847
  %v2879 = vmul.f32 %v2878, %v2877
  %v2880 = vmul.f32 0.5, %v2879
  %v2881 = vsub.f32 1.5, %v2880
  %v2882 = vmul.f32 %v2877, %v2881
  %v2883 = vmul.f32 %v2847, %v2882
  %vm2884 = vcmp.eq.f32.partialorder %v2847, inf
  %v2885 = vsel %vm2884, %v2847, %v2883
  %vm2886 = vcmp.eq.f32.partialorder %v2847, 0.0
  %v2887 = vand.u32 %v2847, 2147483648
  %v2888 = vsel %vm2886, %v2887, %v2885
  %v2889 = vrsqrt.pop %v2848
  %v2890 = vmul.f32 %v2889, %v2848
  %v2891 = vmul.f32 %v2890, %v2889
  %v2892 = vmul.f32 0.5, %v2891
  %v2893 = vsub.f32 1.5, %v2892
  %v2894 = vmul.f32 %v2889, %v2893
  %v2895 = vmul.f32 %v2848, %v2894
  %vm2896 = vcmp.eq.f32.partialorder %v2848, inf
  %v2897 = vsel %vm2896, %v2848, %v2895
  %vm2898 = vcmp.eq.f32.partialorder %v2848, 0.0
  %v2899 = vand.u32 %v2848, 2147483648
  %v2900 = vsel %vm2898, %v2899, %v2897
  %v2901 = vrsqrt.pop %v2849
  %v2902 = vmul.f32 %v2901, %v2849
  %v2903 = vmul.f32 %v2902, %v2901
  %v2904 = vmul.f32 0.5, %v2903
  %v2905 = vsub.f32 1.5, %v2904
  %v2906 = vmul.f32 %v2901, %v2905
  %v2907 = vmul.f32 %v2849, %v2906
  %vm2908 = vcmp.eq.f32.partialorder %v2849, inf
  %v2909 = vsel %vm2908, %v2849, %v2907
  %vm2910 = vcmp.eq.f32.partialorder %v2849, 0.0
  %v2911 = vand.u32 %v2849, 2147483648
  %v2912 = vsel %vm2910, %v2911, %v2909
  %v2913 = vrsqrt.pop %v2850
  %v2914 = vmul.f32 %v2913, %v2850
  %v2915 = vmul.f32 %v2914, %v2913
  %v2916 = vmul.f32 0.5, %v2915
  %v2917 = vsub.f32 1.5, %v2916
  %v2918 = vmul.f32 %v2913, %v2917
  %v2919 = vmul.f32 %v2850, %v2918
  %vm2920 = vcmp.eq.f32.partialorder %v2850, inf
  %v2921 = vsel %vm2920, %v2850, %v2919
  %vm2922 = vcmp.eq.f32.partialorder %v2850, 0.0
  %v2923 = vand.u32 %v2850, 2147483648
  %v2924 = vsel %vm2922, %v2923, %v2921
  %v2925 = vrsqrt.pop %v2851
  %v2926 = vmul.f32 %v2925, %v2851
  %v2927 = vmul.f32 %v2926, %v2925
  %v2928 = vmul.f32 0.5, %v2927
  %v2929 = vsub.f32 1.5, %v2928
  %v2930 = vmul.f32 %v2925, %v2929
  %v2931 = vmul.f32 %v2851, %v2930
  %vm2932 = vcmp.eq.f32.partialorder %v2851, inf
  %v2933 = vsel %vm2932, %v2851, %v2931
  %vm2934 = vcmp.eq.f32.partialorder %v2851, 0.0
  %v2935 = vand.u32 %v2851, 2147483648
  %v2936 = vsel %vm2934, %v2935, %v2933
  %v2937 = vrsqrt.pop %v2852
  %v2938 = vmul.f32 %v2937, %v2852
  %v2939 = vmul.f32 %v2938, %v2937
  %v2940 = vmul.f32 0.5, %v2939
  %v2941 = vsub.f32 1.5, %v2940
  %v2942 = vmul.f32 %v2937, %v2941
  %v2943 = vmul.f32 %v2852, %v2942
  %vm2944 = vcmp.eq.f32.partialorder %v2852, inf
  %v2945 = vsel %vm2944, %v2852, %v2943
  %vm2946 = vcmp.eq.f32.partialorder %v2852, 0.0
  %v2947 = vand.u32 %v2852, 2147483648
  %v2948 = vsel %vm2946, %v2947, %v2945
  %v2950 = vsel %vm373, %v2864, 0
  %v2953 = vsel %vm373, %v2876, 0
  %v2956 = vsel %vm373, %v2888, 0
  %v2959 = vsel %vm373, %v2900, 0
  %v2962 = vsel %vm373, %v2912, 0
  %v2965 = vsel %vm373, %v2924, 0
  %v2968 = vsel %vm373, %v2936, 0
  %v2971 = vsel %vm373, %v2948, 0
  %2973 = vmatpush.msra.mxu0 0.0
  %2974 = vmatpush.msra.mxu0 0.0
  %2975 = vmatpush.msra.mxu0 0.0
  %2976 = vmatpush.msra.mxu0 0.0
  %2977 = vmatpush.msra.mxu0 0.0
  %2978 = vmatpush.msra.mxu0 0.0
  %2979 = vmatpush.msra.mxu0 0.0
  %2980 = vmatpush.msra.mxu0 0.0
  %2981 = vmatpush.msra.mxu0 0.0
  %2982 = vmatpush.msra.mxu0 0.0
  %2983 = vmatpush.msra.mxu0 0.0
  %2984 = vmatpush.msra.mxu0 0.0
  %2985 = vmatpush.msra.mxu0 0.0
  %2986 = vmatpush.msra.mxu0 0.0
  %2987 = vmatpush.msra.mxu0 0.0
  %2988 = vmatpush.msra.mxu0 %v2641
  %2989 = vmatmul.f32.gmra.mxu0 %v2950
  %v2990 = vpop.f32.mrf.mxu0
  %v2991 = vadd.f32 0.0, %v2990
  %2992 = vmatmul.f32.gmra.mxu0 %v2953
  %v2993 = vpop.f32.mrf.mxu0
  %v2994 = vadd.f32 0.0, %v2993
  %2995 = vmatmul.f32.gmra.mxu0 %v2956
  %v2996 = vpop.f32.mrf.mxu0
  %v2997 = vadd.f32 0.0, %v2996
  %2998 = vmatmul.f32.gmra.mxu0 %v2959
  %v2999 = vpop.f32.mrf.mxu0
  %v3000 = vadd.f32 0.0, %v2999
  %3001 = vmatmul.f32.gmra.mxu0 %v2962
  %v3002 = vpop.f32.mrf.mxu0
  %v3003 = vadd.f32 0.0, %v3002
  %3004 = vmatmul.f32.gmra.mxu0 %v2965
  %v3005 = vpop.f32.mrf.mxu0
  %v3006 = vadd.f32 0.0, %v3005
  %3007 = vmatmul.f32.gmra.mxu0 %v2968
  %v3008 = vpop.f32.mrf.mxu0
  %v3009 = vadd.f32 0.0, %v3008
  %3010 = vmatmul.f32.gmra.mxu0 %v2971
  %v3011 = vpop.f32.mrf.mxu0
  %v3012 = vadd.f32 0.0, %v3011
  %3013 = vdwg.mxu0
  %v3015 = vsel %vm761, %v2628, 0
  %v3018 = vsel %vm761, %v2629, 0
  %v3021 = vsel %vm761, %v2630, 0
  %v3024 = vsel %vm761, %v2631, 0
  %v3027 = vsel %vm761, %v2632, 0
  %v3030 = vsel %vm761, %v2633, 0
  %v3033 = vsel %vm761, %v2634, 0
  %v3036 = vsel %vm761, %v2635, 0
  %3038 = vmatpush.msra.mxu0 0.0
  %3039 = vmatpush.msra.mxu0 0.0
  %3040 = vmatpush.msra.mxu0 0.0
  %3041 = vmatpush.msra.mxu0 0.0
  %3042 = vmatpush.msra.mxu0 0.0
  %3043 = vmatpush.msra.mxu0 0.0
  %3044 = vmatpush.msra.mxu0 0.0
  %3045 = vmatpush.msra.mxu0 0.0
  %3046 = vmatpush.msra.mxu0 0.0
  %3047 = vmatpush.msra.mxu0 0.0
  %3048 = vmatpush.msra.mxu0 0.0
  %3049 = vmatpush.msra.mxu0 0.0
  %3050 = vmatpush.msra.mxu0 %v2640
  %3051 = vmatpush.msra.mxu0 %v2639
  %3052 = vmatpush.msra.mxu0 %v2638
  %3053 = vmatpush.msra.mxu0 %v2637
  %3054 = vmatmul.f32.gmra.mxu0 %v3015
  %v3055 = vpop.f32.mrf.mxu0
  %v3056 = vadd.f32 %v2991, %v3055
  %3057 = vmatmul.f32.gmra.mxu0 %v3018
  %v3058 = vpop.f32.mrf.mxu0
  %v3059 = vadd.f32 %v2994, %v3058
  %3060 = vmatmul.f32.gmra.mxu0 %v3021
  %v3061 = vpop.f32.mrf.mxu0
  %v3062 = vadd.f32 %v2997, %v3061
  %3063 = vmatmul.f32.gmra.mxu0 %v3024
  %v3064 = vpop.f32.mrf.mxu0
  %v3065 = vadd.f32 %v3000, %v3064
  %3066 = vmatmul.f32.gmra.mxu0 %v3027
  %v3067 = vpop.f32.mrf.mxu0
  %v3068 = vadd.f32 %v3003, %v3067
  %3069 = vmatmul.f32.gmra.mxu0 %v3030
  %v3070 = vpop.f32.mrf.mxu0
  %v3071 = vadd.f32 %v3006, %v3070
  %3072 = vmatmul.f32.gmra.mxu0 %v3033
  %v3073 = vpop.f32.mrf.mxu0
  %v3074 = vadd.f32 %v3009, %v3073
  %3075 = vmatmul.f32.gmra.mxu0 %v3036
  %v3076 = vpop.f32.mrf.mxu0
  %v3077 = vadd.f32 %v3012, %v3076
  %3078 = vdwg.mxu0
  %v3080 = vperm.slane %v2642, 0
  %v3082 = vadd.f32 %v3056, %v3080
  %v3083 = vadd.f32 %v3059, %v3080
  %v3084 = vadd.f32 %v3062, %v3080
  %v3085 = vadd.f32 %v3065, %v3080
  %v3086 = vadd.f32 %v3068, %v3080
  %v3087 = vadd.f32 %v3071, %v3080
  %v3088 = vadd.f32 %v3074, %v3080
  %v3089 = vadd.f32 %v3077, %v3080
  %v3091 = vsel %vm373, %v2734, 0
  %v3094 = vsel %vm373, %v2737, 0
  %v3097 = vsel %vm373, %v2740, 0
  %v3100 = vsel %vm373, %v2743, 0
  %v3103 = vsel %vm373, %v2746, 0
  %v3106 = vsel %vm373, %v2749, 0
  %v3109 = vsel %vm373, %v2752, 0
  %v3112 = vsel %vm373, %v2755, 0
  %v3115 = vsel %vm373, %v2758, 0
  %v3118 = vsel %vm373, %v2761, 0
  %v3121 = vsel %vm373, %v2764, 0
  %v3124 = vsel %vm373, %v2767, 0
  %v3127 = vsel %vm373, %v2770, 0
  %v3130 = vsel %vm373, %v2773, 0
  %v3133 = vsel %vm373, %v2776, 0
  %v3136 = vsel %vm373, %v2779, 0
  %v3139 = vsel %vm373, %v2782, 0
  %v3142 = vsel %vm373, %v2785, 0
  %v3145 = vsel %vm373, %v2788, 0
  %v3148 = vsel %vm373, %v2791, 0
  %v3151 = vsel %vm373, %v2794, 0
  %v3154 = vsel %vm373, %v2797, 0
  %v3157 = vsel %vm373, %v2800, 0
  %v3160 = vsel %vm373, %v2803, 0
  %3162 = vmatpush.msra.mxu0 0.0
  %3163 = vmatpush.msra.mxu0 0.0
  %3164 = vmatpush.msra.mxu0 0.0
  %3165 = vmatpush.msra.mxu0 0.0
  %3166 = vmatpush.msra.mxu0 0.0
  %3167 = vmatpush.msra.mxu0 0.0
  %3168 = vmatpush.msra.mxu0 0.0
  %3169 = vmatpush.msra.mxu0 0.0
  %3170 = vmatpush.msra.mxu0 0.0
  %3171 = vmatpush.msra.mxu0 0.0
  %3172 = vmatpush.msra.mxu0 0.0
  %3173 = vmatpush.msra.mxu0 0.0
  %3174 = vmatpush.msra.mxu0 0.0
  %3175 = vmatpush.msra.mxu0 0.0
  %3176 = vmatpush.msra.mxu0 0.0
  %3177 = vmatpush.msra.mxu0 %v2643
  %3178 = vmatmul.f32.gmra.mxu0 %v3091
  %v3179 = vpop.f32.mrf.mxu0
  %v3180 = vadd.f32 0.0, %v3179
  %3181 = vmatmul.f32.gmra.mxu0 %v3094
  %v3182 = vpop.f32.mrf.mxu0
  %v3183 = vadd.f32 0.0, %v3182
  %3184 = vmatmul.f32.gmra.mxu0 %v3097
  %v3185 = vpop.f32.mrf.mxu0
  %v3186 = vadd.f32 0.0, %v3185
  %3187 = vmatmul.f32.gmra.mxu0 %v3100
  %v3188 = vpop.f32.mrf.mxu0
  %v3189 = vadd.f32 0.0, %v3188
  %3190 = vmatmul.f32.gmra.mxu0 %v3103
  %v3191 = vpop.f32.mrf.mxu0
  %v3192 = vadd.f32 0.0, %v3191
  %3193 = vmatmul.f32.gmra.mxu0 %v3106
  %v3194 = vpop.f32.mrf.mxu0
  %v3195 = vadd.f32 0.0, %v3194
  %3196 = vmatmul.f32.gmra.mxu0 %v3109
  %v3197 = vpop.f32.mrf.mxu0
  %v3198 = vadd.f32 0.0, %v3197
  %3199 = vmatmul.f32.gmra.mxu0 %v3112
  %v3200 = vpop.f32.mrf.mxu0
  %v3201 = vadd.f32 0.0, %v3200
  %3202 = vmatmul.f32.gmra.mxu0 %v3115
  %v3203 = vpop.f32.mrf.mxu0
  %v3204 = vadd.f32 0.0, %v3203
  %3205 = vmatmul.f32.gmra.mxu0 %v3118
  %v3206 = vpop.f32.mrf.mxu0
  %v3207 = vadd.f32 0.0, %v3206
  %3208 = vmatmul.f32.gmra.mxu0 %v3121
  %v3209 = vpop.f32.mrf.mxu0
  %v3210 = vadd.f32 0.0, %v3209
  %3211 = vmatmul.f32.gmra.mxu0 %v3124
  %v3212 = vpop.f32.mrf.mxu0
  %v3213 = vadd.f32 0.0, %v3212
  %3214 = vmatmul.f32.gmra.mxu0 %v3127
  %v3215 = vpop.f32.mrf.mxu0
  %v3216 = vadd.f32 0.0, %v3215
  %3217 = vmatmul.f32.gmra.mxu0 %v3130
  %v3218 = vpop.f32.mrf.mxu0
  %v3219 = vadd.f32 0.0, %v3218
  %3220 = vmatmul.f32.gmra.mxu0 %v3133
  %v3221 = vpop.f32.mrf.mxu0
  %v3222 = vadd.f32 0.0, %v3221
  %3223 = vmatmul.f32.gmra.mxu0 %v3136
  %v3224 = vpop.f32.mrf.mxu0
  %v3225 = vadd.f32 0.0, %v3224
  %3226 = vmatmul.f32.gmra.mxu0 %v3139
  %v3227 = vpop.f32.mrf.mxu0
  %v3228 = vadd.f32 0.0, %v3227
  %3229 = vmatmul.f32.gmra.mxu0 %v3142
  %v3230 = vpop.f32.mrf.mxu0
  %v3231 = vadd.f32 0.0, %v3230
  %3232 = vmatmul.f32.gmra.mxu0 %v3145
  %v3233 = vpop.f32.mrf.mxu0
  %v3234 = vadd.f32 0.0, %v3233
  %3235 = vmatmul.f32.gmra.mxu0 %v3148
  %v3236 = vpop.f32.mrf.mxu0
  %v3237 = vadd.f32 0.0, %v3236
  %3238 = vmatmul.f32.gmra.mxu0 %v3151
  %v3239 = vpop.f32.mrf.mxu0
  %v3240 = vadd.f32 0.0, %v3239
  %3241 = vmatmul.f32.gmra.mxu0 %v3154
  %v3242 = vpop.f32.mrf.mxu0
  %v3243 = vadd.f32 0.0, %v3242
  %3244 = vmatmul.f32.gmra.mxu0 %v3157
  %v3245 = vpop.f32.mrf.mxu0
  %v3246 = vadd.f32 0.0, %v3245
  %3247 = vmatmul.f32.gmra.mxu0 %v3160
  %v3248 = vpop.f32.mrf.mxu0
  %v3249 = vadd.f32 0.0, %v3248
  %3250 = vdwg.mxu0
  %v3251 = vadd.f32 %v3082, %v3084
  %v3252 = vadd.f32 %v3083, %v3085
  %v3253 = vadd.f32 %v3180, %v3186
  %v3254 = vadd.f32 %v3183, %v3189
  %v3255 = vadd.f32 %v3204, %v3210
  %v3256 = vadd.f32 %v3207, %v3213
  %v3257 = vadd.f32 %v3228, %v3234
  %v3258 = vadd.f32 %v3231, %v3237
  %v3259 = vadd.f32 %v3251, %v3086
  %v3260 = vadd.f32 %v3252, %v3087
  %v3261 = vadd.f32 %v3253, %v3192
  %v3262 = vadd.f32 %v3254, %v3195
  %v3263 = vadd.f32 %v3255, %v3216
  %v3264 = vadd.f32 %v3256, %v3219
  %v3265 = vadd.f32 %v3257, %v3240
  %v3266 = vadd.f32 %v3258, %v3243
  %v3267 = vadd.f32 %v3259, %v3088
  %v3268 = vadd.f32 %v3260, %v3089
  %v3269 = vadd.f32 %v3261, %v3198
  %v3270 = vadd.f32 %v3262, %v3201
  %v3271 = vadd.f32 %v3263, %v3222
  %v3272 = vadd.f32 %v3264, %v3225
  %v3273 = vadd.f32 %v3265, %v3246
  %v3274 = vadd.f32 %v3266, %v3249
  %v3275 = vmul.f32 %v3267, 0.25
  %v3276 = vmul.f32 %v3268, 0.25
  %v3277 = vmul.f32 %v3269, 0.25
  %v3278 = vmul.f32 %v3270, 0.25
  %v3279 = vmul.f32 %v3271, 0.25
  %v3280 = vmul.f32 %v3272, 0.25
  %v3281 = vmul.f32 %v3273, 0.25
  %v3282 = vmul.f32 %v3274, 0.25
  %v3283 = vadd.f32 %v133, %v3275
  %v3284 = vadd.f32 %v134, %v3276
  %v3285 = vadd.f32 %v135, %v3277
  %v3286 = vadd.f32 %v136, %v3278
  %v3287 = vadd.f32 %v137, %v3279
  %v3288 = vadd.f32 %v138, %v3280
  %v3289 = vadd.f32 %v139, %v3281
  %v3290 = vadd.f32 %v140, %v3282
  %v3291 = vld [vmem:[%s59] sm:$0x1]
  %v3292 = vld [vmem:[%s61] sm:$0x1]
  %v3293 = vsel %vm761, %v3283, 0.0
  %3294 = vadd.xlane.f32.xlu0 %v3293
  %v3295 = vpop.xlane.xlu0 %3294
  %v3296 = vsel %vm761, %v3284, 0.0
  %3297 = vadd.xlane.f32.xlu0 %v3296
  %v3298 = vpop.xlane.xlu0 %3297
  %v3299 = vrcp.pop 32.0
  %v3300 = vmul.f32 32.0, %v3299
  %v3301 = vsub.f32 1.0, %v3300
  %v3302 = vmul.f32 %v3299, %v3301
  %v3303 = vadd.f32 %v3299, %v3302
  %vm3304 = vweird.f32 %v3299
  %v3305 = vsel %vm3304, %v3299, %v3303
  %v3306 = vmul.f32 %v3295, %v3305
  %v3307 = vmul.f32 %v3298, %v3305
  %v3308 = vsub.f32 %v3283, %v3306
  %v3309 = vsub.f32 %v3284, %v3307
  %v3310 = vmul.f32 %v3308, %v3308
  %v3311 = vmul.f32 %v3309, %v3309
  %v3312 = vsel %vm761, %v3310, 0.0
  %3313 = vadd.xlane.f32.xlu0 %v3312
  %v3314 = vpop.xlane.xlu0 %3313
  %v3315 = vsel %vm761, %v3311, 0.0
  %3316 = vadd.xlane.f32.xlu0 %v3315
  %v3317 = vpop.xlane.xlu0 %3316
  %v3318 = vmul.f32 %v3314, %v3305
  %v3319 = vmul.f32 %v3317, %v3305
  %v3320 = vadd.f32 %v3318, 1e-05
  %v3321 = vadd.f32 %v3319, 1e-05
  %v3322 = vrsqrt.pop %v3320
  %v3323 = vmul.f32 %v3322, %v3320
  %v3324 = vmul.f32 %v3323, %v3322
  %v3325 = vmul.f32 0.5, %v3324
  %v3326 = vsub.f32 1.5, %v3325
  %v3327 = vmul.f32 %v3322, %v3326
  %vm3328 = vweird.f32 %v3320
  %vm3329 = vweird.f32 %v3322
  %vm3330 = vmor %vm3328, %vm3329
  %v3331 = vsel %vm3330, %v3322, %v3327
  %v3332 = vrsqrt.pop %v3321
  %v3333 = vmul.f32 %v3332, %v3321
  %v3334 = vmul.f32 %v3333, %v3332
  %v3335 = vmul.f32 0.5, %v3334
  %v3336 = vsub.f32 1.5, %v3335
  %v3337 = vmul.f32 %v3332, %v3336
  %vm3338 = vweird.f32 %v3321
  %vm3339 = vweird.f32 %v3332
  %vm3340 = vmor %vm3338, %vm3339
  %v3341 = vsel %vm3340, %v3332, %v3337
  %v3342 = vmul.f32 %v3308, %v3331
  %v3343 = vmul.f32 %v3309, %v3341
  %v3345 = vperm.slane %v3291, 0
  %v3347 = vmul.f32 %v3342, %v3345
  %v3348 = vmul.f32 %v3343, %v3345
  %v3350 = vperm.slane %v3292, 0
  %v3352 = vadd.f32 %v3347, %v3350
  %v3353 = vadd.f32 %v3348, %v3350
  %v3354 = vmul.f32 %v3285, %v3285
  %v3355 = vmul.f32 %v3286, %v3286
  %v3356 = vmul.f32 %v3287, %v3287
  %v3357 = vmul.f32 %v3288, %v3288
  %v3358 = vadd.f32 %v3354, %v3356
  %v3359 = vadd.f32 %v3355, %v3357
  %v3360 = vmul.f32 %v3289, %v3289
  %v3361 = vmul.f32 %v3290, %v3290
  %v3362 = vadd.f32 %v3358, %v3360
  %v3363 = vadd.f32 %v3359, %v3361
  %vm3364 = vcmp.gt.f32.partialorder %v3362, 0.0002
  %vm3365 = vcmp.gt.f32.partialorder %v3363, 0.0002
  %v3366 = vsel %vm3364, 1, 0
  %v3367 = vsel %vm3365, 1, 0
  %v3368 = vcvt.s32.f32 %v3366
  %v3369 = vcvt.s32.f32 %v3367
  %v3370 = vmul.f32 %v3362, %v3368
  %v3371 = vmul.f32 %v3363, %v3369
  %v3372 = vsel %vm373, %v3370, 0.0
  %3373 = vadd.xlane.f32.xlu0 %v3372
  %v3374 = vpop.xlane.xlu0 %3373
  %v3375 = vsel %vm373, %v3371, 0.0
  %3376 = vadd.xlane.f32.xlu0 %v3375
  %v3377 = vpop.xlane.xlu0 %3376
  %v3378 = vsel %vm373, %v3368, 0.0
  %3379 = vadd.xlane.f32.xlu0 %v3378
  %v3380 = vpop.xlane.xlu0 %3379
  %v3381 = vsel %vm373, %v3369, 0.0
  %3382 = vadd.xlane.f32.xlu0 %v3381
  %v3383 = vpop.xlane.xlu0 %3382
  %v3384 = vadd.f32 %v3380, 0.0001
  %v3385 = vadd.f32 %v3383, 0.0001
  %v3386 = vrcp.pop %v3384
  %v3387 = vmul.f32 %v3384, %v3386
  %v3388 = vsub.f32 1.0, %v3387
  %v3389 = vmul.f32 %v3386, %v3388
  %v3390 = vadd.f32 %v3386, %v3389
  %vm3391 = vweird.f32 %v3384
  %vm3392 = vweird.f32 %v3386
  %vm3393 = vmor %vm3391, %vm3392
  %v3394 = vsel %vm3393, %v3386, %v3390
  %v3395 = vand.u32 2147483647, %v3384
  %vm3396 = vcmp.eq.f32.partialorder %v3395, 8.507059e+37
  %v3397 = vand.u32 %v3384, 2147483648
  %v3398 = vor.u32 1.1754944e-38, %v3397
  %v3399 = vsel %vm3396, %v3398, %v3394
  %v3400 = vmul.f32 %v3374, %v3399
  %v3401 = vrcp.pop %v3385
  %v3402 = vmul.f32 %v3385, %v3401
  %v3403 = vsub.f32 1.0, %v3402
  %v3404 = vmul.f32 %v3401, %v3403
  %v3405 = vadd.f32 %v3401, %v3404
  %vm3406 = vweird.f32 %v3385
  %vm3407 = vweird.f32 %v3401
  %vm3408 = vmor %vm3406, %vm3407
  %v3409 = vsel %vm3408, %v3401, %v3405
  %v3410 = vand.u32 2147483647, %v3385
  %vm3411 = vcmp.eq.f32.partialorder %v3410, 8.507059e+37
  %v3412 = vand.u32 %v3385, 2147483648
  %v3413 = vor.u32 1.1754944e-38, %v3412
  %v3414 = vsel %vm3411, %v3413, %v3409
  %v3415 = vmul.f32 %v3377, %v3414
  %v3416 = vadd.f32 %v3400, 0.0001
  %v3417 = vadd.f32 %v3415, 0.0001
  %v3418 = vrsqrt.pop %v3416
  %v3419 = vmul.f32 %v3418, %v3416
  %v3420 = vmul.f32 %v3419, %v3418
  %v3421 = vmul.f32 0.5, %v3420
  %v3422 = vsub.f32 1.5, %v3421
  %v3423 = vmul.f32 %v3418, %v3422
  %vm3424 = vweird.f32 %v3416
  %vm3425 = vweird.f32 %v3418
  %vm3426 = vmor %vm3424, %vm3425
  %v3427 = vsel %vm3426, %v3418, %v3423
  %v3428 = vrsqrt.pop %v3417
  %v3429 = vmul.f32 %v3428, %v3417
  %v3430 = vmul.f32 %v3429, %v3428
  %v3431 = vmul.f32 0.5, %v3430
  %v3432 = vsub.f32 1.5, %v3431
  %v3433 = vmul.f32 %v3428, %v3432
  %vm3434 = vweird.f32 %v3417
  %vm3435 = vweird.f32 %v3428
  %vm3436 = vmor %vm3434, %vm3435
  %v3437 = vsel %vm3436, %v3428, %v3433
  %v3438 = vmul.f32 %v3368, %v3427
  %v3439 = vmul.f32 %v3369, %v3437
  %v3440 = vmul.f32 %v3285, %v3438
  %v3441 = vmul.f32 %v3286, %v3439
  %v3442 = vmul.f32 %v3287, %v3438
  %v3443 = vmul.f32 %v3288, %v3439
  %v3444 = vmul.f32 %v3289, %v3438
  %v3445 = vmul.f32 %v3290, %v3439
  %3446 = vst.msk [vmem:[%s63] sm:$0xff] %vm761, %v3352
  %3447 = vst.msk [vmem:[%s63 + $0x8] sm:$0xff] %vm761, %v3353
  %3448 = vst.msk [vmem:[%s65] sm:$0xff] %vm373, %v3440
  %3449 = vst.msk [vmem:[%s65 + $0x8] sm:$0xff] %vm373, %v3441
  %3450 = vst.msk [vmem:[%s65 + $0x10] sm:$0xff] %vm373, %v3442
  %3451 = vst.msk [vmem:[%s65 + $0x18] sm:$0xff] %vm373, %v3443
  %3452 = vst.msk [vmem:[%s65 + $0x20] sm:$0xff] %vm373, %v3444
  %3453 = vst.msk [vmem:[%s65 + $0x28] sm:$0xff] %vm373, %v3445
  // Predicated region
  $region126: #{gvp_encoder_forward.8} parent=0 // pred_check
    _
  $region127: #{gvp_encoder_forward.8} parent=0 // pred_check_branch
    %3455 = sbr.rel (0) target = $region129
  $region128: #{gvp_encoder_forward.8} parent=0 // pred_region
    _
  $region129: #{gvp_encoder_forward.8} parent=0 // pred_fallthru
    _
  // Predicated region
  $region130: #{gvp_encoder_forward.8} parent=0 // pred_check
    _
  $region131: #{gvp_encoder_forward.8} parent=0 // pred_check_branch
    %3457 = sbr.rel (0) target = $region133
  $region132: #{gvp_encoder_forward.8} parent=0 // pred_region
    _
  $region133: #{gvp_encoder_forward.8} parent=0 // pred_fallthru
    _
  // Predicated region
  $region134: #{gvp_encoder_forward.8} parent=0 // pred_check
    _
  $region135: #{gvp_encoder_forward.8} parent=0 // pred_check_branch
    %3459 = sbr.rel (0) target = $region137
  $region136: #{gvp_encoder_forward.8} parent=0 // pred_region
    _
  $region137: #{gvp_encoder_forward.8} parent=0 // pred_fallthru
    _
  // Predicated region
  $region138: #{gvp_encoder_forward.8} parent=0 // pred_check
    _
  $region139: #{gvp_encoder_forward.8} parent=0 // pred_check_branch
    %3461 = sbr.rel (0) target = $region141
  $region140: #{gvp_encoder_forward.8} parent=0 // pred_region
    _
  $region141: #{gvp_encoder_forward.8} parent=0 // pred_fallthru
    _

</llo_original>
